<compile_context>
chip_gen: v5e
topology: v5e:2x2
jax: 0.10.0
libtpu: 0.0.40
codegen_flags: <defaults>
</compile_context>

<pallas_src>
import numpy as np

import jax
import jax.numpy as jnp
from jax.experimental import pallas as pl
from jax.experimental.pallas import tpu as pltpu

EPS = 1e-5


# ----------------------------------------------------------------------------
# Small in-kernel helpers (pure jnp, traced inside the Pallas kernel).
# ----------------------------------------------------------------------------
def _mm(a, b):
    """bf16 x bf16 MXU matmul with f32 accumulation."""
    return jnp.dot(a.astype(jnp.bfloat16), b.astype(jnp.bfloat16),
                   preferred_element_type=jnp.float32)


def _instance_norm(x, count, valid=None, relu=False):
    """InstanceNorm2d(affine=False) over the row axis of x:(R, C) f32.

    `valid` ((R,1) bool) restricts the statistics to real spatial positions
    when x carries padded-width garbage rows; `count` = number of valid
    positions (H*W).  Biased variance, eps inside rsqrt (PyTorch defaults).
    """
    xs = jnp.where(valid, x, 0.0) if valid is not None else x
    mean = jnp.sum(xs, axis=0, keepdims=True) * (1.0 / count)
    xc = x - mean
    xc2 = jnp.where(valid, xc, 0.0) if valid is not None else xc
    var = jnp.sum(xc2 * xc2, axis=0, keepdims=True) * (1.0 / count)
    y = xc * jax.lax.rsqrt(var + EPS)
    if relu:
        y = jnp.maximum(y, 0.0)
    return y


def _reflect_pad1(x, h, w):
    """x: (h*w, C) row-major -> ((h+2)*(w+2), C); ReflectionPad2d(1)."""
    rows = []
    for r in range(h):
        b = x[r * w:(r + 1) * w, :]
        rows.append(jnp.concatenate([b[1:2, :], b, b[w - 2:w - 1, :]], axis=0))
    order = [1] + list(range(h)) + [h - 2]
    return jnp.concatenate([rows[r] for r in order], axis=0)


def _compact(x, h, w, wrow):
    """Drop padded-width garbage columns: rows f=oy*wrow+ox -> (h*w, C)."""
    if wrow == w:
        return x[:h * w, :]
    return jnp.concatenate([x[oy * wrow: oy * wrow + w, :] for oy in range(h)],
                           axis=0)


# ----------------------------------------------------------------------------
# Host-side constant builders (run once at trace time).
# ----------------------------------------------------------------------------
def _zero_pad_parity_selectors(h_in, w_in, wrow_in, r_in):
    """0/1 matrices that zero-pad an (h_in, w_in) map by 1 and split the padded
    image by column parity (space-to-depth for a stride-2 4x4 conv).

    Source rows are indexed f = y0*wrow_in + x0 (x0 < w_in valid), f < r_in.
    Result[p] has shape (Hp*Ws, r_in), Hp = h_in+2, Ws = (w_in+2)//2; row
    t = y*Ws + xs holds padded position (y, 2*xs+p) (zero rows = zero pad).
    """
    hp, wp = h_in + 2, w_in + 2
    assert wp % 2 == 0
    ws = wp // 2
    sel = np.zeros((2, hp * ws, r_in), np.float32)
    for p in range(2):
        for y in range(hp):
            for xs in range(ws):
                x = 2 * xs + p
                yy, xx = y - 1, x - 1
                if 0 <= yy < h_in and 0 <= xx < w_in:
                    sel[p, y * ws + xs, yy * wrow_in + xx] = 1.0
    return sel


def _conv0_patches(x_nhwc, k=7, pad=3):
    """ReflectionPad2d(3) + 7x7 im2col, done once on the network input."""
    n, h, w, c = x_nhwc.shape
    xp = jnp.pad(x_nhwc, ((0, 0), (pad, pad), (pad, pad), (0, 0)),
                 mode="reflect")
    cols = [xp[:, dy:dy + h, dx:dx + w, :]
            for dy in range(k) for dx in range(k)]
    patches = jnp.concatenate(cols, axis=-1)              # (n, h, w, k*k*c)
    return patches.reshape(n, h * w, k * k * c).astype(jnp.bfloat16)


def _const_index_map(nd):
    return lambda b: (0,) * nd


# ----------------------------------------------------------------------------
# Parameters
# ----------------------------------------------------------------------------
def init_params(key, in_channels=3, dim=8, n_residual=3, n_downsample=2):
    """Conv weights only.  Biases are omitted: every conv is immediately
    followed by InstanceNorm2d(affine=False), which subtracts the per-channel
    per-instance mean, so a conv bias is exactly cancelled (no-op)."""
    params = {}
    keys = jax.random.split(key, 1 + n_downsample + 2 * n_residual)
    ki = 0

    def w(key_, kh, kw_, cin, cout):
        return 0.05 * jax.random.normal(key_, (kh, kw_, cin, cout), jnp.float32)

    params["conv0_w"] = w(keys[ki], 7, 7, in_channels, dim); ki += 1
    d = dim
    for i in range(n_downsample):
        params[f"down{i}_w"] = w(keys[ki], 4, 4, d, 2 * d); ki += 1
        d *= 2
    for i in range(n_residual):
        params[f"res{i}_w1"] = w(keys[ki], 3, 3, d, d); ki += 1
        params[f"res{i}_w2"] = w(keys[ki], 3, 3, d, d); ki += 1
    params["_cfg"] = (in_channels, dim, n_residual, n_downsample)
    return params


# ----------------------------------------------------------------------------
# Forward pass: one fused pallas_call for the whole encoder.
# ----------------------------------------------------------------------------
def content_encoder_forward(x_nchw, params):
    in_channels, dim, n_res, n_down = params["_cfg"]
    n, c, h, w = x_nchw.shape
    assert c == in_channels
    assert h % (2 ** n_down) == 0 and w % (2 ** n_down) == 0
    # TODO(synk): > ~32x32 inputs need the tiled / streaming-IN variant.
    assert h * w <= 1024, "fully-fused kernel is sized for small feature maps"

    x_nhwc = jnp.transpose(x_nchw, (0, 2, 3, 1)).astype(jnp.float32)
    patches0 = _conv0_patches(x_nhwc)                 # (n, h*w, 49*cin) bf16

    # ---------------- static layer metadata + constant operands -------------
    w0 = params["conv0_w"].reshape(49 * in_channels, dim).astype(jnp.bfloat16)

    down_meta, down_w, sels = [], [], []
    hc, wc, cc = h, w, dim          # current valid feature-map size
    wrow, r_rows = wc, hc * wc      # layout of the current activation value
    for i in range(n_down):
        sel = _zero_pad_parity_selectors(hc, wc, wrow, r_rows)
        sels.append(jnp.asarray(sel, jnp.bfloat16))
        ws_ = (wc + 2) // 2
        ho, wo, cout = hc // 2, wc // 2, 2 * cc
        new_wrow = wc + 2
        new_r = (ho - 1) * new_wrow + wo
        down_meta.append(dict(ws=ws_, ho=ho, wo=wo, wrow=new_wrow, r=new_r,
                              cin=cc, cout=cout, pn=sel.shape[1],
                              fin=sel.shape[2]))
        down_w.append(
            params[f"down{i}_w"].reshape(16, cc, cout).astype(jnp.bfloat16))
        hc, wc, cc, wrow, r_rows = ho, wo, cout, new_wrow, new_r

    hr, wr, cr = hc, wc, cc
    if n_res:
        assert hr >= 2 and wr >= 2          # ReflectionPad2d(1) needs >= 2
        wres = jnp.stack(
            [params[f"res{i}_w{j}"].reshape(9, cr, cr)
             for i in range(n_res) for j in (1, 2)],
            axis=0).astype(jnp.bfloat16)    # (2*n_res, 9, cr, cr)
    else:
        wres = jnp.zeros((1, 9, cr, cr), jnp.bfloat16)

    last_wrow = wrow

    # ---------------------------- the fused kernel ---------------------------
    def kernel(*refs):
        p0_ref, w0_ref = refs[0], refs[1]
        wd_refs = refs[2:2 + n_down]
        wres_ref = refs[2 + n_down]
        sel_refs = refs[3 + n_down:3 + 2 * n_down]
        o_ref = refs[3 + 2 * n_down]

        # -- Stem: ReflectionPad2d(3)+Conv7x7 (pre-packed, contraction=147)
        #    + InstanceNorm + ReLU.  Output rows are compact (no waste).
        a = _instance_norm(_mm(p0_ref[0], w0_ref[...]), float(h * w),
                           relu=True)

        # -- Downsampling: Conv4x4 stride 2 pad 1 + InstanceNorm + ReLU.
        for i, m in enumerate(down_meta):
            # zero-pad + column-parity split via constant selection matmuls
            xpar = [_mm(sel_refs[i][p], a) for p in range(2)]
            acc = jnp.zeros((m["r"], m["cout"]), jnp.float32)
            for dy in range(4):
                for dx in range(4):
                    src = xpar[dx % 2]
                    off = dy * m["ws"] + dx // 2
                    acc = acc + _mm(src[off:off + m["r"], :],
                                    wd_refs[i][dy * 4 + dx])
            ridx = jax.lax.broadcasted_iota(jnp.int32, (m["r"], 1), 0)
            a = _instance_norm(acc, float(m["ho"] * m["wo"]),
                               valid=(ridx % m["wrow"]) < m["wo"], relu=True)

        # -- Compact to (hr*wr, cr) row-major (drop padded-width columns).
        x = _compact(a, hr, wr, last_wrow)

        # -- Residual blocks: x + IN(conv(ReLU(IN(conv(reflpad(x)))))).
        wp = wr + 2
        rres = (hr - 1) * wp + wr
        for blk in range(n_res):
            hcur = x
            for j in range(2):
                pv = _reflect_pad1(hcur, hr, wr)       # ((hr+2)*wp, cr)
                acc = jnp.zeros((rres, cr), jnp.float32)
                for dy in range(3):
                    for dx in range(3):
                        off = dy * wp + dx
                        acc = acc + _mm(pv[off:off + rres, :],
                                        wres_ref[blk * 2 + j, dy * 3 + dx])
                hcur = _instance_norm(_compact(acc, hr, wr, wp),
                                      float(hr * wr), relu=(j == 0))
            x = x + hcur

        o_ref[0] = x

    # --------------------------- pallas_call plumbing ------------------------
    inputs = [patches0, w0] + down_w + [wres] + sels
    in_specs = [pl.BlockSpec((1,) + tuple(patches0.shape[1:]),
                             lambda b: (b, 0, 0))]
    for arr in inputs[1:]:
        in_specs.append(pl.BlockSpec(tuple(arr.shape),
                                     _const_index_map(arr.ndim)))
    out_shape = jax.ShapeDtypeStruct((n, hr * wr, cr), jnp.float32)
    out_specs = pl.BlockSpec((1, hr * wr, cr), lambda b: (b, 0, 0))

    # Advisory cost estimate.
    flops = 2 * (h * w) * (49 * in_channels) * dim
    for m in down_meta:
        flops += 2 * (2 * m["pn"] * m["fin"] * m["cin"])        # selection mms
        flops += 2 * 16 * m["r"] * m["cin"] * m["cout"]         # conv mms
    if n_res:
        flops += 2 * n_res * 2 * 9 * ((hr - 1) * (wr + 2) + wr) * cr * cr
    flops *= n
    trans = n * (dim + sum(m["cout"] for m in down_meta) + 2 * n_res * cr)
    bytes_accessed = sum(int(np.prod(a.shape)) * int(a.dtype.itemsize)
                         for a in inputs) + int(n * hr * wr * cr * 4)
    cost = pl.CostEstimate(flops=int(flops), transcendentals=int(trans),
                           bytes_accessed=int(bytes_accessed))

    out = pl.pallas_call(
        kernel,
        out_shape=out_shape,
        grid=(n,),
        in_specs=in_specs,
        out_specs=out_specs,
        cost_estimate=cost,
        compiler_params=pltpu.CompilerParams(
            dimension_semantics=("parallel",),
            vmem_limit_bytes=32 * 1024 * 1024,
        ),
    )(*inputs)

    # Single one-time post-op: back to NCHW.
    return jnp.transpose(out.reshape(n, hr, wr, cr), (0, 3, 1, 2))


# ----------------------------------------------------------------------------
# Demo / smoke test
# ----------------------------------------------------------------------------
if __name__ == "__main__":
    key = jax.random.PRNGKey(0)
    k_x, k_p = jax.random.split(key)

    # Small-shape instance: in_channels=3, dim=8, 2 downsamples, 3 res blocks.
    x = jax.random.normal(k_x, (2, 3, 16, 16), jnp.float32)       # NCHW
    params = init_params(k_p, in_channels=3, dim=8, n_residual=3,
                         n_downsample=2)

    fwd = jax.jit(lambda xx: content_encoder_forward(xx, params))
    out = fwd(x)
    jax.block_until_ready(out)

    expected_shape = (2, 32, 4, 4)   # dim 8 -> 16 -> 32, spatial 16 -> 8 -> 4
    assert out.shape == expected_shape, (out.shape, expected_shape)
    assert bool(jnp.all(jnp.isfinite(out)))
    print("KERNEL_OK")
</pallas_src>

<mosaic_0001>
module attributes {stable_mosaic.version = 11 : i64} {
  func.func @kernel(%arg0: i32, %arg1: memref<1x256x147xbf16, #tpu.memory_space<vmem>>, %arg2: memref<147x8xbf16, #tpu.memory_space<vmem>>, %arg3: memref<16x8x16xbf16, #tpu.memory_space<vmem>>, %arg4: memref<16x16x32xbf16, #tpu.memory_space<vmem>>, %arg5: memref<6x9x32x32xbf16, #tpu.memory_space<vmem>>, %arg6: memref<2x162x256xbf16, #tpu.memory_space<vmem>>, %arg7: memref<2x50x134xbf16, #tpu.memory_space<vmem>>, %arg8: memref<1x16x32xf32, #tpu.memory_space<vmem>>) attributes {dimension_semantics = [#tpu.dimension_semantics<parallel>], iteration_bounds = array<i64: 2>, scalar_prefetch = 0 : i64, scratch_operands = 0 : i64, tpu.core_type = #tpu.core_type<tc>, window_params = [{transform_indices = @transform_0, window_bounds = array<i64: 1, 256, 147>}, {pipeline_mode = #tpu.pipeline_mode<synchronous>, transform_indices = @transform_1, window_bounds = array<i64: 147, 8>}, {pipeline_mode = #tpu.pipeline_mode<synchronous>, transform_indices = @transform_2, window_bounds = array<i64: 16, 8, 16>}, {pipeline_mode = #tpu.pipeline_mode<synchronous>, transform_indices = @transform_3, window_bounds = array<i64: 16, 16, 32>}, {pipeline_mode = #tpu.pipeline_mode<synchronous>, transform_indices = @transform_4, window_bounds = array<i64: 6, 9, 32, 32>}, {pipeline_mode = #tpu.pipeline_mode<synchronous>, transform_indices = @transform_5, window_bounds = array<i64: 2, 162, 256>}, {pipeline_mode = #tpu.pipeline_mode<synchronous>, transform_indices = @transform_6, window_bounds = array<i64: 2, 50, 134>}, {transform_indices = @transform_7, window_bounds = array<i64: 1, 16, 32>}]} {
    %c0 = arith.constant 0 : index
    %c0_0 = arith.constant 0 : index
    %c0_1 = arith.constant 0 : index
    %0 = vector.load %arg1[%c0, %c0_0, %c0_1] : memref<1x256x147xbf16, #tpu.memory_space<vmem>>, vector<1x256x147xbf16>
    %1 = vector.shape_cast %0 : vector<1x256x147xbf16> to vector<256x147xbf16>
    %c0_2 = arith.constant 0 : index
    %c0_3 = arith.constant 0 : index
    %2 = vector.load %arg2[%c0_2, %c0_3] : memref<147x8xbf16, #tpu.memory_space<vmem>>, vector<147x8xbf16>
    %cst = arith.constant dense<0.000000e+00> : vector<256x8xf32>
    %3 = tpu.matmul %1, %2, %cst {dimension_numbers = #tpu.dot_dimension_numbers<[1], [0], [0], [1], [0, 0, 1, 1], [], []>} : vector<256x147xbf16>, vector<147x8xbf16>, vector<256x8xf32> -> vector<256x8xf32>
    %cst_4 = arith.constant dense<0.000000e+00> : vector<8xf32>
    %4 = vector.multi_reduction <add>, %3, %cst_4 [0] : vector<256x8xf32> to vector<8xf32>
    %5 = vector.shape_cast %4 : vector<8xf32> to vector<1x8xf32>
    %cst_5 = arith.constant 3.906250e-03 : f32
    %6 = vector.broadcast %cst_5 : f32 to vector<1x8xf32>
    %7 = arith.mulf %5, %6 : vector<1x8xf32>
    %8 = vector.broadcast %7 : vector<1x8xf32> to vector<256x8xf32>
    %9 = arith.subf %3, %8 : vector<256x8xf32>
    %10 = arith.mulf %9, %9 : vector<256x8xf32>
    %cst_6 = arith.constant dense<0.000000e+00> : vector<8xf32>
    %11 = vector.multi_reduction <add>, %10, %cst_6 [0] : vector<256x8xf32> to vector<8xf32>
    %12 = vector.shape_cast %11 : vector<8xf32> to vector<1x8xf32>
    %cst_7 = arith.constant 3.906250e-03 : f32
    %13 = vector.broadcast %cst_7 : f32 to vector<1x8xf32>
    %14 = arith.mulf %12, %13 : vector<1x8xf32>
    %cst_8 = arith.constant 9.99999974E-6 : f32
    %15 = vector.broadcast %cst_8 : f32 to vector<1x8xf32>
    %16 = arith.addf %14, %15 : vector<1x8xf32>
    %17 = math.rsqrt %16 : vector<1x8xf32>
    %18 = vector.broadcast %17 : vector<1x8xf32> to vector<256x8xf32>
    %19 = arith.mulf %9, %18 : vector<256x8xf32>
    %cst_9 = arith.constant 0.000000e+00 : f32
    %20 = vector.broadcast %cst_9 : f32 to vector<256x8xf32>
    %21 = arith.maximumf %19, %20 : vector<256x8xf32>
    %c0_10 = arith.constant 0 : index
    %c0_11 = arith.constant 0 : index
    %c0_12 = arith.constant 0 : index
    %22 = vector.load %arg6[%c0_10, %c0_11, %c0_12] : memref<2x162x256xbf16, #tpu.memory_space<vmem>>, vector<1x162x256xbf16>
    %23 = vector.shape_cast %22 : vector<1x162x256xbf16> to vector<162x256xbf16>
    %24 = arith.truncf %21 : vector<256x8xf32> to vector<256x8xbf16>
    %cst_13 = arith.constant dense<0.000000e+00> : vector<162x8xf32>
    %25 = tpu.matmul %23, %24, %cst_13 {dimension_numbers = #tpu.dot_dimension_numbers<[1], [0], [0], [1], [0, 0, 1, 1], [], []>} : vector<162x256xbf16>, vector<256x8xbf16>, vector<162x8xf32> -> vector<162x8xf32>
    %c1 = arith.constant 1 : index
    %c0_14 = arith.constant 0 : index
    %c0_15 = arith.constant 0 : index
    %26 = vector.load %arg6[%c1, %c0_14, %c0_15] : memref<2x162x256xbf16, #tpu.memory_space<vmem>>, vector<1x162x256xbf16>
    %27 = vector.shape_cast %26 : vector<1x162x256xbf16> to vector<162x256xbf16>
    %28 = arith.truncf %21 : vector<256x8xf32> to vector<256x8xbf16>
    %cst_16 = arith.constant dense<0.000000e+00> : vector<162x8xf32>
    %29 = tpu.matmul %27, %28, %cst_16 {dimension_numbers = #tpu.dot_dimension_numbers<[1], [0], [0], [1], [0, 0, 1, 1], [], []>} : vector<162x256xbf16>, vector<256x8xbf16>, vector<162x8xf32> -> vector<162x8xf32>
    %cst_17 = arith.constant 0.000000e+00 : f32
    %30 = vector.broadcast %cst_17 : f32 to vector<134x16xf32>
    %31 = vector.extract_strided_slice %25 {offsets = [0, 0], sizes = [134, 8], strides = [1, 1]} : vector<162x8xf32> to vector<134x8xf32>
    %c0_18 = arith.constant 0 : index
    %c0_19 = arith.constant 0 : index
    %c0_20 = arith.constant 0 : index
    %32 = vector.load %arg3[%c0_18, %c0_19, %c0_20] : memref<16x8x16xbf16, #tpu.memory_space<vmem>>, vector<1x8x16xbf16>
    %33 = vector.shape_cast %32 : vector<1x8x16xbf16> to vector<8x16xbf16>
    %34 = arith.truncf %31 : vector<134x8xf32> to vector<134x8xbf16>
    %cst_21 = arith.constant dense<0.000000e+00> : vector<134x16xf32>
    %35 = tpu.matmul %34, %33, %cst_21 {dimension_numbers = #tpu.dot_dimension_numbers<[1], [0], [0], [1], [0, 0, 1, 1], [], []>} : vector<134x8xbf16>, vector<8x16xbf16>, vector<134x16xf32> -> vector<134x16xf32>
    %36 = arith.addf %30, %35 : vector<134x16xf32>
    %37 = vector.extract_strided_slice %29 {offsets = [0, 0], sizes = [134, 8], strides = [1, 1]} : vector<162x8xf32> to vector<134x8xf32>
    %c1_22 = arith.constant 1 : index
    %c0_23 = arith.constant 0 : index
    %c0_24 = arith.constant 0 : index
    %38 = vector.load %arg3[%c1_22, %c0_23, %c0_24] : memref<16x8x16xbf16, #tpu.memory_space<vmem>>, vector<1x8x16xbf16>
    %39 = vector.shape_cast %38 : vector<1x8x16xbf16> to vector<8x16xbf16>
    %40 = arith.truncf %37 : vector<134x8xf32> to vector<134x8xbf16>
    %cst_25 = arith.constant dense<0.000000e+00> : vector<134x16xf32>
    %41 = tpu.matmul %40, %39, %cst_25 {dimension_numbers = #tpu.dot_dimension_numbers<[1], [0], [0], [1], [0, 0, 1, 1], [], []>} : vector<134x8xbf16>, vector<8x16xbf16>, vector<134x16xf32> -> vector<134x16xf32>
    %42 = arith.addf %36, %41 : vector<134x16xf32>
    %43 = vector.extract_strided_slice %25 {offsets = [1, 0], sizes = [134, 8], strides = [1, 1]} : vector<162x8xf32> to vector<134x8xf32>
    %c2 = arith.constant 2 : index
    %c0_26 = arith.constant 0 : index
    %c0_27 = arith.constant 0 : index
    %44 = vector.load %arg3[%c2, %c0_26, %c0_27] : memref<16x8x16xbf16, #tpu.memory_space<vmem>>, vector<1x8x16xbf16>
    %45 = vector.shape_cast %44 : vector<1x8x16xbf16> to vector<8x16xbf16>
    %46 = arith.truncf %43 : vector<134x8xf32> to vector<134x8xbf16>
    %cst_28 = arith.constant dense<0.000000e+00> : vector<134x16xf32>
    %47 = tpu.matmul %46, %45, %cst_28 {dimension_numbers = #tpu.dot_dimension_numbers<[1], [0], [0], [1], [0, 0, 1, 1], [], []>} : vector<134x8xbf16>, vector<8x16xbf16>, vector<134x16xf32> -> vector<134x16xf32>
    %48 = arith.addf %42, %47 : vector<134x16xf32>
    %49 = vector.extract_strided_slice %29 {offsets = [1, 0], sizes = [134, 8], strides = [1, 1]} : vector<162x8xf32> to vector<134x8xf32>
    %c3 = arith.constant 3 : index
    %c0_29 = arith.constant 0 : index
    %c0_30 = arith.constant 0 : index
    %50 = vector.load %arg3[%c3, %c0_29, %c0_30] : memref<16x8x16xbf16, #tpu.memory_space<vmem>>, vector<1x8x16xbf16>
    %51 = vector.shape_cast %50 : vector<1x8x16xbf16> to vector<8x16xbf16>
    %52 = arith.truncf %49 : vector<134x8xf32> to vector<134x8xbf16>
    %cst_31 = arith.constant dense<0.000000e+00> : vector<134x16xf32>
    %53 = tpu.matmul %52, %51, %cst_31 {dimension_numbers = #tpu.dot_dimension_numbers<[1], [0], [0], [1], [0, 0, 1, 1], [], []>} : vector<134x8xbf16>, vector<8x16xbf16>, vector<134x16xf32> -> vector<134x16xf32>
    %54 = arith.addf %48, %53 : vector<134x16xf32>
    %55 = vector.extract_strided_slice %25 {offsets = [9, 0], sizes = [134, 8], strides = [1, 1]} : vector<162x8xf32> to vector<134x8xf32>
    %c4 = arith.constant 4 : index
    %c0_32 = arith.constant 0 : index
    %c0_33 = arith.constant 0 : index
    %56 = vector.load %arg3[%c4, %c0_32, %c0_33] : memref<16x8x16xbf16, #tpu.memory_space<vmem>>, vector<1x8x16xbf16>
    %57 = vector.shape_cast %56 : vector<1x8x16xbf16> to vector<8x16xbf16>
    %58 = arith.truncf %55 : vector<134x8xf32> to vector<134x8xbf16>
    %cst_34 = arith.constant dense<0.000000e+00> : vector<134x16xf32>
    %59 = tpu.matmul %58, %57, %cst_34 {dimension_numbers = #tpu.dot_dimension_numbers<[1], [0], [0], [1], [0, 0, 1, 1], [], []>} : vector<134x8xbf16>, vector<8x16xbf16>, vector<134x16xf32> -> vector<134x16xf32>
    %60 = arith.addf %54, %59 : vector<134x16xf32>
    %61 = vector.extract_strided_slice %29 {offsets = [9, 0], sizes = [134, 8], strides = [1, 1]} : vector<162x8xf32> to vector<134x8xf32>
    %c5 = arith.constant 5 : index
    %c0_35 = arith.constant 0 : index
    %c0_36 = arith.constant 0 : index
    %62 = vector.load %arg3[%c5, %c0_35, %c0_36] : memref<16x8x16xbf16, #tpu.memory_space<vmem>>, vector<1x8x16xbf16>
    %63 = vector.shape_cast %62 : vector<1x8x16xbf16> to vector<8x16xbf16>
    %64 = arith.truncf %61 : vector<134x8xf32> to vector<134x8xbf16>
    %cst_37 = arith.constant dense<0.000000e+00> : vector<134x16xf32>
    %65 = tpu.matmul %64, %63, %cst_37 {dimension_numbers = #tpu.dot_dimension_numbers<[1], [0], [0], [1], [0, 0, 1, 1], [], []>} : vector<134x8xbf16>, vector<8x16xbf16>, vector<134x16xf32> -> vector<134x16xf32>
    %66 = arith.addf %60, %65 : vector<134x16xf32>
    %67 = vector.extract_strided_slice %25 {offsets = [10, 0], sizes = [134, 8], strides = [1, 1]} : vector<162x8xf32> to vector<134x8xf32>
    %c6 = arith.constant 6 : index
    %c0_38 = arith.constant 0 : index
    %c0_39 = arith.constant 0 : index
    %68 = vector.load %arg3[%c6, %c0_38, %c0_39] : memref<16x8x16xbf16, #tpu.memory_space<vmem>>, vector<1x8x16xbf16>
    %69 = vector.shape_cast %68 : vector<1x8x16xbf16> to vector<8x16xbf16>
    %70 = arith.truncf %67 : vector<134x8xf32> to vector<134x8xbf16>
    %cst_40 = arith.constant dense<0.000000e+00> : vector<134x16xf32>
    %71 = tpu.matmul %70, %69, %cst_40 {dimension_numbers = #tpu.dot_dimension_numbers<[1], [0], [0], [1], [0, 0, 1, 1], [], []>} : vector<134x8xbf16>, vector<8x16xbf16>, vector<134x16xf32> -> vector<134x16xf32>
    %72 = arith.addf %66, %71 : vector<134x16xf32>
    %73 = vector.extract_strided_slice %29 {offsets = [10, 0], sizes = [134, 8], strides = [1, 1]} : vector<162x8xf32> to vector<134x8xf32>
    %c7 = arith.constant 7 : index
    %c0_41 = arith.constant 0 : index
    %c0_42 = arith.constant 0 : index
    %74 = vector.load %arg3[%c7, %c0_41, %c0_42] : memref<16x8x16xbf16, #tpu.memory_space<vmem>>, vector<1x8x16xbf16>
    %75 = vector.shape_cast %74 : vector<1x8x16xbf16> to vector<8x16xbf16>
    %76 = arith.truncf %73 : vector<134x8xf32> to vector<134x8xbf16>
    %cst_43 = arith.constant dense<0.000000e+00> : vector<134x16xf32>
    %77 = tpu.matmul %76, %75, %cst_43 {dimension_numbers = #tpu.dot_dimension_numbers<[1], [0], [0], [1], [0, 0, 1, 1], [], []>} : vector<134x8xbf16>, vector<8x16xbf16>, vector<134x16xf32> -> vector<134x16xf32>
    %78 = arith.addf %72, %77 : vector<134x16xf32>
    %79 = vector.extract_strided_slice %25 {offsets = [18, 0], sizes = [134, 8], strides = [1, 1]} : vector<162x8xf32> to vector<134x8xf32>
    %c8 = arith.constant 8 : index
    %c0_44 = arith.constant 0 : index
    %c0_45 = arith.constant 0 : index
    %80 = vector.load %arg3[%c8, %c0_44, %c0_45] : memref<16x8x16xbf16, #tpu.memory_space<vmem>>, vector<1x8x16xbf16>
    %81 = vector.shape_cast %80 : vector<1x8x16xbf16> to vector<8x16xbf16>
    %82 = arith.truncf %79 : vector<134x8xf32> to vector<134x8xbf16>
    %cst_46 = arith.constant dense<0.000000e+00> : vector<134x16xf32>
    %83 = tpu.matmul %82, %81, %cst_46 {dimension_numbers = #tpu.dot_dimension_numbers<[1], [0], [0], [1], [0, 0, 1, 1], [], []>} : vector<134x8xbf16>, vector<8x16xbf16>, vector<134x16xf32> -> vector<134x16xf32>
    %84 = arith.addf %78, %83 : vector<134x16xf32>
    %85 = vector.extract_strided_slice %29 {offsets = [18, 0], sizes = [134, 8], strides = [1, 1]} : vector<162x8xf32> to vector<134x8xf32>
    %c9 = arith.constant 9 : index
    %c0_47 = arith.constant 0 : index
    %c0_48 = arith.constant 0 : index
    %86 = vector.load %arg3[%c9, %c0_47, %c0_48] : memref<16x8x16xbf16, #tpu.memory_space<vmem>>, vector<1x8x16xbf16>
    %87 = vector.shape_cast %86 : vector<1x8x16xbf16> to vector<8x16xbf16>
    %88 = arith.truncf %85 : vector<134x8xf32> to vector<134x8xbf16>
    %cst_49 = arith.constant dense<0.000000e+00> : vector<134x16xf32>
    %89 = tpu.matmul %88, %87, %cst_49 {dimension_numbers = #tpu.dot_dimension_numbers<[1], [0], [0], [1], [0, 0, 1, 1], [], []>} : vector<134x8xbf16>, vector<8x16xbf16>, vector<134x16xf32> -> vector<134x16xf32>
    %90 = arith.addf %84, %89 : vector<134x16xf32>
    %91 = vector.extract_strided_slice %25 {offsets = [19, 0], sizes = [134, 8], strides = [1, 1]} : vector<162x8xf32> to vector<134x8xf32>
    %c10 = arith.constant 10 : index
    %c0_50 = arith.constant 0 : index
    %c0_51 = arith.constant 0 : index
    %92 = vector.load %arg3[%c10, %c0_50, %c0_51] : memref<16x8x16xbf16, #tpu.memory_space<vmem>>, vector<1x8x16xbf16>
    %93 = vector.shape_cast %92 : vector<1x8x16xbf16> to vector<8x16xbf16>
    %94 = arith.truncf %91 : vector<134x8xf32> to vector<134x8xbf16>
    %cst_52 = arith.constant dense<0.000000e+00> : vector<134x16xf32>
    %95 = tpu.matmul %94, %93, %cst_52 {dimension_numbers = #tpu.dot_dimension_numbers<[1], [0], [0], [1], [0, 0, 1, 1], [], []>} : vector<134x8xbf16>, vector<8x16xbf16>, vector<134x16xf32> -> vector<134x16xf32>
    %96 = arith.addf %90, %95 : vector<134x16xf32>
    %97 = vector.extract_strided_slice %29 {offsets = [19, 0], sizes = [134, 8], strides = [1, 1]} : vector<162x8xf32> to vector<134x8xf32>
    %c11 = arith.constant 11 : index
    %c0_53 = arith.constant 0 : index
    %c0_54 = arith.constant 0 : index
    %98 = vector.load %arg3[%c11, %c0_53, %c0_54] : memref<16x8x16xbf16, #tpu.memory_space<vmem>>, vector<1x8x16xbf16>
    %99 = vector.shape_cast %98 : vector<1x8x16xbf16> to vector<8x16xbf16>
    %100 = arith.truncf %97 : vector<134x8xf32> to vector<134x8xbf16>
    %cst_55 = arith.constant dense<0.000000e+00> : vector<134x16xf32>
    %101 = tpu.matmul %100, %99, %cst_55 {dimension_numbers = #tpu.dot_dimension_numbers<[1], [0], [0], [1], [0, 0, 1, 1], [], []>} : vector<134x8xbf16>, vector<8x16xbf16>, vector<134x16xf32> -> vector<134x16xf32>
    %102 = arith.addf %96, %101 : vector<134x16xf32>
    %103 = vector.extract_strided_slice %25 {offsets = [27, 0], sizes = [134, 8], strides = [1, 1]} : vector<162x8xf32> to vector<134x8xf32>
    %c12 = arith.constant 12 : index
    %c0_56 = arith.constant 0 : index
    %c0_57 = arith.constant 0 : index
    %104 = vector.load %arg3[%c12, %c0_56, %c0_57] : memref<16x8x16xbf16, #tpu.memory_space<vmem>>, vector<1x8x16xbf16>
    %105 = vector.shape_cast %104 : vector<1x8x16xbf16> to vector<8x16xbf16>
    %106 = arith.truncf %103 : vector<134x8xf32> to vector<134x8xbf16>
    %cst_58 = arith.constant dense<0.000000e+00> : vector<134x16xf32>
    %107 = tpu.matmul %106, %105, %cst_58 {dimension_numbers = #tpu.dot_dimension_numbers<[1], [0], [0], [1], [0, 0, 1, 1], [], []>} : vector<134x8xbf16>, vector<8x16xbf16>, vector<134x16xf32> -> vector<134x16xf32>
    %108 = arith.addf %102, %107 : vector<134x16xf32>
    %109 = vector.extract_strided_slice %29 {offsets = [27, 0], sizes = [134, 8], strides = [1, 1]} : vector<162x8xf32> to vector<134x8xf32>
    %c13 = arith.constant 13 : index
    %c0_59 = arith.constant 0 : index
    %c0_60 = arith.constant 0 : index
    %110 = vector.load %arg3[%c13, %c0_59, %c0_60] : memref<16x8x16xbf16, #tpu.memory_space<vmem>>, vector<1x8x16xbf16>
    %111 = vector.shape_cast %110 : vector<1x8x16xbf16> to vector<8x16xbf16>
    %112 = arith.truncf %109 : vector<134x8xf32> to vector<134x8xbf16>
    %cst_61 = arith.constant dense<0.000000e+00> : vector<134x16xf32>
    %113 = tpu.matmul %112, %111, %cst_61 {dimension_numbers = #tpu.dot_dimension_numbers<[1], [0], [0], [1], [0, 0, 1, 1], [], []>} : vector<134x8xbf16>, vector<8x16xbf16>, vector<134x16xf32> -> vector<134x16xf32>
    %114 = arith.addf %108, %113 : vector<134x16xf32>
    %115 = vector.extract_strided_slice %25 {offsets = [28, 0], sizes = [134, 8], strides = [1, 1]} : vector<162x8xf32> to vector<134x8xf32>
    %c14 = arith.constant 14 : index
    %c0_62 = arith.constant 0 : index
    %c0_63 = arith.constant 0 : index
    %116 = vector.load %arg3[%c14, %c0_62, %c0_63] : memref<16x8x16xbf16, #tpu.memory_space<vmem>>, vector<1x8x16xbf16>
    %117 = vector.shape_cast %116 : vector<1x8x16xbf16> to vector<8x16xbf16>
    %118 = arith.truncf %115 : vector<134x8xf32> to vector<134x8xbf16>
    %cst_64 = arith.constant dense<0.000000e+00> : vector<134x16xf32>
    %119 = tpu.matmul %118, %117, %cst_64 {dimension_numbers = #tpu.dot_dimension_numbers<[1], [0], [0], [1], [0, 0, 1, 1], [], []>} : vector<134x8xbf16>, vector<8x16xbf16>, vector<134x16xf32> -> vector<134x16xf32>
    %120 = arith.addf %114, %119 : vector<134x16xf32>
    %121 = vector.extract_strided_slice %29 {offsets = [28, 0], sizes = [134, 8], strides = [1, 1]} : vector<162x8xf32> to vector<134x8xf32>
    %c15 = arith.constant 15 : index
    %c0_65 = arith.constant 0 : index
    %c0_66 = arith.constant 0 : index
    %122 = vector.load %arg3[%c15, %c0_65, %c0_66] : memref<16x8x16xbf16, #tpu.memory_space<vmem>>, vector<1x8x16xbf16>
    %123 = vector.shape_cast %122 : vector<1x8x16xbf16> to vector<8x16xbf16>
    %124 = arith.truncf %121 : vector<134x8xf32> to vector<134x8xbf16>
    %cst_67 = arith.constant dense<0.000000e+00> : vector<134x16xf32>
    %125 = tpu.matmul %124, %123, %cst_67 {dimension_numbers = #tpu.dot_dimension_numbers<[1], [0], [0], [1], [0, 0, 1, 1], [], []>} : vector<134x8xbf16>, vector<8x16xbf16>, vector<134x16xf32> -> vector<134x16xf32>
    %126 = arith.addf %120, %125 : vector<134x16xf32>
    %127 = tpu.iota {dimensions = array<i32: 0>} : vector<134x1xi32>
    %c18_i32 = arith.constant 18 : i32
    %c0_i32 = arith.constant 0 : i32
    %128 = arith.cmpi eq, %c18_i32, %c0_i32 : i32
    %c1_i32 = arith.constant 1 : i32
    %129 = arith.select %128, %c1_i32, %c18_i32 : i32
    %130 = vector.broadcast %129 : i32 to vector<134x1xi32>
    %131 = arith.remsi %127, %130 : vector<134x1xi32>
    %c0_i32_68 = arith.constant 0 : i32
    %132 = vector.broadcast %c0_i32_68 : i32 to vector<134x1xi32>
    %133 = arith.cmpi ne, %131, %132 : vector<134x1xi32>
    %c0_i32_69 = arith.constant 0 : i32
    %134 = vector.broadcast %c0_i32_69 : i32 to vector<134x1xi32>
    %135 = arith.cmpi slt, %131, %134 : vector<134x1xi32>
    %c0_i32_70 = arith.constant 0 : i32
    %136 = arith.cmpi slt, %129, %c0_i32_70 : i32
    %137 = vector.broadcast %136 : i1 to vector<134x1xi1>
    %138 = vector.broadcast %137 : vector<134x1xi1> to vector<134x1xi1>
    %139 = arith.xori %135, %138 : vector<134x1xi1>
    %140 = arith.andi %139, %133 : vector<134x1xi1>
    %141 = vector.broadcast %129 : i32 to vector<134x1xi32>
    %142 = arith.addi %131, %141 : vector<134x1xi32>
    %143 = arith.select %140, %142, %131 : vector<134x1xi1>, vector<134x1xi32>
    %c8_i32 = arith.constant 8 : i32
    %144 = vector.broadcast %c8_i32 : i32 to vector<134x1xi32>
    %145 = arith.cmpi slt, %143, %144 : vector<134x1xi32>
    %cst_71 = arith.constant 0.000000e+00 : f32
    %146 = vector.shape_cast %145 : vector<134x1xi1> to vector<134x1xi1>
    %147 = vector.broadcast %146 : vector<134x1xi1> to vector<134x16xi1>
    %148 = vector.broadcast %cst_71 : f32 to vector<134x16xf32>
    %149 = arith.select %147, %126, %148 : vector<134x16xi1>, vector<134x16xf32>
    %cst_72 = arith.constant dense<0.000000e+00> : vector<16xf32>
    %150 = vector.multi_reduction <add>, %149, %cst_72 [0] : vector<134x16xf32> to vector<16xf32>
    %151 = vector.shape_cast %150 : vector<16xf32> to vector<1x16xf32>
    %cst_73 = arith.constant 1.562500e-02 : f32
    %152 = vector.broadcast %cst_73 : f32 to vector<1x16xf32>
    %153 = arith.mulf %151, %152 : vector<1x16xf32>
    %154 = vector.broadcast %153 : vector<1x16xf32> to vector<134x16xf32>
    %155 = arith.subf %126, %154 : vector<134x16xf32>
    %cst_74 = arith.constant 0.000000e+00 : f32
    %156 = vector.shape_cast %145 : vector<134x1xi1> to vector<134x1xi1>
    %157 = vector.broadcast %156 : vector<134x1xi1> to vector<134x16xi1>
    %158 = vector.broadcast %cst_74 : f32 to vector<134x16xf32>
    %159 = arith.select %157, %155, %158 : vector<134x16xi1>, vector<134x16xf32>
    %160 = arith.mulf %159, %159 : vector<134x16xf32>
    %cst_75 = arith.constant dense<0.000000e+00> : vector<16xf32>
    %161 = vector.multi_reduction <add>, %160, %cst_75 [0] : vector<134x16xf32> to vector<16xf32>
    %162 = vector.shape_cast %161 : vector<16xf32> to vector<1x16xf32>
    %cst_76 = arith.constant 1.562500e-02 : f32
    %163 = vector.broadcast %cst_76 : f32 to vector<1x16xf32>
    %164 = arith.mulf %162, %163 : vector<1x16xf32>
    %cst_77 = arith.constant 9.99999974E-6 : f32
    %165 = vector.broadcast %cst_77 : f32 to vector<1x16xf32>
    %166 = arith.addf %164, %165 : vector<1x16xf32>
    %167 = math.rsqrt %166 : vector<1x16xf32>
    %168 = vector.broadcast %167 : vector<1x16xf32> to vector<134x16xf32>
    %169 = arith.mulf %155, %168 : vector<134x16xf32>
    %cst_78 = arith.constant 0.000000e+00 : f32
    %170 = vector.broadcast %cst_78 : f32 to vector<134x16xf32>
    %171 = arith.maximumf %169, %170 : vector<134x16xf32>
    %c0_79 = arith.constant 0 : index
    %c0_80 = arith.constant 0 : index
    %c0_81 = arith.constant 0 : index
    %172 = vector.load %arg7[%c0_79, %c0_80, %c0_81] : memref<2x50x134xbf16, #tpu.memory_space<vmem>>, vector<1x50x134xbf16>
    %173 = vector.shape_cast %172 : vector<1x50x134xbf16> to vector<50x134xbf16>
    %174 = arith.truncf %171 : vector<134x16xf32> to vector<134x16xbf16>
    %cst_82 = arith.constant dense<0.000000e+00> : vector<50x16xf32>
    %175 = tpu.matmul %173, %174, %cst_82 {dimension_numbers = #tpu.dot_dimension_numbers<[1], [0], [0], [1], [0, 0, 1, 1], [], []>} : vector<50x134xbf16>, vector<134x16xbf16>, vector<50x16xf32> -> vector<50x16xf32>
    %c1_83 = arith.constant 1 : index
    %c0_84 = arith.constant 0 : index
    %c0_85 = arith.constant 0 : index
    %176 = vector.load %arg7[%c1_83, %c0_84, %c0_85] : memref<2x50x134xbf16, #tpu.memory_space<vmem>>, vector<1x50x134xbf16>
    %177 = vector.shape_cast %176 : vector<1x50x134xbf16> to vector<50x134xbf16>
    %178 = arith.truncf %171 : vector<134x16xf32> to vector<134x16xbf16>
    %cst_86 = arith.constant dense<0.000000e+00> : vector<50x16xf32>
    %179 = tpu.matmul %177, %178, %cst_86 {dimension_numbers = #tpu.dot_dimension_numbers<[1], [0], [0], [1], [0, 0, 1, 1], [], []>} : vector<50x134xbf16>, vector<134x16xbf16>, vector<50x16xf32> -> vector<50x16xf32>
    %cst_87 = arith.constant 0.000000e+00 : f32
    %180 = vector.broadcast %cst_87 : f32 to vector<34x32xf32>
    %181 = vector.extract_strided_slice %175 {offsets = [0, 0], sizes = [34, 16], strides = [1, 1]} : vector<50x16xf32> to vector<34x16xf32>
    %c0_88 = arith.constant 0 : index
    %c0_89 = arith.constant 0 : index
    %c0_90 = arith.constant 0 : index
    %182 = vector.load %arg4[%c0_88, %c0_89, %c0_90] : memref<16x16x32xbf16, #tpu.memory_space<vmem>>, vector<1x16x32xbf16>
    %183 = vector.shape_cast %182 : vector<1x16x32xbf16> to vector<16x32xbf16>
    %184 = arith.truncf %181 : vector<34x16xf32> to vector<34x16xbf16>
    %cst_91 = arith.constant dense<0.000000e+00> : vector<34x32xf32>
    %185 = tpu.matmul %184, %183, %cst_91 {dimension_numbers = #tpu.dot_dimension_numbers<[1], [0], [0], [1], [0, 0, 1, 1], [], []>} : vector<34x16xbf16>, vector<16x32xbf16>, vector<34x32xf32> -> vector<34x32xf32>
    %186 = arith.addf %180, %185 : vector<34x32xf32>
    %187 = vector.extract_strided_slice %179 {offsets = [0, 0], sizes = [34, 16], strides = [1, 1]} : vector<50x16xf32> to vector<34x16xf32>
    %c1_92 = arith.constant 1 : index
    %c0_93 = arith.constant 0 : index
    %c0_94 = arith.constant 0 : index
    %188 = vector.load %arg4[%c1_92, %c0_93, %c0_94] : memref<16x16x32xbf16, #tpu.memory_space<vmem>>, vector<1x16x32xbf16>
    %189 = vector.shape_cast %188 : vector<1x16x32xbf16> to vector<16x32xbf16>
    %190 = arith.truncf %187 : vector<34x16xf32> to vector<34x16xbf16>
    %cst_95 = arith.constant dense<0.000000e+00> : vector<34x32xf32>
    %191 = tpu.matmul %190, %189, %cst_95 {dimension_numbers = #tpu.dot_dimension_numbers<[1], [0], [0], [1], [0, 0, 1, 1], [], []>} : vector<34x16xbf16>, vector<16x32xbf16>, vector<34x32xf32> -> vector<34x32xf32>
    %192 = arith.addf %186, %191 : vector<34x32xf32>
    %193 = vector.extract_strided_slice %175 {offsets = [1, 0], sizes = [34, 16], strides = [1, 1]} : vector<50x16xf32> to vector<34x16xf32>
    %c2_96 = arith.constant 2 : index
    %c0_97 = arith.constant 0 : index
    %c0_98 = arith.constant 0 : index
    %194 = vector.load %arg4[%c2_96, %c0_97, %c0_98] : memref<16x16x32xbf16, #tpu.memory_space<vmem>>, vector<1x16x32xbf16>
    %195 = vector.shape_cast %194 : vector<1x16x32xbf16> to vector<16x32xbf16>
    %196 = arith.truncf %193 : vector<34x16xf32> to vector<34x16xbf16>
    %cst_99 = arith.constant dense<0.000000e+00> : vector<34x32xf32>
    %197 = tpu.matmul %196, %195, %cst_99 {dimension_numbers = #tpu.dot_dimension_numbers<[1], [0], [0], [1], [0, 0, 1, 1], [], []>} : vector<34x16xbf16>, vector<16x32xbf16>, vector<34x32xf32> -> vector<34x32xf32>
    %198 = arith.addf %192, %197 : vector<34x32xf32>
    %199 = vector.extract_strided_slice %179 {offsets = [1, 0], sizes = [34, 16], strides = [1, 1]} : vector<50x16xf32> to vector<34x16xf32>
    %c3_100 = arith.constant 3 : index
    %c0_101 = arith.constant 0 : index
    %c0_102 = arith.constant 0 : index
    %200 = vector.load %arg4[%c3_100, %c0_101, %c0_102] : memref<16x16x32xbf16, #tpu.memory_space<vmem>>, vector<1x16x32xbf16>
    %201 = vector.shape_cast %200 : vector<1x16x32xbf16> to vector<16x32xbf16>
    %202 = arith.truncf %199 : vector<34x16xf32> to vector<34x16xbf16>
    %cst_103 = arith.constant dense<0.000000e+00> : vector<34x32xf32>
    %203 = tpu.matmul %202, %201, %cst_103 {dimension_numbers = #tpu.dot_dimension_numbers<[1], [0], [0], [1], [0, 0, 1, 1], [], []>} : vector<34x16xbf16>, vector<16x32xbf16>, vector<34x32xf32> -> vector<34x32xf32>
    %204 = arith.addf %198, %203 : vector<34x32xf32>
    %205 = vector.extract_strided_slice %175 {offsets = [5, 0], sizes = [34, 16], strides = [1, 1]} : vector<50x16xf32> to vector<34x16xf32>
    %c4_104 = arith.constant 4 : index
    %c0_105 = arith.constant 0 : index
    %c0_106 = arith.constant 0 : index
    %206 = vector.load %arg4[%c4_104, %c0_105, %c0_106] : memref<16x16x32xbf16, #tpu.memory_space<vmem>>, vector<1x16x32xbf16>
    %207 = vector.shape_cast %206 : vector<1x16x32xbf16> to vector<16x32xbf16>
    %208 = arith.truncf %205 : vector<34x16xf32> to vector<34x16xbf16>
    %cst_107 = arith.constant dense<0.000000e+00> : vector<34x32xf32>
    %209 = tpu.matmul %208, %207, %cst_107 {dimension_numbers = #tpu.dot_dimension_numbers<[1], [0], [0], [1], [0, 0, 1, 1], [], []>} : vector<34x16xbf16>, vector<16x32xbf16>, vector<34x32xf32> -> vector<34x32xf32>
    %210 = arith.addf %204, %209 : vector<34x32xf32>
    %211 = vector.extract_strided_slice %179 {offsets = [5, 0], sizes = [34, 16], strides = [1, 1]} : vector<50x16xf32> to vector<34x16xf32>
    %c5_108 = arith.constant 5 : index
    %c0_109 = arith.constant 0 : index
    %c0_110 = arith.constant 0 : index
    %212 = vector.load %arg4[%c5_108, %c0_109, %c0_110] : memref<16x16x32xbf16, #tpu.memory_space<vmem>>, vector<1x16x32xbf16>
    %213 = vector.shape_cast %212 : vector<1x16x32xbf16> to vector<16x32xbf16>
    %214 = arith.truncf %211 : vector<34x16xf32> to vector<34x16xbf16>
    %cst_111 = arith.constant dense<0.000000e+00> : vector<34x32xf32>
    %215 = tpu.matmul %214, %213, %cst_111 {dimension_numbers = #tpu.dot_dimension_numbers<[1], [0], [0], [1], [0, 0, 1, 1], [], []>} : vector<34x16xbf16>, vector<16x32xbf16>, vector<34x32xf32> -> vector<34x32xf32>
    %216 = arith.addf %210, %215 : vector<34x32xf32>
    %217 = vector.extract_strided_slice %175 {offsets = [6, 0], sizes = [34, 16], strides = [1, 1]} : vector<50x16xf32> to vector<34x16xf32>
    %c6_112 = arith.constant 6 : index
    %c0_113 = arith.constant 0 : index
    %c0_114 = arith.constant 0 : index
    %218 = vector.load %arg4[%c6_112, %c0_113, %c0_114] : memref<16x16x32xbf16, #tpu.memory_space<vmem>>, vector<1x16x32xbf16>
    %219 = vector.shape_cast %218 : vector<1x16x32xbf16> to vector<16x32xbf16>
    %220 = arith.truncf %217 : vector<34x16xf32> to vector<34x16xbf16>
    %cst_115 = arith.constant dense<0.000000e+00> : vector<34x32xf32>
    %221 = tpu.matmul %220, %219, %cst_115 {dimension_numbers = #tpu.dot_dimension_numbers<[1], [0], [0], [1], [0, 0, 1, 1], [], []>} : vector<34x16xbf16>, vector<16x32xbf16>, vector<34x32xf32> -> vector<34x32xf32>
    %222 = arith.addf %216, %221 : vector<34x32xf32>
    %223 = vector.extract_strided_slice %179 {offsets = [6, 0], sizes = [34, 16], strides = [1, 1]} : vector<50x16xf32> to vector<34x16xf32>
    %c7_116 = arith.constant 7 : index
    %c0_117 = arith.constant 0 : index
    %c0_118 = arith.constant 0 : index
    %224 = vector.load %arg4[%c7_116, %c0_117, %c0_118] : memref<16x16x32xbf16, #tpu.memory_space<vmem>>, vector<1x16x32xbf16>
    %225 = vector.shape_cast %224 : vector<1x16x32xbf16> to vector<16x32xbf16>
    %226 = arith.truncf %223 : vector<34x16xf32> to vector<34x16xbf16>
    %cst_119 = arith.constant dense<0.000000e+00> : vector<34x32xf32>
    %227 = tpu.matmul %226, %225, %cst_119 {dimension_numbers = #tpu.dot_dimension_numbers<[1], [0], [0], [1], [0, 0, 1, 1], [], []>} : vector<34x16xbf16>, vector<16x32xbf16>, vector<34x32xf32> -> vector<34x32xf32>
    %228 = arith.addf %222, %227 : vector<34x32xf32>
    %229 = vector.extract_strided_slice %175 {offsets = [10, 0], sizes = [34, 16], strides = [1, 1]} : vector<50x16xf32> to vector<34x16xf32>
    %c8_120 = arith.constant 8 : index
    %c0_121 = arith.constant 0 : index
    %c0_122 = arith.constant 0 : index
    %230 = vector.load %arg4[%c8_120, %c0_121, %c0_122] : memref<16x16x32xbf16, #tpu.memory_space<vmem>>, vector<1x16x32xbf16>
    %231 = vector.shape_cast %230 : vector<1x16x32xbf16> to vector<16x32xbf16>
    %232 = arith.truncf %229 : vector<34x16xf32> to vector<34x16xbf16>
    %cst_123 = arith.constant dense<0.000000e+00> : vector<34x32xf32>
    %233 = tpu.matmul %232, %231, %cst_123 {dimension_numbers = #tpu.dot_dimension_numbers<[1], [0], [0], [1], [0, 0, 1, 1], [], []>} : vector<34x16xbf16>, vector<16x32xbf16>, vector<34x32xf32> -> vector<34x32xf32>
    %234 = arith.addf %228, %233 : vector<34x32xf32>
    %235 = vector.extract_strided_slice %179 {offsets = [10, 0], sizes = [34, 16], strides = [1, 1]} : vector<50x16xf32> to vector<34x16xf32>
    %c9_124 = arith.constant 9 : index
    %c0_125 = arith.constant 0 : index
    %c0_126 = arith.constant 0 : index
    %236 = vector.load %arg4[%c9_124, %c0_125, %c0_126] : memref<16x16x32xbf16, #tpu.memory_space<vmem>>, vector<1x16x32xbf16>
    %237 = vector.shape_cast %236 : vector<1x16x32xbf16> to vector<16x32xbf16>
    %238 = arith.truncf %235 : vector<34x16xf32> to vector<34x16xbf16>
    %cst_127 = arith.constant dense<0.000000e+00> : vector<34x32xf32>
    %239 = tpu.matmul %238, %237, %cst_127 {dimension_numbers = #tpu.dot_dimension_numbers<[1], [0], [0], [1], [0, 0, 1, 1], [], []>} : vector<34x16xbf16>, vector<16x32xbf16>, vector<34x32xf32> -> vector<34x32xf32>
    %240 = arith.addf %234, %239 : vector<34x32xf32>
    %241 = vector.extract_strided_slice %175 {offsets = [11, 0], sizes = [34, 16], strides = [1, 1]} : vector<50x16xf32> to vector<34x16xf32>
    %c10_128 = arith.constant 10 : index
    %c0_129 = arith.constant 0 : index
    %c0_130 = arith.constant 0 : index
    %242 = vector.load %arg4[%c10_128, %c0_129, %c0_130] : memref<16x16x32xbf16, #tpu.memory_space<vmem>>, vector<1x16x32xbf16>
    %243 = vector.shape_cast %242 : vector<1x16x32xbf16> to vector<16x32xbf16>
    %244 = arith.truncf %241 : vector<34x16xf32> to vector<34x16xbf16>
    %cst_131 = arith.constant dense<0.000000e+00> : vector<34x32xf32>
    %245 = tpu.matmul %244, %243, %cst_131 {dimension_numbers = #tpu.dot_dimension_numbers<[1], [0], [0], [1], [0, 0, 1, 1], [], []>} : vector<34x16xbf16>, vector<16x32xbf16>, vector<34x32xf32> -> vector<34x32xf32>
    %246 = arith.addf %240, %245 : vector<34x32xf32>
    %247 = vector.extract_strided_slice %179 {offsets = [11, 0], sizes = [34, 16], strides = [1, 1]} : vector<50x16xf32> to vector<34x16xf32>
    %c11_132 = arith.constant 11 : index
    %c0_133 = arith.constant 0 : index
    %c0_134 = arith.constant 0 : index
    %248 = vector.load %arg4[%c11_132, %c0_133, %c0_134] : memref<16x16x32xbf16, #tpu.memory_space<vmem>>, vector<1x16x32xbf16>
    %249 = vector.shape_cast %248 : vector<1x16x32xbf16> to vector<16x32xbf16>
    %250 = arith.truncf %247 : vector<34x16xf32> to vector<34x16xbf16>
    %cst_135 = arith.constant dense<0.000000e+00> : vector<34x32xf32>
    %251 = tpu.matmul %250, %249, %cst_135 {dimension_numbers = #tpu.dot_dimension_numbers<[1], [0], [0], [1], [0, 0, 1, 1], [], []>} : vector<34x16xbf16>, vector<16x32xbf16>, vector<34x32xf32> -> vector<34x32xf32>
    %252 = arith.addf %246, %251 : vector<34x32xf32>
    %253 = vector.extract_strided_slice %175 {offsets = [15, 0], sizes = [34, 16], strides = [1, 1]} : vector<50x16xf32> to vector<34x16xf32>
    %c12_136 = arith.constant 12 : index
    %c0_137 = arith.constant 0 : index
    %c0_138 = arith.constant 0 : index
    %254 = vector.load %arg4[%c12_136, %c0_137, %c0_138] : memref<16x16x32xbf16, #tpu.memory_space<vmem>>, vector<1x16x32xbf16>
    %255 = vector.shape_cast %254 : vector<1x16x32xbf16> to vector<16x32xbf16>
    %256 = arith.truncf %253 : vector<34x16xf32> to vector<34x16xbf16>
    %cst_139 = arith.constant dense<0.000000e+00> : vector<34x32xf32>
    %257 = tpu.matmul %256, %255, %cst_139 {dimension_numbers = #tpu.dot_dimension_numbers<[1], [0], [0], [1], [0, 0, 1, 1], [], []>} : vector<34x16xbf16>, vector<16x32xbf16>, vector<34x32xf32> -> vector<34x32xf32>
    %258 = arith.addf %252, %257 : vector<34x32xf32>
    %259 = vector.extract_strided_slice %179 {offsets = [15, 0], sizes = [34, 16], strides = [1, 1]} : vector<50x16xf32> to vector<34x16xf32>
    %c13_140 = arith.constant 13 : index
    %c0_141 = arith.constant 0 : index
    %c0_142 = arith.constant 0 : index
    %260 = vector.load %arg4[%c13_140, %c0_141, %c0_142] : memref<16x16x32xbf16, #tpu.memory_space<vmem>>, vector<1x16x32xbf16>
    %261 = vector.shape_cast %260 : vector<1x16x32xbf16> to vector<16x32xbf16>
    %262 = arith.truncf %259 : vector<34x16xf32> to vector<34x16xbf16>
    %cst_143 = arith.constant dense<0.000000e+00> : vector<34x32xf32>
    %263 = tpu.matmul %262, %261, %cst_143 {dimension_numbers = #tpu.dot_dimension_numbers<[1], [0], [0], [1], [0, 0, 1, 1], [], []>} : vector<34x16xbf16>, vector<16x32xbf16>, vector<34x32xf32> -> vector<34x32xf32>
    %264 = arith.addf %258, %263 : vector<34x32xf32>
    %265 = vector.extract_strided_slice %175 {offsets = [16, 0], sizes = [34, 16], strides = [1, 1]} : vector<50x16xf32> to vector<34x16xf32>
    %c14_144 = arith.constant 14 : index
    %c0_145 = arith.constant 0 : index
    %c0_146 = arith.constant 0 : index
    %266 = vector.load %arg4[%c14_144, %c0_145, %c0_146] : memref<16x16x32xbf16, #tpu.memory_space<vmem>>, vector<1x16x32xbf16>
    %267 = vector.shape_cast %266 : vector<1x16x32xbf16> to vector<16x32xbf16>
    %268 = arith.truncf %265 : vector<34x16xf32> to vector<34x16xbf16>
    %cst_147 = arith.constant dense<0.000000e+00> : vector<34x32xf32>
    %269 = tpu.matmul %268, %267, %cst_147 {dimension_numbers = #tpu.dot_dimension_numbers<[1], [0], [0], [1], [0, 0, 1, 1], [], []>} : vector<34x16xbf16>, vector<16x32xbf16>, vector<34x32xf32> -> vector<34x32xf32>
    %270 = arith.addf %264, %269 : vector<34x32xf32>
    %271 = vector.extract_strided_slice %179 {offsets = [16, 0], sizes = [34, 16], strides = [1, 1]} : vector<50x16xf32> to vector<34x16xf32>
    %c15_148 = arith.constant 15 : index
    %c0_149 = arith.constant 0 : index
    %c0_150 = arith.constant 0 : index
    %272 = vector.load %arg4[%c15_148, %c0_149, %c0_150] : memref<16x16x32xbf16, #tpu.memory_space<vmem>>, vector<1x16x32xbf16>
    %273 = vector.shape_cast %272 : vector<1x16x32xbf16> to vector<16x32xbf16>
    %274 = arith.truncf %271 : vector<34x16xf32> to vector<34x16xbf16>
    %cst_151 = arith.constant dense<0.000000e+00> : vector<34x32xf32>
    %275 = tpu.matmul %274, %273, %cst_151 {dimension_numbers = #tpu.dot_dimension_numbers<[1], [0], [0], [1], [0, 0, 1, 1], [], []>} : vector<34x16xbf16>, vector<16x32xbf16>, vector<34x32xf32> -> vector<34x32xf32>
    %276 = arith.addf %270, %275 : vector<34x32xf32>
    %277 = tpu.iota {dimensions = array<i32: 0>} : vector<34x1xi32>
    %c10_i32 = arith.constant 10 : i32
    %c0_i32_152 = arith.constant 0 : i32
    %278 = arith.cmpi eq, %c10_i32, %c0_i32_152 : i32
    %c1_i32_153 = arith.constant 1 : i32
    %279 = arith.select %278, %c1_i32_153, %c10_i32 : i32
    %280 = vector.broadcast %279 : i32 to vector<34x1xi32>
    %281 = arith.remsi %277, %280 : vector<34x1xi32>
    %c0_i32_154 = arith.constant 0 : i32
    %282 = vector.broadcast %c0_i32_154 : i32 to vector<34x1xi32>
    %283 = arith.cmpi ne, %281, %282 : vector<34x1xi32>
    %c0_i32_155 = arith.constant 0 : i32
    %284 = vector.broadcast %c0_i32_155 : i32 to vector<34x1xi32>
    %285 = arith.cmpi slt, %281, %284 : vector<34x1xi32>
    %c0_i32_156 = arith.constant 0 : i32
    %286 = arith.cmpi slt, %279, %c0_i32_156 : i32
    %287 = vector.broadcast %286 : i1 to vector<34x1xi1>
    %288 = vector.broadcast %287 : vector<34x1xi1> to vector<34x1xi1>
    %289 = arith.xori %285, %288 : vector<34x1xi1>
    %290 = arith.andi %289, %283 : vector<34x1xi1>
    %291 = vector.broadcast %279 : i32 to vector<34x1xi32>
    %292 = arith.addi %281, %291 : vector<34x1xi32>
    %293 = arith.select %290, %292, %281 : vector<34x1xi1>, vector<34x1xi32>
    %c4_i32 = arith.constant 4 : i32
    %294 = vector.broadcast %c4_i32 : i32 to vector<34x1xi32>
    %295 = arith.cmpi slt, %293, %294 : vector<34x1xi32>
    %cst_157 = arith.constant 0.000000e+00 : f32
    %296 = vector.shape_cast %295 : vector<34x1xi1> to vector<34x1xi1>
    %297 = vector.broadcast %296 : vector<34x1xi1> to vector<34x32xi1>
    %298 = vector.broadcast %cst_157 : f32 to vector<34x32xf32>
    %299 = arith.select %297, %276, %298 : vector<34x32xi1>, vector<34x32xf32>
    %cst_158 = arith.constant dense<0.000000e+00> : vector<32xf32>
    %300 = vector.multi_reduction <add>, %299, %cst_158 [0] : vector<34x32xf32> to vector<32xf32>
    %301 = vector.shape_cast %300 : vector<32xf32> to vector<1x32xf32>
    %cst_159 = arith.constant 6.250000e-02 : f32
    %302 = vector.broadcast %cst_159 : f32 to vector<1x32xf32>
    %303 = arith.mulf %301, %302 : vector<1x32xf32>
    %304 = vector.broadcast %303 : vector<1x32xf32> to vector<34x32xf32>
    %305 = arith.subf %276, %304 : vector<34x32xf32>
    %cst_160 = arith.constant 0.000000e+00 : f32
    %306 = vector.shape_cast %295 : vector<34x1xi1> to vector<34x1xi1>
    %307 = vector.broadcast %306 : vector<34x1xi1> to vector<34x32xi1>
    %308 = vector.broadcast %cst_160 : f32 to vector<34x32xf32>
    %309 = arith.select %307, %305, %308 : vector<34x32xi1>, vector<34x32xf32>
    %310 = arith.mulf %309, %309 : vector<34x32xf32>
    %cst_161 = arith.constant dense<0.000000e+00> : vector<32xf32>
    %311 = vector.multi_reduction <add>, %310, %cst_161 [0] : vector<34x32xf32> to vector<32xf32>
    %312 = vector.shape_cast %311 : vector<32xf32> to vector<1x32xf32>
    %cst_162 = arith.constant 6.250000e-02 : f32
    %313 = vector.broadcast %cst_162 : f32 to vector<1x32xf32>
    %314 = arith.mulf %312, %313 : vector<1x32xf32>
    %cst_163 = arith.constant 9.99999974E-6 : f32
    %315 = vector.broadcast %cst_163 : f32 to vector<1x32xf32>
    %316 = arith.addf %314, %315 : vector<1x32xf32>
    %317 = math.rsqrt %316 : vector<1x32xf32>
    %318 = vector.broadcast %317 : vector<1x32xf32> to vector<34x32xf32>
    %319 = arith.mulf %305, %318 : vector<34x32xf32>
    %cst_164 = arith.constant 0.000000e+00 : f32
    %320 = vector.broadcast %cst_164 : f32 to vector<34x32xf32>
    %321 = arith.maximumf %319, %320 : vector<34x32xf32>
    %322 = vector.extract_strided_slice %321 {offsets = [0, 0], sizes = [4, 32], strides = [1, 1]} : vector<34x32xf32> to vector<4x32xf32>
    %323 = vector.extract_strided_slice %321 {offsets = [10, 0], sizes = [4, 32], strides = [1, 1]} : vector<34x32xf32> to vector<4x32xf32>
    %324 = vector.extract_strided_slice %321 {offsets = [20, 0], sizes = [4, 32], strides = [1, 1]} : vector<34x32xf32> to vector<4x32xf32>
    %325 = vector.extract_strided_slice %321 {offsets = [30, 0], sizes = [4, 32], strides = [1, 1]} : vector<34x32xf32> to vector<4x32xf32>
    %326 = tpu.concatenate %322, %323, %324, %325 in 0 : vector<4x32xf32>, vector<4x32xf32>, vector<4x32xf32>, vector<4x32xf32> -> vector<16x32xf32>
    %327 = vector.extract_strided_slice %326 {offsets = [0, 0], sizes = [4, 32], strides = [1, 1]} : vector<16x32xf32> to vector<4x32xf32>
    %328 = vector.extract_strided_slice %327 {offsets = [1, 0], sizes = [1, 32], strides = [1, 1]} : vector<4x32xf32> to vector<1x32xf32>
    %329 = vector.extract_strided_slice %327 {offsets = [2, 0], sizes = [1, 32], strides = [1, 1]} : vector<4x32xf32> to vector<1x32xf32>
    %330 = tpu.concatenate %328, %327, %329 in 0 : vector<1x32xf32>, vector<4x32xf32>, vector<1x32xf32> -> vector<6x32xf32>
    %331 = vector.extract_strided_slice %326 {offsets = [4, 0], sizes = [4, 32], strides = [1, 1]} : vector<16x32xf32> to vector<4x32xf32>
    %332 = vector.extract_strided_slice %331 {offsets = [1, 0], sizes = [1, 32], strides = [1, 1]} : vector<4x32xf32> to vector<1x32xf32>
    %333 = vector.extract_strided_slice %331 {offsets = [2, 0], sizes = [1, 32], strides = [1, 1]} : vector<4x32xf32> to vector<1x32xf32>
    %334 = tpu.concatenate %332, %331, %333 in 0 : vector<1x32xf32>, vector<4x32xf32>, vector<1x32xf32> -> vector<6x32xf32>
    %335 = vector.extract_strided_slice %326 {offsets = [8, 0], sizes = [4, 32], strides = [1, 1]} : vector<16x32xf32> to vector<4x32xf32>
    %336 = vector.extract_strided_slice %335 {offsets = [1, 0], sizes = [1, 32], strides = [1, 1]} : vector<4x32xf32> to vector<1x32xf32>
    %337 = vector.extract_strided_slice %335 {offsets = [2, 0], sizes = [1, 32], strides = [1, 1]} : vector<4x32xf32> to vector<1x32xf32>
    %338 = tpu.concatenate %336, %335, %337 in 0 : vector<1x32xf32>, vector<4x32xf32>, vector<1x32xf32> -> vector<6x32xf32>
    %339 = vector.extract_strided_slice %326 {offsets = [12, 0], sizes = [4, 32], strides = [1, 1]} : vector<16x32xf32> to vector<4x32xf32>
    %340 = vector.extract_strided_slice %339 {offsets = [1, 0], sizes = [1, 32], strides = [1, 1]} : vector<4x32xf32> to vector<1x32xf32>
    %341 = vector.extract_strided_slice %339 {offsets = [2, 0], sizes = [1, 32], strides = [1, 1]} : vector<4x32xf32> to vector<1x32xf32>
    %342 = tpu.concatenate %340, %339, %341 in 0 : vector<1x32xf32>, vector<4x32xf32>, vector<1x32xf32> -> vector<6x32xf32>
    %343 = tpu.concatenate %334, %330, %334, %338, %342, %338 in 0 : vector<6x32xf32>, vector<6x32xf32>, vector<6x32xf32>, vector<6x32xf32>, vector<6x32xf32>, vector<6x32xf32> -> vector<36x32xf32>
    %cst_165 = arith.constant 0.000000e+00 : f32
    %344 = vector.broadcast %cst_165 : f32 to vector<22x32xf32>
    %345 = vector.extract_strided_slice %343 {offsets = [0, 0], sizes = [22, 32], strides = [1, 1]} : vector<36x32xf32> to vector<22x32xf32>
    %c0_166 = arith.constant 0 : index
    %c0_167 = arith.constant 0 : index
    %c0_168 = arith.constant 0 : index
    %c0_169 = arith.constant 0 : index
    %346 = vector.load %arg5[%c0_166, %c0_167, %c0_168, %c0_169] : memref<6x9x32x32xbf16, #tpu.memory_space<vmem>>, vector<1x1x32x32xbf16>
    %347 = vector.shape_cast %346 : vector<1x1x32x32xbf16> to vector<32x32xbf16>
    %348 = arith.truncf %345 : vector<22x32xf32> to vector<22x32xbf16>
    %cst_170 = arith.constant dense<0.000000e+00> : vector<22x32xf32>
    %349 = tpu.matmul %348, %347, %cst_170 {dimension_numbers = #tpu.dot_dimension_numbers<[1], [0], [0], [1], [0, 0, 1, 1], [], []>} : vector<22x32xbf16>, vector<32x32xbf16>, vector<22x32xf32> -> vector<22x32xf32>
    %350 = arith.addf %344, %349 : vector<22x32xf32>
    %351 = vector.extract_strided_slice %343 {offsets = [1, 0], sizes = [22, 32], strides = [1, 1]} : vector<36x32xf32> to vector<22x32xf32>
    %c0_171 = arith.constant 0 : index
    %c1_172 = arith.constant 1 : index
    %c0_173 = arith.constant 0 : index
    %c0_174 = arith.constant 0 : index
    %352 = vector.load %arg5[%c0_171, %c1_172, %c0_173, %c0_174] : memref<6x9x32x32xbf16, #tpu.memory_space<vmem>>, vector<1x1x32x32xbf16>
    %353 = vector.shape_cast %352 : vector<1x1x32x32xbf16> to vector<32x32xbf16>
    %354 = arith.truncf %351 : vector<22x32xf32> to vector<22x32xbf16>
    %cst_175 = arith.constant dense<0.000000e+00> : vector<22x32xf32>
    %355 = tpu.matmul %354, %353, %cst_175 {dimension_numbers = #tpu.dot_dimension_numbers<[1], [0], [0], [1], [0, 0, 1, 1], [], []>} : vector<22x32xbf16>, vector<32x32xbf16>, vector<22x32xf32> -> vector<22x32xf32>
    %356 = arith.addf %350, %355 : vector<22x32xf32>
    %357 = vector.extract_strided_slice %343 {offsets = [2, 0], sizes = [22, 32], strides = [1, 1]} : vector<36x32xf32> to vector<22x32xf32>
    %c0_176 = arith.constant 0 : index
    %c2_177 = arith.constant 2 : index
    %c0_178 = arith.constant 0 : index
    %c0_179 = arith.constant 0 : index
    %358 = vector.load %arg5[%c0_176, %c2_177, %c0_178, %c0_179] : memref<6x9x32x32xbf16, #tpu.memory_space<vmem>>, vector<1x1x32x32xbf16>
    %359 = vector.shape_cast %358 : vector<1x1x32x32xbf16> to vector<32x32xbf16>
    %360 = arith.truncf %357 : vector<22x32xf32> to vector<22x32xbf16>
    %cst_180 = arith.constant dense<0.000000e+00> : vector<22x32xf32>
    %361 = tpu.matmul %360, %359, %cst_180 {dimension_numbers = #tpu.dot_dimension_numbers<[1], [0], [0], [1], [0, 0, 1, 1], [], []>} : vector<22x32xbf16>, vector<32x32xbf16>, vector<22x32xf32> -> vector<22x32xf32>
    %362 = arith.addf %356, %361 : vector<22x32xf32>
    %363 = vector.extract_strided_slice %343 {offsets = [6, 0], sizes = [22, 32], strides = [1, 1]} : vector<36x32xf32> to vector<22x32xf32>
    %c0_181 = arith.constant 0 : index
    %c3_182 = arith.constant 3 : index
    %c0_183 = arith.constant 0 : index
    %c0_184 = arith.constant 0 : index
    %364 = vector.load %arg5[%c0_181, %c3_182, %c0_183, %c0_184] : memref<6x9x32x32xbf16, #tpu.memory_space<vmem>>, vector<1x1x32x32xbf16>
    %365 = vector.shape_cast %364 : vector<1x1x32x32xbf16> to vector<32x32xbf16>
    %366 = arith.truncf %363 : vector<22x32xf32> to vector<22x32xbf16>
    %cst_185 = arith.constant dense<0.000000e+00> : vector<22x32xf32>
    %367 = tpu.matmul %366, %365, %cst_185 {dimension_numbers = #tpu.dot_dimension_numbers<[1], [0], [0], [1], [0, 0, 1, 1], [], []>} : vector<22x32xbf16>, vector<32x32xbf16>, vector<22x32xf32> -> vector<22x32xf32>
    %368 = arith.addf %362, %367 : vector<22x32xf32>
    %369 = vector.extract_strided_slice %343 {offsets = [7, 0], sizes = [22, 32], strides = [1, 1]} : vector<36x32xf32> to vector<22x32xf32>
    %c0_186 = arith.constant 0 : index
    %c4_187 = arith.constant 4 : index
    %c0_188 = arith.constant 0 : index
    %c0_189 = arith.constant 0 : index
    %370 = vector.load %arg5[%c0_186, %c4_187, %c0_188, %c0_189] : memref<6x9x32x32xbf16, #tpu.memory_space<vmem>>, vector<1x1x32x32xbf16>
    %371 = vector.shape_cast %370 : vector<1x1x32x32xbf16> to vector<32x32xbf16>
    %372 = arith.truncf %369 : vector<22x32xf32> to vector<22x32xbf16>
    %cst_190 = arith.constant dense<0.000000e+00> : vector<22x32xf32>
    %373 = tpu.matmul %372, %371, %cst_190 {dimension_numbers = #tpu.dot_dimension_numbers<[1], [0], [0], [1], [0, 0, 1, 1], [], []>} : vector<22x32xbf16>, vector<32x32xbf16>, vector<22x32xf32> -> vector<22x32xf32>
    %374 = arith.addf %368, %373 : vector<22x32xf32>
    %375 = vector.extract_strided_slice %343 {offsets = [8, 0], sizes = [22, 32], strides = [1, 1]} : vector<36x32xf32> to vector<22x32xf32>
    %c0_191 = arith.constant 0 : index
    %c5_192 = arith.constant 5 : index
    %c0_193 = arith.constant 0 : index
    %c0_194 = arith.constant 0 : index
    %376 = vector.load %arg5[%c0_191, %c5_192, %c0_193, %c0_194] : memref<6x9x32x32xbf16, #tpu.memory_space<vmem>>, vector<1x1x32x32xbf16>
    %377 = vector.shape_cast %376 : vector<1x1x32x32xbf16> to vector<32x32xbf16>
    %378 = arith.truncf %375 : vector<22x32xf32> to vector<22x32xbf16>
    %cst_195 = arith.constant dense<0.000000e+00> : vector<22x32xf32>
    %379 = tpu.matmul %378, %377, %cst_195 {dimension_numbers = #tpu.dot_dimension_numbers<[1], [0], [0], [1], [0, 0, 1, 1], [], []>} : vector<22x32xbf16>, vector<32x32xbf16>, vector<22x32xf32> -> vector<22x32xf32>
    %380 = arith.addf %374, %379 : vector<22x32xf32>
    %381 = vector.extract_strided_slice %343 {offsets = [12, 0], sizes = [22, 32], strides = [1, 1]} : vector<36x32xf32> to vector<22x32xf32>
    %c0_196 = arith.constant 0 : index
    %c6_197 = arith.constant 6 : index
    %c0_198 = arith.constant 0 : index
    %c0_199 = arith.constant 0 : index
    %382 = vector.load %arg5[%c0_196, %c6_197, %c0_198, %c0_199] : memref<6x9x32x32xbf16, #tpu.memory_space<vmem>>, vector<1x1x32x32xbf16>
    %383 = vector.shape_cast %382 : vector<1x1x32x32xbf16> to vector<32x32xbf16>
    %384 = arith.truncf %381 : vector<22x32xf32> to vector<22x32xbf16>
    %cst_200 = arith.constant dense<0.000000e+00> : vector<22x32xf32>
    %385 = tpu.matmul %384, %383, %cst_200 {dimension_numbers = #tpu.dot_dimension_numbers<[1], [0], [0], [1], [0, 0, 1, 1], [], []>} : vector<22x32xbf16>, vector<32x32xbf16>, vector<22x32xf32> -> vector<22x32xf32>
    %386 = arith.addf %380, %385 : vector<22x32xf32>
    %387 = vector.extract_strided_slice %343 {offsets = [13, 0], sizes = [22, 32], strides = [1, 1]} : vector<36x32xf32> to vector<22x32xf32>
    %c0_201 = arith.constant 0 : index
    %c7_202 = arith.constant 7 : index
    %c0_203 = arith.constant 0 : index
    %c0_204 = arith.constant 0 : index
    %388 = vector.load %arg5[%c0_201, %c7_202, %c0_203, %c0_204] : memref<6x9x32x32xbf16, #tpu.memory_space<vmem>>, vector<1x1x32x32xbf16>
    %389 = vector.shape_cast %388 : vector<1x1x32x32xbf16> to vector<32x32xbf16>
    %390 = arith.truncf %387 : vector<22x32xf32> to vector<22x32xbf16>
    %cst_205 = arith.constant dense<0.000000e+00> : vector<22x32xf32>
    %391 = tpu.matmul %390, %389, %cst_205 {dimension_numbers = #tpu.dot_dimension_numbers<[1], [0], [0], [1], [0, 0, 1, 1], [], []>} : vector<22x32xbf16>, vector<32x32xbf16>, vector<22x32xf32> -> vector<22x32xf32>
    %392 = arith.addf %386, %391 : vector<22x32xf32>
    %393 = vector.extract_strided_slice %343 {offsets = [14, 0], sizes = [22, 32], strides = [1, 1]} : vector<36x32xf32> to vector<22x32xf32>
    %c0_206 = arith.constant 0 : index
    %c8_207 = arith.constant 8 : index
    %c0_208 = arith.constant 0 : index
    %c0_209 = arith.constant 0 : index
    %394 = vector.load %arg5[%c0_206, %c8_207, %c0_208, %c0_209] : memref<6x9x32x32xbf16, #tpu.memory_space<vmem>>, vector<1x1x32x32xbf16>
    %395 = vector.shape_cast %394 : vector<1x1x32x32xbf16> to vector<32x32xbf16>
    %396 = arith.truncf %393 : vector<22x32xf32> to vector<22x32xbf16>
    %cst_210 = arith.constant dense<0.000000e+00> : vector<22x32xf32>
    %397 = tpu.matmul %396, %395, %cst_210 {dimension_numbers = #tpu.dot_dimension_numbers<[1], [0], [0], [1], [0, 0, 1, 1], [], []>} : vector<22x32xbf16>, vector<32x32xbf16>, vector<22x32xf32> -> vector<22x32xf32>
    %398 = arith.addf %392, %397 : vector<22x32xf32>
    %399 = vector.extract_strided_slice %398 {offsets = [0, 0], sizes = [4, 32], strides = [1, 1]} : vector<22x32xf32> to vector<4x32xf32>
    %400 = vector.extract_strided_slice %398 {offsets = [6, 0], sizes = [4, 32], strides = [1, 1]} : vector<22x32xf32> to vector<4x32xf32>
    %401 = vector.extract_strided_slice %398 {offsets = [12, 0], sizes = [4, 32], strides = [1, 1]} : vector<22x32xf32> to vector<4x32xf32>
    %402 = vector.extract_strided_slice %398 {offsets = [18, 0], sizes = [4, 32], strides = [1, 1]} : vector<22x32xf32> to vector<4x32xf32>
    %403 = tpu.concatenate %399, %400, %401, %402 in 0 : vector<4x32xf32>, vector<4x32xf32>, vector<4x32xf32>, vector<4x32xf32> -> vector<16x32xf32>
    %cst_211 = arith.constant dense<0.000000e+00> : vector<32xf32>
    %404 = vector.multi_reduction <add>, %403, %cst_211 [0] : vector<16x32xf32> to vector<32xf32>
    %405 = vector.shape_cast %404 : vector<32xf32> to vector<1x32xf32>
    %cst_212 = arith.constant 6.250000e-02 : f32
    %406 = vector.broadcast %cst_212 : f32 to vector<1x32xf32>
    %407 = arith.mulf %405, %406 : vector<1x32xf32>
    %408 = vector.broadcast %407 : vector<1x32xf32> to vector<16x32xf32>
    %409 = arith.subf %403, %408 : vector<16x32xf32>
    %410 = arith.mulf %409, %409 : vector<16x32xf32>
    %cst_213 = arith.constant dense<0.000000e+00> : vector<32xf32>
    %411 = vector.multi_reduction <add>, %410, %cst_213 [0] : vector<16x32xf32> to vector<32xf32>
    %412 = vector.shape_cast %411 : vector<32xf32> to vector<1x32xf32>
    %cst_214 = arith.constant 6.250000e-02 : f32
    %413 = vector.broadcast %cst_214 : f32 to vector<1x32xf32>
    %414 = arith.mulf %412, %413 : vector<1x32xf32>
    %cst_215 = arith.constant 9.99999974E-6 : f32
    %415 = vector.broadcast %cst_215 : f32 to vector<1x32xf32>
    %416 = arith.addf %414, %415 : vector<1x32xf32>
    %417 = math.rsqrt %416 : vector<1x32xf32>
    %418 = vector.broadcast %417 : vector<1x32xf32> to vector<16x32xf32>
    %419 = arith.mulf %409, %418 : vector<16x32xf32>
    %cst_216 = arith.constant 0.000000e+00 : f32
    %420 = vector.broadcast %cst_216 : f32 to vector<16x32xf32>
    %421 = arith.maximumf %419, %420 : vector<16x32xf32>
    %422 = vector.extract_strided_slice %421 {offsets = [0, 0], sizes = [4, 32], strides = [1, 1]} : vector<16x32xf32> to vector<4x32xf32>
    %423 = vector.extract_strided_slice %422 {offsets = [1, 0], sizes = [1, 32], strides = [1, 1]} : vector<4x32xf32> to vector<1x32xf32>
    %424 = vector.extract_strided_slice %422 {offsets = [2, 0], sizes = [1, 32], strides = [1, 1]} : vector<4x32xf32> to vector<1x32xf32>
    %425 = tpu.concatenate %423, %422, %424 in 0 : vector<1x32xf32>, vector<4x32xf32>, vector<1x32xf32> -> vector<6x32xf32>
    %426 = vector.extract_strided_slice %421 {offsets = [4, 0], sizes = [4, 32], strides = [1, 1]} : vector<16x32xf32> to vector<4x32xf32>
    %427 = vector.extract_strided_slice %426 {offsets = [1, 0], sizes = [1, 32], strides = [1, 1]} : vector<4x32xf32> to vector<1x32xf32>
    %428 = vector.extract_strided_slice %426 {offsets = [2, 0], sizes = [1, 32], strides = [1, 1]} : vector<4x32xf32> to vector<1x32xf32>
    %429 = tpu.concatenate %427, %426, %428 in 0 : vector<1x32xf32>, vector<4x32xf32>, vector<1x32xf32> -> vector<6x32xf32>
    %430 = vector.extract_strided_slice %421 {offsets = [8, 0], sizes = [4, 32], strides = [1, 1]} : vector<16x32xf32> to vector<4x32xf32>
    %431 = vector.extract_strided_slice %430 {offsets = [1, 0], sizes = [1, 32], strides = [1, 1]} : vector<4x32xf32> to vector<1x32xf32>
    %432 = vector.extract_strided_slice %430 {offsets = [2, 0], sizes = [1, 32], strides = [1, 1]} : vector<4x32xf32> to vector<1x32xf32>
    %433 = tpu.concatenate %431, %430, %432 in 0 : vector<1x32xf32>, vector<4x32xf32>, vector<1x32xf32> -> vector<6x32xf32>
    %434 = vector.extract_strided_slice %421 {offsets = [12, 0], sizes = [4, 32], strides = [1, 1]} : vector<16x32xf32> to vector<4x32xf32>
    %435 = vector.extract_strided_slice %434 {offsets = [1, 0], sizes = [1, 32], strides = [1, 1]} : vector<4x32xf32> to vector<1x32xf32>
    %436 = vector.extract_strided_slice %434 {offsets = [2, 0], sizes = [1, 32], strides = [1, 1]} : vector<4x32xf32> to vector<1x32xf32>
    %437 = tpu.concatenate %435, %434, %436 in 0 : vector<1x32xf32>, vector<4x32xf32>, vector<1x32xf32> -> vector<6x32xf32>
    %438 = tpu.concatenate %429, %425, %429, %433, %437, %433 in 0 : vector<6x32xf32>, vector<6x32xf32>, vector<6x32xf32>, vector<6x32xf32>, vector<6x32xf32>, vector<6x32xf32> -> vector<36x32xf32>
    %cst_217 = arith.constant 0.000000e+00 : f32
    %439 = vector.broadcast %cst_217 : f32 to vector<22x32xf32>
    %440 = vector.extract_strided_slice %438 {offsets = [0, 0], sizes = [22, 32], strides = [1, 1]} : vector<36x32xf32> to vector<22x32xf32>
    %c1_218 = arith.constant 1 : index
    %c0_219 = arith.constant 0 : index
    %c0_220 = arith.constant 0 : index
    %c0_221 = arith.constant 0 : index
    %441 = vector.load %arg5[%c1_218, %c0_219, %c0_220, %c0_221] : memref<6x9x32x32xbf16, #tpu.memory_space<vmem>>, vector<1x1x32x32xbf16>
    %442 = vector.shape_cast %441 : vector<1x1x32x32xbf16> to vector<32x32xbf16>
    %443 = arith.truncf %440 : vector<22x32xf32> to vector<22x32xbf16>
    %cst_222 = arith.constant dense<0.000000e+00> : vector<22x32xf32>
    %444 = tpu.matmul %443, %442, %cst_222 {dimension_numbers = #tpu.dot_dimension_numbers<[1], [0], [0], [1], [0, 0, 1, 1], [], []>} : vector<22x32xbf16>, vector<32x32xbf16>, vector<22x32xf32> -> vector<22x32xf32>
    %445 = arith.addf %439, %444 : vector<22x32xf32>
    %446 = vector.extract_strided_slice %438 {offsets = [1, 0], sizes = [22, 32], strides = [1, 1]} : vector<36x32xf32> to vector<22x32xf32>
    %c1_223 = arith.constant 1 : index
    %c1_224 = arith.constant 1 : index
    %c0_225 = arith.constant 0 : index
    %c0_226 = arith.constant 0 : index
    %447 = vector.load %arg5[%c1_223, %c1_224, %c0_225, %c0_226] : memref<6x9x32x32xbf16, #tpu.memory_space<vmem>>, vector<1x1x32x32xbf16>
    %448 = vector.shape_cast %447 : vector<1x1x32x32xbf16> to vector<32x32xbf16>
    %449 = arith.truncf %446 : vector<22x32xf32> to vector<22x32xbf16>
    %cst_227 = arith.constant dense<0.000000e+00> : vector<22x32xf32>
    %450 = tpu.matmul %449, %448, %cst_227 {dimension_numbers = #tpu.dot_dimension_numbers<[1], [0], [0], [1], [0, 0, 1, 1], [], []>} : vector<22x32xbf16>, vector<32x32xbf16>, vector<22x32xf32> -> vector<22x32xf32>
    %451 = arith.addf %445, %450 : vector<22x32xf32>
    %452 = vector.extract_strided_slice %438 {offsets = [2, 0], sizes = [22, 32], strides = [1, 1]} : vector<36x32xf32> to vector<22x32xf32>
    %c1_228 = arith.constant 1 : index
    %c2_229 = arith.constant 2 : index
    %c0_230 = arith.constant 0 : index
    %c0_231 = arith.constant 0 : index
    %453 = vector.load %arg5[%c1_228, %c2_229, %c0_230, %c0_231] : memref<6x9x32x32xbf16, #tpu.memory_space<vmem>>, vector<1x1x32x32xbf16>
    %454 = vector.shape_cast %453 : vector<1x1x32x32xbf16> to vector<32x32xbf16>
    %455 = arith.truncf %452 : vector<22x32xf32> to vector<22x32xbf16>
    %cst_232 = arith.constant dense<0.000000e+00> : vector<22x32xf32>
    %456 = tpu.matmul %455, %454, %cst_232 {dimension_numbers = #tpu.dot_dimension_numbers<[1], [0], [0], [1], [0, 0, 1, 1], [], []>} : vector<22x32xbf16>, vector<32x32xbf16>, vector<22x32xf32> -> vector<22x32xf32>
    %457 = arith.addf %451, %456 : vector<22x32xf32>
    %458 = vector.extract_strided_slice %438 {offsets = [6, 0], sizes = [22, 32], strides = [1, 1]} : vector<36x32xf32> to vector<22x32xf32>
    %c1_233 = arith.constant 1 : index
    %c3_234 = arith.constant 3 : index
    %c0_235 = arith.constant 0 : index
    %c0_236 = arith.constant 0 : index
    %459 = vector.load %arg5[%c1_233, %c3_234, %c0_235, %c0_236] : memref<6x9x32x32xbf16, #tpu.memory_space<vmem>>, vector<1x1x32x32xbf16>
    %460 = vector.shape_cast %459 : vector<1x1x32x32xbf16> to vector<32x32xbf16>
    %461 = arith.truncf %458 : vector<22x32xf32> to vector<22x32xbf16>
    %cst_237 = arith.constant dense<0.000000e+00> : vector<22x32xf32>
    %462 = tpu.matmul %461, %460, %cst_237 {dimension_numbers = #tpu.dot_dimension_numbers<[1], [0], [0], [1], [0, 0, 1, 1], [], []>} : vector<22x32xbf16>, vector<32x32xbf16>, vector<22x32xf32> -> vector<22x32xf32>
    %463 = arith.addf %457, %462 : vector<22x32xf32>
    %464 = vector.extract_strided_slice %438 {offsets = [7, 0], sizes = [22, 32], strides = [1, 1]} : vector<36x32xf32> to vector<22x32xf32>
    %c1_238 = arith.constant 1 : index
    %c4_239 = arith.constant 4 : index
    %c0_240 = arith.constant 0 : index
    %c0_241 = arith.constant 0 : index
    %465 = vector.load %arg5[%c1_238, %c4_239, %c0_240, %c0_241] : memref<6x9x32x32xbf16, #tpu.memory_space<vmem>>, vector<1x1x32x32xbf16>
    %466 = vector.shape_cast %465 : vector<1x1x32x32xbf16> to vector<32x32xbf16>
    %467 = arith.truncf %464 : vector<22x32xf32> to vector<22x32xbf16>
    %cst_242 = arith.constant dense<0.000000e+00> : vector<22x32xf32>
    %468 = tpu.matmul %467, %466, %cst_242 {dimension_numbers = #tpu.dot_dimension_numbers<[1], [0], [0], [1], [0, 0, 1, 1], [], []>} : vector<22x32xbf16>, vector<32x32xbf16>, vector<22x32xf32> -> vector<22x32xf32>
    %469 = arith.addf %463, %468 : vector<22x32xf32>
    %470 = vector.extract_strided_slice %438 {offsets = [8, 0], sizes = [22, 32], strides = [1, 1]} : vector<36x32xf32> to vector<22x32xf32>
    %c1_243 = arith.constant 1 : index
    %c5_244 = arith.constant 5 : index
    %c0_245 = arith.constant 0 : index
    %c0_246 = arith.constant 0 : index
    %471 = vector.load %arg5[%c1_243, %c5_244, %c0_245, %c0_246] : memref<6x9x32x32xbf16, #tpu.memory_space<vmem>>, vector<1x1x32x32xbf16>
    %472 = vector.shape_cast %471 : vector<1x1x32x32xbf16> to vector<32x32xbf16>
    %473 = arith.truncf %470 : vector<22x32xf32> to vector<22x32xbf16>
    %cst_247 = arith.constant dense<0.000000e+00> : vector<22x32xf32>
    %474 = tpu.matmul %473, %472, %cst_247 {dimension_numbers = #tpu.dot_dimension_numbers<[1], [0], [0], [1], [0, 0, 1, 1], [], []>} : vector<22x32xbf16>, vector<32x32xbf16>, vector<22x32xf32> -> vector<22x32xf32>
    %475 = arith.addf %469, %474 : vector<22x32xf32>
    %476 = vector.extract_strided_slice %438 {offsets = [12, 0], sizes = [22, 32], strides = [1, 1]} : vector<36x32xf32> to vector<22x32xf32>
    %c1_248 = arith.constant 1 : index
    %c6_249 = arith.constant 6 : index
    %c0_250 = arith.constant 0 : index
    %c0_251 = arith.constant 0 : index
    %477 = vector.load %arg5[%c1_248, %c6_249, %c0_250, %c0_251] : memref<6x9x32x32xbf16, #tpu.memory_space<vmem>>, vector<1x1x32x32xbf16>
    %478 = vector.shape_cast %477 : vector<1x1x32x32xbf16> to vector<32x32xbf16>
    %479 = arith.truncf %476 : vector<22x32xf32> to vector<22x32xbf16>
    %cst_252 = arith.constant dense<0.000000e+00> : vector<22x32xf32>
    %480 = tpu.matmul %479, %478, %cst_252 {dimension_numbers = #tpu.dot_dimension_numbers<[1], [0], [0], [1], [0, 0, 1, 1], [], []>} : vector<22x32xbf16>, vector<32x32xbf16>, vector<22x32xf32> -> vector<22x32xf32>
    %481 = arith.addf %475, %480 : vector<22x32xf32>
    %482 = vector.extract_strided_slice %438 {offsets = [13, 0], sizes = [22, 32], strides = [1, 1]} : vector<36x32xf32> to vector<22x32xf32>
    %c1_253 = arith.constant 1 : index
    %c7_254 = arith.constant 7 : index
    %c0_255 = arith.constant 0 : index
    %c0_256 = arith.constant 0 : index
    %483 = vector.load %arg5[%c1_253, %c7_254, %c0_255, %c0_256] : memref<6x9x32x32xbf16, #tpu.memory_space<vmem>>, vector<1x1x32x32xbf16>
    %484 = vector.shape_cast %483 : vector<1x1x32x32xbf16> to vector<32x32xbf16>
    %485 = arith.truncf %482 : vector<22x32xf32> to vector<22x32xbf16>
    %cst_257 = arith.constant dense<0.000000e+00> : vector<22x32xf32>
    %486 = tpu.matmul %485, %484, %cst_257 {dimension_numbers = #tpu.dot_dimension_numbers<[1], [0], [0], [1], [0, 0, 1, 1], [], []>} : vector<22x32xbf16>, vector<32x32xbf16>, vector<22x32xf32> -> vector<22x32xf32>
    %487 = arith.addf %481, %486 : vector<22x32xf32>
    %488 = vector.extract_strided_slice %438 {offsets = [14, 0], sizes = [22, 32], strides = [1, 1]} : vector<36x32xf32> to vector<22x32xf32>
    %c1_258 = arith.constant 1 : index
    %c8_259 = arith.constant 8 : index
    %c0_260 = arith.constant 0 : index
    %c0_261 = arith.constant 0 : index
    %489 = vector.load %arg5[%c1_258, %c8_259, %c0_260, %c0_261] : memref<6x9x32x32xbf16, #tpu.memory_space<vmem>>, vector<1x1x32x32xbf16>
    %490 = vector.shape_cast %489 : vector<1x1x32x32xbf16> to vector<32x32xbf16>
    %491 = arith.truncf %488 : vector<22x32xf32> to vector<22x32xbf16>
    %cst_262 = arith.constant dense<0.000000e+00> : vector<22x32xf32>
    %492 = tpu.matmul %491, %490, %cst_262 {dimension_numbers = #tpu.dot_dimension_numbers<[1], [0], [0], [1], [0, 0, 1, 1], [], []>} : vector<22x32xbf16>, vector<32x32xbf16>, vector<22x32xf32> -> vector<22x32xf32>
    %493 = arith.addf %487, %492 : vector<22x32xf32>
    %494 = vector.extract_strided_slice %493 {offsets = [0, 0], sizes = [4, 32], strides = [1, 1]} : vector<22x32xf32> to vector<4x32xf32>
    %495 = vector.extract_strided_slice %493 {offsets = [6, 0], sizes = [4, 32], strides = [1, 1]} : vector<22x32xf32> to vector<4x32xf32>
    %496 = vector.extract_strided_slice %493 {offsets = [12, 0], sizes = [4, 32], strides = [1, 1]} : vector<22x32xf32> to vector<4x32xf32>
    %497 = vector.extract_strided_slice %493 {offsets = [18, 0], sizes = [4, 32], strides = [1, 1]} : vector<22x32xf32> to vector<4x32xf32>
    %498 = tpu.concatenate %494, %495, %496, %497 in 0 : vector<4x32xf32>, vector<4x32xf32>, vector<4x32xf32>, vector<4x32xf32> -> vector<16x32xf32>
    %cst_263 = arith.constant dense<0.000000e+00> : vector<32xf32>
    %499 = vector.multi_reduction <add>, %498, %cst_263 [0] : vector<16x32xf32> to vector<32xf32>
    %500 = vector.shape_cast %499 : vector<32xf32> to vector<1x32xf32>
    %cst_264 = arith.constant 6.250000e-02 : f32
    %501 = vector.broadcast %cst_264 : f32 to vector<1x32xf32>
    %502 = arith.mulf %500, %501 : vector<1x32xf32>
    %503 = vector.broadcast %502 : vector<1x32xf32> to vector<16x32xf32>
    %504 = arith.subf %498, %503 : vector<16x32xf32>
    %505 = arith.mulf %504, %504 : vector<16x32xf32>
    %cst_265 = arith.constant dense<0.000000e+00> : vector<32xf32>
    %506 = vector.multi_reduction <add>, %505, %cst_265 [0] : vector<16x32xf32> to vector<32xf32>
    %507 = vector.shape_cast %506 : vector<32xf32> to vector<1x32xf32>
    %cst_266 = arith.constant 6.250000e-02 : f32
    %508 = vector.broadcast %cst_266 : f32 to vector<1x32xf32>
    %509 = arith.mulf %507, %508 : vector<1x32xf32>
    %cst_267 = arith.constant 9.99999974E-6 : f32
    %510 = vector.broadcast %cst_267 : f32 to vector<1x32xf32>
    %511 = arith.addf %509, %510 : vector<1x32xf32>
    %512 = math.rsqrt %511 : vector<1x32xf32>
    %513 = vector.broadcast %512 : vector<1x32xf32> to vector<16x32xf32>
    %514 = arith.mulf %504, %513 : vector<16x32xf32>
    %515 = arith.addf %326, %514 : vector<16x32xf32>
    %516 = vector.extract_strided_slice %515 {offsets = [0, 0], sizes = [4, 32], strides = [1, 1]} : vector<16x32xf32> to vector<4x32xf32>
    %517 = vector.extract_strided_slice %516 {offsets = [1, 0], sizes = [1, 32], strides = [1, 1]} : vector<4x32xf32> to vector<1x32xf32>
    %518 = vector.extract_strided_slice %516 {offsets = [2, 0], sizes = [1, 32], strides = [1, 1]} : vector<4x32xf32> to vector<1x32xf32>
    %519 = tpu.concatenate %517, %516, %518 in 0 : vector<1x32xf32>, vector<4x32xf32>, vector<1x32xf32> -> vector<6x32xf32>
    %520 = vector.extract_strided_slice %515 {offsets = [4, 0], sizes = [4, 32], strides = [1, 1]} : vector<16x32xf32> to vector<4x32xf32>
    %521 = vector.extract_strided_slice %520 {offsets = [1, 0], sizes = [1, 32], strides = [1, 1]} : vector<4x32xf32> to vector<1x32xf32>
    %522 = vector.extract_strided_slice %520 {offsets = [2, 0], sizes = [1, 32], strides = [1, 1]} : vector<4x32xf32> to vector<1x32xf32>
    %523 = tpu.concatenate %521, %520, %522 in 0 : vector<1x32xf32>, vector<4x32xf32>, vector<1x32xf32> -> vector<6x32xf32>
    %524 = vector.extract_strided_slice %515 {offsets = [8, 0], sizes = [4, 32], strides = [1, 1]} : vector<16x32xf32> to vector<4x32xf32>
    %525 = vector.extract_strided_slice %524 {offsets = [1, 0], sizes = [1, 32], strides = [1, 1]} : vector<4x32xf32> to vector<1x32xf32>
    %526 = vector.extract_strided_slice %524 {offsets = [2, 0], sizes = [1, 32], strides = [1, 1]} : vector<4x32xf32> to vector<1x32xf32>
    %527 = tpu.concatenate %525, %524, %526 in 0 : vector<1x32xf32>, vector<4x32xf32>, vector<1x32xf32> -> vector<6x32xf32>
    %528 = vector.extract_strided_slice %515 {offsets = [12, 0], sizes = [4, 32], strides = [1, 1]} : vector<16x32xf32> to vector<4x32xf32>
    %529 = vector.extract_strided_slice %528 {offsets = [1, 0], sizes = [1, 32], strides = [1, 1]} : vector<4x32xf32> to vector<1x32xf32>
    %530 = vector.extract_strided_slice %528 {offsets = [2, 0], sizes = [1, 32], strides = [1, 1]} : vector<4x32xf32> to vector<1x32xf32>
    %531 = tpu.concatenate %529, %528, %530 in 0 : vector<1x32xf32>, vector<4x32xf32>, vector<1x32xf32> -> vector<6x32xf32>
    %532 = tpu.concatenate %523, %519, %523, %527, %531, %527 in 0 : vector<6x32xf32>, vector<6x32xf32>, vector<6x32xf32>, vector<6x32xf32>, vector<6x32xf32>, vector<6x32xf32> -> vector<36x32xf32>
    %cst_268 = arith.constant 0.000000e+00 : f32
    %533 = vector.broadcast %cst_268 : f32 to vector<22x32xf32>
    %534 = vector.extract_strided_slice %532 {offsets = [0, 0], sizes = [22, 32], strides = [1, 1]} : vector<36x32xf32> to vector<22x32xf32>
    %c2_269 = arith.constant 2 : index
    %c0_270 = arith.constant 0 : index
    %c0_271 = arith.constant 0 : index
    %c0_272 = arith.constant 0 : index
    %535 = vector.load %arg5[%c2_269, %c0_270, %c0_271, %c0_272] : memref<6x9x32x32xbf16, #tpu.memory_space<vmem>>, vector<1x1x32x32xbf16>
    %536 = vector.shape_cast %535 : vector<1x1x32x32xbf16> to vector<32x32xbf16>
    %537 = arith.truncf %534 : vector<22x32xf32> to vector<22x32xbf16>
    %cst_273 = arith.constant dense<0.000000e+00> : vector<22x32xf32>
    %538 = tpu.matmul %537, %536, %cst_273 {dimension_numbers = #tpu.dot_dimension_numbers<[1], [0], [0], [1], [0, 0, 1, 1], [], []>} : vector<22x32xbf16>, vector<32x32xbf16>, vector<22x32xf32> -> vector<22x32xf32>
    %539 = arith.addf %533, %538 : vector<22x32xf32>
    %540 = vector.extract_strided_slice %532 {offsets = [1, 0], sizes = [22, 32], strides = [1, 1]} : vector<36x32xf32> to vector<22x32xf32>
    %c2_274 = arith.constant 2 : index
    %c1_275 = arith.constant 1 : index
    %c0_276 = arith.constant 0 : index
    %c0_277 = arith.constant 0 : index
    %541 = vector.load %arg5[%c2_274, %c1_275, %c0_276, %c0_277] : memref<6x9x32x32xbf16, #tpu.memory_space<vmem>>, vector<1x1x32x32xbf16>
    %542 = vector.shape_cast %541 : vector<1x1x32x32xbf16> to vector<32x32xbf16>
    %543 = arith.truncf %540 : vector<22x32xf32> to vector<22x32xbf16>
    %cst_278 = arith.constant dense<0.000000e+00> : vector<22x32xf32>
    %544 = tpu.matmul %543, %542, %cst_278 {dimension_numbers = #tpu.dot_dimension_numbers<[1], [0], [0], [1], [0, 0, 1, 1], [], []>} : vector<22x32xbf16>, vector<32x32xbf16>, vector<22x32xf32> -> vector<22x32xf32>
    %545 = arith.addf %539, %544 : vector<22x32xf32>
    %546 = vector.extract_strided_slice %532 {offsets = [2, 0], sizes = [22, 32], strides = [1, 1]} : vector<36x32xf32> to vector<22x32xf32>
    %c2_279 = arith.constant 2 : index
    %c2_280 = arith.constant 2 : index
    %c0_281 = arith.constant 0 : index
    %c0_282 = arith.constant 0 : index
    %547 = vector.load %arg5[%c2_279, %c2_280, %c0_281, %c0_282] : memref<6x9x32x32xbf16, #tpu.memory_space<vmem>>, vector<1x1x32x32xbf16>
    %548 = vector.shape_cast %547 : vector<1x1x32x32xbf16> to vector<32x32xbf16>
    %549 = arith.truncf %546 : vector<22x32xf32> to vector<22x32xbf16>
    %cst_283 = arith.constant dense<0.000000e+00> : vector<22x32xf32>
    %550 = tpu.matmul %549, %548, %cst_283 {dimension_numbers = #tpu.dot_dimension_numbers<[1], [0], [0], [1], [0, 0, 1, 1], [], []>} : vector<22x32xbf16>, vector<32x32xbf16>, vector<22x32xf32> -> vector<22x32xf32>
    %551 = arith.addf %545, %550 : vector<22x32xf32>
    %552 = vector.extract_strided_slice %532 {offsets = [6, 0], sizes = [22, 32], strides = [1, 1]} : vector<36x32xf32> to vector<22x32xf32>
    %c2_284 = arith.constant 2 : index
    %c3_285 = arith.constant 3 : index
    %c0_286 = arith.constant 0 : index
    %c0_287 = arith.constant 0 : index
    %553 = vector.load %arg5[%c2_284, %c3_285, %c0_286, %c0_287] : memref<6x9x32x32xbf16, #tpu.memory_space<vmem>>, vector<1x1x32x32xbf16>
    %554 = vector.shape_cast %553 : vector<1x1x32x32xbf16> to vector<32x32xbf16>
    %555 = arith.truncf %552 : vector<22x32xf32> to vector<22x32xbf16>
    %cst_288 = arith.constant dense<0.000000e+00> : vector<22x32xf32>
    %556 = tpu.matmul %555, %554, %cst_288 {dimension_numbers = #tpu.dot_dimension_numbers<[1], [0], [0], [1], [0, 0, 1, 1], [], []>} : vector<22x32xbf16>, vector<32x32xbf16>, vector<22x32xf32> -> vector<22x32xf32>
    %557 = arith.addf %551, %556 : vector<22x32xf32>
    %558 = vector.extract_strided_slice %532 {offsets = [7, 0], sizes = [22, 32], strides = [1, 1]} : vector<36x32xf32> to vector<22x32xf32>
    %c2_289 = arith.constant 2 : index
    %c4_290 = arith.constant 4 : index
    %c0_291 = arith.constant 0 : index
    %c0_292 = arith.constant 0 : index
    %559 = vector.load %arg5[%c2_289, %c4_290, %c0_291, %c0_292] : memref<6x9x32x32xbf16, #tpu.memory_space<vmem>>, vector<1x1x32x32xbf16>
    %560 = vector.shape_cast %559 : vector<1x1x32x32xbf16> to vector<32x32xbf16>
    %561 = arith.truncf %558 : vector<22x32xf32> to vector<22x32xbf16>
    %cst_293 = arith.constant dense<0.000000e+00> : vector<22x32xf32>
    %562 = tpu.matmul %561, %560, %cst_293 {dimension_numbers = #tpu.dot_dimension_numbers<[1], [0], [0], [1], [0, 0, 1, 1], [], []>} : vector<22x32xbf16>, vector<32x32xbf16>, vector<22x32xf32> -> vector<22x32xf32>
    %563 = arith.addf %557, %562 : vector<22x32xf32>
    %564 = vector.extract_strided_slice %532 {offsets = [8, 0], sizes = [22, 32], strides = [1, 1]} : vector<36x32xf32> to vector<22x32xf32>
    %c2_294 = arith.constant 2 : index
    %c5_295 = arith.constant 5 : index
    %c0_296 = arith.constant 0 : index
    %c0_297 = arith.constant 0 : index
    %565 = vector.load %arg5[%c2_294, %c5_295, %c0_296, %c0_297] : memref<6x9x32x32xbf16, #tpu.memory_space<vmem>>, vector<1x1x32x32xbf16>
    %566 = vector.shape_cast %565 : vector<1x1x32x32xbf16> to vector<32x32xbf16>
    %567 = arith.truncf %564 : vector<22x32xf32> to vector<22x32xbf16>
    %cst_298 = arith.constant dense<0.000000e+00> : vector<22x32xf32>
    %568 = tpu.matmul %567, %566, %cst_298 {dimension_numbers = #tpu.dot_dimension_numbers<[1], [0], [0], [1], [0, 0, 1, 1], [], []>} : vector<22x32xbf16>, vector<32x32xbf16>, vector<22x32xf32> -> vector<22x32xf32>
    %569 = arith.addf %563, %568 : vector<22x32xf32>
    %570 = vector.extract_strided_slice %532 {offsets = [12, 0], sizes = [22, 32], strides = [1, 1]} : vector<36x32xf32> to vector<22x32xf32>
    %c2_299 = arith.constant 2 : index
    %c6_300 = arith.constant 6 : index
    %c0_301 = arith.constant 0 : index
    %c0_302 = arith.constant 0 : index
    %571 = vector.load %arg5[%c2_299, %c6_300, %c0_301, %c0_302] : memref<6x9x32x32xbf16, #tpu.memory_space<vmem>>, vector<1x1x32x32xbf16>
    %572 = vector.shape_cast %571 : vector<1x1x32x32xbf16> to vector<32x32xbf16>
    %573 = arith.truncf %570 : vector<22x32xf32> to vector<22x32xbf16>
    %cst_303 = arith.constant dense<0.000000e+00> : vector<22x32xf32>
    %574 = tpu.matmul %573, %572, %cst_303 {dimension_numbers = #tpu.dot_dimension_numbers<[1], [0], [0], [1], [0, 0, 1, 1], [], []>} : vector<22x32xbf16>, vector<32x32xbf16>, vector<22x32xf32> -> vector<22x32xf32>
    %575 = arith.addf %569, %574 : vector<22x32xf32>
    %576 = vector.extract_strided_slice %532 {offsets = [13, 0], sizes = [22, 32], strides = [1, 1]} : vector<36x32xf32> to vector<22x32xf32>
    %c2_304 = arith.constant 2 : index
    %c7_305 = arith.constant 7 : index
    %c0_306 = arith.constant 0 : index
    %c0_307 = arith.constant 0 : index
    %577 = vector.load %arg5[%c2_304, %c7_305, %c0_306, %c0_307] : memref<6x9x32x32xbf16, #tpu.memory_space<vmem>>, vector<1x1x32x32xbf16>
    %578 = vector.shape_cast %577 : vector<1x1x32x32xbf16> to vector<32x32xbf16>
    %579 = arith.truncf %576 : vector<22x32xf32> to vector<22x32xbf16>
    %cst_308 = arith.constant dense<0.000000e+00> : vector<22x32xf32>
    %580 = tpu.matmul %579, %578, %cst_308 {dimension_numbers = #tpu.dot_dimension_numbers<[1], [0], [0], [1], [0, 0, 1, 1], [], []>} : vector<22x32xbf16>, vector<32x32xbf16>, vector<22x32xf32> -> vector<22x32xf32>
    %581 = arith.addf %575, %580 : vector<22x32xf32>
    %582 = vector.extract_strided_slice %532 {offsets = [14, 0], sizes = [22, 32], strides = [1, 1]} : vector<36x32xf32> to vector<22x32xf32>
    %c2_309 = arith.constant 2 : index
    %c8_310 = arith.constant 8 : index
    %c0_311 = arith.constant 0 : index
    %c0_312 = arith.constant 0 : index
    %583 = vector.load %arg5[%c2_309, %c8_310, %c0_311, %c0_312] : memref<6x9x32x32xbf16, #tpu.memory_space<vmem>>, vector<1x1x32x32xbf16>
    %584 = vector.shape_cast %583 : vector<1x1x32x32xbf16> to vector<32x32xbf16>
    %585 = arith.truncf %582 : vector<22x32xf32> to vector<22x32xbf16>
    %cst_313 = arith.constant dense<0.000000e+00> : vector<22x32xf32>
    %586 = tpu.matmul %585, %584, %cst_313 {dimension_numbers = #tpu.dot_dimension_numbers<[1], [0], [0], [1], [0, 0, 1, 1], [], []>} : vector<22x32xbf16>, vector<32x32xbf16>, vector<22x32xf32> -> vector<22x32xf32>
    %587 = arith.addf %581, %586 : vector<22x32xf32>
    %588 = vector.extract_strided_slice %587 {offsets = [0, 0], sizes = [4, 32], strides = [1, 1]} : vector<22x32xf32> to vector<4x32xf32>
    %589 = vector.extract_strided_slice %587 {offsets = [6, 0], sizes = [4, 32], strides = [1, 1]} : vector<22x32xf32> to vector<4x32xf32>
    %590 = vector.extract_strided_slice %587 {offsets = [12, 0], sizes = [4, 32], strides = [1, 1]} : vector<22x32xf32> to vector<4x32xf32>
    %591 = vector.extract_strided_slice %587 {offsets = [18, 0], sizes = [4, 32], strides = [1, 1]} : vector<22x32xf32> to vector<4x32xf32>
    %592 = tpu.concatenate %588, %589, %590, %591 in 0 : vector<4x32xf32>, vector<4x32xf32>, vector<4x32xf32>, vector<4x32xf32> -> vector<16x32xf32>
    %cst_314 = arith.constant dense<0.000000e+00> : vector<32xf32>
    %593 = vector.multi_reduction <add>, %592, %cst_314 [0] : vector<16x32xf32> to vector<32xf32>
    %594 = vector.shape_cast %593 : vector<32xf32> to vector<1x32xf32>
    %cst_315 = arith.constant 6.250000e-02 : f32
    %595 = vector.broadcast %cst_315 : f32 to vector<1x32xf32>
    %596 = arith.mulf %594, %595 : vector<1x32xf32>
    %597 = vector.broadcast %596 : vector<1x32xf32> to vector<16x32xf32>
    %598 = arith.subf %592, %597 : vector<16x32xf32>
    %599 = arith.mulf %598, %598 : vector<16x32xf32>
    %cst_316 = arith.constant dense<0.000000e+00> : vector<32xf32>
    %600 = vector.multi_reduction <add>, %599, %cst_316 [0] : vector<16x32xf32> to vector<32xf32>
    %601 = vector.shape_cast %600 : vector<32xf32> to vector<1x32xf32>
    %cst_317 = arith.constant 6.250000e-02 : f32
    %602 = vector.broadcast %cst_317 : f32 to vector<1x32xf32>
    %603 = arith.mulf %601, %602 : vector<1x32xf32>
    %cst_318 = arith.constant 9.99999974E-6 : f32
    %604 = vector.broadcast %cst_318 : f32 to vector<1x32xf32>
    %605 = arith.addf %603, %604 : vector<1x32xf32>
    %606 = math.rsqrt %605 : vector<1x32xf32>
    %607 = vector.broadcast %606 : vector<1x32xf32> to vector<16x32xf32>
    %608 = arith.mulf %598, %607 : vector<16x32xf32>
    %cst_319 = arith.constant 0.000000e+00 : f32
    %609 = vector.broadcast %cst_319 : f32 to vector<16x32xf32>
    %610 = arith.maximumf %608, %609 : vector<16x32xf32>
    %611 = vector.extract_strided_slice %610 {offsets = [0, 0], sizes = [4, 32], strides = [1, 1]} : vector<16x32xf32> to vector<4x32xf32>
    %612 = vector.extract_strided_slice %611 {offsets = [1, 0], sizes = [1, 32], strides = [1, 1]} : vector<4x32xf32> to vector<1x32xf32>
    %613 = vector.extract_strided_slice %611 {offsets = [2, 0], sizes = [1, 32], strides = [1, 1]} : vector<4x32xf32> to vector<1x32xf32>
    %614 = tpu.concatenate %612, %611, %613 in 0 : vector<1x32xf32>, vector<4x32xf32>, vector<1x32xf32> -> vector<6x32xf32>
    %615 = vector.extract_strided_slice %610 {offsets = [4, 0], sizes = [4, 32], strides = [1, 1]} : vector<16x32xf32> to vector<4x32xf32>
    %616 = vector.extract_strided_slice %615 {offsets = [1, 0], sizes = [1, 32], strides = [1, 1]} : vector<4x32xf32> to vector<1x32xf32>
    %617 = vector.extract_strided_slice %615 {offsets = [2, 0], sizes = [1, 32], strides = [1, 1]} : vector<4x32xf32> to vector<1x32xf32>
    %618 = tpu.concatenate %616, %615, %617 in 0 : vector<1x32xf32>, vector<4x32xf32>, vector<1x32xf32> -> vector<6x32xf32>
    %619 = vector.extract_strided_slice %610 {offsets = [8, 0], sizes = [4, 32], strides = [1, 1]} : vector<16x32xf32> to vector<4x32xf32>
    %620 = vector.extract_strided_slice %619 {offsets = [1, 0], sizes = [1, 32], strides = [1, 1]} : vector<4x32xf32> to vector<1x32xf32>
    %621 = vector.extract_strided_slice %619 {offsets = [2, 0], sizes = [1, 32], strides = [1, 1]} : vector<4x32xf32> to vector<1x32xf32>
    %622 = tpu.concatenate %620, %619, %621 in 0 : vector<1x32xf32>, vector<4x32xf32>, vector<1x32xf32> -> vector<6x32xf32>
    %623 = vector.extract_strided_slice %610 {offsets = [12, 0], sizes = [4, 32], strides = [1, 1]} : vector<16x32xf32> to vector<4x32xf32>
    %624 = vector.extract_strided_slice %623 {offsets = [1, 0], sizes = [1, 32], strides = [1, 1]} : vector<4x32xf32> to vector<1x32xf32>
    %625 = vector.extract_strided_slice %623 {offsets = [2, 0], sizes = [1, 32], strides = [1, 1]} : vector<4x32xf32> to vector<1x32xf32>
    %626 = tpu.concatenate %624, %623, %625 in 0 : vector<1x32xf32>, vector<4x32xf32>, vector<1x32xf32> -> vector<6x32xf32>
    %627 = tpu.concatenate %618, %614, %618, %622, %626, %622 in 0 : vector<6x32xf32>, vector<6x32xf32>, vector<6x32xf32>, vector<6x32xf32>, vector<6x32xf32>, vector<6x32xf32> -> vector<36x32xf32>
    %cst_320 = arith.constant 0.000000e+00 : f32
    %628 = vector.broadcast %cst_320 : f32 to vector<22x32xf32>
    %629 = vector.extract_strided_slice %627 {offsets = [0, 0], sizes = [22, 32], strides = [1, 1]} : vector<36x32xf32> to vector<22x32xf32>
    %c3_321 = arith.constant 3 : index
    %c0_322 = arith.constant 0 : index
    %c0_323 = arith.constant 0 : index
    %c0_324 = arith.constant 0 : index
    %630 = vector.load %arg5[%c3_321, %c0_322, %c0_323, %c0_324] : memref<6x9x32x32xbf16, #tpu.memory_space<vmem>>, vector<1x1x32x32xbf16>
    %631 = vector.shape_cast %630 : vector<1x1x32x32xbf16> to vector<32x32xbf16>
    %632 = arith.truncf %629 : vector<22x32xf32> to vector<22x32xbf16>
    %cst_325 = arith.constant dense<0.000000e+00> : vector<22x32xf32>
    %633 = tpu.matmul %632, %631, %cst_325 {dimension_numbers = #tpu.dot_dimension_numbers<[1], [0], [0], [1], [0, 0, 1, 1], [], []>} : vector<22x32xbf16>, vector<32x32xbf16>, vector<22x32xf32> -> vector<22x32xf32>
    %634 = arith.addf %628, %633 : vector<22x32xf32>
    %635 = vector.extract_strided_slice %627 {offsets = [1, 0], sizes = [22, 32], strides = [1, 1]} : vector<36x32xf32> to vector<22x32xf32>
    %c3_326 = arith.constant 3 : index
    %c1_327 = arith.constant 1 : index
    %c0_328 = arith.constant 0 : index
    %c0_329 = arith.constant 0 : index
    %636 = vector.load %arg5[%c3_326, %c1_327, %c0_328, %c0_329] : memref<6x9x32x32xbf16, #tpu.memory_space<vmem>>, vector<1x1x32x32xbf16>
    %637 = vector.shape_cast %636 : vector<1x1x32x32xbf16> to vector<32x32xbf16>
    %638 = arith.truncf %635 : vector<22x32xf32> to vector<22x32xbf16>
    %cst_330 = arith.constant dense<0.000000e+00> : vector<22x32xf32>
    %639 = tpu.matmul %638, %637, %cst_330 {dimension_numbers = #tpu.dot_dimension_numbers<[1], [0], [0], [1], [0, 0, 1, 1], [], []>} : vector<22x32xbf16>, vector<32x32xbf16>, vector<22x32xf32> -> vector<22x32xf32>
    %640 = arith.addf %634, %639 : vector<22x32xf32>
    %641 = vector.extract_strided_slice %627 {offsets = [2, 0], sizes = [22, 32], strides = [1, 1]} : vector<36x32xf32> to vector<22x32xf32>
    %c3_331 = arith.constant 3 : index
    %c2_332 = arith.constant 2 : index
    %c0_333 = arith.constant 0 : index
    %c0_334 = arith.constant 0 : index
    %642 = vector.load %arg5[%c3_331, %c2_332, %c0_333, %c0_334] : memref<6x9x32x32xbf16, #tpu.memory_space<vmem>>, vector<1x1x32x32xbf16>
    %643 = vector.shape_cast %642 : vector<1x1x32x32xbf16> to vector<32x32xbf16>
    %644 = arith.truncf %641 : vector<22x32xf32> to vector<22x32xbf16>
    %cst_335 = arith.constant dense<0.000000e+00> : vector<22x32xf32>
    %645 = tpu.matmul %644, %643, %cst_335 {dimension_numbers = #tpu.dot_dimension_numbers<[1], [0], [0], [1], [0, 0, 1, 1], [], []>} : vector<22x32xbf16>, vector<32x32xbf16>, vector<22x32xf32> -> vector<22x32xf32>
    %646 = arith.addf %640, %645 : vector<22x32xf32>
    %647 = vector.extract_strided_slice %627 {offsets = [6, 0], sizes = [22, 32], strides = [1, 1]} : vector<36x32xf32> to vector<22x32xf32>
    %c3_336 = arith.constant 3 : index
    %c3_337 = arith.constant 3 : index
    %c0_338 = arith.constant 0 : index
    %c0_339 = arith.constant 0 : index
    %648 = vector.load %arg5[%c3_336, %c3_337, %c0_338, %c0_339] : memref<6x9x32x32xbf16, #tpu.memory_space<vmem>>, vector<1x1x32x32xbf16>
    %649 = vector.shape_cast %648 : vector<1x1x32x32xbf16> to vector<32x32xbf16>
    %650 = arith.truncf %647 : vector<22x32xf32> to vector<22x32xbf16>
    %cst_340 = arith.constant dense<0.000000e+00> : vector<22x32xf32>
    %651 = tpu.matmul %650, %649, %cst_340 {dimension_numbers = #tpu.dot_dimension_numbers<[1], [0], [0], [1], [0, 0, 1, 1], [], []>} : vector<22x32xbf16>, vector<32x32xbf16>, vector<22x32xf32> -> vector<22x32xf32>
    %652 = arith.addf %646, %651 : vector<22x32xf32>
    %653 = vector.extract_strided_slice %627 {offsets = [7, 0], sizes = [22, 32], strides = [1, 1]} : vector<36x32xf32> to vector<22x32xf32>
    %c3_341 = arith.constant 3 : index
    %c4_342 = arith.constant 4 : index
    %c0_343 = arith.constant 0 : index
    %c0_344 = arith.constant 0 : index
    %654 = vector.load %arg5[%c3_341, %c4_342, %c0_343, %c0_344] : memref<6x9x32x32xbf16, #tpu.memory_space<vmem>>, vector<1x1x32x32xbf16>
    %655 = vector.shape_cast %654 : vector<1x1x32x32xbf16> to vector<32x32xbf16>
    %656 = arith.truncf %653 : vector<22x32xf32> to vector<22x32xbf16>
    %cst_345 = arith.constant dense<0.000000e+00> : vector<22x32xf32>
    %657 = tpu.matmul %656, %655, %cst_345 {dimension_numbers = #tpu.dot_dimension_numbers<[1], [0], [0], [1], [0, 0, 1, 1], [], []>} : vector<22x32xbf16>, vector<32x32xbf16>, vector<22x32xf32> -> vector<22x32xf32>
    %658 = arith.addf %652, %657 : vector<22x32xf32>
    %659 = vector.extract_strided_slice %627 {offsets = [8, 0], sizes = [22, 32], strides = [1, 1]} : vector<36x32xf32> to vector<22x32xf32>
    %c3_346 = arith.constant 3 : index
    %c5_347 = arith.constant 5 : index
    %c0_348 = arith.constant 0 : index
    %c0_349 = arith.constant 0 : index
    %660 = vector.load %arg5[%c3_346, %c5_347, %c0_348, %c0_349] : memref<6x9x32x32xbf16, #tpu.memory_space<vmem>>, vector<1x1x32x32xbf16>
    %661 = vector.shape_cast %660 : vector<1x1x32x32xbf16> to vector<32x32xbf16>
    %662 = arith.truncf %659 : vector<22x32xf32> to vector<22x32xbf16>
    %cst_350 = arith.constant dense<0.000000e+00> : vector<22x32xf32>
    %663 = tpu.matmul %662, %661, %cst_350 {dimension_numbers = #tpu.dot_dimension_numbers<[1], [0], [0], [1], [0, 0, 1, 1], [], []>} : vector<22x32xbf16>, vector<32x32xbf16>, vector<22x32xf32> -> vector<22x32xf32>
    %664 = arith.addf %658, %663 : vector<22x32xf32>
    %665 = vector.extract_strided_slice %627 {offsets = [12, 0], sizes = [22, 32], strides = [1, 1]} : vector<36x32xf32> to vector<22x32xf32>
    %c3_351 = arith.constant 3 : index
    %c6_352 = arith.constant 6 : index
    %c0_353 = arith.constant 0 : index
    %c0_354 = arith.constant 0 : index
    %666 = vector.load %arg5[%c3_351, %c6_352, %c0_353, %c0_354] : memref<6x9x32x32xbf16, #tpu.memory_space<vmem>>, vector<1x1x32x32xbf16>
    %667 = vector.shape_cast %666 : vector<1x1x32x32xbf16> to vector<32x32xbf16>
    %668 = arith.truncf %665 : vector<22x32xf32> to vector<22x32xbf16>
    %cst_355 = arith.constant dense<0.000000e+00> : vector<22x32xf32>
    %669 = tpu.matmul %668, %667, %cst_355 {dimension_numbers = #tpu.dot_dimension_numbers<[1], [0], [0], [1], [0, 0, 1, 1], [], []>} : vector<22x32xbf16>, vector<32x32xbf16>, vector<22x32xf32> -> vector<22x32xf32>
    %670 = arith.addf %664, %669 : vector<22x32xf32>
    %671 = vector.extract_strided_slice %627 {offsets = [13, 0], sizes = [22, 32], strides = [1, 1]} : vector<36x32xf32> to vector<22x32xf32>
    %c3_356 = arith.constant 3 : index
    %c7_357 = arith.constant 7 : index
    %c0_358 = arith.constant 0 : index
    %c0_359 = arith.constant 0 : index
    %672 = vector.load %arg5[%c3_356, %c7_357, %c0_358, %c0_359] : memref<6x9x32x32xbf16, #tpu.memory_space<vmem>>, vector<1x1x32x32xbf16>
    %673 = vector.shape_cast %672 : vector<1x1x32x32xbf16> to vector<32x32xbf16>
    %674 = arith.truncf %671 : vector<22x32xf32> to vector<22x32xbf16>
    %cst_360 = arith.constant dense<0.000000e+00> : vector<22x32xf32>
    %675 = tpu.matmul %674, %673, %cst_360 {dimension_numbers = #tpu.dot_dimension_numbers<[1], [0], [0], [1], [0, 0, 1, 1], [], []>} : vector<22x32xbf16>, vector<32x32xbf16>, vector<22x32xf32> -> vector<22x32xf32>
    %676 = arith.addf %670, %675 : vector<22x32xf32>
    %677 = vector.extract_strided_slice %627 {offsets = [14, 0], sizes = [22, 32], strides = [1, 1]} : vector<36x32xf32> to vector<22x32xf32>
    %c3_361 = arith.constant 3 : index
    %c8_362 = arith.constant 8 : index
    %c0_363 = arith.constant 0 : index
    %c0_364 = arith.constant 0 : index
    %678 = vector.load %arg5[%c3_361, %c8_362, %c0_363, %c0_364] : memref<6x9x32x32xbf16, #tpu.memory_space<vmem>>, vector<1x1x32x32xbf16>
    %679 = vector.shape_cast %678 : vector<1x1x32x32xbf16> to vector<32x32xbf16>
    %680 = arith.truncf %677 : vector<22x32xf32> to vector<22x32xbf16>
    %cst_365 = arith.constant dense<0.000000e+00> : vector<22x32xf32>
    %681 = tpu.matmul %680, %679, %cst_365 {dimension_numbers = #tpu.dot_dimension_numbers<[1], [0], [0], [1], [0, 0, 1, 1], [], []>} : vector<22x32xbf16>, vector<32x32xbf16>, vector<22x32xf32> -> vector<22x32xf32>
    %682 = arith.addf %676, %681 : vector<22x32xf32>
    %683 = vector.extract_strided_slice %682 {offsets = [0, 0], sizes = [4, 32], strides = [1, 1]} : vector<22x32xf32> to vector<4x32xf32>
    %684 = vector.extract_strided_slice %682 {offsets = [6, 0], sizes = [4, 32], strides = [1, 1]} : vector<22x32xf32> to vector<4x32xf32>
    %685 = vector.extract_strided_slice %682 {offsets = [12, 0], sizes = [4, 32], strides = [1, 1]} : vector<22x32xf32> to vector<4x32xf32>
    %686 = vector.extract_strided_slice %682 {offsets = [18, 0], sizes = [4, 32], strides = [1, 1]} : vector<22x32xf32> to vector<4x32xf32>
    %687 = tpu.concatenate %683, %684, %685, %686 in 0 : vector<4x32xf32>, vector<4x32xf32>, vector<4x32xf32>, vector<4x32xf32> -> vector<16x32xf32>
    %cst_366 = arith.constant dense<0.000000e+00> : vector<32xf32>
    %688 = vector.multi_reduction <add>, %687, %cst_366 [0] : vector<16x32xf32> to vector<32xf32>
    %689 = vector.shape_cast %688 : vector<32xf32> to vector<1x32xf32>
    %cst_367 = arith.constant 6.250000e-02 : f32
    %690 = vector.broadcast %cst_367 : f32 to vector<1x32xf32>
    %691 = arith.mulf %689, %690 : vector<1x32xf32>
    %692 = vector.broadcast %691 : vector<1x32xf32> to vector<16x32xf32>
    %693 = arith.subf %687, %692 : vector<16x32xf32>
    %694 = arith.mulf %693, %693 : vector<16x32xf32>
    %cst_368 = arith.constant dense<0.000000e+00> : vector<32xf32>
    %695 = vector.multi_reduction <add>, %694, %cst_368 [0] : vector<16x32xf32> to vector<32xf32>
    %696 = vector.shape_cast %695 : vector<32xf32> to vector<1x32xf32>
    %cst_369 = arith.constant 6.250000e-02 : f32
    %697 = vector.broadcast %cst_369 : f32 to vector<1x32xf32>
    %698 = arith.mulf %696, %697 : vector<1x32xf32>
    %cst_370 = arith.constant 9.99999974E-6 : f32
    %699 = vector.broadcast %cst_370 : f32 to vector<1x32xf32>
    %700 = arith.addf %698, %699 : vector<1x32xf32>
    %701 = math.rsqrt %700 : vector<1x32xf32>
    %702 = vector.broadcast %701 : vector<1x32xf32> to vector<16x32xf32>
    %703 = arith.mulf %693, %702 : vector<16x32xf32>
    %704 = arith.addf %515, %703 : vector<16x32xf32>
    %705 = vector.extract_strided_slice %704 {offsets = [0, 0], sizes = [4, 32], strides = [1, 1]} : vector<16x32xf32> to vector<4x32xf32>
    %706 = vector.extract_strided_slice %705 {offsets = [1, 0], sizes = [1, 32], strides = [1, 1]} : vector<4x32xf32> to vector<1x32xf32>
    %707 = vector.extract_strided_slice %705 {offsets = [2, 0], sizes = [1, 32], strides = [1, 1]} : vector<4x32xf32> to vector<1x32xf32>
    %708 = tpu.concatenate %706, %705, %707 in 0 : vector<1x32xf32>, vector<4x32xf32>, vector<1x32xf32> -> vector<6x32xf32>
    %709 = vector.extract_strided_slice %704 {offsets = [4, 0], sizes = [4, 32], strides = [1, 1]} : vector<16x32xf32> to vector<4x32xf32>
    %710 = vector.extract_strided_slice %709 {offsets = [1, 0], sizes = [1, 32], strides = [1, 1]} : vector<4x32xf32> to vector<1x32xf32>
    %711 = vector.extract_strided_slice %709 {offsets = [2, 0], sizes = [1, 32], strides = [1, 1]} : vector<4x32xf32> to vector<1x32xf32>
    %712 = tpu.concatenate %710, %709, %711 in 0 : vector<1x32xf32>, vector<4x32xf32>, vector<1x32xf32> -> vector<6x32xf32>
    %713 = vector.extract_strided_slice %704 {offsets = [8, 0], sizes = [4, 32], strides = [1, 1]} : vector<16x32xf32> to vector<4x32xf32>
    %714 = vector.extract_strided_slice %713 {offsets = [1, 0], sizes = [1, 32], strides = [1, 1]} : vector<4x32xf32> to vector<1x32xf32>
    %715 = vector.extract_strided_slice %713 {offsets = [2, 0], sizes = [1, 32], strides = [1, 1]} : vector<4x32xf32> to vector<1x32xf32>
    %716 = tpu.concatenate %714, %713, %715 in 0 : vector<1x32xf32>, vector<4x32xf32>, vector<1x32xf32> -> vector<6x32xf32>
    %717 = vector.extract_strided_slice %704 {offsets = [12, 0], sizes = [4, 32], strides = [1, 1]} : vector<16x32xf32> to vector<4x32xf32>
    %718 = vector.extract_strided_slice %717 {offsets = [1, 0], sizes = [1, 32], strides = [1, 1]} : vector<4x32xf32> to vector<1x32xf32>
    %719 = vector.extract_strided_slice %717 {offsets = [2, 0], sizes = [1, 32], strides = [1, 1]} : vector<4x32xf32> to vector<1x32xf32>
    %720 = tpu.concatenate %718, %717, %719 in 0 : vector<1x32xf32>, vector<4x32xf32>, vector<1x32xf32> -> vector<6x32xf32>
    %721 = tpu.concatenate %712, %708, %712, %716, %720, %716 in 0 : vector<6x32xf32>, vector<6x32xf32>, vector<6x32xf32>, vector<6x32xf32>, vector<6x32xf32>, vector<6x32xf32> -> vector<36x32xf32>
    %cst_371 = arith.constant 0.000000e+00 : f32
    %722 = vector.broadcast %cst_371 : f32 to vector<22x32xf32>
    %723 = vector.extract_strided_slice %721 {offsets = [0, 0], sizes = [22, 32], strides = [1, 1]} : vector<36x32xf32> to vector<22x32xf32>
    %c4_372 = arith.constant 4 : index
    %c0_373 = arith.constant 0 : index
    %c0_374 = arith.constant 0 : index
    %c0_375 = arith.constant 0 : index
    %724 = vector.load %arg5[%c4_372, %c0_373, %c0_374, %c0_375] : memref<6x9x32x32xbf16, #tpu.memory_space<vmem>>, vector<1x1x32x32xbf16>
    %725 = vector.shape_cast %724 : vector<1x1x32x32xbf16> to vector<32x32xbf16>
    %726 = arith.truncf %723 : vector<22x32xf32> to vector<22x32xbf16>
    %cst_376 = arith.constant dense<0.000000e+00> : vector<22x32xf32>
    %727 = tpu.matmul %726, %725, %cst_376 {dimension_numbers = #tpu.dot_dimension_numbers<[1], [0], [0], [1], [0, 0, 1, 1], [], []>} : vector<22x32xbf16>, vector<32x32xbf16>, vector<22x32xf32> -> vector<22x32xf32>
    %728 = arith.addf %722, %727 : vector<22x32xf32>
    %729 = vector.extract_strided_slice %721 {offsets = [1, 0], sizes = [22, 32], strides = [1, 1]} : vector<36x32xf32> to vector<22x32xf32>
    %c4_377 = arith.constant 4 : index
    %c1_378 = arith.constant 1 : index
    %c0_379 = arith.constant 0 : index
    %c0_380 = arith.constant 0 : index
    %730 = vector.load %arg5[%c4_377, %c1_378, %c0_379, %c0_380] : memref<6x9x32x32xbf16, #tpu.memory_space<vmem>>, vector<1x1x32x32xbf16>
    %731 = vector.shape_cast %730 : vector<1x1x32x32xbf16> to vector<32x32xbf16>
    %732 = arith.truncf %729 : vector<22x32xf32> to vector<22x32xbf16>
    %cst_381 = arith.constant dense<0.000000e+00> : vector<22x32xf32>
    %733 = tpu.matmul %732, %731, %cst_381 {dimension_numbers = #tpu.dot_dimension_numbers<[1], [0], [0], [1], [0, 0, 1, 1], [], []>} : vector<22x32xbf16>, vector<32x32xbf16>, vector<22x32xf32> -> vector<22x32xf32>
    %734 = arith.addf %728, %733 : vector<22x32xf32>
    %735 = vector.extract_strided_slice %721 {offsets = [2, 0], sizes = [22, 32], strides = [1, 1]} : vector<36x32xf32> to vector<22x32xf32>
    %c4_382 = arith.constant 4 : index
    %c2_383 = arith.constant 2 : index
    %c0_384 = arith.constant 0 : index
    %c0_385 = arith.constant 0 : index
    %736 = vector.load %arg5[%c4_382, %c2_383, %c0_384, %c0_385] : memref<6x9x32x32xbf16, #tpu.memory_space<vmem>>, vector<1x1x32x32xbf16>
    %737 = vector.shape_cast %736 : vector<1x1x32x32xbf16> to vector<32x32xbf16>
    %738 = arith.truncf %735 : vector<22x32xf32> to vector<22x32xbf16>
    %cst_386 = arith.constant dense<0.000000e+00> : vector<22x32xf32>
    %739 = tpu.matmul %738, %737, %cst_386 {dimension_numbers = #tpu.dot_dimension_numbers<[1], [0], [0], [1], [0, 0, 1, 1], [], []>} : vector<22x32xbf16>, vector<32x32xbf16>, vector<22x32xf32> -> vector<22x32xf32>
    %740 = arith.addf %734, %739 : vector<22x32xf32>
    %741 = vector.extract_strided_slice %721 {offsets = [6, 0], sizes = [22, 32], strides = [1, 1]} : vector<36x32xf32> to vector<22x32xf32>
    %c4_387 = arith.constant 4 : index
    %c3_388 = arith.constant 3 : index
    %c0_389 = arith.constant 0 : index
    %c0_390 = arith.constant 0 : index
    %742 = vector.load %arg5[%c4_387, %c3_388, %c0_389, %c0_390] : memref<6x9x32x32xbf16, #tpu.memory_space<vmem>>, vector<1x1x32x32xbf16>
    %743 = vector.shape_cast %742 : vector<1x1x32x32xbf16> to vector<32x32xbf16>
    %744 = arith.truncf %741 : vector<22x32xf32> to vector<22x32xbf16>
    %cst_391 = arith.constant dense<0.000000e+00> : vector<22x32xf32>
    %745 = tpu.matmul %744, %743, %cst_391 {dimension_numbers = #tpu.dot_dimension_numbers<[1], [0], [0], [1], [0, 0, 1, 1], [], []>} : vector<22x32xbf16>, vector<32x32xbf16>, vector<22x32xf32> -> vector<22x32xf32>
    %746 = arith.addf %740, %745 : vector<22x32xf32>
    %747 = vector.extract_strided_slice %721 {offsets = [7, 0], sizes = [22, 32], strides = [1, 1]} : vector<36x32xf32> to vector<22x32xf32>
    %c4_392 = arith.constant 4 : index
    %c4_393 = arith.constant 4 : index
    %c0_394 = arith.constant 0 : index
    %c0_395 = arith.constant 0 : index
    %748 = vector.load %arg5[%c4_392, %c4_393, %c0_394, %c0_395] : memref<6x9x32x32xbf16, #tpu.memory_space<vmem>>, vector<1x1x32x32xbf16>
    %749 = vector.shape_cast %748 : vector<1x1x32x32xbf16> to vector<32x32xbf16>
    %750 = arith.truncf %747 : vector<22x32xf32> to vector<22x32xbf16>
    %cst_396 = arith.constant dense<0.000000e+00> : vector<22x32xf32>
    %751 = tpu.matmul %750, %749, %cst_396 {dimension_numbers = #tpu.dot_dimension_numbers<[1], [0], [0], [1], [0, 0, 1, 1], [], []>} : vector<22x32xbf16>, vector<32x32xbf16>, vector<22x32xf32> -> vector<22x32xf32>
    %752 = arith.addf %746, %751 : vector<22x32xf32>
    %753 = vector.extract_strided_slice %721 {offsets = [8, 0], sizes = [22, 32], strides = [1, 1]} : vector<36x32xf32> to vector<22x32xf32>
    %c4_397 = arith.constant 4 : index
    %c5_398 = arith.constant 5 : index
    %c0_399 = arith.constant 0 : index
    %c0_400 = arith.constant 0 : index
    %754 = vector.load %arg5[%c4_397, %c5_398, %c0_399, %c0_400] : memref<6x9x32x32xbf16, #tpu.memory_space<vmem>>, vector<1x1x32x32xbf16>
    %755 = vector.shape_cast %754 : vector<1x1x32x32xbf16> to vector<32x32xbf16>
    %756 = arith.truncf %753 : vector<22x32xf32> to vector<22x32xbf16>
    %cst_401 = arith.constant dense<0.000000e+00> : vector<22x32xf32>
    %757 = tpu.matmul %756, %755, %cst_401 {dimension_numbers = #tpu.dot_dimension_numbers<[1], [0], [0], [1], [0, 0, 1, 1], [], []>} : vector<22x32xbf16>, vector<32x32xbf16>, vector<22x32xf32> -> vector<22x32xf32>
    %758 = arith.addf %752, %757 : vector<22x32xf32>
    %759 = vector.extract_strided_slice %721 {offsets = [12, 0], sizes = [22, 32], strides = [1, 1]} : vector<36x32xf32> to vector<22x32xf32>
    %c4_402 = arith.constant 4 : index
    %c6_403 = arith.constant 6 : index
    %c0_404 = arith.constant 0 : index
    %c0_405 = arith.constant 0 : index
    %760 = vector.load %arg5[%c4_402, %c6_403, %c0_404, %c0_405] : memref<6x9x32x32xbf16, #tpu.memory_space<vmem>>, vector<1x1x32x32xbf16>
    %761 = vector.shape_cast %760 : vector<1x1x32x32xbf16> to vector<32x32xbf16>
    %762 = arith.truncf %759 : vector<22x32xf32> to vector<22x32xbf16>
    %cst_406 = arith.constant dense<0.000000e+00> : vector<22x32xf32>
    %763 = tpu.matmul %762, %761, %cst_406 {dimension_numbers = #tpu.dot_dimension_numbers<[1], [0], [0], [1], [0, 0, 1, 1], [], []>} : vector<22x32xbf16>, vector<32x32xbf16>, vector<22x32xf32> -> vector<22x32xf32>
    %764 = arith.addf %758, %763 : vector<22x32xf32>
    %765 = vector.extract_strided_slice %721 {offsets = [13, 0], sizes = [22, 32], strides = [1, 1]} : vector<36x32xf32> to vector<22x32xf32>
    %c4_407 = arith.constant 4 : index
    %c7_408 = arith.constant 7 : index
    %c0_409 = arith.constant 0 : index
    %c0_410 = arith.constant 0 : index
    %766 = vector.load %arg5[%c4_407, %c7_408, %c0_409, %c0_410] : memref<6x9x32x32xbf16, #tpu.memory_space<vmem>>, vector<1x1x32x32xbf16>
    %767 = vector.shape_cast %766 : vector<1x1x32x32xbf16> to vector<32x32xbf16>
    %768 = arith.truncf %765 : vector<22x32xf32> to vector<22x32xbf16>
    %cst_411 = arith.constant dense<0.000000e+00> : vector<22x32xf32>
    %769 = tpu.matmul %768, %767, %cst_411 {dimension_numbers = #tpu.dot_dimension_numbers<[1], [0], [0], [1], [0, 0, 1, 1], [], []>} : vector<22x32xbf16>, vector<32x32xbf16>, vector<22x32xf32> -> vector<22x32xf32>
    %770 = arith.addf %764, %769 : vector<22x32xf32>
    %771 = vector.extract_strided_slice %721 {offsets = [14, 0], sizes = [22, 32], strides = [1, 1]} : vector<36x32xf32> to vector<22x32xf32>
    %c4_412 = arith.constant 4 : index
    %c8_413 = arith.constant 8 : index
    %c0_414 = arith.constant 0 : index
    %c0_415 = arith.constant 0 : index
    %772 = vector.load %arg5[%c4_412, %c8_413, %c0_414, %c0_415] : memref<6x9x32x32xbf16, #tpu.memory_space<vmem>>, vector<1x1x32x32xbf16>
    %773 = vector.shape_cast %772 : vector<1x1x32x32xbf16> to vector<32x32xbf16>
    %774 = arith.truncf %771 : vector<22x32xf32> to vector<22x32xbf16>
    %cst_416 = arith.constant dense<0.000000e+00> : vector<22x32xf32>
    %775 = tpu.matmul %774, %773, %cst_416 {dimension_numbers = #tpu.dot_dimension_numbers<[1], [0], [0], [1], [0, 0, 1, 1], [], []>} : vector<22x32xbf16>, vector<32x32xbf16>, vector<22x32xf32> -> vector<22x32xf32>
    %776 = arith.addf %770, %775 : vector<22x32xf32>
    %777 = vector.extract_strided_slice %776 {offsets = [0, 0], sizes = [4, 32], strides = [1, 1]} : vector<22x32xf32> to vector<4x32xf32>
    %778 = vector.extract_strided_slice %776 {offsets = [6, 0], sizes = [4, 32], strides = [1, 1]} : vector<22x32xf32> to vector<4x32xf32>
    %779 = vector.extract_strided_slice %776 {offsets = [12, 0], sizes = [4, 32], strides = [1, 1]} : vector<22x32xf32> to vector<4x32xf32>
    %780 = vector.extract_strided_slice %776 {offsets = [18, 0], sizes = [4, 32], strides = [1, 1]} : vector<22x32xf32> to vector<4x32xf32>
    %781 = tpu.concatenate %777, %778, %779, %780 in 0 : vector<4x32xf32>, vector<4x32xf32>, vector<4x32xf32>, vector<4x32xf32> -> vector<16x32xf32>
    %cst_417 = arith.constant dense<0.000000e+00> : vector<32xf32>
    %782 = vector.multi_reduction <add>, %781, %cst_417 [0] : vector<16x32xf32> to vector<32xf32>
    %783 = vector.shape_cast %782 : vector<32xf32> to vector<1x32xf32>
    %cst_418 = arith.constant 6.250000e-02 : f32
    %784 = vector.broadcast %cst_418 : f32 to vector<1x32xf32>
    %785 = arith.mulf %783, %784 : vector<1x32xf32>
    %786 = vector.broadcast %785 : vector<1x32xf32> to vector<16x32xf32>
    %787 = arith.subf %781, %786 : vector<16x32xf32>
    %788 = arith.mulf %787, %787 : vector<16x32xf32>
    %cst_419 = arith.constant dense<0.000000e+00> : vector<32xf32>
    %789 = vector.multi_reduction <add>, %788, %cst_419 [0] : vector<16x32xf32> to vector<32xf32>
    %790 = vector.shape_cast %789 : vector<32xf32> to vector<1x32xf32>
    %cst_420 = arith.constant 6.250000e-02 : f32
    %791 = vector.broadcast %cst_420 : f32 to vector<1x32xf32>
    %792 = arith.mulf %790, %791 : vector<1x32xf32>
    %cst_421 = arith.constant 9.99999974E-6 : f32
    %793 = vector.broadcast %cst_421 : f32 to vector<1x32xf32>
    %794 = arith.addf %792, %793 : vector<1x32xf32>
    %795 = math.rsqrt %794 : vector<1x32xf32>
    %796 = vector.broadcast %795 : vector<1x32xf32> to vector<16x32xf32>
    %797 = arith.mulf %787, %796 : vector<16x32xf32>
    %cst_422 = arith.constant 0.000000e+00 : f32
    %798 = vector.broadcast %cst_422 : f32 to vector<16x32xf32>
    %799 = arith.maximumf %797, %798 : vector<16x32xf32>
    %800 = vector.extract_strided_slice %799 {offsets = [0, 0], sizes = [4, 32], strides = [1, 1]} : vector<16x32xf32> to vector<4x32xf32>
    %801 = vector.extract_strided_slice %800 {offsets = [1, 0], sizes = [1, 32], strides = [1, 1]} : vector<4x32xf32> to vector<1x32xf32>
    %802 = vector.extract_strided_slice %800 {offsets = [2, 0], sizes = [1, 32], strides = [1, 1]} : vector<4x32xf32> to vector<1x32xf32>
    %803 = tpu.concatenate %801, %800, %802 in 0 : vector<1x32xf32>, vector<4x32xf32>, vector<1x32xf32> -> vector<6x32xf32>
    %804 = vector.extract_strided_slice %799 {offsets = [4, 0], sizes = [4, 32], strides = [1, 1]} : vector<16x32xf32> to vector<4x32xf32>
    %805 = vector.extract_strided_slice %804 {offsets = [1, 0], sizes = [1, 32], strides = [1, 1]} : vector<4x32xf32> to vector<1x32xf32>
    %806 = vector.extract_strided_slice %804 {offsets = [2, 0], sizes = [1, 32], strides = [1, 1]} : vector<4x32xf32> to vector<1x32xf32>
    %807 = tpu.concatenate %805, %804, %806 in 0 : vector<1x32xf32>, vector<4x32xf32>, vector<1x32xf32> -> vector<6x32xf32>
    %808 = vector.extract_strided_slice %799 {offsets = [8, 0], sizes = [4, 32], strides = [1, 1]} : vector<16x32xf32> to vector<4x32xf32>
    %809 = vector.extract_strided_slice %808 {offsets = [1, 0], sizes = [1, 32], strides = [1, 1]} : vector<4x32xf32> to vector<1x32xf32>
    %810 = vector.extract_strided_slice %808 {offsets = [2, 0], sizes = [1, 32], strides = [1, 1]} : vector<4x32xf32> to vector<1x32xf32>
    %811 = tpu.concatenate %809, %808, %810 in 0 : vector<1x32xf32>, vector<4x32xf32>, vector<1x32xf32> -> vector<6x32xf32>
    %812 = vector.extract_strided_slice %799 {offsets = [12, 0], sizes = [4, 32], strides = [1, 1]} : vector<16x32xf32> to vector<4x32xf32>
    %813 = vector.extract_strided_slice %812 {offsets = [1, 0], sizes = [1, 32], strides = [1, 1]} : vector<4x32xf32> to vector<1x32xf32>
    %814 = vector.extract_strided_slice %812 {offsets = [2, 0], sizes = [1, 32], strides = [1, 1]} : vector<4x32xf32> to vector<1x32xf32>
    %815 = tpu.concatenate %813, %812, %814 in 0 : vector<1x32xf32>, vector<4x32xf32>, vector<1x32xf32> -> vector<6x32xf32>
    %816 = tpu.concatenate %807, %803, %807, %811, %815, %811 in 0 : vector<6x32xf32>, vector<6x32xf32>, vector<6x32xf32>, vector<6x32xf32>, vector<6x32xf32>, vector<6x32xf32> -> vector<36x32xf32>
    %cst_423 = arith.constant 0.000000e+00 : f32
    %817 = vector.broadcast %cst_423 : f32 to vector<22x32xf32>
    %818 = vector.extract_strided_slice %816 {offsets = [0, 0], sizes = [22, 32], strides = [1, 1]} : vector<36x32xf32> to vector<22x32xf32>
    %c5_424 = arith.constant 5 : index
    %c0_425 = arith.constant 0 : index
    %c0_426 = arith.constant 0 : index
    %c0_427 = arith.constant 0 : index
    %819 = vector.load %arg5[%c5_424, %c0_425, %c0_426, %c0_427] : memref<6x9x32x32xbf16, #tpu.memory_space<vmem>>, vector<1x1x32x32xbf16>
    %820 = vector.shape_cast %819 : vector<1x1x32x32xbf16> to vector<32x32xbf16>
    %821 = arith.truncf %818 : vector<22x32xf32> to vector<22x32xbf16>
    %cst_428 = arith.constant dense<0.000000e+00> : vector<22x32xf32>
    %822 = tpu.matmul %821, %820, %cst_428 {dimension_numbers = #tpu.dot_dimension_numbers<[1], [0], [0], [1], [0, 0, 1, 1], [], []>} : vector<22x32xbf16>, vector<32x32xbf16>, vector<22x32xf32> -> vector<22x32xf32>
    %823 = arith.addf %817, %822 : vector<22x32xf32>
    %824 = vector.extract_strided_slice %816 {offsets = [1, 0], sizes = [22, 32], strides = [1, 1]} : vector<36x32xf32> to vector<22x32xf32>
    %c5_429 = arith.constant 5 : index
    %c1_430 = arith.constant 1 : index
    %c0_431 = arith.constant 0 : index
    %c0_432 = arith.constant 0 : index
    %825 = vector.load %arg5[%c5_429, %c1_430, %c0_431, %c0_432] : memref<6x9x32x32xbf16, #tpu.memory_space<vmem>>, vector<1x1x32x32xbf16>
    %826 = vector.shape_cast %825 : vector<1x1x32x32xbf16> to vector<32x32xbf16>
    %827 = arith.truncf %824 : vector<22x32xf32> to vector<22x32xbf16>
    %cst_433 = arith.constant dense<0.000000e+00> : vector<22x32xf32>
    %828 = tpu.matmul %827, %826, %cst_433 {dimension_numbers = #tpu.dot_dimension_numbers<[1], [0], [0], [1], [0, 0, 1, 1], [], []>} : vector<22x32xbf16>, vector<32x32xbf16>, vector<22x32xf32> -> vector<22x32xf32>
    %829 = arith.addf %823, %828 : vector<22x32xf32>
    %830 = vector.extract_strided_slice %816 {offsets = [2, 0], sizes = [22, 32], strides = [1, 1]} : vector<36x32xf32> to vector<22x32xf32>
    %c5_434 = arith.constant 5 : index
    %c2_435 = arith.constant 2 : index
    %c0_436 = arith.constant 0 : index
    %c0_437 = arith.constant 0 : index
    %831 = vector.load %arg5[%c5_434, %c2_435, %c0_436, %c0_437] : memref<6x9x32x32xbf16, #tpu.memory_space<vmem>>, vector<1x1x32x32xbf16>
    %832 = vector.shape_cast %831 : vector<1x1x32x32xbf16> to vector<32x32xbf16>
    %833 = arith.truncf %830 : vector<22x32xf32> to vector<22x32xbf16>
    %cst_438 = arith.constant dense<0.000000e+00> : vector<22x32xf32>
    %834 = tpu.matmul %833, %832, %cst_438 {dimension_numbers = #tpu.dot_dimension_numbers<[1], [0], [0], [1], [0, 0, 1, 1], [], []>} : vector<22x32xbf16>, vector<32x32xbf16>, vector<22x32xf32> -> vector<22x32xf32>
    %835 = arith.addf %829, %834 : vector<22x32xf32>
    %836 = vector.extract_strided_slice %816 {offsets = [6, 0], sizes = [22, 32], strides = [1, 1]} : vector<36x32xf32> to vector<22x32xf32>
    %c5_439 = arith.constant 5 : index
    %c3_440 = arith.constant 3 : index
    %c0_441 = arith.constant 0 : index
    %c0_442 = arith.constant 0 : index
    %837 = vector.load %arg5[%c5_439, %c3_440, %c0_441, %c0_442] : memref<6x9x32x32xbf16, #tpu.memory_space<vmem>>, vector<1x1x32x32xbf16>
    %838 = vector.shape_cast %837 : vector<1x1x32x32xbf16> to vector<32x32xbf16>
    %839 = arith.truncf %836 : vector<22x32xf32> to vector<22x32xbf16>
    %cst_443 = arith.constant dense<0.000000e+00> : vector<22x32xf32>
    %840 = tpu.matmul %839, %838, %cst_443 {dimension_numbers = #tpu.dot_dimension_numbers<[1], [0], [0], [1], [0, 0, 1, 1], [], []>} : vector<22x32xbf16>, vector<32x32xbf16>, vector<22x32xf32> -> vector<22x32xf32>
    %841 = arith.addf %835, %840 : vector<22x32xf32>
    %842 = vector.extract_strided_slice %816 {offsets = [7, 0], sizes = [22, 32], strides = [1, 1]} : vector<36x32xf32> to vector<22x32xf32>
    %c5_444 = arith.constant 5 : index
    %c4_445 = arith.constant 4 : index
    %c0_446 = arith.constant 0 : index
    %c0_447 = arith.constant 0 : index
    %843 = vector.load %arg5[%c5_444, %c4_445, %c0_446, %c0_447] : memref<6x9x32x32xbf16, #tpu.memory_space<vmem>>, vector<1x1x32x32xbf16>
    %844 = vector.shape_cast %843 : vector<1x1x32x32xbf16> to vector<32x32xbf16>
    %845 = arith.truncf %842 : vector<22x32xf32> to vector<22x32xbf16>
    %cst_448 = arith.constant dense<0.000000e+00> : vector<22x32xf32>
    %846 = tpu.matmul %845, %844, %cst_448 {dimension_numbers = #tpu.dot_dimension_numbers<[1], [0], [0], [1], [0, 0, 1, 1], [], []>} : vector<22x32xbf16>, vector<32x32xbf16>, vector<22x32xf32> -> vector<22x32xf32>
    %847 = arith.addf %841, %846 : vector<22x32xf32>
    %848 = vector.extract_strided_slice %816 {offsets = [8, 0], sizes = [22, 32], strides = [1, 1]} : vector<36x32xf32> to vector<22x32xf32>
    %c5_449 = arith.constant 5 : index
    %c5_450 = arith.constant 5 : index
    %c0_451 = arith.constant 0 : index
    %c0_452 = arith.constant 0 : index
    %849 = vector.load %arg5[%c5_449, %c5_450, %c0_451, %c0_452] : memref<6x9x32x32xbf16, #tpu.memory_space<vmem>>, vector<1x1x32x32xbf16>
    %850 = vector.shape_cast %849 : vector<1x1x32x32xbf16> to vector<32x32xbf16>
    %851 = arith.truncf %848 : vector<22x32xf32> to vector<22x32xbf16>
    %cst_453 = arith.constant dense<0.000000e+00> : vector<22x32xf32>
    %852 = tpu.matmul %851, %850, %cst_453 {dimension_numbers = #tpu.dot_dimension_numbers<[1], [0], [0], [1], [0, 0, 1, 1], [], []>} : vector<22x32xbf16>, vector<32x32xbf16>, vector<22x32xf32> -> vector<22x32xf32>
    %853 = arith.addf %847, %852 : vector<22x32xf32>
    %854 = vector.extract_strided_slice %816 {offsets = [12, 0], sizes = [22, 32], strides = [1, 1]} : vector<36x32xf32> to vector<22x32xf32>
    %c5_454 = arith.constant 5 : index
    %c6_455 = arith.constant 6 : index
    %c0_456 = arith.constant 0 : index
    %c0_457 = arith.constant 0 : index
    %855 = vector.load %arg5[%c5_454, %c6_455, %c0_456, %c0_457] : memref<6x9x32x32xbf16, #tpu.memory_space<vmem>>, vector<1x1x32x32xbf16>
    %856 = vector.shape_cast %855 : vector<1x1x32x32xbf16> to vector<32x32xbf16>
    %857 = arith.truncf %854 : vector<22x32xf32> to vector<22x32xbf16>
    %cst_458 = arith.constant dense<0.000000e+00> : vector<22x32xf32>
    %858 = tpu.matmul %857, %856, %cst_458 {dimension_numbers = #tpu.dot_dimension_numbers<[1], [0], [0], [1], [0, 0, 1, 1], [], []>} : vector<22x32xbf16>, vector<32x32xbf16>, vector<22x32xf32> -> vector<22x32xf32>
    %859 = arith.addf %853, %858 : vector<22x32xf32>
    %860 = vector.extract_strided_slice %816 {offsets = [13, 0], sizes = [22, 32], strides = [1, 1]} : vector<36x32xf32> to vector<22x32xf32>
    %c5_459 = arith.constant 5 : index
    %c7_460 = arith.constant 7 : index
    %c0_461 = arith.constant 0 : index
    %c0_462 = arith.constant 0 : index
    %861 = vector.load %arg5[%c5_459, %c7_460, %c0_461, %c0_462] : memref<6x9x32x32xbf16, #tpu.memory_space<vmem>>, vector<1x1x32x32xbf16>
    %862 = vector.shape_cast %861 : vector<1x1x32x32xbf16> to vector<32x32xbf16>
    %863 = arith.truncf %860 : vector<22x32xf32> to vector<22x32xbf16>
    %cst_463 = arith.constant dense<0.000000e+00> : vector<22x32xf32>
    %864 = tpu.matmul %863, %862, %cst_463 {dimension_numbers = #tpu.dot_dimension_numbers<[1], [0], [0], [1], [0, 0, 1, 1], [], []>} : vector<22x32xbf16>, vector<32x32xbf16>, vector<22x32xf32> -> vector<22x32xf32>
    %865 = arith.addf %859, %864 : vector<22x32xf32>
    %866 = vector.extract_strided_slice %816 {offsets = [14, 0], sizes = [22, 32], strides = [1, 1]} : vector<36x32xf32> to vector<22x32xf32>
    %c5_464 = arith.constant 5 : index
    %c8_465 = arith.constant 8 : index
    %c0_466 = arith.constant 0 : index
    %c0_467 = arith.constant 0 : index
    %867 = vector.load %arg5[%c5_464, %c8_465, %c0_466, %c0_467] : memref<6x9x32x32xbf16, #tpu.memory_space<vmem>>, vector<1x1x32x32xbf16>
    %868 = vector.shape_cast %867 : vector<1x1x32x32xbf16> to vector<32x32xbf16>
    %869 = arith.truncf %866 : vector<22x32xf32> to vector<22x32xbf16>
    %cst_468 = arith.constant dense<0.000000e+00> : vector<22x32xf32>
    %870 = tpu.matmul %869, %868, %cst_468 {dimension_numbers = #tpu.dot_dimension_numbers<[1], [0], [0], [1], [0, 0, 1, 1], [], []>} : vector<22x32xbf16>, vector<32x32xbf16>, vector<22x32xf32> -> vector<22x32xf32>
    %871 = arith.addf %865, %870 : vector<22x32xf32>
    %872 = vector.extract_strided_slice %871 {offsets = [0, 0], sizes = [4, 32], strides = [1, 1]} : vector<22x32xf32> to vector<4x32xf32>
    %873 = vector.extract_strided_slice %871 {offsets = [6, 0], sizes = [4, 32], strides = [1, 1]} : vector<22x32xf32> to vector<4x32xf32>
    %874 = vector.extract_strided_slice %871 {offsets = [12, 0], sizes = [4, 32], strides = [1, 1]} : vector<22x32xf32> to vector<4x32xf32>
    %875 = vector.extract_strided_slice %871 {offsets = [18, 0], sizes = [4, 32], strides = [1, 1]} : vector<22x32xf32> to vector<4x32xf32>
    %876 = tpu.concatenate %872, %873, %874, %875 in 0 : vector<4x32xf32>, vector<4x32xf32>, vector<4x32xf32>, vector<4x32xf32> -> vector<16x32xf32>
    %cst_469 = arith.constant dense<0.000000e+00> : vector<32xf32>
    %877 = vector.multi_reduction <add>, %876, %cst_469 [0] : vector<16x32xf32> to vector<32xf32>
    %878 = vector.shape_cast %877 : vector<32xf32> to vector<1x32xf32>
    %cst_470 = arith.constant 6.250000e-02 : f32
    %879 = vector.broadcast %cst_470 : f32 to vector<1x32xf32>
    %880 = arith.mulf %878, %879 : vector<1x32xf32>
    %881 = vector.broadcast %880 : vector<1x32xf32> to vector<16x32xf32>
    %882 = arith.subf %876, %881 : vector<16x32xf32>
    %883 = arith.mulf %882, %882 : vector<16x32xf32>
    %cst_471 = arith.constant dense<0.000000e+00> : vector<32xf32>
    %884 = vector.multi_reduction <add>, %883, %cst_471 [0] : vector<16x32xf32> to vector<32xf32>
    %885 = vector.shape_cast %884 : vector<32xf32> to vector<1x32xf32>
    %cst_472 = arith.constant 6.250000e-02 : f32
    %886 = vector.broadcast %cst_472 : f32 to vector<1x32xf32>
    %887 = arith.mulf %885, %886 : vector<1x32xf32>
    %cst_473 = arith.constant 9.99999974E-6 : f32
    %888 = vector.broadcast %cst_473 : f32 to vector<1x32xf32>
    %889 = arith.addf %887, %888 : vector<1x32xf32>
    %890 = math.rsqrt %889 : vector<1x32xf32>
    %891 = vector.broadcast %890 : vector<1x32xf32> to vector<16x32xf32>
    %892 = arith.mulf %882, %891 : vector<16x32xf32>
    %893 = arith.addf %704, %892 : vector<16x32xf32>
    %c0_474 = arith.constant 0 : index
    %c0_475 = arith.constant 0 : index
    %c0_476 = arith.constant 0 : index
    %894 = vector.load %arg8[%c0_474, %c0_475, %c0_476] : memref<1x16x32xf32, #tpu.memory_space<vmem>>, vector<1x16x32xf32>
    %895 = vector.shape_cast %894 : vector<1x16x32xf32> to vector<16x32xf32>
    %896 = vector.shape_cast %893 : vector<16x32xf32> to vector<1x16x32xf32>
    tpu.vector_store %arg8[%c0_474, %c0_475, %c0_476], %896 {strides = array<i32>} : memref<1x16x32xf32, #tpu.memory_space<vmem>>, vector<1x16x32xf32>,
    return
  }
  func.func @transform_0(%arg0: i32) -> (i32, i32, i32) {
    %c0_i32 = arith.constant 0 : i32
    %c0_i32_0 = arith.constant 0 : i32
    %c0_i32_1 = arith.constant 0 : i32
    return %arg0, %c0_i32, %c0_i32_0 : i32, i32, i32
  }
  func.func @transform_1(%arg0: i32) -> (i32, i32) {
    %c0_i32 = arith.constant 0 : i32
    %c0_i32_0 = arith.constant 0 : i32
    %c0_i32_1 = arith.constant 0 : i32
    return %c0_i32, %c0_i32_0 : i32, i32
  }
  func.func @transform_2(%arg0: i32) -> (i32, i32, i32) {
    %c0_i32 = arith.constant 0 : i32
    %c0_i32_0 = arith.constant 0 : i32
    %c0_i32_1 = arith.constant 0 : i32
    %c0_i32_2 = arith.constant 0 : i32
    return %c0_i32, %c0_i32_0, %c0_i32_1 : i32, i32, i32
  }
  func.func @transform_3(%arg0: i32) -> (i32, i32, i32) {
    %c0_i32 = arith.constant 0 : i32
    %c0_i32_0 = arith.constant 0 : i32
    %c0_i32_1 = arith.constant 0 : i32
    %c0_i32_2 = arith.constant 0 : i32
    return %c0_i32, %c0_i32_0, %c0_i32_1 : i32, i32, i32
  }
  func.func @transform_4(%arg0: i32) -> (i32, i32, i32, i32) {
    %c0_i32 = arith.constant 0 : i32
    %c0_i32_0 = arith.constant 0 : i32
    %c0_i32_1 = arith.constant 0 : i32
    %c0_i32_2 = arith.constant 0 : i32
    %c0_i32_3 = arith.constant 0 : i32
    return %c0_i32, %c0_i32_0, %c0_i32_1, %c0_i32_2 : i32, i32, i32, i32
  }
  func.func @transform_5(%arg0: i32) -> (i32, i32, i32) {
    %c0_i32 = arith.constant 0 : i32
    %c0_i32_0 = arith.constant 0 : i32
    %c0_i32_1 = arith.constant 0 : i32
    %c0_i32_2 = arith.constant 0 : i32
    return %c0_i32, %c0_i32_0, %c0_i32_1 : i32, i32, i32
  }
  func.func @transform_6(%arg0: i32) -> (i32, i32, i32) {
    %c0_i32 = arith.constant 0 : i32
    %c0_i32_0 = arith.constant 0 : i32
    %c0_i32_1 = arith.constant 0 : i32
    %c0_i32_2 = arith.constant 0 : i32
    return %c0_i32, %c0_i32_0, %c0_i32_1 : i32, i32, i32
  }
  func.func @transform_7(%arg0: i32) -> (i32, i32, i32) {
    %c0_i32 = arith.constant 0 : i32
    %c0_i32_0 = arith.constant 0 : i32
    %c0_i32_1 = arith.constant 0 : i32
    return %arg0, %c0_i32, %c0_i32_0 : i32, i32, i32
  }
}

</mosaic_0001>

<llo_original>
// kernel: _lambda_.1
$region0: #{_lambda_.1}
  #allocation0 [shape = 'u32[]', space=smem, size = 0x4, offset = 0x4, fixed_abs, tag = 'smem constant byte address 0x4 - core index']
  #allocation1 [shape = 'u32[72,128]{1,0:T(1,128)}', space=vmem, size = 0x9000, scoped, tag = 'internal scratch']
  %s0 = inlined_call_operand.vmem [shape: bf16[2,256,147], index: 0, kind: input, shape index: {}]
  %s1 = inlined_call_operand.vmem [shape: bf16[147,8], index: 1, kind: input, shape index: {}]
  %s2 = inlined_call_operand.vmem [shape: bf16[16,8,16], index: 2, kind: input, shape index: {}]
  %s3 = inlined_call_operand.vmem [shape: bf16[16,16,32], index: 3, kind: input, shape index: {}]
  %s4 = inlined_call_operand.vmem [shape: bf16[6,9,32,32], index: 4, kind: input, shape index: {}]
  %s5 = inlined_call_operand.vmem [shape: bf16[2,162,256], index: 5, kind: input, shape index: {}]
  %s6 = inlined_call_operand.vmem [shape: bf16[2,50,134], index: 6, kind: input, shape index: {}]
  %s7 = inlined_call_operand.hbm [shape: f32[2,16,32], index: 7, kind: output, shape index: {}]
  %s8 = sld [smem:[#allocation0]]
  $region61: #{_lambda_.1} parent=0
    _
  %s10 = ssub.s32 1, %s8
  %s11 = scalar_select 0, %s10, %s8
  $region1: #{_lambda_.1} parent=0
    #allocation2 [shape = 'u8[16384]{0}', space=vmem, size = 0x4000, scoped, tag = 'output window, operand 0']
    #allocation3 [shape = 's32[2]{0}', space=sflag, size = 0x8, scoped, tag = 'scoped memory for _lambda_.1']
    %12 = vsyncpa [#allocation3], 0
    %s13 = scalar_lea.sflag [#allocation3], 1
    %14 = vsyncpa %s13, 0
    loop: start=0, step=1, limit=4
    $region2: #{_lambda_.1} parent=1 // loop_pre_header
      _
    $region3: #{_lambda_.1} parent=1 // loop_header
      %s16 = sphi 0, %s20
      %p17 = scmp.ge.s32.totalorder %s16, 4
      %s26 = sphi 0, %s28
      %s29 = sphi 0, %s26
      %s30 = sphi 0, %s29
      %s46 = sphi 0, %s30
      %s50 = sphi 0, %s50
      %s52 = sphi 0, %s50
      %s53 = sphi 0, %s52
      %s67 = sphi 0, %s53
      %s71 = sphi 0, %s71
      %s73 = sphi 0, %s71
      %s74 = sphi 0, %s73
      %s88 = sphi 0, %s74
      %s92 = sphi 0, %s92
      %s94 = sphi 0, %s92
      %s95 = sphi 0, %s94
      %s109 = sphi 0, %s95
      %s113 = sphi 0, %s113
      %s115 = sphi 0, %s113
      %s116 = sphi 0, %s115
      %s130 = sphi 0, %s116
      %s134 = sphi 0, %s134
      %s136 = sphi 0, %s134
      %s137 = sphi 0, %s136
      %s151 = sphi 0, %s137
      %s155 = sphi 0, %s155
      %s157 = sphi 0, %s155
      %s158 = sphi 0, %s157
      %s172 = sphi 0, %s158
      %s178 = sphi 0, %s180
      %s181 = sphi 0, %s178
      %s182 = sphi 0, %s181
      %s198 = sphi 0, %s182
    $region4: #{_lambda_.1} parent=1 // loop_header_branch
      %19 = sbr.rel (%p17) target = $region8
    $region5: #{_lambda_.1} parent=1 // loop_body
      %s21 = ssub.s32 %s16, 1
      %s22 = ssub.s32 %s16, 2
      %s23 = sadd.s32 %s16, 1
      %s24 = ssub.s32 %s16, %s23
      %p25 = scmp.eq.s32.totalorder %s24, 0
      %s27 = sadd.s32 %s26, 1
      %s28 = scalar_select %p25, %s26, %s27
      %p31 = pneg %p25
      %p32 = scmp.eq.s32.totalorder %s16, 1
      %p33 = por %p31, %p32
      %p34 = scmp.ne.s32.totalorder %s26, %s29
      %p35 = scmp.eq.s32.totalorder %s16, 0
      %p36 = por %p34, %p35
      %p37 = scmp.ne.s32.totalorder %s26, %s29
      %p38 = scmp.eq.s32.totalorder %s21, 1
      %p39 = por %p37, %p38
      %p40 = scmp.ne.s32.totalorder %s29, %s30
      %p41 = scmp.eq.s32.totalorder %s21, 0
      %p42 = por %p40, %p41
      %p43 = scmp.ne.s32.totalorder %s29, %s30
      %p44 = scmp.eq.s32.totalorder %s22, 1
      %p45 = por %p43, %p44
      %p47 = scmp.ne.s32.totalorder %s30, %s46
      %p48 = scmp.eq.s32.totalorder %s22, 0
      %p49 = por %p47, %p48
      %s51 = sadd.s32 %s50, 1
      %p54 = scmp.eq.s32.totalorder %s16, 1
      %p55 = scmp.ne.s32.totalorder %s50, %s52
      %p56 = scmp.eq.s32.totalorder %s16, 0
      %p57 = por %p55, %p56
      %p58 = scmp.ne.s32.totalorder %s50, %s52
      %p59 = scmp.eq.s32.totalorder %s21, 1
      %p60 = por %p58, %p59
      %p61 = scmp.ne.s32.totalorder %s52, %s53
      %p62 = scmp.eq.s32.totalorder %s21, 0
      %p63 = por %p61, %p62
      %p64 = scmp.ne.s32.totalorder %s52, %s53
      %p65 = scmp.eq.s32.totalorder %s22, 1
      %p66 = por %p64, %p65
      %p68 = scmp.ne.s32.totalorder %s53, %s67
      %p69 = scmp.eq.s32.totalorder %s22, 0
      %p70 = por %p68, %p69
      %s72 = sadd.s32 %s71, 1
      %p75 = scmp.eq.s32.totalorder %s16, 1
      %p76 = scmp.ne.s32.totalorder %s71, %s73
      %p77 = scmp.eq.s32.totalorder %s16, 0
      %p78 = por %p76, %p77
      %p79 = scmp.ne.s32.totalorder %s71, %s73
      %p80 = scmp.eq.s32.totalorder %s21, 1
      %p81 = por %p79, %p80
      %p82 = scmp.ne.s32.totalorder %s73, %s74
      %p83 = scmp.eq.s32.totalorder %s21, 0
      %p84 = por %p82, %p83
      %p85 = scmp.ne.s32.totalorder %s73, %s74
      %p86 = scmp.eq.s32.totalorder %s22, 1
      %p87 = por %p85, %p86
      %p89 = scmp.ne.s32.totalorder %s74, %s88
      %p90 = scmp.eq.s32.totalorder %s22, 0
      %p91 = por %p89, %p90
      %s93 = sadd.s32 %s92, 1
      %p96 = scmp.eq.s32.totalorder %s16, 1
      %p97 = scmp.ne.s32.totalorder %s92, %s94
      %p98 = scmp.eq.s32.totalorder %s16, 0
      %p99 = por %p97, %p98
      %p100 = scmp.ne.s32.totalorder %s92, %s94
      %p101 = scmp.eq.s32.totalorder %s21, 1
      %p102 = por %p100, %p101
      %p103 = scmp.ne.s32.totalorder %s94, %s95
      %p104 = scmp.eq.s32.totalorder %s21, 0
      %p105 = por %p103, %p104
      %p106 = scmp.ne.s32.totalorder %s94, %s95
      %p107 = scmp.eq.s32.totalorder %s22, 1
      %p108 = por %p106, %p107
      %p110 = scmp.ne.s32.totalorder %s95, %s109
      %p111 = scmp.eq.s32.totalorder %s22, 0
      %p112 = por %p110, %p111
      %s114 = sadd.s32 %s113, 1
      %p117 = scmp.eq.s32.totalorder %s16, 1
      %p118 = scmp.ne.s32.totalorder %s113, %s115
      %p119 = scmp.eq.s32.totalorder %s16, 0
      %p120 = por %p118, %p119
      %p121 = scmp.ne.s32.totalorder %s113, %s115
      %p122 = scmp.eq.s32.totalorder %s21, 1
      %p123 = por %p121, %p122
      %p124 = scmp.ne.s32.totalorder %s115, %s116
      %p125 = scmp.eq.s32.totalorder %s21, 0
      %p126 = por %p124, %p125
      %p127 = scmp.ne.s32.totalorder %s115, %s116
      %p128 = scmp.eq.s32.totalorder %s22, 1
      %p129 = por %p127, %p128
      %p131 = scmp.ne.s32.totalorder %s116, %s130
      %p132 = scmp.eq.s32.totalorder %s22, 0
      %p133 = por %p131, %p132
      %s135 = sadd.s32 %s134, 1
      %p138 = scmp.eq.s32.totalorder %s16, 1
      %p139 = scmp.ne.s32.totalorder %s134, %s136
      %p140 = scmp.eq.s32.totalorder %s16, 0
      %p141 = por %p139, %p140
      %p142 = scmp.ne.s32.totalorder %s134, %s136
      %p143 = scmp.eq.s32.totalorder %s21, 1
      %p144 = por %p142, %p143
      %p145 = scmp.ne.s32.totalorder %s136, %s137
      %p146 = scmp.eq.s32.totalorder %s21, 0
      %p147 = por %p145, %p146
      %p148 = scmp.ne.s32.totalorder %s136, %s137
      %p149 = scmp.eq.s32.totalorder %s22, 1
      %p150 = por %p148, %p149
      %p152 = scmp.ne.s32.totalorder %s137, %s151
      %p153 = scmp.eq.s32.totalorder %s22, 0
      %p154 = por %p152, %p153
      %s156 = sadd.s32 %s155, 1
      %p159 = scmp.eq.s32.totalorder %s16, 1
      %p160 = scmp.ne.s32.totalorder %s155, %s157
      %p161 = scmp.eq.s32.totalorder %s16, 0
      %p162 = por %p160, %p161
      %p163 = scmp.ne.s32.totalorder %s155, %s157
      %p164 = scmp.eq.s32.totalorder %s21, 1
      %p165 = por %p163, %p164
      %p166 = scmp.ne.s32.totalorder %s157, %s158
      %p167 = scmp.eq.s32.totalorder %s21, 0
      %p168 = por %p166, %p167
      %p169 = scmp.ne.s32.totalorder %s157, %s158
      %p170 = scmp.eq.s32.totalorder %s22, 1
      %p171 = por %p169, %p170
      %p173 = scmp.ne.s32.totalorder %s158, %s172
      %p174 = scmp.eq.s32.totalorder %s22, 0
      %p175 = por %p173, %p174
      %s176 = ssub.s32 %s16, %s23
      %p177 = scmp.eq.s32.totalorder %s176, 0
      %s179 = sadd.s32 %s178, 1
      %s180 = scalar_select %p177, %s178, %s179
      %p183 = pneg %p177
      %p184 = scmp.eq.s32.totalorder %s16, 1
      %p185 = por %p183, %p184
      %p186 = scmp.ne.s32.totalorder %s178, %s181
      %p187 = scmp.eq.s32.totalorder %s16, 0
      %p188 = por %p186, %p187
      %p189 = scmp.ne.s32.totalorder %s178, %s181
      %p190 = scmp.eq.s32.totalorder %s21, 1
      %p191 = por %p189, %p190
      %p192 = scmp.ne.s32.totalorder %s181, %s182
      %p193 = scmp.eq.s32.totalorder %s21, 0
      %p194 = por %p192, %p193
      %p195 = scmp.ne.s32.totalorder %s181, %s182
      %p196 = scmp.eq.s32.totalorder %s22, 1
      %p197 = por %p195, %p196
      %p199 = scmp.ne.s32.totalorder %s182, %s198
      %p200 = scmp.eq.s32.totalorder %s22, 0
      %p201 = por %p199, %p200
      %p202 = scmp.le.s32.totalorder 1, %s16
      %p203 = scmp.lt.s32.totalorder %s16, 3
      %p204 = pnand %p202, %p203
      %p205 = pneg %p204
      // Predicated region
      $region9: #{_lambda_.1} parent=5 // pred_check
        _
      $region10: #{_lambda_.1} parent=5 // pred_check_branch
        %207 = sbr.rel (%p204) target = $region12
      $region11: #{_lambda_.1} parent=5 // pred_region
        %s208 = ssub.s32 %s16, 1
        // Predicated region
        $region13: #{_lambda_.1} parent=11 // pred_check
          %p209 = pneg %p63
        $region14: #{_lambda_.1} parent=11 // pred_check_branch
          %211 = sbr.rel (%p209) target = $region16
        $region15: #{_lambda_.1} parent=11 // pred_region
          _
        $region16: #{_lambda_.1} parent=11 // pred_fallthru
          _
        // Predicated region
        $region17: #{_lambda_.1} parent=11 // pred_check
          %p212 = pneg %p84
        $region18: #{_lambda_.1} parent=11 // pred_check_branch
          %214 = sbr.rel (%p212) target = $region20
        $region19: #{_lambda_.1} parent=11 // pred_region
          _
        $region20: #{_lambda_.1} parent=11 // pred_fallthru
          _
        // Predicated region
        $region21: #{_lambda_.1} parent=11 // pred_check
          %p215 = pneg %p105
        $region22: #{_lambda_.1} parent=11 // pred_check_branch
          %217 = sbr.rel (%p215) target = $region24
        $region23: #{_lambda_.1} parent=11 // pred_region
          _
        $region24: #{_lambda_.1} parent=11 // pred_fallthru
          _
        // Predicated region
        $region25: #{_lambda_.1} parent=11 // pred_check
          %p218 = pneg %p126
        $region26: #{_lambda_.1} parent=11 // pred_check_branch
          %220 = sbr.rel (%p218) target = $region28
        $region27: #{_lambda_.1} parent=11 // pred_region
          _
        $region28: #{_lambda_.1} parent=11 // pred_fallthru
          _
        // Predicated region
        $region29: #{_lambda_.1} parent=11 // pred_check
          %p221 = pneg %p147
        $region30: #{_lambda_.1} parent=11 // pred_check_branch
          %223 = sbr.rel (%p221) target = $region32
        $region31: #{_lambda_.1} parent=11 // pred_region
          _
        $region32: #{_lambda_.1} parent=11 // pred_fallthru
          _
        // Predicated region
        $region33: #{_lambda_.1} parent=11 // pred_check
          %p224 = pneg %p168
        $region34: #{_lambda_.1} parent=11 // pred_check_branch
          %226 = sbr.rel (%p224) target = $region36
        $region35: #{_lambda_.1} parent=11 // pred_region
          _
        $region36: #{_lambda_.1} parent=11 // pred_fallthru
          _
      $region12: #{_lambda_.1} parent=5 // pred_fallthru
        _
      %p227 = scmp.lt.s32.totalorder %s16, 2
      // Predicated region
      $region37: #{_lambda_.1} parent=5 // pred_check
        %p228 = pneg %p227
      $region38: #{_lambda_.1} parent=5 // pred_check_branch
        %230 = sbr.rel (%p228) target = $region40
      $region39: #{_lambda_.1} parent=5 // pred_region
        // Predicated region
        $region41: #{_lambda_.1} parent=39 // pred_check
          %p231 = pneg %p36
        $region42: #{_lambda_.1} parent=39 // pred_check_branch
          %233 = sbr.rel (%p231) target = $region44
        $region43: #{_lambda_.1} parent=39 // pred_region
          %p234 = scmp.lt.s32.totalorder %s16, 1
          %s235 = scalar_select %p234, %s16, 1
          %s236 = smul.addr %s235, 64
          %s237 = smul.addr %s236, 4
          %s238 = scalar_lea.vmem %s0, %s237
        $region44: #{_lambda_.1} parent=39 // pred_fallthru
          _
      $region40: #{_lambda_.1} parent=5 // pred_fallthru
        _
      %p239 = scmp.le.s32.totalorder 1, %s16
      %p240 = scmp.lt.s32.totalorder %s16, 3
      %p241 = pnand %p239, %p240
      %p242 = pneg %p241
      // Predicated region
      $region45: #{_lambda_.1} parent=5 // pred_check
        _
      $region46: #{_lambda_.1} parent=5 // pred_check_branch
        %244 = sbr.rel (%p241) target = $region48
      $region47: #{_lambda_.1} parent=5 // pred_region
        %s245 = ssub.s32 %s16, 1
        %p246 = scmp.lt.s32.totalorder %s21, 1
        %s247 = scalar_select %p246, %s21, 1
        %s248 = smul.addr %s247, 64
        %s249 = smul.addr %s248, 4
        %s250 = scalar_lea.vmem %s0, %s249
        %p251 = pneg %p42
        %p252 = pneg %p39
        %p253 = pneg %p63
        %p254 = pneg %p60
        %p255 = pneg %p84
        %p256 = pneg %p81
        %p257 = pneg %p105
        %p258 = pneg %p102
        %p259 = pneg %p126
        %p260 = pneg %p123
        %p261 = pneg %p147
        %p262 = pneg %p144
        %p263 = pneg %p168
        %p264 = pneg %p165
        %p265 = pneg %p194
        %p266 = pneg %p191
        %s267 = sand.u32 %s181, 1
        %s268 = scalar_lea.sflag [#allocation3], %s267
        %s269 = sand.u32 %s181, 1
        %s270 = smul.addr %s269, 16
        %s271 = scalar_lea.vmem [#allocation2], %s270
        %p272 = scmp.lt.s32.totalorder %s21, 1
        %s273 = scalar_select %p272, %s21, 1
        %s274 = smul.addr %s273, 64
        %s275 = smul.addr %s274, 4
        %s276 = scalar_lea.vmem %s0, %s275
        %v278 = vld [vmem:[%s276] sm:$0xff]
        %v279 = vld [vmem:[%s276 + $0x8] sm:$0xff]
        %v280 = vld [vmem:[%s276 + $0x10] sm:$0xff]
        %v281 = vld [vmem:[%s276 + $0x18] sm:$0xff]
        %v282 = vld [vmem:[%s276 + $0x20] sm:$0xff]
        %v283 = vld [vmem:[%s276 + $0x28] sm:$0xff]
        %v284 = vld [vmem:[%s276 + $0x30] sm:$0xff]
        %v285 = vld [vmem:[%s276 + $0x38] sm:$0xff]
        %v286 = vld [vmem:[%s276 + $0x40] sm:$0xff]
        %v287 = vld [vmem:[%s276 + $0x48] sm:$0xff]
        %v288 = vld [vmem:[%s276 + $0x50] sm:$0xff]
        %v289 = vld [vmem:[%s276 + $0x58] sm:$0xff]
        %v290 = vld [vmem:[%s276 + $0x60] sm:$0xff]
        %v291 = vld [vmem:[%s276 + $0x68] sm:$0xff]
        %v292 = vld [vmem:[%s276 + $0x70] sm:$0xff]
        %v293 = vld [vmem:[%s276 + $0x78] sm:$0xff]
        %v294 = vld [vmem:[%s276 + $0x80] sm:$0xff]
        %v295 = vld [vmem:[%s276 + $0x88] sm:$0xff]
        %v296 = vld [vmem:[%s276 + $0x90] sm:$0xff]
        %v297 = vld [vmem:[%s276 + $0x98] sm:$0xff]
        %v298 = vld [vmem:[%s276 + $0xa0] sm:$0xff]
        %v299 = vld [vmem:[%s276 + $0xa8] sm:$0xff]
        %v300 = vld [vmem:[%s276 + $0xb0] sm:$0xff]
        %v301 = vld [vmem:[%s276 + $0xb8] sm:$0xff]
        %v302 = vld [vmem:[%s276 + $0xc0] sm:$0xff]
        %v303 = vld [vmem:[%s276 + $0xc8] sm:$0xff]
        %v304 = vld [vmem:[%s276 + $0xd0] sm:$0xff]
        %v305 = vld [vmem:[%s276 + $0xd8] sm:$0xff]
        %v306 = vld [vmem:[%s276 + $0xe0] sm:$0xff]
        %v307 = vld [vmem:[%s276 + $0xe8] sm:$0xff]
        %v308 = vld [vmem:[%s276 + $0xf0] sm:$0xff]
        %v309 = vld [vmem:[%s276 + $0xf8] sm:$0xff]
        %v310 = vld [vmem:[%s1] sm:$0xf]
        %v311 = vld [vmem:[%s1 + $0x4] sm:$0xf]
        %v312 = vld [vmem:[%s1 + $0x8] sm:$0xf]
        %v313 = vld [vmem:[%s1 + $0xc] sm:$0xf]
        %v314 = vld [vmem:[%s1 + $0x10] sm:$0xf]
        %v315 = vld [vmem:[%s1 + $0x14] sm:$0xf]
        %v316 = vld [vmem:[%s1 + $0x18] sm:$0xf]
        %v317 = vld [vmem:[%s1 + $0x1c] sm:$0xf]
        %v318 = vld [vmem:[%s1 + $0x20] sm:$0xf]
        %v319 = vld [vmem:[%s1 + $0x24] sm:$0xf]
        %v320 = vld [vmem:[%s1 + $0x28] sm:$0xf]
        %v321 = vld [vmem:[%s1 + $0x2c] sm:$0xf]
        %v322 = vld [vmem:[%s1 + $0x30] sm:$0xf]
        %v323 = vld [vmem:[%s1 + $0x34] sm:$0xf]
        %v324 = vld [vmem:[%s1 + $0x38] sm:$0xf]
        %v325 = vld [vmem:[%s1 + $0x3c] sm:$0xf]
        %v326 = vld [vmem:[%s1 + $0x40] sm:$0xf]
        %v327 = vld [vmem:[%s1 + $0x44] sm:$0xf]
        %v328 = vld [vmem:[%s1 + $0x48] sm:$0x3]
        %v361 = vunpack.c.l.b16 %v278
        %v362 = vunpack.c.h.b16 %v278
        %v363 = vunpack.c.l.b16 %v279
        %v364 = vunpack.c.h.b16 %v279
        %v365 = vunpack.c.l.b16 %v280
        %v366 = vunpack.c.h.b16 %v280
        %v367 = vunpack.c.l.b16 %v281
        %v368 = vunpack.c.h.b16 %v281
        %v369 = vunpack.c.l.b16 %v282
        %v370 = vunpack.c.h.b16 %v282
        %v371 = vunpack.c.l.b16 %v283
        %v372 = vunpack.c.h.b16 %v283
        %v373 = vunpack.c.l.b16 %v284
        %v374 = vunpack.c.h.b16 %v284
        %v375 = vunpack.c.l.b16 %v285
        %v376 = vunpack.c.h.b16 %v285
        %v377 = vunpack.c.l.b16 %v286
        %v378 = vunpack.c.h.b16 %v286
        %v379 = vunpack.c.l.b16 %v287
        %v380 = vunpack.c.h.b16 %v287
        %v381 = vunpack.c.l.b16 %v288
        %v382 = vunpack.c.h.b16 %v288
        %v383 = vunpack.c.l.b16 %v289
        %v384 = vunpack.c.h.b16 %v289
        %v385 = vunpack.c.l.b16 %v290
        %v386 = vunpack.c.h.b16 %v290
        %v387 = vunpack.c.l.b16 %v291
        %v388 = vunpack.c.h.b16 %v291
        %v389 = vunpack.c.l.b16 %v292
        %v390 = vunpack.c.h.b16 %v292
        %v391 = vunpack.c.l.b16 %v293
        %v392 = vunpack.c.h.b16 %v293
        %v393 = vunpack.c.l.b16 %v294
        %v394 = vunpack.c.h.b16 %v294
        %v395 = vunpack.c.l.b16 %v295
        %v396 = vunpack.c.h.b16 %v295
        %v397 = vunpack.c.l.b16 %v296
        %v398 = vunpack.c.h.b16 %v296
        %v399 = vunpack.c.l.b16 %v297
        %v400 = vunpack.c.h.b16 %v297
        %v401 = vunpack.c.l.b16 %v298
        %v402 = vunpack.c.h.b16 %v298
        %v403 = vunpack.c.l.b16 %v299
        %v404 = vunpack.c.h.b16 %v299
        %v405 = vunpack.c.l.b16 %v300
        %v406 = vunpack.c.h.b16 %v300
        %v407 = vunpack.c.l.b16 %v301
        %v408 = vunpack.c.h.b16 %v301
        %v409 = vunpack.c.l.b16 %v302
        %v410 = vunpack.c.h.b16 %v302
        %v411 = vunpack.c.l.b16 %v303
        %v412 = vunpack.c.h.b16 %v303
        %v413 = vunpack.c.l.b16 %v304
        %v414 = vunpack.c.h.b16 %v304
        %v415 = vunpack.c.l.b16 %v305
        %v416 = vunpack.c.h.b16 %v305
        %v417 = vunpack.c.l.b16 %v306
        %v418 = vunpack.c.h.b16 %v306
        %v419 = vunpack.c.l.b16 %v307
        %v420 = vunpack.c.h.b16 %v307
        %v421 = vunpack.c.l.b16 %v308
        %v422 = vunpack.c.h.b16 %v308
        %v423 = vunpack.c.l.b16 %v309
        %v424 = vunpack.c.h.b16 %v309
        %v425 = vpack.c.b16 %v363, %v361
        %v426 = vpack.c.b16 %v364, %v362
        %v427 = vpack.c.b16 %v367, %v365
        %v428 = vpack.c.b16 %v368, %v366
        %v429 = vpack.c.b16 %v371, %v369
        %v430 = vpack.c.b16 %v372, %v370
        %v431 = vpack.c.b16 %v375, %v373
        %v432 = vpack.c.b16 %v376, %v374
        %v433 = vpack.c.b16 %v379, %v377
        %v434 = vpack.c.b16 %v380, %v378
        %v435 = vpack.c.b16 %v383, %v381
        %v436 = vpack.c.b16 %v384, %v382
        %v437 = vpack.c.b16 %v387, %v385
        %v438 = vpack.c.b16 %v388, %v386
        %v439 = vpack.c.b16 %v391, %v389
        %v440 = vpack.c.b16 %v392, %v390
        %v441 = vpack.c.b16 %v395, %v393
        %v442 = vpack.c.b16 %v396, %v394
        %v443 = vpack.c.b16 %v399, %v397
        %v444 = vpack.c.b16 %v400, %v398
        %v445 = vpack.c.b16 %v403, %v401
        %v446 = vpack.c.b16 %v404, %v402
        %v447 = vpack.c.b16 %v407, %v405
        %v448 = vpack.c.b16 %v408, %v406
        %v449 = vpack.c.b16 %v411, %v409
        %v450 = vpack.c.b16 %v412, %v410
        %v451 = vpack.c.b16 %v415, %v413
        %v452 = vpack.c.b16 %v416, %v414
        %v453 = vpack.c.b16 %v419, %v417
        %v454 = vpack.c.b16 %v420, %v418
        %v455 = vpack.c.b16 %v423, %v421
        %v456 = vpack.c.b16 %v424, %v422
        %v492 = vunpack.c.l.b16 %v310
        %v493 = vunpack.c.l.b16 %v311
        %v494 = vunpack.c.l.b16 %v312
        %v495 = vunpack.c.l.b16 %v313
        %v496 = vunpack.c.l.b16 %v314
        %v497 = vunpack.c.l.b16 %v315
        %v498 = vunpack.c.l.b16 %v316
        %v499 = vunpack.c.l.b16 %v317
        %v500 = vunpack.c.l.b16 %v318
        %v501 = vunpack.c.l.b16 %v319
        %v502 = vunpack.c.l.b16 %v320
        %v503 = vunpack.c.l.b16 %v321
        %v504 = vunpack.c.l.b16 %v322
        %v505 = vunpack.c.l.b16 %v323
        %v506 = vunpack.c.l.b16 %v324
        %v507 = vunpack.c.l.b16 %v325
        %v508 = vunpack.c.l.b16 %v326
        %v509 = vunpack.c.l.b16 %v327
        %v510 = vunpack.c.l.b16 %v328
        %v511 = vpack.c.b16 %v493, %v492
        %v512 = vpack.c.b16 %v495, %v494
        %v513 = vpack.c.b16 %v497, %v496
        %v514 = vpack.c.b16 %v499, %v498
        %v515 = vpack.c.b16 %v501, %v500
        %v516 = vpack.c.b16 %v503, %v502
        %v517 = vpack.c.b16 %v505, %v504
        %v518 = vpack.c.b16 %v507, %v506
        %v519 = vpack.c.b16 %v509, %v508
        %v520 = vpack.c.b16 %v510, %v510
        %vm530 = vcmask 154624
        %v532 = vsel %vm530, %v426, 0
        %v535 = vsel %vm530, %v428, 0
        %v538 = vsel %vm530, %v430, 0
        %v541 = vsel %vm530, %v432, 0
        %v544 = vsel %vm530, %v434, 0
        %v547 = vsel %vm530, %v436, 0
        %v550 = vsel %vm530, %v438, 0
        %v553 = vsel %vm530, %v440, 0
        %v556 = vsel %vm530, %v442, 0
        %v559 = vsel %vm530, %v444, 0
        %v562 = vsel %vm530, %v446, 0
        %v565 = vsel %vm530, %v448, 0
        %v568 = vsel %vm530, %v450, 0
        %v571 = vsel %vm530, %v452, 0
        %v574 = vsel %vm530, %v454, 0
        %v577 = vsel %vm530, %v456, 0
        %vm579 = vcmask 1040384
        %vm580 = vcmask 1041408
        %v581 = vsel %vm579, 4294967295, 65535
        %v582 = vsel %vm580, %v581, 0
        %v584 = vand.u32 %v520, %v582
        %586 = vmatpush.bf16.msra.mxu0 %v518
        %587 = vmatpush.bf16.msra.mxu0 %v517
        %588 = vmatpush.bf16.msra.mxu0 %v516
        %589 = vmatpush.bf16.msra.mxu0 %v515
        %590 = vmatpush.bf16.msra.mxu0 %v514
        %591 = vmatpush.bf16.msra.mxu0 %v513
        %592 = vmatpush.bf16.msra.mxu0 %v512
        %593 = vmatpush.bf16.msra.mxu0 %v511
        %594 = vmatmul.bf16.gmra.mxu0 %v425
        %v595 = vpop.f32.mrf.mxu0
        %v596 = vadd.f32 0.0, %v595
        %v597 = vpop.f32.mrf.mxu0
        %v598 = vadd.f32 0.0, %v597
        %599 = vmatmul.bf16.gmra.mxu0 %v427
        %v600 = vpop.f32.mrf.mxu0
        %v601 = vadd.f32 0.0, %v600
        %v602 = vpop.f32.mrf.mxu0
        %v603 = vadd.f32 0.0, %v602
        %604 = vmatmul.bf16.gmra.mxu0 %v429
        %v605 = vpop.f32.mrf.mxu0
        %v606 = vadd.f32 0.0, %v605
        %v607 = vpop.f32.mrf.mxu0
        %v608 = vadd.f32 0.0, %v607
        %609 = vmatmul.bf16.gmra.mxu0 %v431
        %v610 = vpop.f32.mrf.mxu0
        %v611 = vadd.f32 0.0, %v610
        %v612 = vpop.f32.mrf.mxu0
        %v613 = vadd.f32 0.0, %v612
        %614 = vmatmul.bf16.gmra.mxu0 %v433
        %v615 = vpop.f32.mrf.mxu0
        %v616 = vadd.f32 0.0, %v615
        %v617 = vpop.f32.mrf.mxu0
        %v618 = vadd.f32 0.0, %v617
        %619 = vmatmul.bf16.gmra.mxu0 %v435
        %v620 = vpop.f32.mrf.mxu0
        %v621 = vadd.f32 0.0, %v620
        %v622 = vpop.f32.mrf.mxu0
        %v623 = vadd.f32 0.0, %v622
        %624 = vmatmul.bf16.gmra.mxu0 %v437
        %v625 = vpop.f32.mrf.mxu0
        %v626 = vadd.f32 0.0, %v625
        %v627 = vpop.f32.mrf.mxu0
        %v628 = vadd.f32 0.0, %v627
        %629 = vmatmul.bf16.gmra.mxu0 %v439
        %v630 = vpop.f32.mrf.mxu0
        %v631 = vadd.f32 0.0, %v630
        %v632 = vpop.f32.mrf.mxu0
        %v633 = vadd.f32 0.0, %v632
        %634 = vmatmul.bf16.gmra.mxu0 %v441
        %v635 = vpop.f32.mrf.mxu0
        %v636 = vadd.f32 0.0, %v635
        %v637 = vpop.f32.mrf.mxu0
        %v638 = vadd.f32 0.0, %v637
        %639 = vmatmul.bf16.gmra.mxu0 %v443
        %v640 = vpop.f32.mrf.mxu0
        %v641 = vadd.f32 0.0, %v640
        %v642 = vpop.f32.mrf.mxu0
        %v643 = vadd.f32 0.0, %v642
        %644 = vmatmul.bf16.gmra.mxu0 %v445
        %v645 = vpop.f32.mrf.mxu0
        %v646 = vadd.f32 0.0, %v645
        %v647 = vpop.f32.mrf.mxu0
        %v648 = vadd.f32 0.0, %v647
        %649 = vmatmul.bf16.gmra.mxu0 %v447
        %v650 = vpop.f32.mrf.mxu0
        %v651 = vadd.f32 0.0, %v650
        %v652 = vpop.f32.mrf.mxu0
        %v653 = vadd.f32 0.0, %v652
        %654 = vmatmul.bf16.gmra.mxu0 %v449
        %v655 = vpop.f32.mrf.mxu0
        %v656 = vadd.f32 0.0, %v655
        %v657 = vpop.f32.mrf.mxu0
        %v658 = vadd.f32 0.0, %v657
        %659 = vmatmul.bf16.gmra.mxu0 %v451
        %v660 = vpop.f32.mrf.mxu0
        %v661 = vadd.f32 0.0, %v660
        %v662 = vpop.f32.mrf.mxu0
        %v663 = vadd.f32 0.0, %v662
        %664 = vmatmul.bf16.gmra.mxu0 %v453
        %v665 = vpop.f32.mrf.mxu0
        %v666 = vadd.f32 0.0, %v665
        %v667 = vpop.f32.mrf.mxu0
        %v668 = vadd.f32 0.0, %v667
        %669 = vmatmul.bf16.gmra.mxu0 %v455
        %v670 = vpop.f32.mrf.mxu0
        %v671 = vadd.f32 0.0, %v670
        %v672 = vpop.f32.mrf.mxu0
        %v673 = vadd.f32 0.0, %v672
        %674 = vdwg.mxu0
        %675 = vmatpush.bf16.msra.mxu0 0
        %676 = vmatpush.bf16.msra.mxu0 0
        %677 = vmatpush.bf16.msra.mxu0 0
        %678 = vmatpush.bf16.msra.mxu0 0
        %679 = vmatpush.bf16.msra.mxu0 0
        %680 = vmatpush.bf16.msra.mxu0 0
        %681 = vmatpush.bf16.msra.mxu0 %v584
        %682 = vmatpush.bf16.msra.mxu0 %v519
        %683 = vmatmul.bf16.gmra.mxu0 %v532
        %v684 = vpop.f32.mrf.mxu0
        %v685 = vadd.f32 %v596, %v684
        %v686 = vpop.f32.mrf.mxu0
        %v687 = vadd.f32 %v598, %v686
        %688 = vmatmul.bf16.gmra.mxu0 %v535
        %v689 = vpop.f32.mrf.mxu0
        %v690 = vadd.f32 %v601, %v689
        %v691 = vpop.f32.mrf.mxu0
        %v692 = vadd.f32 %v603, %v691
        %693 = vmatmul.bf16.gmra.mxu0 %v538
        %v694 = vpop.f32.mrf.mxu0
        %v695 = vadd.f32 %v606, %v694
        %v696 = vpop.f32.mrf.mxu0
        %v697 = vadd.f32 %v608, %v696
        %698 = vmatmul.bf16.gmra.mxu0 %v541
        %v699 = vpop.f32.mrf.mxu0
        %v700 = vadd.f32 %v611, %v699
        %v701 = vpop.f32.mrf.mxu0
        %v702 = vadd.f32 %v613, %v701
        %703 = vmatmul.bf16.gmra.mxu0 %v544
        %v704 = vpop.f32.mrf.mxu0
        %v705 = vadd.f32 %v616, %v704
        %v706 = vpop.f32.mrf.mxu0
        %v707 = vadd.f32 %v618, %v706
        %708 = vmatmul.bf16.gmra.mxu0 %v547
        %v709 = vpop.f32.mrf.mxu0
        %v710 = vadd.f32 %v621, %v709
        %v711 = vpop.f32.mrf.mxu0
        %v712 = vadd.f32 %v623, %v711
        %713 = vmatmul.bf16.gmra.mxu0 %v550
        %v714 = vpop.f32.mrf.mxu0
        %v715 = vadd.f32 %v626, %v714
        %v716 = vpop.f32.mrf.mxu0
        %v717 = vadd.f32 %v628, %v716
        %718 = vmatmul.bf16.gmra.mxu0 %v553
        %v719 = vpop.f32.mrf.mxu0
        %v720 = vadd.f32 %v631, %v719
        %v721 = vpop.f32.mrf.mxu0
        %v722 = vadd.f32 %v633, %v721
        %723 = vmatmul.bf16.gmra.mxu0 %v556
        %v724 = vpop.f32.mrf.mxu0
        %v725 = vadd.f32 %v636, %v724
        %v726 = vpop.f32.mrf.mxu0
        %v727 = vadd.f32 %v638, %v726
        %728 = vmatmul.bf16.gmra.mxu0 %v559
        %v729 = vpop.f32.mrf.mxu0
        %v730 = vadd.f32 %v641, %v729
        %v731 = vpop.f32.mrf.mxu0
        %v732 = vadd.f32 %v643, %v731
        %733 = vmatmul.bf16.gmra.mxu0 %v562
        %v734 = vpop.f32.mrf.mxu0
        %v735 = vadd.f32 %v646, %v734
        %v736 = vpop.f32.mrf.mxu0
        %v737 = vadd.f32 %v648, %v736
        %738 = vmatmul.bf16.gmra.mxu0 %v565
        %v739 = vpop.f32.mrf.mxu0
        %v740 = vadd.f32 %v651, %v739
        %v741 = vpop.f32.mrf.mxu0
        %v742 = vadd.f32 %v653, %v741
        %743 = vmatmul.bf16.gmra.mxu0 %v568
        %v744 = vpop.f32.mrf.mxu0
        %v745 = vadd.f32 %v656, %v744
        %v746 = vpop.f32.mrf.mxu0
        %v747 = vadd.f32 %v658, %v746
        %748 = vmatmul.bf16.gmra.mxu0 %v571
        %v749 = vpop.f32.mrf.mxu0
        %v750 = vadd.f32 %v661, %v749
        %v751 = vpop.f32.mrf.mxu0
        %v752 = vadd.f32 %v663, %v751
        %753 = vmatmul.bf16.gmra.mxu0 %v574
        %v754 = vpop.f32.mrf.mxu0
        %v755 = vadd.f32 %v666, %v754
        %v756 = vpop.f32.mrf.mxu0
        %v757 = vadd.f32 %v668, %v756
        %758 = vmatmul.bf16.gmra.mxu0 %v577
        %v759 = vpop.f32.mrf.mxu0
        %v760 = vadd.f32 %v671, %v759
        %v761 = vpop.f32.mrf.mxu0
        %v762 = vadd.f32 %v673, %v761
        %763 = vdwg.mxu0
        %vm764 = vcmask 64512
        %v765 = vsel %vm764, %v685, 0.0
        %v766 = vsel %vm764, %v687, 0.0
        %v767 = vadd.f32 %v765, %v766
        %v768 = vsel %vm764, %v690, 0.0
        %v769 = vadd.f32 %v767, %v768
        %v770 = vsel %vm764, %v692, 0.0
        %v771 = vadd.f32 %v769, %v770
        %v772 = vsel %vm764, %v695, 0.0
        %v773 = vadd.f32 %v771, %v772
        %v774 = vsel %vm764, %v697, 0.0
        %v775 = vadd.f32 %v773, %v774
        %v776 = vsel %vm764, %v700, 0.0
        %v777 = vadd.f32 %v775, %v776
        %v778 = vsel %vm764, %v702, 0.0
        %v779 = vadd.f32 %v777, %v778
        %v780 = vsel %vm764, %v705, 0.0
        %v781 = vadd.f32 %v779, %v780
        %v782 = vsel %vm764, %v707, 0.0
        %v783 = vadd.f32 %v781, %v782
        %v784 = vsel %vm764, %v710, 0.0
        %v785 = vadd.f32 %v783, %v784
        %v786 = vsel %vm764, %v712, 0.0
        %v787 = vadd.f32 %v785, %v786
        %v788 = vsel %vm764, %v715, 0.0
        %v789 = vadd.f32 %v787, %v788
        %v790 = vsel %vm764, %v717, 0.0
        %v791 = vadd.f32 %v789, %v790
        %v792 = vsel %vm764, %v720, 0.0
        %v793 = vadd.f32 %v791, %v792
        %v794 = vsel %vm764, %v722, 0.0
        %v795 = vadd.f32 %v793, %v794
        %v796 = vsel %vm764, %v725, 0.0
        %v797 = vadd.f32 %v795, %v796
        %v798 = vsel %vm764, %v727, 0.0
        %v799 = vadd.f32 %v797, %v798
        %v800 = vsel %vm764, %v730, 0.0
        %v801 = vadd.f32 %v799, %v800
        %v802 = vsel %vm764, %v732, 0.0
        %v803 = vadd.f32 %v801, %v802
        %v804 = vsel %vm764, %v735, 0.0
        %v805 = vadd.f32 %v803, %v804
        %v806 = vsel %vm764, %v737, 0.0
        %v807 = vadd.f32 %v805, %v806
        %v808 = vsel %vm764, %v740, 0.0
        %v809 = vadd.f32 %v807, %v808
        %v810 = vsel %vm764, %v742, 0.0
        %v811 = vadd.f32 %v809, %v810
        %v812 = vsel %vm764, %v745, 0.0
        %v813 = vadd.f32 %v811, %v812
        %v814 = vsel %vm764, %v747, 0.0
        %v815 = vadd.f32 %v813, %v814
        %v816 = vsel %vm764, %v750, 0.0
        %v817 = vadd.f32 %v815, %v816
        %v818 = vsel %vm764, %v752, 0.0
        %v819 = vadd.f32 %v817, %v818
        %v820 = vsel %vm764, %v755, 0.0
        %v821 = vadd.f32 %v819, %v820
        %v822 = vsel %vm764, %v757, 0.0
        %v823 = vadd.f32 %v821, %v822
        %v824 = vsel %vm764, %v760, 0.0
        %v825 = vadd.f32 %v823, %v824
        %v826 = vsel %vm764, %v762, 0.0
        %v827 = vadd.f32 %v825, %v826
        %v828 = vrot.slane %v827, 4
        %v829 = vadd.f32 %v827, %v828
        %v830 = vrot.slane %v829, 2
        %v831 = vadd.f32 %v829, %v830
        %v832 = vrot.slane %v831, 1
        %v833 = vadd.f32 %v831, %v832
        %v834 = vmul.f32 %v833, 0.00390625
        %v835 = vsub.f32 %v685, %v834
        %v836 = vsub.f32 %v687, %v834
        %v837 = vsub.f32 %v690, %v834
        %v838 = vsub.f32 %v692, %v834
        %v839 = vsub.f32 %v695, %v834
        %v840 = vsub.f32 %v697, %v834
        %v841 = vsub.f32 %v700, %v834
        %v842 = vsub.f32 %v702, %v834
        %v843 = vsub.f32 %v705, %v834
        %v844 = vsub.f32 %v707, %v834
        %v845 = vsub.f32 %v710, %v834
        %v846 = vsub.f32 %v712, %v834
        %v847 = vsub.f32 %v715, %v834
        %v848 = vsub.f32 %v717, %v834
        %v849 = vsub.f32 %v720, %v834
        %v850 = vsub.f32 %v722, %v834
        %v851 = vsub.f32 %v725, %v834
        %v852 = vsub.f32 %v727, %v834
        %v853 = vsub.f32 %v730, %v834
        %v854 = vsub.f32 %v732, %v834
        %v855 = vsub.f32 %v735, %v834
        %v856 = vsub.f32 %v737, %v834
        %v857 = vsub.f32 %v740, %v834
        %v858 = vsub.f32 %v742, %v834
        %v859 = vsub.f32 %v745, %v834
        %v860 = vsub.f32 %v747, %v834
        %v861 = vsub.f32 %v750, %v834
        %v862 = vsub.f32 %v752, %v834
        %v863 = vsub.f32 %v755, %v834
        %v864 = vsub.f32 %v757, %v834
        %v865 = vsub.f32 %v760, %v834
        %v866 = vsub.f32 %v762, %v834
        %v867 = vmul.f32 %v835, %v835
        %v868 = vmul.f32 %v836, %v836
        %v869 = vmul.f32 %v837, %v837
        %v870 = vmul.f32 %v838, %v838
        %v871 = vmul.f32 %v839, %v839
        %v872 = vmul.f32 %v840, %v840
        %v873 = vmul.f32 %v841, %v841
        %v874 = vmul.f32 %v842, %v842
        %v875 = vmul.f32 %v843, %v843
        %v876 = vmul.f32 %v844, %v844
        %v877 = vmul.f32 %v845, %v845
        %v878 = vmul.f32 %v846, %v846
        %v879 = vmul.f32 %v847, %v847
        %v880 = vmul.f32 %v848, %v848
        %v881 = vmul.f32 %v849, %v849
        %v882 = vmul.f32 %v850, %v850
        %v883 = vmul.f32 %v851, %v851
        %v884 = vmul.f32 %v852, %v852
        %v885 = vmul.f32 %v853, %v853
        %v886 = vmul.f32 %v854, %v854
        %v887 = vmul.f32 %v855, %v855
        %v888 = vmul.f32 %v856, %v856
        %v889 = vmul.f32 %v857, %v857
        %v890 = vmul.f32 %v858, %v858
        %v891 = vmul.f32 %v859, %v859
        %v892 = vmul.f32 %v860, %v860
        %v893 = vmul.f32 %v861, %v861
        %v894 = vmul.f32 %v862, %v862
        %v895 = vmul.f32 %v863, %v863
        %v896 = vmul.f32 %v864, %v864
        %v897 = vmul.f32 %v865, %v865
        %v898 = vmul.f32 %v866, %v866
        %v899 = vsel %vm764, %v867, 0.0
        %v900 = vsel %vm764, %v868, 0.0
        %v901 = vadd.f32 %v899, %v900
        %v902 = vsel %vm764, %v869, 0.0
        %v903 = vadd.f32 %v901, %v902
        %v904 = vsel %vm764, %v870, 0.0
        %v905 = vadd.f32 %v903, %v904
        %v906 = vsel %vm764, %v871, 0.0
        %v907 = vadd.f32 %v905, %v906
        %v908 = vsel %vm764, %v872, 0.0
        %v909 = vadd.f32 %v907, %v908
        %v910 = vsel %vm764, %v873, 0.0
        %v911 = vadd.f32 %v909, %v910
        %v912 = vsel %vm764, %v874, 0.0
        %v913 = vadd.f32 %v911, %v912
        %v914 = vsel %vm764, %v875, 0.0
        %v915 = vadd.f32 %v913, %v914
        %v916 = vsel %vm764, %v876, 0.0
        %v917 = vadd.f32 %v915, %v916
        %v918 = vsel %vm764, %v877, 0.0
        %v919 = vadd.f32 %v917, %v918
        %v920 = vsel %vm764, %v878, 0.0
        %v921 = vadd.f32 %v919, %v920
        %v922 = vsel %vm764, %v879, 0.0
        %v923 = vadd.f32 %v921, %v922
        %v924 = vsel %vm764, %v880, 0.0
        %v925 = vadd.f32 %v923, %v924
        %v926 = vsel %vm764, %v881, 0.0
        %v927 = vadd.f32 %v925, %v926
        %v928 = vsel %vm764, %v882, 0.0
        %v929 = vadd.f32 %v927, %v928
        %v930 = vsel %vm764, %v883, 0.0
        %v931 = vadd.f32 %v929, %v930
        %v932 = vsel %vm764, %v884, 0.0
        %v933 = vadd.f32 %v931, %v932
        %v934 = vsel %vm764, %v885, 0.0
        %v935 = vadd.f32 %v933, %v934
        %v936 = vsel %vm764, %v886, 0.0
        %v937 = vadd.f32 %v935, %v936
        %v938 = vsel %vm764, %v887, 0.0
        %v939 = vadd.f32 %v937, %v938
        %v940 = vsel %vm764, %v888, 0.0
        %v941 = vadd.f32 %v939, %v940
        %v942 = vsel %vm764, %v889, 0.0
        %v943 = vadd.f32 %v941, %v942
        %v944 = vsel %vm764, %v890, 0.0
        %v945 = vadd.f32 %v943, %v944
        %v946 = vsel %vm764, %v891, 0.0
        %v947 = vadd.f32 %v945, %v946
        %v948 = vsel %vm764, %v892, 0.0
        %v949 = vadd.f32 %v947, %v948
        %v950 = vsel %vm764, %v893, 0.0
        %v951 = vadd.f32 %v949, %v950
        %v952 = vsel %vm764, %v894, 0.0
        %v953 = vadd.f32 %v951, %v952
        %v954 = vsel %vm764, %v895, 0.0
        %v955 = vadd.f32 %v953, %v954
        %v956 = vsel %vm764, %v896, 0.0
        %v957 = vadd.f32 %v955, %v956
        %v958 = vsel %vm764, %v897, 0.0
        %v959 = vadd.f32 %v957, %v958
        %v960 = vsel %vm764, %v898, 0.0
        %v961 = vadd.f32 %v959, %v960
        %v962 = vrot.slane %v961, 4
        %v963 = vadd.f32 %v961, %v962
        %v964 = vrot.slane %v963, 2
        %v965 = vadd.f32 %v963, %v964
        %v966 = vrot.slane %v965, 1
        %v967 = vadd.f32 %v965, %v966
        %v968 = vmul.f32 %v967, 0.00390625
        %v969 = vadd.f32 %v968, 1e-05
        %v970 = vrsqrt.pop %v969
        %v971 = vmul.f32 %v970, %v969
        %v972 = vmul.f32 %v971, %v970
        %v973 = vmul.f32 0.5, %v972
        %v974 = vsub.f32 1.5, %v973
        %v975 = vmul.f32 %v970, %v974
        %vm976 = vweird.f32 %v969
        %vm977 = vweird.f32 %v970
        %vm978 = vmor %vm976, %vm977
        %v979 = vsel %vm978, %v970, %v975
        %v980 = vmul.f32 %v835, %v979
        %v981 = vmul.f32 %v836, %v979
        %v982 = vmul.f32 %v837, %v979
        %v983 = vmul.f32 %v838, %v979
        %v984 = vmul.f32 %v839, %v979
        %v985 = vmul.f32 %v840, %v979
        %v986 = vmul.f32 %v841, %v979
        %v987 = vmul.f32 %v842, %v979
        %v988 = vmul.f32 %v843, %v979
        %v989 = vmul.f32 %v844, %v979
        %v990 = vmul.f32 %v845, %v979
        %v991 = vmul.f32 %v846, %v979
        %v992 = vmul.f32 %v847, %v979
        %v993 = vmul.f32 %v848, %v979
        %v994 = vmul.f32 %v849, %v979
        %v995 = vmul.f32 %v850, %v979
        %v996 = vmul.f32 %v851, %v979
        %v997 = vmul.f32 %v852, %v979
        %v998 = vmul.f32 %v853, %v979
        %v999 = vmul.f32 %v854, %v979
        %v1000 = vmul.f32 %v855, %v979
        %v1001 = vmul.f32 %v856, %v979
        %v1002 = vmul.f32 %v857, %v979
        %v1003 = vmul.f32 %v858, %v979
        %v1004 = vmul.f32 %v859, %v979
        %v1005 = vmul.f32 %v860, %v979
        %v1006 = vmul.f32 %v861, %v979
        %v1007 = vmul.f32 %v862, %v979
        %v1008 = vmul.f32 %v863, %v979
        %v1009 = vmul.f32 %v864, %v979
        %v1010 = vmul.f32 %v865, %v979
        %v1011 = vmul.f32 %v866, %v979
        %v1012 = vmax.f32 %v980, 0.0
        %v1013 = vmax.f32 %v981, 0.0
        %v1014 = vmax.f32 %v982, 0.0
        %v1015 = vmax.f32 %v983, 0.0
        %v1016 = vmax.f32 %v984, 0.0
        %v1017 = vmax.f32 %v985, 0.0
        %v1018 = vmax.f32 %v986, 0.0
        %v1019 = vmax.f32 %v987, 0.0
        %v1020 = vmax.f32 %v988, 0.0
        %v1021 = vmax.f32 %v989, 0.0
        %v1022 = vmax.f32 %v990, 0.0
        %v1023 = vmax.f32 %v991, 0.0
        %v1024 = vmax.f32 %v992, 0.0
        %v1025 = vmax.f32 %v993, 0.0
        %v1026 = vmax.f32 %v994, 0.0
        %v1027 = vmax.f32 %v995, 0.0
        %v1028 = vmax.f32 %v996, 0.0
        %v1029 = vmax.f32 %v997, 0.0
        %v1030 = vmax.f32 %v998, 0.0
        %v1031 = vmax.f32 %v999, 0.0
        %v1032 = vmax.f32 %v1000, 0.0
        %v1033 = vmax.f32 %v1001, 0.0
        %v1034 = vmax.f32 %v1002, 0.0
        %v1035 = vmax.f32 %v1003, 0.0
        %v1036 = vmax.f32 %v1004, 0.0
        %v1037 = vmax.f32 %v1005, 0.0
        %v1038 = vmax.f32 %v1006, 0.0
        %v1039 = vmax.f32 %v1007, 0.0
        %v1040 = vmax.f32 %v1008, 0.0
        %v1041 = vmax.f32 %v1009, 0.0
        %v1042 = vmax.f32 %v1010, 0.0
        %v1043 = vmax.f32 %v1011, 0.0
        %v1044 = vld [vmem:[%s5] sm:$0xff]
        %v1045 = vld [vmem:[%s5 + $0x8] sm:$0xff]
        %v1046 = vld [vmem:[%s5 + $0x10] sm:$0xff]
        %v1047 = vld [vmem:[%s5 + $0x18] sm:$0xff]
        %v1048 = vld [vmem:[%s5 + $0x20] sm:$0xff]
        %v1049 = vld [vmem:[%s5 + $0x28] sm:$0xff]
        %v1050 = vld [vmem:[%s5 + $0x30] sm:$0xff]
        %v1051 = vld [vmem:[%s5 + $0x38] sm:$0xff]
        %v1052 = vld [vmem:[%s5 + $0x40] sm:$0xff]
        %v1053 = vld [vmem:[%s5 + $0x48] sm:$0xff]
        %v1054 = vld [vmem:[%s5 + $0x50] sm:$0xff]
        %v1055 = vld [vmem:[%s5 + $0x58] sm:$0xff]
        %v1056 = vld [vmem:[%s5 + $0x60] sm:$0xff]
        %v1057 = vld [vmem:[%s5 + $0x68] sm:$0xff]
        %v1058 = vld [vmem:[%s5 + $0x70] sm:$0xff]
        %v1059 = vld [vmem:[%s5 + $0x78] sm:$0xff]
        %v1060 = vld [vmem:[%s5 + $0x80] sm:$0xff]
        %v1061 = vld [vmem:[%s5 + $0x88] sm:$0xff]
        %v1062 = vld [vmem:[%s5 + $0x90] sm:$0xff]
        %v1063 = vld [vmem:[%s5 + $0x98] sm:$0xff]
        %v1064 = vld [vmem:[%s5 + $0xa0] sm:$0x11]
        %v1065 = vpack.c.bf16 %v1013, %v1012
        %v1066 = vpack.c.bf16 %v1015, %v1014
        %v1067 = vpack.c.bf16 %v1017, %v1016
        %v1068 = vpack.c.bf16 %v1019, %v1018
        %v1069 = vpack.c.bf16 %v1021, %v1020
        %v1070 = vpack.c.bf16 %v1023, %v1022
        %v1071 = vpack.c.bf16 %v1025, %v1024
        %v1072 = vpack.c.bf16 %v1027, %v1026
        %v1073 = vpack.c.bf16 %v1029, %v1028
        %v1074 = vpack.c.bf16 %v1031, %v1030
        %v1075 = vpack.c.bf16 %v1033, %v1032
        %v1076 = vpack.c.bf16 %v1035, %v1034
        %v1077 = vpack.c.bf16 %v1037, %v1036
        %v1078 = vpack.c.bf16 %v1039, %v1038
        %v1079 = vpack.c.bf16 %v1041, %v1040
        %v1080 = vpack.c.bf16 %v1043, %v1042
        %v1102 = vunpack.c.l.b16 %v1044
        %v1103 = vunpack.c.h.b16 %v1044
        %v1104 = vunpack.c.l.b16 %v1045
        %v1105 = vunpack.c.h.b16 %v1045
        %v1106 = vunpack.c.l.b16 %v1046
        %v1107 = vunpack.c.h.b16 %v1046
        %v1108 = vunpack.c.l.b16 %v1047
        %v1109 = vunpack.c.h.b16 %v1047
        %v1110 = vunpack.c.l.b16 %v1048
        %v1111 = vunpack.c.h.b16 %v1048
        %v1112 = vunpack.c.l.b16 %v1049
        %v1113 = vunpack.c.h.b16 %v1049
        %v1114 = vunpack.c.l.b16 %v1050
        %v1115 = vunpack.c.h.b16 %v1050
        %v1116 = vunpack.c.l.b16 %v1051
        %v1117 = vunpack.c.h.b16 %v1051
        %v1118 = vunpack.c.l.b16 %v1052
        %v1119 = vunpack.c.h.b16 %v1052
        %v1120 = vunpack.c.l.b16 %v1053
        %v1121 = vunpack.c.h.b16 %v1053
        %v1122 = vunpack.c.l.b16 %v1054
        %v1123 = vunpack.c.h.b16 %v1054
        %v1124 = vunpack.c.l.b16 %v1055
        %v1125 = vunpack.c.h.b16 %v1055
        %v1126 = vunpack.c.l.b16 %v1056
        %v1127 = vunpack.c.h.b16 %v1056
        %v1128 = vunpack.c.l.b16 %v1057
        %v1129 = vunpack.c.h.b16 %v1057
        %v1130 = vunpack.c.l.b16 %v1058
        %v1131 = vunpack.c.h.b16 %v1058
        %v1132 = vunpack.c.l.b16 %v1059
        %v1133 = vunpack.c.h.b16 %v1059
        %v1134 = vunpack.c.l.b16 %v1060
        %v1135 = vunpack.c.h.b16 %v1060
        %v1136 = vunpack.c.l.b16 %v1061
        %v1137 = vunpack.c.h.b16 %v1061
        %v1138 = vunpack.c.l.b16 %v1062
        %v1139 = vunpack.c.h.b16 %v1062
        %v1140 = vunpack.c.l.b16 %v1063
        %v1141 = vunpack.c.h.b16 %v1063
        %v1142 = vunpack.c.l.b16 %v1064
        %v1143 = vunpack.c.h.b16 %v1064
        %v1144 = vpack.c.b16 %v1104, %v1102
        %v1145 = vpack.c.b16 %v1105, %v1103
        %v1146 = vpack.c.b16 %v1108, %v1106
        %v1147 = vpack.c.b16 %v1109, %v1107
        %v1148 = vpack.c.b16 %v1112, %v1110
        %v1149 = vpack.c.b16 %v1113, %v1111
        %v1150 = vpack.c.b16 %v1116, %v1114
        %v1151 = vpack.c.b16 %v1117, %v1115
        %v1152 = vpack.c.b16 %v1120, %v1118
        %v1153 = vpack.c.b16 %v1121, %v1119
        %v1154 = vpack.c.b16 %v1124, %v1122
        %v1155 = vpack.c.b16 %v1125, %v1123
        %v1156 = vpack.c.b16 %v1128, %v1126
        %v1157 = vpack.c.b16 %v1129, %v1127
        %v1158 = vpack.c.b16 %v1132, %v1130
        %v1159 = vpack.c.b16 %v1133, %v1131
        %v1160 = vpack.c.b16 %v1136, %v1134
        %v1161 = vpack.c.b16 %v1137, %v1135
        %v1162 = vpack.c.b16 %v1140, %v1138
        %v1163 = vpack.c.b16 %v1141, %v1139
        %v1164 = vpack.c.b16 %v1142, %v1142
        %v1165 = vpack.c.b16 %v1143, %v1143
        %1188 = vmatpush.bf16.msra.mxu0 %v1072
        %1189 = vmatpush.bf16.msra.mxu0 %v1071
        %1190 = vmatpush.bf16.msra.mxu0 %v1070
        %1191 = vmatpush.bf16.msra.mxu0 %v1069
        %1192 = vmatpush.bf16.msra.mxu0 %v1068
        %1193 = vmatpush.bf16.msra.mxu0 %v1067
        %1194 = vmatpush.bf16.msra.mxu0 %v1066
        %1195 = vmatpush.bf16.msra.mxu0 %v1065
        %1196 = vmatmul.bf16.gmra.mxu0 %v1144
        %v1197 = vpop.f32.mrf.mxu0
        %v1198 = vadd.f32 0.0, %v1197
        %v1199 = vpop.f32.mrf.mxu0
        %v1200 = vadd.f32 0.0, %v1199
        %1201 = vmatmul.bf16.gmra.mxu0 %v1146
        %v1202 = vpop.f32.mrf.mxu0
        %v1203 = vadd.f32 0.0, %v1202
        %v1204 = vpop.f32.mrf.mxu0
        %v1205 = vadd.f32 0.0, %v1204
        %1206 = vmatmul.bf16.gmra.mxu0 %v1148
        %v1207 = vpop.f32.mrf.mxu0
        %v1208 = vadd.f32 0.0, %v1207
        %v1209 = vpop.f32.mrf.mxu0
        %v1210 = vadd.f32 0.0, %v1209
        %1211 = vmatmul.bf16.gmra.mxu0 %v1150
        %v1212 = vpop.f32.mrf.mxu0
        %v1213 = vadd.f32 0.0, %v1212
        %v1214 = vpop.f32.mrf.mxu0
        %v1215 = vadd.f32 0.0, %v1214
        %1216 = vmatmul.bf16.gmra.mxu0 %v1152
        %v1217 = vpop.f32.mrf.mxu0
        %v1218 = vadd.f32 0.0, %v1217
        %v1219 = vpop.f32.mrf.mxu0
        %v1220 = vadd.f32 0.0, %v1219
        %1221 = vmatmul.bf16.gmra.mxu0 %v1154
        %v1222 = vpop.f32.mrf.mxu0
        %v1223 = vadd.f32 0.0, %v1222
        %v1224 = vpop.f32.mrf.mxu0
        %v1225 = vadd.f32 0.0, %v1224
        %1226 = vmatmul.bf16.gmra.mxu0 %v1156
        %v1227 = vpop.f32.mrf.mxu0
        %v1228 = vadd.f32 0.0, %v1227
        %v1229 = vpop.f32.mrf.mxu0
        %v1230 = vadd.f32 0.0, %v1229
        %1231 = vmatmul.bf16.gmra.mxu0 %v1158
        %v1232 = vpop.f32.mrf.mxu0
        %v1233 = vadd.f32 0.0, %v1232
        %v1234 = vpop.f32.mrf.mxu0
        %v1235 = vadd.f32 0.0, %v1234
        %1236 = vmatmul.bf16.gmra.mxu0 %v1160
        %v1237 = vpop.f32.mrf.mxu0
        %v1238 = vadd.f32 0.0, %v1237
        %v1239 = vpop.f32.mrf.mxu0
        %v1240 = vadd.f32 0.0, %v1239
        %1241 = vmatmul.bf16.gmra.mxu0 %v1162
        %v1242 = vpop.f32.mrf.mxu0
        %v1243 = vadd.f32 0.0, %v1242
        %v1244 = vpop.f32.mrf.mxu0
        %v1245 = vadd.f32 0.0, %v1244
        %1246 = vmatmul.bf16.gmra.mxu0 %v1164
        %v1247 = vpop.f32.mrf.mxu0
        %v1248 = vadd.f32 0.0, %v1247
        %v1249 = vpop.f32.mrf.mxu0
        %1250 = vdwg.mxu0
        %1251 = vmatpush.bf16.msra.mxu0 %v1080
        %1252 = vmatpush.bf16.msra.mxu0 %v1079
        %1253 = vmatpush.bf16.msra.mxu0 %v1078
        %1254 = vmatpush.bf16.msra.mxu0 %v1077
        %1255 = vmatpush.bf16.msra.mxu0 %v1076
        %1256 = vmatpush.bf16.msra.mxu0 %v1075
        %1257 = vmatpush.bf16.msra.mxu0 %v1074
        %1258 = vmatpush.bf16.msra.mxu0 %v1073
        %1259 = vmatmul.bf16.gmra.mxu0 %v1145
        %v1260 = vpop.f32.mrf.mxu0
        %v1261 = vadd.f32 %v1198, %v1260
        %v1262 = vpop.f32.mrf.mxu0
        %v1263 = vadd.f32 %v1200, %v1262
        %1264 = vmatmul.bf16.gmra.mxu0 %v1147
        %v1265 = vpop.f32.mrf.mxu0
        %v1266 = vadd.f32 %v1203, %v1265
        %v1267 = vpop.f32.mrf.mxu0
        %v1268 = vadd.f32 %v1205, %v1267
        %1269 = vmatmul.bf16.gmra.mxu0 %v1149
        %v1270 = vpop.f32.mrf.mxu0
        %v1271 = vadd.f32 %v1208, %v1270
        %v1272 = vpop.f32.mrf.mxu0
        %v1273 = vadd.f32 %v1210, %v1272
        %1274 = vmatmul.bf16.gmra.mxu0 %v1151
        %v1275 = vpop.f32.mrf.mxu0
        %v1276 = vadd.f32 %v1213, %v1275
        %v1277 = vpop.f32.mrf.mxu0
        %v1278 = vadd.f32 %v1215, %v1277
        %1279 = vmatmul.bf16.gmra.mxu0 %v1153
        %v1280 = vpop.f32.mrf.mxu0
        %v1281 = vadd.f32 %v1218, %v1280
        %v1282 = vpop.f32.mrf.mxu0
        %v1283 = vadd.f32 %v1220, %v1282
        %1284 = vmatmul.bf16.gmra.mxu0 %v1155
        %v1285 = vpop.f32.mrf.mxu0
        %v1286 = vadd.f32 %v1223, %v1285
        %v1287 = vpop.f32.mrf.mxu0
        %v1288 = vadd.f32 %v1225, %v1287
        %1289 = vmatmul.bf16.gmra.mxu0 %v1157
        %v1290 = vpop.f32.mrf.mxu0
        %v1291 = vadd.f32 %v1228, %v1290
        %v1292 = vpop.f32.mrf.mxu0
        %v1293 = vadd.f32 %v1230, %v1292
        %1294 = vmatmul.bf16.gmra.mxu0 %v1159
        %v1295 = vpop.f32.mrf.mxu0
        %v1296 = vadd.f32 %v1233, %v1295
        %v1297 = vpop.f32.mrf.mxu0
        %v1298 = vadd.f32 %v1235, %v1297
        %1299 = vmatmul.bf16.gmra.mxu0 %v1161
        %v1300 = vpop.f32.mrf.mxu0
        %v1301 = vadd.f32 %v1238, %v1300
        %v1302 = vpop.f32.mrf.mxu0
        %v1303 = vadd.f32 %v1240, %v1302
        %1304 = vmatmul.bf16.gmra.mxu0 %v1163
        %v1305 = vpop.f32.mrf.mxu0
        %v1306 = vadd.f32 %v1243, %v1305
        %v1307 = vpop.f32.mrf.mxu0
        %v1308 = vadd.f32 %v1245, %v1307
        %1309 = vmatmul.bf16.gmra.mxu0 %v1165
        %v1310 = vpop.f32.mrf.mxu0
        %v1311 = vadd.f32 %v1248, %v1310
        %v1312 = vpop.f32.mrf.mxu0
        %1313 = vdwg.mxu0
        %s1314 = scalar_lea.vmem %s5, 168
        %v1315 = vld [vmem:[%s1314] sm:$0xff]
        %v1316 = vld [vmem:[%s1314 + $0x8] sm:$0xff]
        %v1317 = vld [vmem:[%s1314 + $0x10] sm:$0xff]
        %v1318 = vld [vmem:[%s1314 + $0x18] sm:$0xff]
        %v1319 = vld [vmem:[%s1314 + $0x20] sm:$0xff]
        %v1320 = vld [vmem:[%s1314 + $0x28] sm:$0xff]
        %v1321 = vld [vmem:[%s1314 + $0x30] sm:$0xff]
        %v1322 = vld [vmem:[%s1314 + $0x38] sm:$0xff]
        %v1323 = vld [vmem:[%s1314 + $0x40] sm:$0xff]
        %v1324 = vld [vmem:[%s1314 + $0x48] sm:$0xff]
        %v1325 = vld [vmem:[%s1314 + $0x50] sm:$0xff]
        %v1326 = vld [vmem:[%s1314 + $0x58] sm:$0xff]
        %v1327 = vld [vmem:[%s1314 + $0x60] sm:$0xff]
        %v1328 = vld [vmem:[%s1314 + $0x68] sm:$0xff]
        %v1329 = vld [vmem:[%s1314 + $0x70] sm:$0xff]
        %v1330 = vld [vmem:[%s1314 + $0x78] sm:$0xff]
        %v1331 = vld [vmem:[%s1314 + $0x80] sm:$0xff]
        %v1332 = vld [vmem:[%s1314 + $0x88] sm:$0xff]
        %v1333 = vld [vmem:[%s1314 + $0x90] sm:$0xff]
        %v1334 = vld [vmem:[%s1314 + $0x98] sm:$0xff]
        %v1335 = vld [vmem:[%s1314 + $0xa0] sm:$0x11]
        %v1357 = vunpack.c.l.b16 %v1315
        %v1358 = vunpack.c.h.b16 %v1315
        %v1359 = vunpack.c.l.b16 %v1316
        %v1360 = vunpack.c.h.b16 %v1316
        %v1361 = vunpack.c.l.b16 %v1317
        %v1362 = vunpack.c.h.b16 %v1317
        %v1363 = vunpack.c.l.b16 %v1318
        %v1364 = vunpack.c.h.b16 %v1318
        %v1365 = vunpack.c.l.b16 %v1319
        %v1366 = vunpack.c.h.b16 %v1319
        %v1367 = vunpack.c.l.b16 %v1320
        %v1368 = vunpack.c.h.b16 %v1320
        %v1369 = vunpack.c.l.b16 %v1321
        %v1370 = vunpack.c.h.b16 %v1321
        %v1371 = vunpack.c.l.b16 %v1322
        %v1372 = vunpack.c.h.b16 %v1322
        %v1373 = vunpack.c.l.b16 %v1323
        %v1374 = vunpack.c.h.b16 %v1323
        %v1375 = vunpack.c.l.b16 %v1324
        %v1376 = vunpack.c.h.b16 %v1324
        %v1377 = vunpack.c.l.b16 %v1325
        %v1378 = vunpack.c.h.b16 %v1325
        %v1379 = vunpack.c.l.b16 %v1326
        %v1380 = vunpack.c.h.b16 %v1326
        %v1381 = vunpack.c.l.b16 %v1327
        %v1382 = vunpack.c.h.b16 %v1327
        %v1383 = vunpack.c.l.b16 %v1328
        %v1384 = vunpack.c.h.b16 %v1328
        %v1385 = vunpack.c.l.b16 %v1329
        %v1386 = vunpack.c.h.b16 %v1329
        %v1387 = vunpack.c.l.b16 %v1330
        %v1388 = vunpack.c.h.b16 %v1330
        %v1389 = vunpack.c.l.b16 %v1331
        %v1390 = vunpack.c.h.b16 %v1331
        %v1391 = vunpack.c.l.b16 %v1332
        %v1392 = vunpack.c.h.b16 %v1332
        %v1393 = vunpack.c.l.b16 %v1333
        %v1394 = vunpack.c.h.b16 %v1333
        %v1395 = vunpack.c.l.b16 %v1334
        %v1396 = vunpack.c.h.b16 %v1334
        %v1397 = vunpack.c.l.b16 %v1335
        %v1398 = vunpack.c.h.b16 %v1335
        %v1399 = vpack.c.b16 %v1359, %v1357
        %v1400 = vpack.c.b16 %v1360, %v1358
        %v1401 = vpack.c.b16 %v1363, %v1361
        %v1402 = vpack.c.b16 %v1364, %v1362
        %v1403 = vpack.c.b16 %v1367, %v1365
        %v1404 = vpack.c.b16 %v1368, %v1366
        %v1405 = vpack.c.b16 %v1371, %v1369
        %v1406 = vpack.c.b16 %v1372, %v1370
        %v1407 = vpack.c.b16 %v1375, %v1373
        %v1408 = vpack.c.b16 %v1376, %v1374
        %v1409 = vpack.c.b16 %v1379, %v1377
        %v1410 = vpack.c.b16 %v1380, %v1378
        %v1411 = vpack.c.b16 %v1383, %v1381
        %v1412 = vpack.c.b16 %v1384, %v1382
        %v1413 = vpack.c.b16 %v1387, %v1385
        %v1414 = vpack.c.b16 %v1388, %v1386
        %v1415 = vpack.c.b16 %v1391, %v1389
        %v1416 = vpack.c.b16 %v1392, %v1390
        %v1417 = vpack.c.b16 %v1395, %v1393
        %v1418 = vpack.c.b16 %v1396, %v1394
        %v1419 = vpack.c.b16 %v1397, %v1397
        %v1420 = vpack.c.b16 %v1398, %v1398
        %1443 = vmatpush.bf16.msra.mxu0 %v1072
        %1444 = vmatpush.bf16.msra.mxu0 %v1071
        %1445 = vmatpush.bf16.msra.mxu0 %v1070
        %1446 = vmatpush.bf16.msra.mxu0 %v1069
        %1447 = vmatpush.bf16.msra.mxu0 %v1068
        %1448 = vmatpush.bf16.msra.mxu0 %v1067
        %1449 = vmatpush.bf16.msra.mxu0 %v1066
        %1450 = vmatpush.bf16.msra.mxu0 %v1065
        %1451 = vmatmul.bf16.gmra.mxu0 %v1399
        %v1452 = vpop.f32.mrf.mxu0
        %v1453 = vadd.f32 0.0, %v1452
        %v1454 = vpop.f32.mrf.mxu0
        %v1455 = vadd.f32 0.0, %v1454
        %1456 = vmatmul.bf16.gmra.mxu0 %v1401
        %v1457 = vpop.f32.mrf.mxu0
        %v1458 = vadd.f32 0.0, %v1457
        %v1459 = vpop.f32.mrf.mxu0
        %v1460 = vadd.f32 0.0, %v1459
        %1461 = vmatmul.bf16.gmra.mxu0 %v1403
        %v1462 = vpop.f32.mrf.mxu0
        %v1463 = vadd.f32 0.0, %v1462
        %v1464 = vpop.f32.mrf.mxu0
        %v1465 = vadd.f32 0.0, %v1464
        %1466 = vmatmul.bf16.gmra.mxu0 %v1405
        %v1467 = vpop.f32.mrf.mxu0
        %v1468 = vadd.f32 0.0, %v1467
        %v1469 = vpop.f32.mrf.mxu0
        %v1470 = vadd.f32 0.0, %v1469
        %1471 = vmatmul.bf16.gmra.mxu0 %v1407
        %v1472 = vpop.f32.mrf.mxu0
        %v1473 = vadd.f32 0.0, %v1472
        %v1474 = vpop.f32.mrf.mxu0
        %v1475 = vadd.f32 0.0, %v1474
        %1476 = vmatmul.bf16.gmra.mxu0 %v1409
        %v1477 = vpop.f32.mrf.mxu0
        %v1478 = vadd.f32 0.0, %v1477
        %v1479 = vpop.f32.mrf.mxu0
        %v1480 = vadd.f32 0.0, %v1479
        %1481 = vmatmul.bf16.gmra.mxu0 %v1411
        %v1482 = vpop.f32.mrf.mxu0
        %v1483 = vadd.f32 0.0, %v1482
        %v1484 = vpop.f32.mrf.mxu0
        %v1485 = vadd.f32 0.0, %v1484
        %1486 = vmatmul.bf16.gmra.mxu0 %v1413
        %v1487 = vpop.f32.mrf.mxu0
        %v1488 = vadd.f32 0.0, %v1487
        %v1489 = vpop.f32.mrf.mxu0
        %v1490 = vadd.f32 0.0, %v1489
        %1491 = vmatmul.bf16.gmra.mxu0 %v1415
        %v1492 = vpop.f32.mrf.mxu0
        %v1493 = vadd.f32 0.0, %v1492
        %v1494 = vpop.f32.mrf.mxu0
        %v1495 = vadd.f32 0.0, %v1494
        %1496 = vmatmul.bf16.gmra.mxu0 %v1417
        %v1497 = vpop.f32.mrf.mxu0
        %v1498 = vadd.f32 0.0, %v1497
        %v1499 = vpop.f32.mrf.mxu0
        %v1500 = vadd.f32 0.0, %v1499
        %1501 = vmatmul.bf16.gmra.mxu0 %v1419
        %v1502 = vpop.f32.mrf.mxu0
        %v1503 = vadd.f32 0.0, %v1502
        %v1504 = vpop.f32.mrf.mxu0
        %1505 = vdwg.mxu0
        %1506 = vmatpush.bf16.msra.mxu0 %v1080
        %1507 = vmatpush.bf16.msra.mxu0 %v1079
        %1508 = vmatpush.bf16.msra.mxu0 %v1078
        %1509 = vmatpush.bf16.msra.mxu0 %v1077
        %1510 = vmatpush.bf16.msra.mxu0 %v1076
        %1511 = vmatpush.bf16.msra.mxu0 %v1075
        %1512 = vmatpush.bf16.msra.mxu0 %v1074
        %1513 = vmatpush.bf16.msra.mxu0 %v1073
        %1514 = vmatmul.bf16.gmra.mxu0 %v1400
        %v1515 = vpop.f32.mrf.mxu0
        %v1516 = vadd.f32 %v1453, %v1515
        %v1517 = vpop.f32.mrf.mxu0
        %v1518 = vadd.f32 %v1455, %v1517
        %1519 = vmatmul.bf16.gmra.mxu0 %v1402
        %v1520 = vpop.f32.mrf.mxu0
        %v1521 = vadd.f32 %v1458, %v1520
        %v1522 = vpop.f32.mrf.mxu0
        %v1523 = vadd.f32 %v1460, %v1522
        %1524 = vmatmul.bf16.gmra.mxu0 %v1404
        %v1525 = vpop.f32.mrf.mxu0
        %v1526 = vadd.f32 %v1463, %v1525
        %v1527 = vpop.f32.mrf.mxu0
        %v1528 = vadd.f32 %v1465, %v1527
        %1529 = vmatmul.bf16.gmra.mxu0 %v1406
        %v1530 = vpop.f32.mrf.mxu0
        %v1531 = vadd.f32 %v1468, %v1530
        %v1532 = vpop.f32.mrf.mxu0
        %v1533 = vadd.f32 %v1470, %v1532
        %1534 = vmatmul.bf16.gmra.mxu0 %v1408
        %v1535 = vpop.f32.mrf.mxu0
        %v1536 = vadd.f32 %v1473, %v1535
        %v1537 = vpop.f32.mrf.mxu0
        %v1538 = vadd.f32 %v1475, %v1537
        %1539 = vmatmul.bf16.gmra.mxu0 %v1410
        %v1540 = vpop.f32.mrf.mxu0
        %v1541 = vadd.f32 %v1478, %v1540
        %v1542 = vpop.f32.mrf.mxu0
        %v1543 = vadd.f32 %v1480, %v1542
        %1544 = vmatmul.bf16.gmra.mxu0 %v1412
        %v1545 = vpop.f32.mrf.mxu0
        %v1546 = vadd.f32 %v1483, %v1545
        %v1547 = vpop.f32.mrf.mxu0
        %v1548 = vadd.f32 %v1485, %v1547
        %1549 = vmatmul.bf16.gmra.mxu0 %v1414
        %v1550 = vpop.f32.mrf.mxu0
        %v1551 = vadd.f32 %v1488, %v1550
        %v1552 = vpop.f32.mrf.mxu0
        %v1553 = vadd.f32 %v1490, %v1552
        %1554 = vmatmul.bf16.gmra.mxu0 %v1416
        %v1555 = vpop.f32.mrf.mxu0
        %v1556 = vadd.f32 %v1493, %v1555
        %v1557 = vpop.f32.mrf.mxu0
        %v1558 = vadd.f32 %v1495, %v1557
        %1559 = vmatmul.bf16.gmra.mxu0 %v1418
        %v1560 = vpop.f32.mrf.mxu0
        %v1561 = vadd.f32 %v1498, %v1560
        %v1562 = vpop.f32.mrf.mxu0
        %v1563 = vadd.f32 %v1500, %v1562
        %1564 = vmatmul.bf16.gmra.mxu0 %v1420
        %v1565 = vpop.f32.mrf.mxu0
        %v1566 = vadd.f32 %v1503, %v1565
        %v1567 = vpop.f32.mrf.mxu0
        %1568 = vdwg.mxu0
        %v1569 = vld [vmem:[%s2] sm:$0xf]
        %v1570 = vpack.c.bf16 %v1263, %v1261
        %v1571 = vpack.c.bf16 %v1268, %v1266
        %v1572 = vpack.c.bf16 %v1273, %v1271
        %v1573 = vpack.c.bf16 %v1278, %v1276
        %v1574 = vpack.c.bf16 %v1283, %v1281
        %v1575 = vpack.c.bf16 %v1288, %v1286
        %v1576 = vpack.c.bf16 %v1293, %v1291
        %v1577 = vpack.c.bf16 %v1298, %v1296
        %v1578 = vpack.c.bf16 %v1301, %v1301
        %s1579 = scalar_lea.vmem %s2, 4
        %v1580 = vld [vmem:[%s1579] sm:$0xf]
        %v1581 = vpack.c.bf16 %v1518, %v1516
        %v1582 = vpack.c.bf16 %v1523, %v1521
        %v1583 = vpack.c.bf16 %v1528, %v1526
        %v1584 = vpack.c.bf16 %v1533, %v1531
        %v1585 = vpack.c.bf16 %v1538, %v1536
        %v1586 = vpack.c.bf16 %v1543, %v1541
        %v1587 = vpack.c.bf16 %v1548, %v1546
        %v1588 = vpack.c.bf16 %v1553, %v1551
        %v1589 = vpack.c.bf16 %v1556, %v1556
        %v1591 = vsel %vm764, %v1581, 0
        %v1594 = vsel %vm764, %v1582, 0
        %v1597 = vsel %vm764, %v1583, 0
        %v1600 = vsel %vm764, %v1584, 0
        %v1603 = vsel %vm764, %v1585, 0
        %v1606 = vsel %vm764, %v1586, 0
        %v1609 = vsel %vm764, %v1587, 0
        %v1612 = vsel %vm764, %v1588, 0
        %v1615 = vsel %vm764, %v1589, 0
        %vm1617 = vcmask 1043456
        %v1619 = vsel %vm1617, %v1580, 0
        %1621 = vmatpush.bf16.msra.mxu0 0
        %1622 = vmatpush.bf16.msra.mxu0 0
        %1623 = vmatpush.bf16.msra.mxu0 0
        %1624 = vmatpush.bf16.msra.mxu0 0
        %1625 = vmatpush.bf16.msra.mxu0 0
        %1626 = vmatpush.bf16.msra.mxu0 0
        %1627 = vmatpush.bf16.msra.mxu0 0
        %1628 = vmatpush.bf16.msra.mxu0 %v1619
        %1629 = vmatmul.bf16.gmra.mxu0 %v1591
        %v1630 = vpop.f32.mrf.mxu0
        %v1631 = vadd.f32 0.0, %v1630
        %v1632 = vpop.f32.mrf.mxu0
        %v1633 = vadd.f32 0.0, %v1632
        %1634 = vmatmul.bf16.gmra.mxu0 %v1594
        %v1635 = vpop.f32.mrf.mxu0
        %v1636 = vadd.f32 0.0, %v1635
        %v1637 = vpop.f32.mrf.mxu0
        %v1638 = vadd.f32 0.0, %v1637
        %1639 = vmatmul.bf16.gmra.mxu0 %v1597
        %v1640 = vpop.f32.mrf.mxu0
        %v1641 = vadd.f32 0.0, %v1640
        %v1642 = vpop.f32.mrf.mxu0
        %v1643 = vadd.f32 0.0, %v1642
        %1644 = vmatmul.bf16.gmra.mxu0 %v1600
        %v1645 = vpop.f32.mrf.mxu0
        %v1646 = vadd.f32 0.0, %v1645
        %v1647 = vpop.f32.mrf.mxu0
        %v1648 = vadd.f32 0.0, %v1647
        %1649 = vmatmul.bf16.gmra.mxu0 %v1603
        %v1650 = vpop.f32.mrf.mxu0
        %v1651 = vadd.f32 0.0, %v1650
        %v1652 = vpop.f32.mrf.mxu0
        %v1653 = vadd.f32 0.0, %v1652
        %1654 = vmatmul.bf16.gmra.mxu0 %v1606
        %v1655 = vpop.f32.mrf.mxu0
        %v1656 = vadd.f32 0.0, %v1655
        %v1657 = vpop.f32.mrf.mxu0
        %v1658 = vadd.f32 0.0, %v1657
        %1659 = vmatmul.bf16.gmra.mxu0 %v1609
        %v1660 = vpop.f32.mrf.mxu0
        %v1661 = vadd.f32 0.0, %v1660
        %v1662 = vpop.f32.mrf.mxu0
        %v1663 = vadd.f32 0.0, %v1662
        %1664 = vmatmul.bf16.gmra.mxu0 %v1612
        %v1665 = vpop.f32.mrf.mxu0
        %v1666 = vadd.f32 0.0, %v1665
        %v1667 = vpop.f32.mrf.mxu0
        %v1668 = vadd.f32 0.0, %v1667
        %1669 = vmatmul.bf16.gmra.mxu0 %v1615
        %v1670 = vpop.f32.mrf.mxu0
        %v1671 = vadd.f32 0.0, %v1670
        %v1672 = vpop.f32.mrf.mxu0
        %1673 = vdwg.mxu0
        %v1675 = vsel %vm764, %v1570, 0
        %v1678 = vsel %vm764, %v1571, 0
        %v1681 = vsel %vm764, %v1572, 0
        %v1684 = vsel %vm764, %v1573, 0
        %v1687 = vsel %vm764, %v1574, 0
        %v1690 = vsel %vm764, %v1575, 0
        %v1693 = vsel %vm764, %v1576, 0
        %v1696 = vsel %vm764, %v1577, 0
        %v1699 = vsel %vm764, %v1578, 0
        %v1702 = vsel %vm1617, %v1569, 0
        %1704 = vmatpush.bf16.msra.mxu0 0
        %1705 = vmatpush.bf16.msra.mxu0 0
        %1706 = vmatpush.bf16.msra.mxu0 0
        %1707 = vmatpush.bf16.msra.mxu0 0
        %1708 = vmatpush.bf16.msra.mxu0 0
        %1709 = vmatpush.bf16.msra.mxu0 0
        %1710 = vmatpush.bf16.msra.mxu0 0
        %1711 = vmatpush.bf16.msra.mxu0 %v1702
        %1712 = vmatmul.bf16.gmra.mxu0 %v1675
        %v1713 = vpop.f32.mrf.mxu0
        %v1714 = vadd.f32 %v1631, %v1713
        %v1715 = vpop.f32.mrf.mxu0
        %v1716 = vadd.f32 %v1633, %v1715
        %1717 = vmatmul.bf16.gmra.mxu0 %v1678
        %v1718 = vpop.f32.mrf.mxu0
        %v1719 = vadd.f32 %v1636, %v1718
        %v1720 = vpop.f32.mrf.mxu0
        %v1721 = vadd.f32 %v1638, %v1720
        %1722 = vmatmul.bf16.gmra.mxu0 %v1681
        %v1723 = vpop.f32.mrf.mxu0
        %v1724 = vadd.f32 %v1641, %v1723
        %v1725 = vpop.f32.mrf.mxu0
        %v1726 = vadd.f32 %v1643, %v1725
        %1727 = vmatmul.bf16.gmra.mxu0 %v1684
        %v1728 = vpop.f32.mrf.mxu0
        %v1729 = vadd.f32 %v1646, %v1728
        %v1730 = vpop.f32.mrf.mxu0
        %v1731 = vadd.f32 %v1648, %v1730
        %1732 = vmatmul.bf16.gmra.mxu0 %v1687
        %v1733 = vpop.f32.mrf.mxu0
        %v1734 = vadd.f32 %v1651, %v1733
        %v1735 = vpop.f32.mrf.mxu0
        %v1736 = vadd.f32 %v1653, %v1735
        %1737 = vmatmul.bf16.gmra.mxu0 %v1690
        %v1738 = vpop.f32.mrf.mxu0
        %v1739 = vadd.f32 %v1656, %v1738
        %v1740 = vpop.f32.mrf.mxu0
        %v1741 = vadd.f32 %v1658, %v1740
        %1742 = vmatmul.bf16.gmra.mxu0 %v1693
        %v1743 = vpop.f32.mrf.mxu0
        %v1744 = vadd.f32 %v1661, %v1743
        %v1745 = vpop.f32.mrf.mxu0
        %v1746 = vadd.f32 %v1663, %v1745
        %1747 = vmatmul.bf16.gmra.mxu0 %v1696
        %v1748 = vpop.f32.mrf.mxu0
        %v1749 = vadd.f32 %v1666, %v1748
        %v1750 = vpop.f32.mrf.mxu0
        %v1751 = vadd.f32 %v1668, %v1750
        %1752 = vmatmul.bf16.gmra.mxu0 %v1699
        %v1753 = vpop.f32.mrf.mxu0
        %v1754 = vadd.f32 %v1671, %v1753
        %v1755 = vpop.f32.mrf.mxu0
        %1756 = vdwg.mxu0
        %s1757 = scalar_lea.vmem %s2, 8
        %v1758 = vld [vmem:[%s1757] sm:$0xf]
        %vm1759 = vsmask.f32 7424
        %v1760 = vshrl.u32 %v1570, 16
        %v1762 = vshll.u32 %v1570, 16
        %v1764 = vrot.slane %v1762, 1
        %v1765 = vor.u32 %v1760, %v1764
        %v1766 = vshll.u32 %v1571, 16
        %v1768 = vrot.slane %v1766, 1
        %v1769 = vsel %vm1759, %v1765, %v1768
        %v1770 = vshrl.u32 %v1571, 16
        %v1772 = vor.u32 %v1770, %v1768
        %v1773 = vshll.u32 %v1572, 16
        %v1775 = vrot.slane %v1773, 1
        %v1776 = vsel %vm1759, %v1772, %v1775
        %v1777 = vshrl.u32 %v1572, 16
        %v1779 = vor.u32 %v1777, %v1775
        %v1780 = vshll.u32 %v1573, 16
        %v1782 = vrot.slane %v1780, 1
        %v1783 = vsel %vm1759, %v1779, %v1782
        %v1784 = vshrl.u32 %v1573, 16
        %v1786 = vor.u32 %v1784, %v1782
        %v1787 = vshll.u32 %v1574, 16
        %v1789 = vrot.slane %v1787, 1
        %v1790 = vsel %vm1759, %v1786, %v1789
        %v1791 = vshrl.u32 %v1574, 16
        %v1793 = vor.u32 %v1791, %v1789
        %v1794 = vshll.u32 %v1575, 16
        %v1796 = vrot.slane %v1794, 1
        %v1797 = vsel %vm1759, %v1793, %v1796
        %v1798 = vshrl.u32 %v1575, 16
        %v1800 = vor.u32 %v1798, %v1796
        %v1801 = vshll.u32 %v1576, 16
        %v1803 = vrot.slane %v1801, 1
        %v1804 = vsel %vm1759, %v1800, %v1803
        %v1805 = vshrl.u32 %v1576, 16
        %v1807 = vor.u32 %v1805, %v1803
        %v1808 = vshll.u32 %v1577, 16
        %v1810 = vrot.slane %v1808, 1
        %v1811 = vsel %vm1759, %v1807, %v1810
        %v1812 = vshrl.u32 %v1577, 16
        %v1814 = vor.u32 %v1812, %v1810
        %v1815 = vshll.u32 %v1578, 16
        %v1817 = vrot.slane %v1815, 1
        %v1818 = vsel %vm1759, %v1814, %v1817
        %v1819 = vshrl.u32 %v1578, 16
        %v1821 = vor.u32 %v1819, %v1817
        %v1823 = vsel %vm764, %v1769, 0
        %v1826 = vsel %vm764, %v1776, 0
        %v1829 = vsel %vm764, %v1783, 0
        %v1832 = vsel %vm764, %v1790, 0
        %v1835 = vsel %vm764, %v1797, 0
        %v1838 = vsel %vm764, %v1804, 0
        %v1841 = vsel %vm764, %v1811, 0
        %v1844 = vsel %vm764, %v1818, 0
        %v1847 = vsel %vm764, %v1821, 0
        %v1850 = vsel %vm1617, %v1758, 0
        %1852 = vmatpush.bf16.msra.mxu0 0
        %1853 = vmatpush.bf16.msra.mxu0 0
        %1854 = vmatpush.bf16.msra.mxu0 0
        %1855 = vmatpush.bf16.msra.mxu0 0
        %1856 = vmatpush.bf16.msra.mxu0 0
        %1857 = vmatpush.bf16.msra.mxu0 0
        %1858 = vmatpush.bf16.msra.mxu0 0
        %1859 = vmatpush.bf16.msra.mxu0 %v1850
        %1860 = vmatmul.bf16.gmra.mxu0 %v1823
        %v1861 = vpop.f32.mrf.mxu0
        %v1862 = vadd.f32 0.0, %v1861
        %v1863 = vpop.f32.mrf.mxu0
        %v1864 = vadd.f32 0.0, %v1863
        %1865 = vmatmul.bf16.gmra.mxu0 %v1826
        %v1866 = vpop.f32.mrf.mxu0
        %v1867 = vadd.f32 0.0, %v1866
        %v1868 = vpop.f32.mrf.mxu0
        %v1869 = vadd.f32 0.0, %v1868
        %1870 = vmatmul.bf16.gmra.mxu0 %v1829
        %v1871 = vpop.f32.mrf.mxu0
        %v1872 = vadd.f32 0.0, %v1871
        %v1873 = vpop.f32.mrf.mxu0
        %v1874 = vadd.f32 0.0, %v1873
        %1875 = vmatmul.bf16.gmra.mxu0 %v1832
        %v1876 = vpop.f32.mrf.mxu0
        %v1877 = vadd.f32 0.0, %v1876
        %v1878 = vpop.f32.mrf.mxu0
        %v1879 = vadd.f32 0.0, %v1878
        %1880 = vmatmul.bf16.gmra.mxu0 %v1835
        %v1881 = vpop.f32.mrf.mxu0
        %v1882 = vadd.f32 0.0, %v1881
        %v1883 = vpop.f32.mrf.mxu0
        %v1884 = vadd.f32 0.0, %v1883
        %1885 = vmatmul.bf16.gmra.mxu0 %v1838
        %v1886 = vpop.f32.mrf.mxu0
        %v1887 = vadd.f32 0.0, %v1886
        %v1888 = vpop.f32.mrf.mxu0
        %v1889 = vadd.f32 0.0, %v1888
        %1890 = vmatmul.bf16.gmra.mxu0 %v1841
        %v1891 = vpop.f32.mrf.mxu0
        %v1892 = vadd.f32 0.0, %v1891
        %v1893 = vpop.f32.mrf.mxu0
        %v1894 = vadd.f32 0.0, %v1893
        %1895 = vmatmul.bf16.gmra.mxu0 %v1844
        %v1896 = vpop.f32.mrf.mxu0
        %v1897 = vadd.f32 0.0, %v1896
        %v1898 = vpop.f32.mrf.mxu0
        %v1899 = vadd.f32 0.0, %v1898
        %1900 = vmatmul.bf16.gmra.mxu0 %v1847
        %v1901 = vpop.f32.mrf.mxu0
        %v1902 = vadd.f32 0.0, %v1901
        %v1903 = vpop.f32.mrf.mxu0
        %1904 = vdwg.mxu0
        %v1905 = vadd.f32 %v1714, %v1862
        %v1906 = vadd.f32 %v1716, %v1864
        %v1907 = vadd.f32 %v1719, %v1867
        %v1908 = vadd.f32 %v1721, %v1869
        %v1909 = vadd.f32 %v1724, %v1872
        %v1910 = vadd.f32 %v1726, %v1874
        %v1911 = vadd.f32 %v1729, %v1877
        %v1912 = vadd.f32 %v1731, %v1879
        %v1913 = vadd.f32 %v1734, %v1882
        %v1914 = vadd.f32 %v1736, %v1884
        %v1915 = vadd.f32 %v1739, %v1887
        %v1916 = vadd.f32 %v1741, %v1889
        %v1917 = vadd.f32 %v1744, %v1892
        %v1918 = vadd.f32 %v1746, %v1894
        %v1919 = vadd.f32 %v1749, %v1897
        %v1920 = vadd.f32 %v1751, %v1899
        %v1921 = vadd.f32 %v1754, %v1902
        %s1922 = scalar_lea.vmem %s2, 12
        %v1923 = vld [vmem:[%s1922] sm:$0xf]
        %v1924 = vshrl.u32 %v1581, 16
        %v1926 = vshll.u32 %v1581, 16
        %v1928 = vrot.slane %v1926, 1
        %v1929 = vor.u32 %v1924, %v1928
        %v1930 = vshll.u32 %v1582, 16
        %v1932 = vrot.slane %v1930, 1
        %v1933 = vsel %vm1759, %v1929, %v1932
        %v1934 = vshrl.u32 %v1582, 16
        %v1936 = vor.u32 %v1934, %v1932
        %v1937 = vshll.u32 %v1583, 16
        %v1939 = vrot.slane %v1937, 1
        %v1940 = vsel %vm1759, %v1936, %v1939
        %v1941 = vshrl.u32 %v1583, 16
        %v1943 = vor.u32 %v1941, %v1939
        %v1944 = vshll.u32 %v1584, 16
        %v1946 = vrot.slane %v1944, 1
        %v1947 = vsel %vm1759, %v1943, %v1946
        %v1948 = vshrl.u32 %v1584, 16
        %v1950 = vor.u32 %v1948, %v1946
        %v1951 = vshll.u32 %v1585, 16
        %v1953 = vrot.slane %v1951, 1
        %v1954 = vsel %vm1759, %v1950, %v1953
        %v1955 = vshrl.u32 %v1585, 16
        %v1957 = vor.u32 %v1955, %v1953
        %v1958 = vshll.u32 %v1586, 16
        %v1960 = vrot.slane %v1958, 1
        %v1961 = vsel %vm1759, %v1957, %v1960
        %v1962 = vshrl.u32 %v1586, 16
        %v1964 = vor.u32 %v1962, %v1960
        %v1965 = vshll.u32 %v1587, 16
        %v1967 = vrot.slane %v1965, 1
        %v1968 = vsel %vm1759, %v1964, %v1967
        %v1969 = vshrl.u32 %v1587, 16
        %v1971 = vor.u32 %v1969, %v1967
        %v1972 = vshll.u32 %v1588, 16
        %v1974 = vrot.slane %v1972, 1
        %v1975 = vsel %vm1759, %v1971, %v1974
        %v1976 = vshrl.u32 %v1588, 16
        %v1978 = vor.u32 %v1976, %v1974
        %v1979 = vshll.u32 %v1589, 16
        %v1981 = vrot.slane %v1979, 1
        %v1982 = vsel %vm1759, %v1978, %v1981
        %v1983 = vshrl.u32 %v1589, 16
        %v1985 = vor.u32 %v1983, %v1981
        %v1987 = vsel %vm764, %v1933, 0
        %v1990 = vsel %vm764, %v1940, 0
        %v1993 = vsel %vm764, %v1947, 0
        %v1996 = vsel %vm764, %v1954, 0
        %v1999 = vsel %vm764, %v1961, 0
        %v2002 = vsel %vm764, %v1968, 0
        %v2005 = vsel %vm764, %v1975, 0
        %v2008 = vsel %vm764, %v1982, 0
        %v2011 = vsel %vm764, %v1985, 0
        %v2014 = vsel %vm1617, %v1923, 0
        %2016 = vmatpush.bf16.msra.mxu0 0
        %2017 = vmatpush.bf16.msra.mxu0 0
        %2018 = vmatpush.bf16.msra.mxu0 0
        %2019 = vmatpush.bf16.msra.mxu0 0
        %2020 = vmatpush.bf16.msra.mxu0 0
        %2021 = vmatpush.bf16.msra.mxu0 0
        %2022 = vmatpush.bf16.msra.mxu0 0
        %2023 = vmatpush.bf16.msra.mxu0 %v2014
        %2024 = vmatmul.bf16.gmra.mxu0 %v1987
        %v2025 = vpop.f32.mrf.mxu0
        %v2026 = vadd.f32 0.0, %v2025
        %v2027 = vpop.f32.mrf.mxu0
        %v2028 = vadd.f32 0.0, %v2027
        %2029 = vmatmul.bf16.gmra.mxu0 %v1990
        %v2030 = vpop.f32.mrf.mxu0
        %v2031 = vadd.f32 0.0, %v2030
        %v2032 = vpop.f32.mrf.mxu0
        %v2033 = vadd.f32 0.0, %v2032
        %2034 = vmatmul.bf16.gmra.mxu0 %v1993
        %v2035 = vpop.f32.mrf.mxu0
        %v2036 = vadd.f32 0.0, %v2035
        %v2037 = vpop.f32.mrf.mxu0
        %v2038 = vadd.f32 0.0, %v2037
        %2039 = vmatmul.bf16.gmra.mxu0 %v1996
        %v2040 = vpop.f32.mrf.mxu0
        %v2041 = vadd.f32 0.0, %v2040
        %v2042 = vpop.f32.mrf.mxu0
        %v2043 = vadd.f32 0.0, %v2042
        %2044 = vmatmul.bf16.gmra.mxu0 %v1999
        %v2045 = vpop.f32.mrf.mxu0
        %v2046 = vadd.f32 0.0, %v2045
        %v2047 = vpop.f32.mrf.mxu0
        %v2048 = vadd.f32 0.0, %v2047
        %2049 = vmatmul.bf16.gmra.mxu0 %v2002
        %v2050 = vpop.f32.mrf.mxu0
        %v2051 = vadd.f32 0.0, %v2050
        %v2052 = vpop.f32.mrf.mxu0
        %v2053 = vadd.f32 0.0, %v2052
        %2054 = vmatmul.bf16.gmra.mxu0 %v2005
        %v2055 = vpop.f32.mrf.mxu0
        %v2056 = vadd.f32 0.0, %v2055
        %v2057 = vpop.f32.mrf.mxu0
        %v2058 = vadd.f32 0.0, %v2057
        %2059 = vmatmul.bf16.gmra.mxu0 %v2008
        %v2060 = vpop.f32.mrf.mxu0
        %v2061 = vadd.f32 0.0, %v2060
        %v2062 = vpop.f32.mrf.mxu0
        %v2063 = vadd.f32 0.0, %v2062
        %2064 = vmatmul.bf16.gmra.mxu0 %v2011
        %v2065 = vpop.f32.mrf.mxu0
        %v2066 = vadd.f32 0.0, %v2065
        %v2067 = vpop.f32.mrf.mxu0
        %2068 = vdwg.mxu0
        %v2069 = vadd.f32 %v1905, %v2026
        %v2070 = vadd.f32 %v1906, %v2028
        %v2071 = vadd.f32 %v1907, %v2031
        %v2072 = vadd.f32 %v1908, %v2033
        %v2073 = vadd.f32 %v1909, %v2036
        %v2074 = vadd.f32 %v1910, %v2038
        %v2075 = vadd.f32 %v1911, %v2041
        %v2076 = vadd.f32 %v1912, %v2043
        %v2077 = vadd.f32 %v1913, %v2046
        %v2078 = vadd.f32 %v1914, %v2048
        %v2079 = vadd.f32 %v1915, %v2051
        %v2080 = vadd.f32 %v1916, %v2053
        %v2081 = vadd.f32 %v1917, %v2056
        %v2082 = vadd.f32 %v1918, %v2058
        %v2083 = vadd.f32 %v1919, %v2061
        %v2084 = vadd.f32 %v1920, %v2063
        %v2085 = vadd.f32 %v1921, %v2066
        %s2086 = scalar_lea.vmem %s2, 16
        %v2087 = vld [vmem:[%s2086] sm:$0xf]
        %v2088 = vpack.c.bf16 %v1266, %v1263
        %v2089 = vpack.c.bf16 %v1271, %v1268
        %v2090 = vpack.c.bf16 %v1276, %v1273
        %v2091 = vpack.c.bf16 %v1281, %v1278
        %v2092 = vpack.c.bf16 %v1286, %v1283
        %v2093 = vpack.c.bf16 %v1291, %v1288
        %v2094 = vpack.c.bf16 %v1296, %v1293
        %v2095 = vpack.c.bf16 %v1301, %v1298
        %v2096 = vpack.c.bf16 %v1303, %v1303
        %v2098 = vshrl.u32 %v2088, 16
        %v2100 = vshll.u32 %v2088, 16
        %v2102 = vrot.slane %v2100, 1
        %v2103 = vor.u32 %v2098, %v2102
        %v2105 = vshll.u32 %v2089, 16
        %v2107 = vrot.slane %v2105, 1
        %v2108 = vsel %vm1759, %v2103, %v2107
        %v2109 = vshrl.u32 %v2089, 16
        %v2111 = vor.u32 %v2109, %v2107
        %v2113 = vshll.u32 %v2090, 16
        %v2115 = vrot.slane %v2113, 1
        %v2116 = vsel %vm1759, %v2111, %v2115
        %v2117 = vshrl.u32 %v2090, 16
        %v2119 = vor.u32 %v2117, %v2115
        %v2121 = vshll.u32 %v2091, 16
        %v2123 = vrot.slane %v2121, 1
        %v2124 = vsel %vm1759, %v2119, %v2123
        %v2125 = vshrl.u32 %v2091, 16
        %v2127 = vor.u32 %v2125, %v2123
        %v2129 = vshll.u32 %v2092, 16
        %v2131 = vrot.slane %v2129, 1
        %v2132 = vsel %vm1759, %v2127, %v2131
        %v2133 = vshrl.u32 %v2092, 16
        %v2135 = vor.u32 %v2133, %v2131
        %v2137 = vshll.u32 %v2093, 16
        %v2139 = vrot.slane %v2137, 1
        %v2140 = vsel %vm1759, %v2135, %v2139
        %v2141 = vshrl.u32 %v2093, 16
        %v2143 = vor.u32 %v2141, %v2139
        %v2145 = vshll.u32 %v2094, 16
        %v2147 = vrot.slane %v2145, 1
        %v2148 = vsel %vm1759, %v2143, %v2147
        %v2149 = vshrl.u32 %v2094, 16
        %v2151 = vor.u32 %v2149, %v2147
        %v2153 = vshll.u32 %v2095, 16
        %v2155 = vrot.slane %v2153, 1
        %v2156 = vsel %vm1759, %v2151, %v2155
        %v2157 = vshrl.u32 %v2095, 16
        %v2159 = vor.u32 %v2157, %v2155
        %v2161 = vshll.u32 %v2096, 16
        %v2163 = vrot.slane %v2161, 1
        %v2164 = vsel %vm1759, %v2159, %v2163
        %v2165 = vshrl.u32 %v2096, 16
        %v2167 = vor.u32 %v2165, %v2163
        %v2169 = vsel %vm764, %v2108, 0
        %v2172 = vsel %vm764, %v2116, 0
        %v2175 = vsel %vm764, %v2124, 0
        %v2178 = vsel %vm764, %v2132, 0
        %v2181 = vsel %vm764, %v2140, 0
        %v2184 = vsel %vm764, %v2148, 0
        %v2187 = vsel %vm764, %v2156, 0
        %v2190 = vsel %vm764, %v2164, 0
        %v2193 = vsel %vm764, %v2167, 0
        %v2196 = vsel %vm1617, %v2087, 0
        %2198 = vmatpush.bf16.msra.mxu0 0
        %2199 = vmatpush.bf16.msra.mxu0 0
        %2200 = vmatpush.bf16.msra.mxu0 0
        %2201 = vmatpush.bf16.msra.mxu0 0
        %2202 = vmatpush.bf16.msra.mxu0 0
        %2203 = vmatpush.bf16.msra.mxu0 0
        %2204 = vmatpush.bf16.msra.mxu0 0
        %2205 = vmatpush.bf16.msra.mxu0 %v2196
        %2206 = vmatmul.bf16.gmra.mxu0 %v2169
        %v2207 = vpop.f32.mrf.mxu0
        %v2208 = vadd.f32 0.0, %v2207
        %v2209 = vpop.f32.mrf.mxu0
        %v2210 = vadd.f32 0.0, %v2209
        %2211 = vmatmul.bf16.gmra.mxu0 %v2172
        %v2212 = vpop.f32.mrf.mxu0
        %v2213 = vadd.f32 0.0, %v2212
        %v2214 = vpop.f32.mrf.mxu0
        %v2215 = vadd.f32 0.0, %v2214
        %2216 = vmatmul.bf16.gmra.mxu0 %v2175
        %v2217 = vpop.f32.mrf.mxu0
        %v2218 = vadd.f32 0.0, %v2217
        %v2219 = vpop.f32.mrf.mxu0
        %v2220 = vadd.f32 0.0, %v2219
        %2221 = vmatmul.bf16.gmra.mxu0 %v2178
        %v2222 = vpop.f32.mrf.mxu0
        %v2223 = vadd.f32 0.0, %v2222
        %v2224 = vpop.f32.mrf.mxu0
        %v2225 = vadd.f32 0.0, %v2224
        %2226 = vmatmul.bf16.gmra.mxu0 %v2181
        %v2227 = vpop.f32.mrf.mxu0
        %v2228 = vadd.f32 0.0, %v2227
        %v2229 = vpop.f32.mrf.mxu0
        %v2230 = vadd.f32 0.0, %v2229
        %2231 = vmatmul.bf16.gmra.mxu0 %v2184
        %v2232 = vpop.f32.mrf.mxu0
        %v2233 = vadd.f32 0.0, %v2232
        %v2234 = vpop.f32.mrf.mxu0
        %v2235 = vadd.f32 0.0, %v2234
        %2236 = vmatmul.bf16.gmra.mxu0 %v2187
        %v2237 = vpop.f32.mrf.mxu0
        %v2238 = vadd.f32 0.0, %v2237
        %v2239 = vpop.f32.mrf.mxu0
        %v2240 = vadd.f32 0.0, %v2239
        %2241 = vmatmul.bf16.gmra.mxu0 %v2190
        %v2242 = vpop.f32.mrf.mxu0
        %v2243 = vadd.f32 0.0, %v2242
        %v2244 = vpop.f32.mrf.mxu0
        %v2245 = vadd.f32 0.0, %v2244
        %2246 = vmatmul.bf16.gmra.mxu0 %v2193
        %v2247 = vpop.f32.mrf.mxu0
        %v2248 = vadd.f32 0.0, %v2247
        %v2249 = vpop.f32.mrf.mxu0
        %2250 = vdwg.mxu0
        %v2251 = vadd.f32 %v2069, %v2208
        %v2252 = vadd.f32 %v2070, %v2210
        %v2253 = vadd.f32 %v2071, %v2213
        %v2254 = vadd.f32 %v2072, %v2215
        %v2255 = vadd.f32 %v2073, %v2218
        %v2256 = vadd.f32 %v2074, %v2220
        %v2257 = vadd.f32 %v2075, %v2223
        %v2258 = vadd.f32 %v2076, %v2225
        %v2259 = vadd.f32 %v2077, %v2228
        %v2260 = vadd.f32 %v2078, %v2230
        %v2261 = vadd.f32 %v2079, %v2233
        %v2262 = vadd.f32 %v2080, %v2235
        %v2263 = vadd.f32 %v2081, %v2238
        %v2264 = vadd.f32 %v2082, %v2240
        %v2265 = vadd.f32 %v2083, %v2243
        %v2266 = vadd.f32 %v2084, %v2245
        %v2267 = vadd.f32 %v2085, %v2248
        %s2268 = scalar_lea.vmem %s2, 20
        %v2269 = vld [vmem:[%s2268] sm:$0xf]
        %v2270 = vpack.c.bf16 %v1521, %v1518
        %v2271 = vpack.c.bf16 %v1526, %v1523
        %v2272 = vpack.c.bf16 %v1531, %v1528
        %v2273 = vpack.c.bf16 %v1536, %v1533
        %v2274 = vpack.c.bf16 %v1541, %v1538
        %v2275 = vpack.c.bf16 %v1546, %v1543
        %v2276 = vpack.c.bf16 %v1551, %v1548
        %v2277 = vpack.c.bf16 %v1556, %v1553
        %v2278 = vpack.c.bf16 %v1558, %v1558
        %v2280 = vshrl.u32 %v2270, 16
        %v2282 = vshll.u32 %v2270, 16
        %v2284 = vrot.slane %v2282, 1
        %v2285 = vor.u32 %v2280, %v2284
        %v2287 = vshll.u32 %v2271, 16
        %v2289 = vrot.slane %v2287, 1
        %v2290 = vsel %vm1759, %v2285, %v2289
        %v2291 = vshrl.u32 %v2271, 16
        %v2293 = vor.u32 %v2291, %v2289
        %v2295 = vshll.u32 %v2272, 16
        %v2297 = vrot.slane %v2295, 1
        %v2298 = vsel %vm1759, %v2293, %v2297
        %v2299 = vshrl.u32 %v2272, 16
        %v2301 = vor.u32 %v2299, %v2297
        %v2303 = vshll.u32 %v2273, 16
        %v2305 = vrot.slane %v2303, 1
        %v2306 = vsel %vm1759, %v2301, %v2305
        %v2307 = vshrl.u32 %v2273, 16
        %v2309 = vor.u32 %v2307, %v2305
        %v2311 = vshll.u32 %v2274, 16
        %v2313 = vrot.slane %v2311, 1
        %v2314 = vsel %vm1759, %v2309, %v2313
        %v2315 = vshrl.u32 %v2274, 16
        %v2317 = vor.u32 %v2315, %v2313
        %v2319 = vshll.u32 %v2275, 16
        %v2321 = vrot.slane %v2319, 1
        %v2322 = vsel %vm1759, %v2317, %v2321
        %v2323 = vshrl.u32 %v2275, 16
        %v2325 = vor.u32 %v2323, %v2321
        %v2327 = vshll.u32 %v2276, 16
        %v2329 = vrot.slane %v2327, 1
        %v2330 = vsel %vm1759, %v2325, %v2329
        %v2331 = vshrl.u32 %v2276, 16
        %v2333 = vor.u32 %v2331, %v2329
        %v2335 = vshll.u32 %v2277, 16
        %v2337 = vrot.slane %v2335, 1
        %v2338 = vsel %vm1759, %v2333, %v2337
        %v2339 = vshrl.u32 %v2277, 16
        %v2341 = vor.u32 %v2339, %v2337
        %v2343 = vshll.u32 %v2278, 16
        %v2345 = vrot.slane %v2343, 1
        %v2346 = vsel %vm1759, %v2341, %v2345
        %v2347 = vshrl.u32 %v2278, 16
        %v2349 = vor.u32 %v2347, %v2345
        %v2351 = vsel %vm764, %v2290, 0
        %v2354 = vsel %vm764, %v2298, 0
        %v2357 = vsel %vm764, %v2306, 0
        %v2360 = vsel %vm764, %v2314, 0
        %v2363 = vsel %vm764, %v2322, 0
        %v2366 = vsel %vm764, %v2330, 0
        %v2369 = vsel %vm764, %v2338, 0
        %v2372 = vsel %vm764, %v2346, 0
        %v2375 = vsel %vm764, %v2349, 0
        %v2378 = vsel %vm1617, %v2269, 0
        %2380 = vmatpush.bf16.msra.mxu0 0
        %2381 = vmatpush.bf16.msra.mxu0 0
        %2382 = vmatpush.bf16.msra.mxu0 0
        %2383 = vmatpush.bf16.msra.mxu0 0
        %2384 = vmatpush.bf16.msra.mxu0 0
        %2385 = vmatpush.bf16.msra.mxu0 0
        %2386 = vmatpush.bf16.msra.mxu0 0
        %2387 = vmatpush.bf16.msra.mxu0 %v2378
        %2388 = vmatmul.bf16.gmra.mxu0 %v2351
        %v2389 = vpop.f32.mrf.mxu0
        %v2390 = vadd.f32 0.0, %v2389
        %v2391 = vpop.f32.mrf.mxu0
        %v2392 = vadd.f32 0.0, %v2391
        %2393 = vmatmul.bf16.gmra.mxu0 %v2354
        %v2394 = vpop.f32.mrf.mxu0
        %v2395 = vadd.f32 0.0, %v2394
        %v2396 = vpop.f32.mrf.mxu0
        %v2397 = vadd.f32 0.0, %v2396
        %2398 = vmatmul.bf16.gmra.mxu0 %v2357
        %v2399 = vpop.f32.mrf.mxu0
        %v2400 = vadd.f32 0.0, %v2399
        %v2401 = vpop.f32.mrf.mxu0
        %v2402 = vadd.f32 0.0, %v2401
        %2403 = vmatmul.bf16.gmra.mxu0 %v2360
        %v2404 = vpop.f32.mrf.mxu0
        %v2405 = vadd.f32 0.0, %v2404
        %v2406 = vpop.f32.mrf.mxu0
        %v2407 = vadd.f32 0.0, %v2406
        %2408 = vmatmul.bf16.gmra.mxu0 %v2363
        %v2409 = vpop.f32.mrf.mxu0
        %v2410 = vadd.f32 0.0, %v2409
        %v2411 = vpop.f32.mrf.mxu0
        %v2412 = vadd.f32 0.0, %v2411
        %2413 = vmatmul.bf16.gmra.mxu0 %v2366
        %v2414 = vpop.f32.mrf.mxu0
        %v2415 = vadd.f32 0.0, %v2414
        %v2416 = vpop.f32.mrf.mxu0
        %v2417 = vadd.f32 0.0, %v2416
        %2418 = vmatmul.bf16.gmra.mxu0 %v2369
        %v2419 = vpop.f32.mrf.mxu0
        %v2420 = vadd.f32 0.0, %v2419
        %v2421 = vpop.f32.mrf.mxu0
        %v2422 = vadd.f32 0.0, %v2421
        %2423 = vmatmul.bf16.gmra.mxu0 %v2372
        %v2424 = vpop.f32.mrf.mxu0
        %v2425 = vadd.f32 0.0, %v2424
        %v2426 = vpop.f32.mrf.mxu0
        %v2427 = vadd.f32 0.0, %v2426
        %2428 = vmatmul.bf16.gmra.mxu0 %v2375
        %v2429 = vpop.f32.mrf.mxu0
        %v2430 = vadd.f32 0.0, %v2429
        %v2431 = vpop.f32.mrf.mxu0
        %2432 = vdwg.mxu0
        %v2433 = vadd.f32 %v2251, %v2390
        %v2434 = vadd.f32 %v2252, %v2392
        %v2435 = vadd.f32 %v2253, %v2395
        %v2436 = vadd.f32 %v2254, %v2397
        %v2437 = vadd.f32 %v2255, %v2400
        %v2438 = vadd.f32 %v2256, %v2402
        %v2439 = vadd.f32 %v2257, %v2405
        %v2440 = vadd.f32 %v2258, %v2407
        %v2441 = vadd.f32 %v2259, %v2410
        %v2442 = vadd.f32 %v2260, %v2412
        %v2443 = vadd.f32 %v2261, %v2415
        %v2444 = vadd.f32 %v2262, %v2417
        %v2445 = vadd.f32 %v2263, %v2420
        %v2446 = vadd.f32 %v2264, %v2422
        %v2447 = vadd.f32 %v2265, %v2425
        %v2448 = vadd.f32 %v2266, %v2427
        %v2449 = vadd.f32 %v2267, %v2430
        %s2450 = scalar_lea.vmem %s2, 24
        %v2451 = vld [vmem:[%s2450] sm:$0xf]
        %vm2461 = vcmask 1046528
        %v2462 = vrot.slane %v2088, 1
        %v2463 = vrot.slane %v2089, 1
        %v2464 = vsel %vm2461, %v2462, %v2463
        %v2465 = vrot.slane %v2090, 1
        %v2466 = vsel %vm2461, %v2463, %v2465
        %v2467 = vrot.slane %v2091, 1
        %v2468 = vsel %vm2461, %v2465, %v2467
        %v2469 = vrot.slane %v2092, 1
        %v2470 = vsel %vm2461, %v2467, %v2469
        %v2471 = vrot.slane %v2093, 1
        %v2472 = vsel %vm2461, %v2469, %v2471
        %v2473 = vrot.slane %v2094, 1
        %v2474 = vsel %vm2461, %v2471, %v2473
        %v2475 = vrot.slane %v2095, 1
        %v2476 = vsel %vm2461, %v2473, %v2475
        %v2477 = vrot.slane %v2096, 1
        %v2478 = vsel %vm2461, %v2475, %v2477
        %v2480 = vsel %vm764, %v2464, 0
        %v2483 = vsel %vm764, %v2466, 0
        %v2486 = vsel %vm764, %v2468, 0
        %v2489 = vsel %vm764, %v2470, 0
        %v2492 = vsel %vm764, %v2472, 0
        %v2495 = vsel %vm764, %v2474, 0
        %v2498 = vsel %vm764, %v2476, 0
        %v2501 = vsel %vm764, %v2478, 0
        %v2504 = vsel %vm764, %v2477, 0
        %v2507 = vsel %vm1617, %v2451, 0
        %2509 = vmatpush.bf16.msra.mxu0 0
        %2510 = vmatpush.bf16.msra.mxu0 0
        %2511 = vmatpush.bf16.msra.mxu0 0
        %2512 = vmatpush.bf16.msra.mxu0 0
        %2513 = vmatpush.bf16.msra.mxu0 0
        %2514 = vmatpush.bf16.msra.mxu0 0
        %2515 = vmatpush.bf16.msra.mxu0 0
        %2516 = vmatpush.bf16.msra.mxu0 %v2507
        %2517 = vmatmul.bf16.gmra.mxu0 %v2480
        %v2518 = vpop.f32.mrf.mxu0
        %v2519 = vadd.f32 0.0, %v2518
        %v2520 = vpop.f32.mrf.mxu0
        %v2521 = vadd.f32 0.0, %v2520
        %2522 = vmatmul.bf16.gmra.mxu0 %v2483
        %v2523 = vpop.f32.mrf.mxu0
        %v2524 = vadd.f32 0.0, %v2523
        %v2525 = vpop.f32.mrf.mxu0
        %v2526 = vadd.f32 0.0, %v2525
        %2527 = vmatmul.bf16.gmra.mxu0 %v2486
        %v2528 = vpop.f32.mrf.mxu0
        %v2529 = vadd.f32 0.0, %v2528
        %v2530 = vpop.f32.mrf.mxu0
        %v2531 = vadd.f32 0.0, %v2530
        %2532 = vmatmul.bf16.gmra.mxu0 %v2489
        %v2533 = vpop.f32.mrf.mxu0
        %v2534 = vadd.f32 0.0, %v2533
        %v2535 = vpop.f32.mrf.mxu0
        %v2536 = vadd.f32 0.0, %v2535
        %2537 = vmatmul.bf16.gmra.mxu0 %v2492
        %v2538 = vpop.f32.mrf.mxu0
        %v2539 = vadd.f32 0.0, %v2538
        %v2540 = vpop.f32.mrf.mxu0
        %v2541 = vadd.f32 0.0, %v2540
        %2542 = vmatmul.bf16.gmra.mxu0 %v2495
        %v2543 = vpop.f32.mrf.mxu0
        %v2544 = vadd.f32 0.0, %v2543
        %v2545 = vpop.f32.mrf.mxu0
        %v2546 = vadd.f32 0.0, %v2545
        %2547 = vmatmul.bf16.gmra.mxu0 %v2498
        %v2548 = vpop.f32.mrf.mxu0
        %v2549 = vadd.f32 0.0, %v2548
        %v2550 = vpop.f32.mrf.mxu0
        %v2551 = vadd.f32 0.0, %v2550
        %2552 = vmatmul.bf16.gmra.mxu0 %v2501
        %v2553 = vpop.f32.mrf.mxu0
        %v2554 = vadd.f32 0.0, %v2553
        %v2555 = vpop.f32.mrf.mxu0
        %v2556 = vadd.f32 0.0, %v2555
        %2557 = vmatmul.bf16.gmra.mxu0 %v2504
        %v2558 = vpop.f32.mrf.mxu0
        %v2559 = vadd.f32 0.0, %v2558
        %v2560 = vpop.f32.mrf.mxu0
        %2561 = vdwg.mxu0
        %v2562 = vadd.f32 %v2433, %v2519
        %v2563 = vadd.f32 %v2434, %v2521
        %v2564 = vadd.f32 %v2435, %v2524
        %v2565 = vadd.f32 %v2436, %v2526
        %v2566 = vadd.f32 %v2437, %v2529
        %v2567 = vadd.f32 %v2438, %v2531
        %v2568 = vadd.f32 %v2439, %v2534
        %v2569 = vadd.f32 %v2440, %v2536
        %v2570 = vadd.f32 %v2441, %v2539
        %v2571 = vadd.f32 %v2442, %v2541
        %v2572 = vadd.f32 %v2443, %v2544
        %v2573 = vadd.f32 %v2444, %v2546
        %v2574 = vadd.f32 %v2445, %v2549
        %v2575 = vadd.f32 %v2446, %v2551
        %v2576 = vadd.f32 %v2447, %v2554
        %v2577 = vadd.f32 %v2448, %v2556
        %v2578 = vadd.f32 %v2449, %v2559
        %s2579 = scalar_lea.vmem %s2, 28
        %v2580 = vld [vmem:[%s2579] sm:$0xf]
        %v2590 = vrot.slane %v2270, 1
        %v2591 = vrot.slane %v2271, 1
        %v2592 = vsel %vm2461, %v2590, %v2591
        %v2593 = vrot.slane %v2272, 1
        %v2594 = vsel %vm2461, %v2591, %v2593
        %v2595 = vrot.slane %v2273, 1
        %v2596 = vsel %vm2461, %v2593, %v2595
        %v2597 = vrot.slane %v2274, 1
        %v2598 = vsel %vm2461, %v2595, %v2597
        %v2599 = vrot.slane %v2275, 1
        %v2600 = vsel %vm2461, %v2597, %v2599
        %v2601 = vrot.slane %v2276, 1
        %v2602 = vsel %vm2461, %v2599, %v2601
        %v2603 = vrot.slane %v2277, 1
        %v2604 = vsel %vm2461, %v2601, %v2603
        %v2605 = vrot.slane %v2278, 1
        %v2606 = vsel %vm2461, %v2603, %v2605
        %v2608 = vsel %vm764, %v2592, 0
        %v2611 = vsel %vm764, %v2594, 0
        %v2614 = vsel %vm764, %v2596, 0
        %v2617 = vsel %vm764, %v2598, 0
        %v2620 = vsel %vm764, %v2600, 0
        %v2623 = vsel %vm764, %v2602, 0
        %v2626 = vsel %vm764, %v2604, 0
        %v2629 = vsel %vm764, %v2606, 0
        %v2632 = vsel %vm764, %v2605, 0
        %v2635 = vsel %vm1617, %v2580, 0
        %2637 = vmatpush.bf16.msra.mxu0 0
        %2638 = vmatpush.bf16.msra.mxu0 0
        %2639 = vmatpush.bf16.msra.mxu0 0
        %2640 = vmatpush.bf16.msra.mxu0 0
        %2641 = vmatpush.bf16.msra.mxu0 0
        %2642 = vmatpush.bf16.msra.mxu0 0
        %2643 = vmatpush.bf16.msra.mxu0 0
        %2644 = vmatpush.bf16.msra.mxu0 %v2635
        %2645 = vmatmul.bf16.gmra.mxu0 %v2608
        %v2646 = vpop.f32.mrf.mxu0
        %v2647 = vadd.f32 0.0, %v2646
        %v2648 = vpop.f32.mrf.mxu0
        %v2649 = vadd.f32 0.0, %v2648
        %2650 = vmatmul.bf16.gmra.mxu0 %v2611
        %v2651 = vpop.f32.mrf.mxu0
        %v2652 = vadd.f32 0.0, %v2651
        %v2653 = vpop.f32.mrf.mxu0
        %v2654 = vadd.f32 0.0, %v2653
        %2655 = vmatmul.bf16.gmra.mxu0 %v2614
        %v2656 = vpop.f32.mrf.mxu0
        %v2657 = vadd.f32 0.0, %v2656
        %v2658 = vpop.f32.mrf.mxu0
        %v2659 = vadd.f32 0.0, %v2658
        %2660 = vmatmul.bf16.gmra.mxu0 %v2617
        %v2661 = vpop.f32.mrf.mxu0
        %v2662 = vadd.f32 0.0, %v2661
        %v2663 = vpop.f32.mrf.mxu0
        %v2664 = vadd.f32 0.0, %v2663
        %2665 = vmatmul.bf16.gmra.mxu0 %v2620
        %v2666 = vpop.f32.mrf.mxu0
        %v2667 = vadd.f32 0.0, %v2666
        %v2668 = vpop.f32.mrf.mxu0
        %v2669 = vadd.f32 0.0, %v2668
        %2670 = vmatmul.bf16.gmra.mxu0 %v2623
        %v2671 = vpop.f32.mrf.mxu0
        %v2672 = vadd.f32 0.0, %v2671
        %v2673 = vpop.f32.mrf.mxu0
        %v2674 = vadd.f32 0.0, %v2673
        %2675 = vmatmul.bf16.gmra.mxu0 %v2626
        %v2676 = vpop.f32.mrf.mxu0
        %v2677 = vadd.f32 0.0, %v2676
        %v2678 = vpop.f32.mrf.mxu0
        %v2679 = vadd.f32 0.0, %v2678
        %2680 = vmatmul.bf16.gmra.mxu0 %v2629
        %v2681 = vpop.f32.mrf.mxu0
        %v2682 = vadd.f32 0.0, %v2681
        %v2683 = vpop.f32.mrf.mxu0
        %v2684 = vadd.f32 0.0, %v2683
        %2685 = vmatmul.bf16.gmra.mxu0 %v2632
        %v2686 = vpop.f32.mrf.mxu0
        %v2687 = vadd.f32 0.0, %v2686
        %v2688 = vpop.f32.mrf.mxu0
        %2689 = vdwg.mxu0
        %v2690 = vadd.f32 %v2562, %v2647
        %v2691 = vadd.f32 %v2563, %v2649
        %v2692 = vadd.f32 %v2564, %v2652
        %v2693 = vadd.f32 %v2565, %v2654
        %v2694 = vadd.f32 %v2566, %v2657
        %v2695 = vadd.f32 %v2567, %v2659
        %v2696 = vadd.f32 %v2568, %v2662
        %v2697 = vadd.f32 %v2569, %v2664
        %v2698 = vadd.f32 %v2570, %v2667
        %v2699 = vadd.f32 %v2571, %v2669
        %v2700 = vadd.f32 %v2572, %v2672
        %v2701 = vadd.f32 %v2573, %v2674
        %v2702 = vadd.f32 %v2574, %v2677
        %v2703 = vadd.f32 %v2575, %v2679
        %v2704 = vadd.f32 %v2576, %v2682
        %v2705 = vadd.f32 %v2577, %v2684
        %v2706 = vadd.f32 %v2578, %v2687
        %s2707 = scalar_lea.vmem %s2, 32
        %v2708 = vld [vmem:[%s2707] sm:$0xf]
        %v2709 = vpack.c.bf16 %v1303, %v1301
        %v2710 = vpack.c.bf16 %v1306, %v1306
        %v2720 = vrot.slane %v1571, 1
        %v2721 = vrot.slane %v1572, 1
        %v2722 = vsel %vm2461, %v2720, %v2721
        %v2723 = vrot.slane %v1573, 1
        %v2724 = vsel %vm2461, %v2721, %v2723
        %v2725 = vrot.slane %v1574, 1
        %v2726 = vsel %vm2461, %v2723, %v2725
        %v2727 = vrot.slane %v1575, 1
        %v2728 = vsel %vm2461, %v2725, %v2727
        %v2729 = vrot.slane %v1576, 1
        %v2730 = vsel %vm2461, %v2727, %v2729
        %v2731 = vrot.slane %v1577, 1
        %v2732 = vsel %vm2461, %v2729, %v2731
        %v2733 = vrot.slane %v2709, 1
        %v2734 = vsel %vm2461, %v2731, %v2733
        %v2735 = vrot.slane %v2710, 1
        %v2736 = vsel %vm2461, %v2733, %v2735
        %v2738 = vsel %vm764, %v2722, 0
        %v2741 = vsel %vm764, %v2724, 0
        %v2744 = vsel %vm764, %v2726, 0
        %v2747 = vsel %vm764, %v2728, 0
        %v2750 = vsel %vm764, %v2730, 0
        %v2753 = vsel %vm764, %v2732, 0
        %v2756 = vsel %vm764, %v2734, 0
        %v2759 = vsel %vm764, %v2736, 0
        %v2762 = vsel %vm764, %v2735, 0
        %v2765 = vsel %vm1617, %v2708, 0
        %2767 = vmatpush.bf16.msra.mxu0 0
        %2768 = vmatpush.bf16.msra.mxu0 0
        %2769 = vmatpush.bf16.msra.mxu0 0
        %2770 = vmatpush.bf16.msra.mxu0 0
        %2771 = vmatpush.bf16.msra.mxu0 0
        %2772 = vmatpush.bf16.msra.mxu0 0
        %2773 = vmatpush.bf16.msra.mxu0 0
        %2774 = vmatpush.bf16.msra.mxu0 %v2765
        %2775 = vmatmul.bf16.gmra.mxu0 %v2738
        %v2776 = vpop.f32.mrf.mxu0
        %v2777 = vadd.f32 0.0, %v2776
        %v2778 = vpop.f32.mrf.mxu0
        %v2779 = vadd.f32 0.0, %v2778
        %2780 = vmatmul.bf16.gmra.mxu0 %v2741
        %v2781 = vpop.f32.mrf.mxu0
        %v2782 = vadd.f32 0.0, %v2781
        %v2783 = vpop.f32.mrf.mxu0
        %v2784 = vadd.f32 0.0, %v2783
        %2785 = vmatmul.bf16.gmra.mxu0 %v2744
        %v2786 = vpop.f32.mrf.mxu0
        %v2787 = vadd.f32 0.0, %v2786
        %v2788 = vpop.f32.mrf.mxu0
        %v2789 = vadd.f32 0.0, %v2788
        %2790 = vmatmul.bf16.gmra.mxu0 %v2747
        %v2791 = vpop.f32.mrf.mxu0
        %v2792 = vadd.f32 0.0, %v2791
        %v2793 = vpop.f32.mrf.mxu0
        %v2794 = vadd.f32 0.0, %v2793
        %2795 = vmatmul.bf16.gmra.mxu0 %v2750
        %v2796 = vpop.f32.mrf.mxu0
        %v2797 = vadd.f32 0.0, %v2796
        %v2798 = vpop.f32.mrf.mxu0
        %v2799 = vadd.f32 0.0, %v2798
        %2800 = vmatmul.bf16.gmra.mxu0 %v2753
        %v2801 = vpop.f32.mrf.mxu0
        %v2802 = vadd.f32 0.0, %v2801
        %v2803 = vpop.f32.mrf.mxu0
        %v2804 = vadd.f32 0.0, %v2803
        %2805 = vmatmul.bf16.gmra.mxu0 %v2756
        %v2806 = vpop.f32.mrf.mxu0
        %v2807 = vadd.f32 0.0, %v2806
        %v2808 = vpop.f32.mrf.mxu0
        %v2809 = vadd.f32 0.0, %v2808
        %2810 = vmatmul.bf16.gmra.mxu0 %v2759
        %v2811 = vpop.f32.mrf.mxu0
        %v2812 = vadd.f32 0.0, %v2811
        %v2813 = vpop.f32.mrf.mxu0
        %v2814 = vadd.f32 0.0, %v2813
        %2815 = vmatmul.bf16.gmra.mxu0 %v2762
        %v2816 = vpop.f32.mrf.mxu0
        %v2817 = vadd.f32 0.0, %v2816
        %v2818 = vpop.f32.mrf.mxu0
        %2819 = vdwg.mxu0
        %v2820 = vadd.f32 %v2690, %v2777
        %v2821 = vadd.f32 %v2691, %v2779
        %v2822 = vadd.f32 %v2692, %v2782
        %v2823 = vadd.f32 %v2693, %v2784
        %v2824 = vadd.f32 %v2694, %v2787
        %v2825 = vadd.f32 %v2695, %v2789
        %v2826 = vadd.f32 %v2696, %v2792
        %v2827 = vadd.f32 %v2697, %v2794
        %v2828 = vadd.f32 %v2698, %v2797
        %v2829 = vadd.f32 %v2699, %v2799
        %v2830 = vadd.f32 %v2700, %v2802
        %v2831 = vadd.f32 %v2701, %v2804
        %v2832 = vadd.f32 %v2702, %v2807
        %v2833 = vadd.f32 %v2703, %v2809
        %v2834 = vadd.f32 %v2704, %v2812
        %v2835 = vadd.f32 %v2705, %v2814
        %v2836 = vadd.f32 %v2706, %v2817
        %s2837 = scalar_lea.vmem %s2, 36
        %v2838 = vld [vmem:[%s2837] sm:$0xf]
        %v2839 = vpack.c.bf16 %v1558, %v1556
        %v2840 = vpack.c.bf16 %v1561, %v1561
        %v2850 = vrot.slane %v1582, 1
        %v2851 = vrot.slane %v1583, 1
        %v2852 = vsel %vm2461, %v2850, %v2851
        %v2853 = vrot.slane %v1584, 1
        %v2854 = vsel %vm2461, %v2851, %v2853
        %v2855 = vrot.slane %v1585, 1
        %v2856 = vsel %vm2461, %v2853, %v2855
        %v2857 = vrot.slane %v1586, 1
        %v2858 = vsel %vm2461, %v2855, %v2857
        %v2859 = vrot.slane %v1587, 1
        %v2860 = vsel %vm2461, %v2857, %v2859
        %v2861 = vrot.slane %v1588, 1
        %v2862 = vsel %vm2461, %v2859, %v2861
        %v2863 = vrot.slane %v2839, 1
        %v2864 = vsel %vm2461, %v2861, %v2863
        %v2865 = vrot.slane %v2840, 1
        %v2866 = vsel %vm2461, %v2863, %v2865
        %v2868 = vsel %vm764, %v2852, 0
        %v2871 = vsel %vm764, %v2854, 0
        %v2874 = vsel %vm764, %v2856, 0
        %v2877 = vsel %vm764, %v2858, 0
        %v2880 = vsel %vm764, %v2860, 0
        %v2883 = vsel %vm764, %v2862, 0
        %v2886 = vsel %vm764, %v2864, 0
        %v2889 = vsel %vm764, %v2866, 0
        %v2892 = vsel %vm764, %v2865, 0
        %v2895 = vsel %vm1617, %v2838, 0
        %2897 = vmatpush.bf16.msra.mxu0 0
        %2898 = vmatpush.bf16.msra.mxu0 0
        %2899 = vmatpush.bf16.msra.mxu0 0
        %2900 = vmatpush.bf16.msra.mxu0 0
        %2901 = vmatpush.bf16.msra.mxu0 0
        %2902 = vmatpush.bf16.msra.mxu0 0
        %2903 = vmatpush.bf16.msra.mxu0 0
        %2904 = vmatpush.bf16.msra.mxu0 %v2895
        %2905 = vmatmul.bf16.gmra.mxu0 %v2868
        %v2906 = vpop.f32.mrf.mxu0
        %v2907 = vadd.f32 0.0, %v2906
        %v2908 = vpop.f32.mrf.mxu0
        %v2909 = vadd.f32 0.0, %v2908
        %2910 = vmatmul.bf16.gmra.mxu0 %v2871
        %v2911 = vpop.f32.mrf.mxu0
        %v2912 = vadd.f32 0.0, %v2911
        %v2913 = vpop.f32.mrf.mxu0
        %v2914 = vadd.f32 0.0, %v2913
        %2915 = vmatmul.bf16.gmra.mxu0 %v2874
        %v2916 = vpop.f32.mrf.mxu0
        %v2917 = vadd.f32 0.0, %v2916
        %v2918 = vpop.f32.mrf.mxu0
        %v2919 = vadd.f32 0.0, %v2918
        %2920 = vmatmul.bf16.gmra.mxu0 %v2877
        %v2921 = vpop.f32.mrf.mxu0
        %v2922 = vadd.f32 0.0, %v2921
        %v2923 = vpop.f32.mrf.mxu0
        %v2924 = vadd.f32 0.0, %v2923
        %2925 = vmatmul.bf16.gmra.mxu0 %v2880
        %v2926 = vpop.f32.mrf.mxu0
        %v2927 = vadd.f32 0.0, %v2926
        %v2928 = vpop.f32.mrf.mxu0
        %v2929 = vadd.f32 0.0, %v2928
        %2930 = vmatmul.bf16.gmra.mxu0 %v2883
        %v2931 = vpop.f32.mrf.mxu0
        %v2932 = vadd.f32 0.0, %v2931
        %v2933 = vpop.f32.mrf.mxu0
        %v2934 = vadd.f32 0.0, %v2933
        %2935 = vmatmul.bf16.gmra.mxu0 %v2886
        %v2936 = vpop.f32.mrf.mxu0
        %v2937 = vadd.f32 0.0, %v2936
        %v2938 = vpop.f32.mrf.mxu0
        %v2939 = vadd.f32 0.0, %v2938
        %2940 = vmatmul.bf16.gmra.mxu0 %v2889
        %v2941 = vpop.f32.mrf.mxu0
        %v2942 = vadd.f32 0.0, %v2941
        %v2943 = vpop.f32.mrf.mxu0
        %v2944 = vadd.f32 0.0, %v2943
        %2945 = vmatmul.bf16.gmra.mxu0 %v2892
        %v2946 = vpop.f32.mrf.mxu0
        %v2947 = vadd.f32 0.0, %v2946
        %v2948 = vpop.f32.mrf.mxu0
        %2949 = vdwg.mxu0
        %v2950 = vadd.f32 %v2820, %v2907
        %v2951 = vadd.f32 %v2821, %v2909
        %v2952 = vadd.f32 %v2822, %v2912
        %v2953 = vadd.f32 %v2823, %v2914
        %v2954 = vadd.f32 %v2824, %v2917
        %v2955 = vadd.f32 %v2825, %v2919
        %v2956 = vadd.f32 %v2826, %v2922
        %v2957 = vadd.f32 %v2827, %v2924
        %v2958 = vadd.f32 %v2828, %v2927
        %v2959 = vadd.f32 %v2829, %v2929
        %v2960 = vadd.f32 %v2830, %v2932
        %v2961 = vadd.f32 %v2831, %v2934
        %v2962 = vadd.f32 %v2832, %v2937
        %v2963 = vadd.f32 %v2833, %v2939
        %v2964 = vadd.f32 %v2834, %v2942
        %v2965 = vadd.f32 %v2835, %v2944
        %v2966 = vadd.f32 %v2836, %v2947
        %s2967 = scalar_lea.vmem %s2, 40
        %v2968 = vld [vmem:[%s2967] sm:$0xf]
        %v2969 = vpack.c.bf16 %v1308, %v1306
        %vm2970 = vsmask.f32 6400
        %v2971 = vrot.slane %v1770, 1
        %v2972 = vrot.slane %v1766, 2
        %v2973 = vor.u32 %v2971, %v2972
        %v2974 = vrot.slane %v1777, 1
        %v2975 = vrot.slane %v1773, 2
        %v2976 = vor.u32 %v2974, %v2975
        %v2977 = vsel %vm2970, %v2973, %v2976
        %v2978 = vrot.slane %v1784, 1
        %v2979 = vrot.slane %v1780, 2
        %v2980 = vor.u32 %v2978, %v2979
        %v2981 = vsel %vm2970, %v2976, %v2980
        %v2982 = vrot.slane %v1791, 1
        %v2983 = vrot.slane %v1787, 2
        %v2984 = vor.u32 %v2982, %v2983
        %v2985 = vsel %vm2970, %v2980, %v2984
        %v2986 = vrot.slane %v1798, 1
        %v2987 = vrot.slane %v1794, 2
        %v2988 = vor.u32 %v2986, %v2987
        %v2989 = vsel %vm2970, %v2984, %v2988
        %v2990 = vrot.slane %v1805, 1
        %v2991 = vrot.slane %v1801, 2
        %v2992 = vor.u32 %v2990, %v2991
        %v2993 = vsel %vm2970, %v2988, %v2992
        %v2994 = vrot.slane %v1812, 1
        %v2995 = vrot.slane %v1808, 2
        %v2996 = vor.u32 %v2994, %v2995
        %v2997 = vsel %vm2970, %v2992, %v2996
        %v2999 = vshrl.u32 %v2709, 16
        %v3001 = vrot.slane %v2999, 1
        %v3002 = vshll.u32 %v2709, 16
        %v3004 = vrot.slane %v3002, 2
        %v3005 = vor.u32 %v3001, %v3004
        %v3006 = vsel %vm2970, %v2996, %v3005
        %v3008 = vshrl.u32 %v2969, 16
        %v3010 = vrot.slane %v3008, 1
        %v3011 = vshll.u32 %v2969, 16
        %v3013 = vrot.slane %v3011, 2
        %v3014 = vor.u32 %v3010, %v3013
        %v3015 = vsel %vm2970, %v3005, %v3014
        %v3017 = vsel %vm764, %v2977, 0
        %v3020 = vsel %vm764, %v2981, 0
        %v3023 = vsel %vm764, %v2985, 0
        %v3026 = vsel %vm764, %v2989, 0
        %v3029 = vsel %vm764, %v2993, 0
        %v3032 = vsel %vm764, %v2997, 0
        %v3035 = vsel %vm764, %v3006, 0
        %v3038 = vsel %vm764, %v3015, 0
        %v3041 = vsel %vm764, %v3014, 0
        %v3044 = vsel %vm1617, %v2968, 0
        %3046 = vmatpush.bf16.msra.mxu0 0
        %3047 = vmatpush.bf16.msra.mxu0 0
        %3048 = vmatpush.bf16.msra.mxu0 0
        %3049 = vmatpush.bf16.msra.mxu0 0
        %3050 = vmatpush.bf16.msra.mxu0 0
        %3051 = vmatpush.bf16.msra.mxu0 0
        %3052 = vmatpush.bf16.msra.mxu0 0
        %3053 = vmatpush.bf16.msra.mxu0 %v3044
        %3054 = vmatmul.bf16.gmra.mxu0 %v3017
        %v3055 = vpop.f32.mrf.mxu0
        %v3056 = vadd.f32 0.0, %v3055
        %v3057 = vpop.f32.mrf.mxu0
        %v3058 = vadd.f32 0.0, %v3057
        %3059 = vmatmul.bf16.gmra.mxu0 %v3020
        %v3060 = vpop.f32.mrf.mxu0
        %v3061 = vadd.f32 0.0, %v3060
        %v3062 = vpop.f32.mrf.mxu0
        %v3063 = vadd.f32 0.0, %v3062
        %3064 = vmatmul.bf16.gmra.mxu0 %v3023
        %v3065 = vpop.f32.mrf.mxu0
        %v3066 = vadd.f32 0.0, %v3065
        %v3067 = vpop.f32.mrf.mxu0
        %v3068 = vadd.f32 0.0, %v3067
        %3069 = vmatmul.bf16.gmra.mxu0 %v3026
        %v3070 = vpop.f32.mrf.mxu0
        %v3071 = vadd.f32 0.0, %v3070
        %v3072 = vpop.f32.mrf.mxu0
        %v3073 = vadd.f32 0.0, %v3072
        %3074 = vmatmul.bf16.gmra.mxu0 %v3029
        %v3075 = vpop.f32.mrf.mxu0
        %v3076 = vadd.f32 0.0, %v3075
        %v3077 = vpop.f32.mrf.mxu0
        %v3078 = vadd.f32 0.0, %v3077
        %3079 = vmatmul.bf16.gmra.mxu0 %v3032
        %v3080 = vpop.f32.mrf.mxu0
        %v3081 = vadd.f32 0.0, %v3080
        %v3082 = vpop.f32.mrf.mxu0
        %v3083 = vadd.f32 0.0, %v3082
        %3084 = vmatmul.bf16.gmra.mxu0 %v3035
        %v3085 = vpop.f32.mrf.mxu0
        %v3086 = vadd.f32 0.0, %v3085
        %v3087 = vpop.f32.mrf.mxu0
        %v3088 = vadd.f32 0.0, %v3087
        %3089 = vmatmul.bf16.gmra.mxu0 %v3038
        %v3090 = vpop.f32.mrf.mxu0
        %v3091 = vadd.f32 0.0, %v3090
        %v3092 = vpop.f32.mrf.mxu0
        %v3093 = vadd.f32 0.0, %v3092
        %3094 = vmatmul.bf16.gmra.mxu0 %v3041
        %v3095 = vpop.f32.mrf.mxu0
        %v3096 = vadd.f32 0.0, %v3095
        %v3097 = vpop.f32.mrf.mxu0
        %3098 = vdwg.mxu0
        %v3099 = vadd.f32 %v2950, %v3056
        %v3100 = vadd.f32 %v2951, %v3058
        %v3101 = vadd.f32 %v2952, %v3061
        %v3102 = vadd.f32 %v2953, %v3063
        %v3103 = vadd.f32 %v2954, %v3066
        %v3104 = vadd.f32 %v2955, %v3068
        %v3105 = vadd.f32 %v2956, %v3071
        %v3106 = vadd.f32 %v2957, %v3073
        %v3107 = vadd.f32 %v2958, %v3076
        %v3108 = vadd.f32 %v2959, %v3078
        %v3109 = vadd.f32 %v2960, %v3081
        %v3110 = vadd.f32 %v2961, %v3083
        %v3111 = vadd.f32 %v2962, %v3086
        %v3112 = vadd.f32 %v2963, %v3088
        %v3113 = vadd.f32 %v2964, %v3091
        %v3114 = vadd.f32 %v2965, %v3093
        %v3115 = vadd.f32 %v2966, %v3096
        %s3116 = scalar_lea.vmem %s2, 44
        %v3117 = vld [vmem:[%s3116] sm:$0xf]
        %v3118 = vpack.c.bf16 %v1563, %v1561
        %v3119 = vrot.slane %v1934, 1
        %v3120 = vrot.slane %v1930, 2
        %v3121 = vor.u32 %v3119, %v3120
        %v3122 = vrot.slane %v1941, 1
        %v3123 = vrot.slane %v1937, 2
        %v3124 = vor.u32 %v3122, %v3123
        %v3125 = vsel %vm2970, %v3121, %v3124
        %v3126 = vrot.slane %v1948, 1
        %v3127 = vrot.slane %v1944, 2
        %v3128 = vor.u32 %v3126, %v3127
        %v3129 = vsel %vm2970, %v3124, %v3128
        %v3130 = vrot.slane %v1955, 1
        %v3131 = vrot.slane %v1951, 2
        %v3132 = vor.u32 %v3130, %v3131
        %v3133 = vsel %vm2970, %v3128, %v3132
        %v3134 = vrot.slane %v1962, 1
        %v3135 = vrot.slane %v1958, 2
        %v3136 = vor.u32 %v3134, %v3135
        %v3137 = vsel %vm2970, %v3132, %v3136
        %v3138 = vrot.slane %v1969, 1
        %v3139 = vrot.slane %v1965, 2
        %v3140 = vor.u32 %v3138, %v3139
        %v3141 = vsel %vm2970, %v3136, %v3140
        %v3142 = vrot.slane %v1976, 1
        %v3143 = vrot.slane %v1972, 2
        %v3144 = vor.u32 %v3142, %v3143
        %v3145 = vsel %vm2970, %v3140, %v3144
        %v3147 = vshrl.u32 %v2839, 16
        %v3149 = vrot.slane %v3147, 1
        %v3150 = vshll.u32 %v2839, 16
        %v3152 = vrot.slane %v3150, 2
        %v3153 = vor.u32 %v3149, %v3152
        %v3154 = vsel %vm2970, %v3144, %v3153
        %v3156 = vshrl.u32 %v3118, 16
        %v3158 = vrot.slane %v3156, 1
        %v3159 = vshll.u32 %v3118, 16
        %v3161 = vrot.slane %v3159, 2
        %v3162 = vor.u32 %v3158, %v3161
        %v3163 = vsel %vm2970, %v3153, %v3162
        %v3165 = vsel %vm764, %v3125, 0
        %v3168 = vsel %vm764, %v3129, 0
        %v3171 = vsel %vm764, %v3133, 0
        %v3174 = vsel %vm764, %v3137, 0
        %v3177 = vsel %vm764, %v3141, 0
        %v3180 = vsel %vm764, %v3145, 0
        %v3183 = vsel %vm764, %v3154, 0
        %v3186 = vsel %vm764, %v3163, 0
        %v3189 = vsel %vm764, %v3162, 0
        %v3192 = vsel %vm1617, %v3117, 0
        %3194 = vmatpush.bf16.msra.mxu0 0
        %3195 = vmatpush.bf16.msra.mxu0 0
        %3196 = vmatpush.bf16.msra.mxu0 0
        %3197 = vmatpush.bf16.msra.mxu0 0
        %3198 = vmatpush.bf16.msra.mxu0 0
        %3199 = vmatpush.bf16.msra.mxu0 0
        %3200 = vmatpush.bf16.msra.mxu0 0
        %3201 = vmatpush.bf16.msra.mxu0 %v3192
        %3202 = vmatmul.bf16.gmra.mxu0 %v3165
        %v3203 = vpop.f32.mrf.mxu0
        %v3204 = vadd.f32 0.0, %v3203
        %v3205 = vpop.f32.mrf.mxu0
        %v3206 = vadd.f32 0.0, %v3205
        %3207 = vmatmul.bf16.gmra.mxu0 %v3168
        %v3208 = vpop.f32.mrf.mxu0
        %v3209 = vadd.f32 0.0, %v3208
        %v3210 = vpop.f32.mrf.mxu0
        %v3211 = vadd.f32 0.0, %v3210
        %3212 = vmatmul.bf16.gmra.mxu0 %v3171
        %v3213 = vpop.f32.mrf.mxu0
        %v3214 = vadd.f32 0.0, %v3213
        %v3215 = vpop.f32.mrf.mxu0
        %v3216 = vadd.f32 0.0, %v3215
        %3217 = vmatmul.bf16.gmra.mxu0 %v3174
        %v3218 = vpop.f32.mrf.mxu0
        %v3219 = vadd.f32 0.0, %v3218
        %v3220 = vpop.f32.mrf.mxu0
        %v3221 = vadd.f32 0.0, %v3220
        %3222 = vmatmul.bf16.gmra.mxu0 %v3177
        %v3223 = vpop.f32.mrf.mxu0
        %v3224 = vadd.f32 0.0, %v3223
        %v3225 = vpop.f32.mrf.mxu0
        %v3226 = vadd.f32 0.0, %v3225
        %3227 = vmatmul.bf16.gmra.mxu0 %v3180
        %v3228 = vpop.f32.mrf.mxu0
        %v3229 = vadd.f32 0.0, %v3228
        %v3230 = vpop.f32.mrf.mxu0
        %v3231 = vadd.f32 0.0, %v3230
        %3232 = vmatmul.bf16.gmra.mxu0 %v3183
        %v3233 = vpop.f32.mrf.mxu0
        %v3234 = vadd.f32 0.0, %v3233
        %v3235 = vpop.f32.mrf.mxu0
        %v3236 = vadd.f32 0.0, %v3235
        %3237 = vmatmul.bf16.gmra.mxu0 %v3186
        %v3238 = vpop.f32.mrf.mxu0
        %v3239 = vadd.f32 0.0, %v3238
        %v3240 = vpop.f32.mrf.mxu0
        %v3241 = vadd.f32 0.0, %v3240
        %3242 = vmatmul.bf16.gmra.mxu0 %v3189
        %v3243 = vpop.f32.mrf.mxu0
        %v3244 = vadd.f32 0.0, %v3243
        %v3245 = vpop.f32.mrf.mxu0
        %3246 = vdwg.mxu0
        %v3247 = vadd.f32 %v3099, %v3204
        %v3248 = vadd.f32 %v3100, %v3206
        %v3249 = vadd.f32 %v3101, %v3209
        %v3250 = vadd.f32 %v3102, %v3211
        %v3251 = vadd.f32 %v3103, %v3214
        %v3252 = vadd.f32 %v3104, %v3216
        %v3253 = vadd.f32 %v3105, %v3219
        %v3254 = vadd.f32 %v3106, %v3221
        %v3255 = vadd.f32 %v3107, %v3224
        %v3256 = vadd.f32 %v3108, %v3226
        %v3257 = vadd.f32 %v3109, %v3229
        %v3258 = vadd.f32 %v3110, %v3231
        %v3259 = vadd.f32 %v3111, %v3234
        %v3260 = vadd.f32 %v3112, %v3236
        %v3261 = vadd.f32 %v3113, %v3239
        %v3262 = vadd.f32 %v3114, %v3241
        %v3263 = vadd.f32 %v3115, %v3244
        %s3264 = scalar_lea.vmem %s2, 48
        %v3265 = vld [vmem:[%s3264] sm:$0xf]
        %v3266 = vpack.c.bf16 %v1306, %v1303
        %v3267 = vpack.c.bf16 %v1311, %v1308
        %v3268 = vrot.slane %v2109, 1
        %v3269 = vrot.slane %v2105, 2
        %v3270 = vor.u32 %v3268, %v3269
        %v3271 = vrot.slane %v2117, 1
        %v3272 = vrot.slane %v2113, 2
        %v3273 = vor.u32 %v3271, %v3272
        %v3274 = vsel %vm2970, %v3270, %v3273
        %v3275 = vrot.slane %v2125, 1
        %v3276 = vrot.slane %v2121, 2
        %v3277 = vor.u32 %v3275, %v3276
        %v3278 = vsel %vm2970, %v3273, %v3277
        %v3279 = vrot.slane %v2133, 1
        %v3280 = vrot.slane %v2129, 2
        %v3281 = vor.u32 %v3279, %v3280
        %v3282 = vsel %vm2970, %v3277, %v3281
        %v3283 = vrot.slane %v2141, 1
        %v3284 = vrot.slane %v2137, 2
        %v3285 = vor.u32 %v3283, %v3284
        %v3286 = vsel %vm2970, %v3281, %v3285
        %v3287 = vrot.slane %v2149, 1
        %v3288 = vrot.slane %v2145, 2
        %v3289 = vor.u32 %v3287, %v3288
        %v3290 = vsel %vm2970, %v3285, %v3289
        %v3291 = vrot.slane %v2157, 1
        %v3292 = vrot.slane %v2153, 2
        %v3293 = vor.u32 %v3291, %v3292
        %v3294 = vsel %vm2970, %v3289, %v3293
        %v3296 = vshrl.u32 %v3266, 16
        %v3298 = vrot.slane %v3296, 1
        %v3299 = vshll.u32 %v3266, 16
        %v3301 = vrot.slane %v3299, 2
        %v3302 = vor.u32 %v3298, %v3301
        %v3303 = vsel %vm2970, %v3293, %v3302
        %v3305 = vshrl.u32 %v3267, 16
        %v3307 = vrot.slane %v3305, 1
        %v3308 = vshll.u32 %v3267, 16
        %v3310 = vrot.slane %v3308, 2
        %v3311 = vor.u32 %v3307, %v3310
        %v3312 = vsel %vm2970, %v3302, %v3311
        %v3314 = vsel %vm764, %v3274, 0
        %v3317 = vsel %vm764, %v3278, 0
        %v3320 = vsel %vm764, %v3282, 0
        %v3323 = vsel %vm764, %v3286, 0
        %v3326 = vsel %vm764, %v3290, 0
        %v3329 = vsel %vm764, %v3294, 0
        %v3332 = vsel %vm764, %v3303, 0
        %v3335 = vsel %vm764, %v3312, 0
        %v3338 = vsel %vm764, %v3311, 0
        %v3341 = vsel %vm1617, %v3265, 0
        %3343 = vmatpush.bf16.msra.mxu0 0
        %3344 = vmatpush.bf16.msra.mxu0 0
        %3345 = vmatpush.bf16.msra.mxu0 0
        %3346 = vmatpush.bf16.msra.mxu0 0
        %3347 = vmatpush.bf16.msra.mxu0 0
        %3348 = vmatpush.bf16.msra.mxu0 0
        %3349 = vmatpush.bf16.msra.mxu0 0
        %3350 = vmatpush.bf16.msra.mxu0 %v3341
        %3351 = vmatmul.bf16.gmra.mxu0 %v3314
        %v3352 = vpop.f32.mrf.mxu0
        %v3353 = vadd.f32 0.0, %v3352
        %v3354 = vpop.f32.mrf.mxu0
        %v3355 = vadd.f32 0.0, %v3354
        %3356 = vmatmul.bf16.gmra.mxu0 %v3317
        %v3357 = vpop.f32.mrf.mxu0
        %v3358 = vadd.f32 0.0, %v3357
        %v3359 = vpop.f32.mrf.mxu0
        %v3360 = vadd.f32 0.0, %v3359
        %3361 = vmatmul.bf16.gmra.mxu0 %v3320
        %v3362 = vpop.f32.mrf.mxu0
        %v3363 = vadd.f32 0.0, %v3362
        %v3364 = vpop.f32.mrf.mxu0
        %v3365 = vadd.f32 0.0, %v3364
        %3366 = vmatmul.bf16.gmra.mxu0 %v3323
        %v3367 = vpop.f32.mrf.mxu0
        %v3368 = vadd.f32 0.0, %v3367
        %v3369 = vpop.f32.mrf.mxu0
        %v3370 = vadd.f32 0.0, %v3369
        %3371 = vmatmul.bf16.gmra.mxu0 %v3326
        %v3372 = vpop.f32.mrf.mxu0
        %v3373 = vadd.f32 0.0, %v3372
        %v3374 = vpop.f32.mrf.mxu0
        %v3375 = vadd.f32 0.0, %v3374
        %3376 = vmatmul.bf16.gmra.mxu0 %v3329
        %v3377 = vpop.f32.mrf.mxu0
        %v3378 = vadd.f32 0.0, %v3377
        %v3379 = vpop.f32.mrf.mxu0
        %v3380 = vadd.f32 0.0, %v3379
        %3381 = vmatmul.bf16.gmra.mxu0 %v3332
        %v3382 = vpop.f32.mrf.mxu0
        %v3383 = vadd.f32 0.0, %v3382
        %v3384 = vpop.f32.mrf.mxu0
        %v3385 = vadd.f32 0.0, %v3384
        %3386 = vmatmul.bf16.gmra.mxu0 %v3335
        %v3387 = vpop.f32.mrf.mxu0
        %v3388 = vadd.f32 0.0, %v3387
        %v3389 = vpop.f32.mrf.mxu0
        %v3390 = vadd.f32 0.0, %v3389
        %3391 = vmatmul.bf16.gmra.mxu0 %v3338
        %v3392 = vpop.f32.mrf.mxu0
        %v3393 = vadd.f32 0.0, %v3392
        %v3394 = vpop.f32.mrf.mxu0
        %3395 = vdwg.mxu0
        %v3396 = vadd.f32 %v3247, %v3353
        %v3397 = vadd.f32 %v3248, %v3355
        %v3398 = vadd.f32 %v3249, %v3358
        %v3399 = vadd.f32 %v3250, %v3360
        %v3400 = vadd.f32 %v3251, %v3363
        %v3401 = vadd.f32 %v3252, %v3365
        %v3402 = vadd.f32 %v3253, %v3368
        %v3403 = vadd.f32 %v3254, %v3370
        %v3404 = vadd.f32 %v3255, %v3373
        %v3405 = vadd.f32 %v3256, %v3375
        %v3406 = vadd.f32 %v3257, %v3378
        %v3407 = vadd.f32 %v3258, %v3380
        %v3408 = vadd.f32 %v3259, %v3383
        %v3409 = vadd.f32 %v3260, %v3385
        %v3410 = vadd.f32 %v3261, %v3388
        %v3411 = vadd.f32 %v3262, %v3390
        %v3412 = vadd.f32 %v3263, %v3393
        %s3413 = scalar_lea.vmem %s2, 52
        %v3414 = vld [vmem:[%s3413] sm:$0xf]
        %v3415 = vpack.c.bf16 %v1561, %v1558
        %v3416 = vpack.c.bf16 %v1566, %v1563
        %v3417 = vrot.slane %v2291, 1
        %v3418 = vrot.slane %v2287, 2
        %v3419 = vor.u32 %v3417, %v3418
        %v3420 = vrot.slane %v2299, 1
        %v3421 = vrot.slane %v2295, 2
        %v3422 = vor.u32 %v3420, %v3421
        %v3423 = vsel %vm2970, %v3419, %v3422
        %v3424 = vrot.slane %v2307, 1
        %v3425 = vrot.slane %v2303, 2
        %v3426 = vor.u32 %v3424, %v3425
        %v3427 = vsel %vm2970, %v3422, %v3426
        %v3428 = vrot.slane %v2315, 1
        %v3429 = vrot.slane %v2311, 2
        %v3430 = vor.u32 %v3428, %v3429
        %v3431 = vsel %vm2970, %v3426, %v3430
        %v3432 = vrot.slane %v2323, 1
        %v3433 = vrot.slane %v2319, 2
        %v3434 = vor.u32 %v3432, %v3433
        %v3435 = vsel %vm2970, %v3430, %v3434
        %v3436 = vrot.slane %v2331, 1
        %v3437 = vrot.slane %v2327, 2
        %v3438 = vor.u32 %v3436, %v3437
        %v3439 = vsel %vm2970, %v3434, %v3438
        %v3440 = vrot.slane %v2339, 1
        %v3441 = vrot.slane %v2335, 2
        %v3442 = vor.u32 %v3440, %v3441
        %v3443 = vsel %vm2970, %v3438, %v3442
        %v3445 = vshrl.u32 %v3415, 16
        %v3447 = vrot.slane %v3445, 1
        %v3448 = vshll.u32 %v3415, 16
        %v3450 = vrot.slane %v3448, 2
        %v3451 = vor.u32 %v3447, %v3450
        %v3452 = vsel %vm2970, %v3442, %v3451
        %v3454 = vshrl.u32 %v3416, 16
        %v3456 = vrot.slane %v3454, 1
        %v3457 = vshll.u32 %v3416, 16
        %v3459 = vrot.slane %v3457, 2
        %v3460 = vor.u32 %v3456, %v3459
        %v3461 = vsel %vm2970, %v3451, %v3460
        %v3463 = vsel %vm764, %v3423, 0
        %v3466 = vsel %vm764, %v3427, 0
        %v3469 = vsel %vm764, %v3431, 0
        %v3472 = vsel %vm764, %v3435, 0
        %v3475 = vsel %vm764, %v3439, 0
        %v3478 = vsel %vm764, %v3443, 0
        %v3481 = vsel %vm764, %v3452, 0
        %v3484 = vsel %vm764, %v3461, 0
        %v3487 = vsel %vm764, %v3460, 0
        %v3490 = vsel %vm1617, %v3414, 0
        %3492 = vmatpush.bf16.msra.mxu0 0
        %3493 = vmatpush.bf16.msra.mxu0 0
        %3494 = vmatpush.bf16.msra.mxu0 0
        %3495 = vmatpush.bf16.msra.mxu0 0
        %3496 = vmatpush.bf16.msra.mxu0 0
        %3497 = vmatpush.bf16.msra.mxu0 0
        %3498 = vmatpush.bf16.msra.mxu0 0
        %3499 = vmatpush.bf16.msra.mxu0 %v3490
        %3500 = vmatmul.bf16.gmra.mxu0 %v3463
        %v3501 = vpop.f32.mrf.mxu0
        %v3502 = vadd.f32 0.0, %v3501
        %v3503 = vpop.f32.mrf.mxu0
        %v3504 = vadd.f32 0.0, %v3503
        %3505 = vmatmul.bf16.gmra.mxu0 %v3466
        %v3506 = vpop.f32.mrf.mxu0
        %v3507 = vadd.f32 0.0, %v3506
        %v3508 = vpop.f32.mrf.mxu0
        %v3509 = vadd.f32 0.0, %v3508
        %3510 = vmatmul.bf16.gmra.mxu0 %v3469
        %v3511 = vpop.f32.mrf.mxu0
        %v3512 = vadd.f32 0.0, %v3511
        %v3513 = vpop.f32.mrf.mxu0
        %v3514 = vadd.f32 0.0, %v3513
        %3515 = vmatmul.bf16.gmra.mxu0 %v3472
        %v3516 = vpop.f32.mrf.mxu0
        %v3517 = vadd.f32 0.0, %v3516
        %v3518 = vpop.f32.mrf.mxu0
        %v3519 = vadd.f32 0.0, %v3518
        %3520 = vmatmul.bf16.gmra.mxu0 %v3475
        %v3521 = vpop.f32.mrf.mxu0
        %v3522 = vadd.f32 0.0, %v3521
        %v3523 = vpop.f32.mrf.mxu0
        %v3524 = vadd.f32 0.0, %v3523
        %3525 = vmatmul.bf16.gmra.mxu0 %v3478
        %v3526 = vpop.f32.mrf.mxu0
        %v3527 = vadd.f32 0.0, %v3526
        %v3528 = vpop.f32.mrf.mxu0
        %v3529 = vadd.f32 0.0, %v3528
        %3530 = vmatmul.bf16.gmra.mxu0 %v3481
        %v3531 = vpop.f32.mrf.mxu0
        %v3532 = vadd.f32 0.0, %v3531
        %v3533 = vpop.f32.mrf.mxu0
        %v3534 = vadd.f32 0.0, %v3533
        %3535 = vmatmul.bf16.gmra.mxu0 %v3484
        %v3536 = vpop.f32.mrf.mxu0
        %v3537 = vadd.f32 0.0, %v3536
        %v3538 = vpop.f32.mrf.mxu0
        %v3539 = vadd.f32 0.0, %v3538
        %3540 = vmatmul.bf16.gmra.mxu0 %v3487
        %v3541 = vpop.f32.mrf.mxu0
        %v3542 = vadd.f32 0.0, %v3541
        %v3543 = vpop.f32.mrf.mxu0
        %3544 = vdwg.mxu0
        %v3545 = vadd.f32 %v3396, %v3502
        %v3546 = vadd.f32 %v3397, %v3504
        %v3547 = vadd.f32 %v3398, %v3507
        %v3548 = vadd.f32 %v3399, %v3509
        %v3549 = vadd.f32 %v3400, %v3512
        %v3550 = vadd.f32 %v3401, %v3514
        %v3551 = vadd.f32 %v3402, %v3517
        %v3552 = vadd.f32 %v3403, %v3519
        %v3553 = vadd.f32 %v3404, %v3522
        %v3554 = vadd.f32 %v3405, %v3524
        %v3555 = vadd.f32 %v3406, %v3527
        %v3556 = vadd.f32 %v3407, %v3529
        %v3557 = vadd.f32 %v3408, %v3532
        %v3558 = vadd.f32 %v3409, %v3534
        %v3559 = vadd.f32 %v3410, %v3537
        %v3560 = vadd.f32 %v3411, %v3539
        %v3561 = vadd.f32 %v3412, %v3542
        %s3562 = scalar_lea.vmem %s2, 56
        %v3563 = vld [vmem:[%s3562] sm:$0xf]
        %vm3566 = vcmask 1045504
        %v3567 = vrot.slane %v2089, 2
        %v3568 = vrot.slane %v2090, 2
        %v3569 = vsel %vm3566, %v3567, %v3568
        %v3570 = vrot.slane %v2091, 2
        %v3571 = vsel %vm3566, %v3568, %v3570
        %v3572 = vrot.slane %v2092, 2
        %v3573 = vsel %vm3566, %v3570, %v3572
        %v3574 = vrot.slane %v2093, 2
        %v3575 = vsel %vm3566, %v3572, %v3574
        %v3576 = vrot.slane %v2094, 2
        %v3577 = vsel %vm3566, %v3574, %v3576
        %v3578 = vrot.slane %v2095, 2
        %v3579 = vsel %vm3566, %v3576, %v3578
        %v3580 = vrot.slane %v3266, 2
        %v3581 = vsel %vm3566, %v3578, %v3580
        %v3582 = vrot.slane %v3267, 2
        %v3583 = vsel %vm3566, %v3580, %v3582
        %v3585 = vsel %vm764, %v3569, 0
        %v3588 = vsel %vm764, %v3571, 0
        %v3591 = vsel %vm764, %v3573, 0
        %v3594 = vsel %vm764, %v3575, 0
        %v3597 = vsel %vm764, %v3577, 0
        %v3600 = vsel %vm764, %v3579, 0
        %v3603 = vsel %vm764, %v3581, 0
        %v3606 = vsel %vm764, %v3583, 0
        %v3609 = vsel %vm764, %v3582, 0
        %v3612 = vsel %vm1617, %v3563, 0
        %3614 = vmatpush.bf16.msra.mxu0 0
        %3615 = vmatpush.bf16.msra.mxu0 0
        %3616 = vmatpush.bf16.msra.mxu0 0
        %3617 = vmatpush.bf16.msra.mxu0 0
        %3618 = vmatpush.bf16.msra.mxu0 0
        %3619 = vmatpush.bf16.msra.mxu0 0
        %3620 = vmatpush.bf16.msra.mxu0 0
        %3621 = vmatpush.bf16.msra.mxu0 %v3612
        %3622 = vmatmul.bf16.gmra.mxu0 %v3585
        %v3623 = vpop.f32.mrf.mxu0
        %v3624 = vadd.f32 0.0, %v3623
        %v3625 = vpop.f32.mrf.mxu0
        %v3626 = vadd.f32 0.0, %v3625
        %3627 = vmatmul.bf16.gmra.mxu0 %v3588
        %v3628 = vpop.f32.mrf.mxu0
        %v3629 = vadd.f32 0.0, %v3628
        %v3630 = vpop.f32.mrf.mxu0
        %v3631 = vadd.f32 0.0, %v3630
        %3632 = vmatmul.bf16.gmra.mxu0 %v3591
        %v3633 = vpop.f32.mrf.mxu0
        %v3634 = vadd.f32 0.0, %v3633
        %v3635 = vpop.f32.mrf.mxu0
        %v3636 = vadd.f32 0.0, %v3635
        %3637 = vmatmul.bf16.gmra.mxu0 %v3594
        %v3638 = vpop.f32.mrf.mxu0
        %v3639 = vadd.f32 0.0, %v3638
        %v3640 = vpop.f32.mrf.mxu0
        %v3641 = vadd.f32 0.0, %v3640
        %3642 = vmatmul.bf16.gmra.mxu0 %v3597
        %v3643 = vpop.f32.mrf.mxu0
        %v3644 = vadd.f32 0.0, %v3643
        %v3645 = vpop.f32.mrf.mxu0
        %v3646 = vadd.f32 0.0, %v3645
        %3647 = vmatmul.bf16.gmra.mxu0 %v3600
        %v3648 = vpop.f32.mrf.mxu0
        %v3649 = vadd.f32 0.0, %v3648
        %v3650 = vpop.f32.mrf.mxu0
        %v3651 = vadd.f32 0.0, %v3650
        %3652 = vmatmul.bf16.gmra.mxu0 %v3603
        %v3653 = vpop.f32.mrf.mxu0
        %v3654 = vadd.f32 0.0, %v3653
        %v3655 = vpop.f32.mrf.mxu0
        %v3656 = vadd.f32 0.0, %v3655
        %3657 = vmatmul.bf16.gmra.mxu0 %v3606
        %v3658 = vpop.f32.mrf.mxu0
        %v3659 = vadd.f32 0.0, %v3658
        %v3660 = vpop.f32.mrf.mxu0
        %v3661 = vadd.f32 0.0, %v3660
        %3662 = vmatmul.bf16.gmra.mxu0 %v3609
        %v3663 = vpop.f32.mrf.mxu0
        %v3664 = vadd.f32 0.0, %v3663
        %v3665 = vpop.f32.mrf.mxu0
        %3666 = vdwg.mxu0
        %v3667 = vadd.f32 %v3545, %v3624
        %v3668 = vadd.f32 %v3546, %v3626
        %v3669 = vadd.f32 %v3547, %v3629
        %v3670 = vadd.f32 %v3548, %v3631
        %v3671 = vadd.f32 %v3549, %v3634
        %v3672 = vadd.f32 %v3550, %v3636
        %v3673 = vadd.f32 %v3551, %v3639
        %v3674 = vadd.f32 %v3552, %v3641
        %v3675 = vadd.f32 %v3553, %v3644
        %v3676 = vadd.f32 %v3554, %v3646
        %v3677 = vadd.f32 %v3555, %v3649
        %v3678 = vadd.f32 %v3556, %v3651
        %v3679 = vadd.f32 %v3557, %v3654
        %v3680 = vadd.f32 %v3558, %v3656
        %v3681 = vadd.f32 %v3559, %v3659
        %v3682 = vadd.f32 %v3560, %v3661
        %v3683 = vadd.f32 %v3561, %v3664
        %s3684 = scalar_lea.vmem %s2, 60
        %v3685 = vld [vmem:[%s3684] sm:$0xf]
        %v3688 = vrot.slane %v2271, 2
        %v3689 = vrot.slane %v2272, 2
        %v3690 = vsel %vm3566, %v3688, %v3689
        %v3691 = vrot.slane %v2273, 2
        %v3692 = vsel %vm3566, %v3689, %v3691
        %v3693 = vrot.slane %v2274, 2
        %v3694 = vsel %vm3566, %v3691, %v3693
        %v3695 = vrot.slane %v2275, 2
        %v3696 = vsel %vm3566, %v3693, %v3695
        %v3697 = vrot.slane %v2276, 2
        %v3698 = vsel %vm3566, %v3695, %v3697
        %v3699 = vrot.slane %v2277, 2
        %v3700 = vsel %vm3566, %v3697, %v3699
        %v3701 = vrot.slane %v3415, 2
        %v3702 = vsel %vm3566, %v3699, %v3701
        %v3703 = vrot.slane %v3416, 2
        %v3704 = vsel %vm3566, %v3701, %v3703
        %v3706 = vsel %vm764, %v3690, 0
        %v3709 = vsel %vm764, %v3692, 0
        %v3712 = vsel %vm764, %v3694, 0
        %v3715 = vsel %vm764, %v3696, 0
        %v3718 = vsel %vm764, %v3698, 0
        %v3721 = vsel %vm764, %v3700, 0
        %v3724 = vsel %vm764, %v3702, 0
        %v3727 = vsel %vm764, %v3704, 0
        %v3730 = vsel %vm764, %v3703, 0
        %v3733 = vsel %vm1617, %v3685, 0
        %3735 = vmatpush.bf16.msra.mxu0 0
        %3736 = vmatpush.bf16.msra.mxu0 0
        %3737 = vmatpush.bf16.msra.mxu0 0
        %3738 = vmatpush.bf16.msra.mxu0 0
        %3739 = vmatpush.bf16.msra.mxu0 0
        %3740 = vmatpush.bf16.msra.mxu0 0
        %3741 = vmatpush.bf16.msra.mxu0 0
        %3742 = vmatpush.bf16.msra.mxu0 %v3733
        %3743 = vmatmul.bf16.gmra.mxu0 %v3706
        %v3744 = vpop.f32.mrf.mxu0
        %v3745 = vadd.f32 0.0, %v3744
        %v3746 = vpop.f32.mrf.mxu0
        %v3747 = vadd.f32 0.0, %v3746
        %3748 = vmatmul.bf16.gmra.mxu0 %v3709
        %v3749 = vpop.f32.mrf.mxu0
        %v3750 = vadd.f32 0.0, %v3749
        %v3751 = vpop.f32.mrf.mxu0
        %v3752 = vadd.f32 0.0, %v3751
        %3753 = vmatmul.bf16.gmra.mxu0 %v3712
        %v3754 = vpop.f32.mrf.mxu0
        %v3755 = vadd.f32 0.0, %v3754
        %v3756 = vpop.f32.mrf.mxu0
        %v3757 = vadd.f32 0.0, %v3756
        %3758 = vmatmul.bf16.gmra.mxu0 %v3715
        %v3759 = vpop.f32.mrf.mxu0
        %v3760 = vadd.f32 0.0, %v3759
        %v3761 = vpop.f32.mrf.mxu0
        %v3762 = vadd.f32 0.0, %v3761
        %3763 = vmatmul.bf16.gmra.mxu0 %v3718
        %v3764 = vpop.f32.mrf.mxu0
        %v3765 = vadd.f32 0.0, %v3764
        %v3766 = vpop.f32.mrf.mxu0
        %v3767 = vadd.f32 0.0, %v3766
        %3768 = vmatmul.bf16.gmra.mxu0 %v3721
        %v3769 = vpop.f32.mrf.mxu0
        %v3770 = vadd.f32 0.0, %v3769
        %v3771 = vpop.f32.mrf.mxu0
        %v3772 = vadd.f32 0.0, %v3771
        %3773 = vmatmul.bf16.gmra.mxu0 %v3724
        %v3774 = vpop.f32.mrf.mxu0
        %v3775 = vadd.f32 0.0, %v3774
        %v3776 = vpop.f32.mrf.mxu0
        %v3777 = vadd.f32 0.0, %v3776
        %3778 = vmatmul.bf16.gmra.mxu0 %v3727
        %v3779 = vpop.f32.mrf.mxu0
        %v3780 = vadd.f32 0.0, %v3779
        %v3781 = vpop.f32.mrf.mxu0
        %v3782 = vadd.f32 0.0, %v3781
        %3783 = vmatmul.bf16.gmra.mxu0 %v3730
        %v3784 = vpop.f32.mrf.mxu0
        %v3785 = vadd.f32 0.0, %v3784
        %v3786 = vpop.f32.mrf.mxu0
        %3787 = vdwg.mxu0
        %v3788 = vadd.f32 %v3667, %v3745
        %v3789 = vadd.f32 %v3668, %v3747
        %v3790 = vadd.f32 %v3669, %v3750
        %v3791 = vadd.f32 %v3670, %v3752
        %v3792 = vadd.f32 %v3671, %v3755
        %v3793 = vadd.f32 %v3672, %v3757
        %v3794 = vadd.f32 %v3673, %v3760
        %v3795 = vadd.f32 %v3674, %v3762
        %v3796 = vadd.f32 %v3675, %v3765
        %v3797 = vadd.f32 %v3676, %v3767
        %v3798 = vadd.f32 %v3677, %v3770
        %v3799 = vadd.f32 %v3678, %v3772
        %v3800 = vadd.f32 %v3679, %v3775
        %v3801 = vadd.f32 %v3680, %v3777
        %v3802 = vadd.f32 %v3681, %v3780
        %v3803 = vadd.f32 %v3682, %v3782
        %v3804 = vadd.f32 %v3683, %v3785
        %v3805 = vlaneseq
        %v3806 = vshrl.u32 %v3805, 7
        %v3807 = vadd.s32 %v3806, 8
        %v3808 = vadd.s32 %v3806, 16
        %v3809 = vadd.s32 %v3806, 24
        %v3810 = vadd.s32 %v3806, 32
        %v3811 = vadd.s32 %v3806, 40
        %v3812 = vadd.s32 %v3806, 48
        %v3813 = vadd.s32 %v3806, 56
        %v3814 = vadd.s32 %v3806, 64
        %v3815 = vadd.s32 %v3806, 72
        %v3816 = vadd.s32 %v3806, 80
        %v3817 = vadd.s32 %v3806, 88
        %v3818 = vadd.s32 %v3806, 96
        %v3819 = vadd.s32 %v3806, 104
        %v3820 = vadd.s32 %v3806, 112
        %v3821 = vadd.s32 %v3806, 120
        %v3822 = vadd.s32 %v3806, 128
        %vm3823 = vcmp.lt.s32.totalorder %v3806, 0
        %v3824 = vsub.s32 0, %v3806
        %v3825 = vsel %vm3823, %v3824, %v3806
        %v3826 = vand.u32 %v3825, 65535
        %v3827 = vshrl.u32 %v3825, 16
        %v3829 = vmul.u32 %v3826, 14564
        %v3830 = vmul.u32 %v3826, 58254
        %v3831 = vmul.u32 %v3827, 14564
        %v3832 = vmul.u32 %v3827, 58254
        %v3833 = vshll.u32 %v3830, 16
        %v3834 = vshrl.u32 %v3830, 16
        %v3835 = vshll.u32 %v3831, 16
        %v3836 = vshrl.u32 %v3831, 16
        %vm3837 = vc.u32 %v3829, %v3833
        %v3838 = vsel %vm3837, 1, 0
        %v3839 = vadd.s32 %v3829, %v3833
        %v3840 = vadd.s32 %v3832, %v3838
        %vm3841 = vc.u32 %v3839, %v3835
        %v3842 = vsel %vm3841, 1, 0
        %v3843 = vadd.s32 %v3839, %v3835
        %v3844 = vadd.s32 %v3840, %v3842
        %v3845 = vadd.s32 %v3844, %v3834
        %v3846 = vadd.s32 %v3845, %v3836
        %v3847 = vshrl.u32 %v3846, 4
        %v3848 = vmul.u32 %v3847, 18
        %v3849 = vsub.s32 %v3825, %v3848
        %v3850 = vsub.s32 0, %v3849
        %v3851 = vsel %vm3823, %v3850, %v3849
        %vm3852 = vcmp.lt.s32.totalorder %v3807, 0
        %v3853 = vsub.s32 0, %v3807
        %v3854 = vsel %vm3852, %v3853, %v3807
        %v3855 = vand.u32 %v3854, 65535
        %v3856 = vshrl.u32 %v3854, 16
        %v3858 = vmul.u32 %v3855, 14564
        %v3859 = vmul.u32 %v3855, 58254
        %v3860 = vmul.u32 %v3856, 14564
        %v3861 = vmul.u32 %v3856, 58254
        %v3862 = vshll.u32 %v3859, 16
        %v3863 = vshrl.u32 %v3859, 16
        %v3864 = vshll.u32 %v3860, 16
        %v3865 = vshrl.u32 %v3860, 16
        %vm3866 = vc.u32 %v3858, %v3862
        %v3867 = vsel %vm3866, 1, 0
        %v3868 = vadd.s32 %v3858, %v3862
        %v3869 = vadd.s32 %v3861, %v3867
        %vm3870 = vc.u32 %v3868, %v3864
        %v3871 = vsel %vm3870, 1, 0
        %v3872 = vadd.s32 %v3868, %v3864
        %v3873 = vadd.s32 %v3869, %v3871
        %v3874 = vadd.s32 %v3873, %v3863
        %v3875 = vadd.s32 %v3874, %v3865
        %v3876 = vshrl.u32 %v3875, 4
        %v3877 = vmul.u32 %v3876, 18
        %v3878 = vsub.s32 %v3854, %v3877
        %v3879 = vsub.s32 0, %v3878
        %v3880 = vsel %vm3852, %v3879, %v3878
        %vm3881 = vcmp.lt.s32.totalorder %v3808, 0
        %v3882 = vsub.s32 0, %v3808
        %v3883 = vsel %vm3881, %v3882, %v3808
        %v3884 = vand.u32 %v3883, 65535
        %v3885 = vshrl.u32 %v3883, 16
        %v3887 = vmul.u32 %v3884, 14564
        %v3888 = vmul.u32 %v3884, 58254
        %v3889 = vmul.u32 %v3885, 14564
        %v3890 = vmul.u32 %v3885, 58254
        %v3891 = vshll.u32 %v3888, 16
        %v3892 = vshrl.u32 %v3888, 16
        %v3893 = vshll.u32 %v3889, 16
        %v3894 = vshrl.u32 %v3889, 16
        %vm3895 = vc.u32 %v3887, %v3891
        %v3896 = vsel %vm3895, 1, 0
        %v3897 = vadd.s32 %v3887, %v3891
        %v3898 = vadd.s32 %v3890, %v3896
        %vm3899 = vc.u32 %v3897, %v3893
        %v3900 = vsel %vm3899, 1, 0
        %v3901 = vadd.s32 %v3897, %v3893
        %v3902 = vadd.s32 %v3898, %v3900
        %v3903 = vadd.s32 %v3902, %v3892
        %v3904 = vadd.s32 %v3903, %v3894
        %v3905 = vshrl.u32 %v3904, 4
        %v3906 = vmul.u32 %v3905, 18
        %v3907 = vsub.s32 %v3883, %v3906
        %v3908 = vsub.s32 0, %v3907
        %v3909 = vsel %vm3881, %v3908, %v3907
        %vm3910 = vcmp.lt.s32.totalorder %v3809, 0
        %v3911 = vsub.s32 0, %v3809
        %v3912 = vsel %vm3910, %v3911, %v3809
        %v3913 = vand.u32 %v3912, 65535
        %v3914 = vshrl.u32 %v3912, 16
        %v3916 = vmul.u32 %v3913, 14564
        %v3917 = vmul.u32 %v3913, 58254
        %v3918 = vmul.u32 %v3914, 14564
        %v3919 = vmul.u32 %v3914, 58254
        %v3920 = vshll.u32 %v3917, 16
        %v3921 = vshrl.u32 %v3917, 16
        %v3922 = vshll.u32 %v3918, 16
        %v3923 = vshrl.u32 %v3918, 16
        %vm3924 = vc.u32 %v3916, %v3920
        %v3925 = vsel %vm3924, 1, 0
        %v3926 = vadd.s32 %v3916, %v3920
        %v3927 = vadd.s32 %v3919, %v3925
        %vm3928 = vc.u32 %v3926, %v3922
        %v3929 = vsel %vm3928, 1, 0
        %v3930 = vadd.s32 %v3926, %v3922
        %v3931 = vadd.s32 %v3927, %v3929
        %v3932 = vadd.s32 %v3931, %v3921
        %v3933 = vadd.s32 %v3932, %v3923
        %v3934 = vshrl.u32 %v3933, 4
        %v3935 = vmul.u32 %v3934, 18
        %v3936 = vsub.s32 %v3912, %v3935
        %v3937 = vsub.s32 0, %v3936
        %v3938 = vsel %vm3910, %v3937, %v3936
        %vm3939 = vcmp.lt.s32.totalorder %v3810, 0
        %v3940 = vsub.s32 0, %v3810
        %v3941 = vsel %vm3939, %v3940, %v3810
        %v3942 = vand.u32 %v3941, 65535
        %v3943 = vshrl.u32 %v3941, 16
        %v3945 = vmul.u32 %v3942, 14564
        %v3946 = vmul.u32 %v3942, 58254
        %v3947 = vmul.u32 %v3943, 14564
        %v3948 = vmul.u32 %v3943, 58254
        %v3949 = vshll.u32 %v3946, 16
        %v3950 = vshrl.u32 %v3946, 16
        %v3951 = vshll.u32 %v3947, 16
        %v3952 = vshrl.u32 %v3947, 16
        %vm3953 = vc.u32 %v3945, %v3949
        %v3954 = vsel %vm3953, 1, 0
        %v3955 = vadd.s32 %v3945, %v3949
        %v3956 = vadd.s32 %v3948, %v3954
        %vm3957 = vc.u32 %v3955, %v3951
        %v3958 = vsel %vm3957, 1, 0
        %v3959 = vadd.s32 %v3955, %v3951
        %v3960 = vadd.s32 %v3956, %v3958
        %v3961 = vadd.s32 %v3960, %v3950
        %v3962 = vadd.s32 %v3961, %v3952
        %v3963 = vshrl.u32 %v3962, 4
        %v3964 = vmul.u32 %v3963, 18
        %v3965 = vsub.s32 %v3941, %v3964
        %v3966 = vsub.s32 0, %v3965
        %v3967 = vsel %vm3939, %v3966, %v3965
        %vm3968 = vcmp.lt.s32.totalorder %v3811, 0
        %v3969 = vsub.s32 0, %v3811
        %v3970 = vsel %vm3968, %v3969, %v3811
        %v3971 = vand.u32 %v3970, 65535
        %v3972 = vshrl.u32 %v3970, 16
        %v3974 = vmul.u32 %v3971, 14564
        %v3975 = vmul.u32 %v3971, 58254
        %v3976 = vmul.u32 %v3972, 14564
        %v3977 = vmul.u32 %v3972, 58254
        %v3978 = vshll.u32 %v3975, 16
        %v3979 = vshrl.u32 %v3975, 16
        %v3980 = vshll.u32 %v3976, 16
        %v3981 = vshrl.u32 %v3976, 16
        %vm3982 = vc.u32 %v3974, %v3978
        %v3983 = vsel %vm3982, 1, 0
        %v3984 = vadd.s32 %v3974, %v3978
        %v3985 = vadd.s32 %v3977, %v3983
        %vm3986 = vc.u32 %v3984, %v3980
        %v3987 = vsel %vm3986, 1, 0
        %v3988 = vadd.s32 %v3984, %v3980
        %v3989 = vadd.s32 %v3985, %v3987
        %v3990 = vadd.s32 %v3989, %v3979
        %v3991 = vadd.s32 %v3990, %v3981
        %v3992 = vshrl.u32 %v3991, 4
        %v3993 = vmul.u32 %v3992, 18
        %v3994 = vsub.s32 %v3970, %v3993
        %v3995 = vsub.s32 0, %v3994
        %v3996 = vsel %vm3968, %v3995, %v3994
        %vm3997 = vcmp.lt.s32.totalorder %v3812, 0
        %v3998 = vsub.s32 0, %v3812
        %v3999 = vsel %vm3997, %v3998, %v3812
        %v4000 = vand.u32 %v3999, 65535
        %v4001 = vshrl.u32 %v3999, 16
        %v4003 = vmul.u32 %v4000, 14564
        %v4004 = vmul.u32 %v4000, 58254
        %v4005 = vmul.u32 %v4001, 14564
        %v4006 = vmul.u32 %v4001, 58254
        %v4007 = vshll.u32 %v4004, 16
        %v4008 = vshrl.u32 %v4004, 16
        %v4009 = vshll.u32 %v4005, 16
        %v4010 = vshrl.u32 %v4005, 16
        %vm4011 = vc.u32 %v4003, %v4007
        %v4012 = vsel %vm4011, 1, 0
        %v4013 = vadd.s32 %v4003, %v4007
        %v4014 = vadd.s32 %v4006, %v4012
        %vm4015 = vc.u32 %v4013, %v4009
        %v4016 = vsel %vm4015, 1, 0
        %v4017 = vadd.s32 %v4013, %v4009
        %v4018 = vadd.s32 %v4014, %v4016
        %v4019 = vadd.s32 %v4018, %v4008
        %v4020 = vadd.s32 %v4019, %v4010
        %v4021 = vshrl.u32 %v4020, 4
        %v4022 = vmul.u32 %v4021, 18
        %v4023 = vsub.s32 %v3999, %v4022
        %v4024 = vsub.s32 0, %v4023
        %v4025 = vsel %vm3997, %v4024, %v4023
        %vm4026 = vcmp.lt.s32.totalorder %v3813, 0
        %v4027 = vsub.s32 0, %v3813
        %v4028 = vsel %vm4026, %v4027, %v3813
        %v4029 = vand.u32 %v4028, 65535
        %v4030 = vshrl.u32 %v4028, 16
        %v4032 = vmul.u32 %v4029, 14564
        %v4033 = vmul.u32 %v4029, 58254
        %v4034 = vmul.u32 %v4030, 14564
        %v4035 = vmul.u32 %v4030, 58254
        %v4036 = vshll.u32 %v4033, 16
        %v4037 = vshrl.u32 %v4033, 16
        %v4038 = vshll.u32 %v4034, 16
        %v4039 = vshrl.u32 %v4034, 16
        %vm4040 = vc.u32 %v4032, %v4036
        %v4041 = vsel %vm4040, 1, 0
        %v4042 = vadd.s32 %v4032, %v4036
        %v4043 = vadd.s32 %v4035, %v4041
        %vm4044 = vc.u32 %v4042, %v4038
        %v4045 = vsel %vm4044, 1, 0
        %v4046 = vadd.s32 %v4042, %v4038
        %v4047 = vadd.s32 %v4043, %v4045
        %v4048 = vadd.s32 %v4047, %v4037
        %v4049 = vadd.s32 %v4048, %v4039
        %v4050 = vshrl.u32 %v4049, 4
        %v4051 = vmul.u32 %v4050, 18
        %v4052 = vsub.s32 %v4028, %v4051
        %v4053 = vsub.s32 0, %v4052
        %v4054 = vsel %vm4026, %v4053, %v4052
        %vm4055 = vcmp.lt.s32.totalorder %v3814, 0
        %v4056 = vsub.s32 0, %v3814
        %v4057 = vsel %vm4055, %v4056, %v3814
        %v4058 = vand.u32 %v4057, 65535
        %v4059 = vshrl.u32 %v4057, 16
        %v4061 = vmul.u32 %v4058, 14564
        %v4062 = vmul.u32 %v4058, 58254
        %v4063 = vmul.u32 %v4059, 14564
        %v4064 = vmul.u32 %v4059, 58254
        %v4065 = vshll.u32 %v4062, 16
        %v4066 = vshrl.u32 %v4062, 16
        %v4067 = vshll.u32 %v4063, 16
        %v4068 = vshrl.u32 %v4063, 16
        %vm4069 = vc.u32 %v4061, %v4065
        %v4070 = vsel %vm4069, 1, 0
        %v4071 = vadd.s32 %v4061, %v4065
        %v4072 = vadd.s32 %v4064, %v4070
        %vm4073 = vc.u32 %v4071, %v4067
        %v4074 = vsel %vm4073, 1, 0
        %v4075 = vadd.s32 %v4071, %v4067
        %v4076 = vadd.s32 %v4072, %v4074
        %v4077 = vadd.s32 %v4076, %v4066
        %v4078 = vadd.s32 %v4077, %v4068
        %v4079 = vshrl.u32 %v4078, 4
        %v4080 = vmul.u32 %v4079, 18
        %v4081 = vsub.s32 %v4057, %v4080
        %v4082 = vsub.s32 0, %v4081
        %v4083 = vsel %vm4055, %v4082, %v4081
        %vm4084 = vcmp.lt.s32.totalorder %v3815, 0
        %v4085 = vsub.s32 0, %v3815
        %v4086 = vsel %vm4084, %v4085, %v3815
        %v4087 = vand.u32 %v4086, 65535
        %v4088 = vshrl.u32 %v4086, 16
        %v4090 = vmul.u32 %v4087, 14564
        %v4091 = vmul.u32 %v4087, 58254
        %v4092 = vmul.u32 %v4088, 14564
        %v4093 = vmul.u32 %v4088, 58254
        %v4094 = vshll.u32 %v4091, 16
        %v4095 = vshrl.u32 %v4091, 16
        %v4096 = vshll.u32 %v4092, 16
        %v4097 = vshrl.u32 %v4092, 16
        %vm4098 = vc.u32 %v4090, %v4094
        %v4099 = vsel %vm4098, 1, 0
        %v4100 = vadd.s32 %v4090, %v4094
        %v4101 = vadd.s32 %v4093, %v4099
        %vm4102 = vc.u32 %v4100, %v4096
        %v4103 = vsel %vm4102, 1, 0
        %v4104 = vadd.s32 %v4100, %v4096
        %v4105 = vadd.s32 %v4101, %v4103
        %v4106 = vadd.s32 %v4105, %v4095
        %v4107 = vadd.s32 %v4106, %v4097
        %v4108 = vshrl.u32 %v4107, 4
        %v4109 = vmul.u32 %v4108, 18
        %v4110 = vsub.s32 %v4086, %v4109
        %v4111 = vsub.s32 0, %v4110
        %v4112 = vsel %vm4084, %v4111, %v4110
        %vm4113 = vcmp.lt.s32.totalorder %v3816, 0
        %v4114 = vsub.s32 0, %v3816
        %v4115 = vsel %vm4113, %v4114, %v3816
        %v4116 = vand.u32 %v4115, 65535
        %v4117 = vshrl.u32 %v4115, 16
        %v4119 = vmul.u32 %v4116, 14564
        %v4120 = vmul.u32 %v4116, 58254
        %v4121 = vmul.u32 %v4117, 14564
        %v4122 = vmul.u32 %v4117, 58254
        %v4123 = vshll.u32 %v4120, 16
        %v4124 = vshrl.u32 %v4120, 16
        %v4125 = vshll.u32 %v4121, 16
        %v4126 = vshrl.u32 %v4121, 16
        %vm4127 = vc.u32 %v4119, %v4123
        %v4128 = vsel %vm4127, 1, 0
        %v4129 = vadd.s32 %v4119, %v4123
        %v4130 = vadd.s32 %v4122, %v4128
        %vm4131 = vc.u32 %v4129, %v4125
        %v4132 = vsel %vm4131, 1, 0
        %v4133 = vadd.s32 %v4129, %v4125
        %v4134 = vadd.s32 %v4130, %v4132
        %v4135 = vadd.s32 %v4134, %v4124
        %v4136 = vadd.s32 %v4135, %v4126
        %v4137 = vshrl.u32 %v4136, 4
        %v4138 = vmul.u32 %v4137, 18
        %v4139 = vsub.s32 %v4115, %v4138
        %v4140 = vsub.s32 0, %v4139
        %v4141 = vsel %vm4113, %v4140, %v4139
        %vm4142 = vcmp.lt.s32.totalorder %v3817, 0
        %v4143 = vsub.s32 0, %v3817
        %v4144 = vsel %vm4142, %v4143, %v3817
        %v4145 = vand.u32 %v4144, 65535
        %v4146 = vshrl.u32 %v4144, 16
        %v4148 = vmul.u32 %v4145, 14564
        %v4149 = vmul.u32 %v4145, 58254
        %v4150 = vmul.u32 %v4146, 14564
        %v4151 = vmul.u32 %v4146, 58254
        %v4152 = vshll.u32 %v4149, 16
        %v4153 = vshrl.u32 %v4149, 16
        %v4154 = vshll.u32 %v4150, 16
        %v4155 = vshrl.u32 %v4150, 16
        %vm4156 = vc.u32 %v4148, %v4152
        %v4157 = vsel %vm4156, 1, 0
        %v4158 = vadd.s32 %v4148, %v4152
        %v4159 = vadd.s32 %v4151, %v4157
        %vm4160 = vc.u32 %v4158, %v4154
        %v4161 = vsel %vm4160, 1, 0
        %v4162 = vadd.s32 %v4158, %v4154
        %v4163 = vadd.s32 %v4159, %v4161
        %v4164 = vadd.s32 %v4163, %v4153
        %v4165 = vadd.s32 %v4164, %v4155
        %v4166 = vshrl.u32 %v4165, 4
        %v4167 = vmul.u32 %v4166, 18
        %v4168 = vsub.s32 %v4144, %v4167
        %v4169 = vsub.s32 0, %v4168
        %v4170 = vsel %vm4142, %v4169, %v4168
        %vm4171 = vcmp.lt.s32.totalorder %v3818, 0
        %v4172 = vsub.s32 0, %v3818
        %v4173 = vsel %vm4171, %v4172, %v3818
        %v4174 = vand.u32 %v4173, 65535
        %v4175 = vshrl.u32 %v4173, 16
        %v4177 = vmul.u32 %v4174, 14564
        %v4178 = vmul.u32 %v4174, 58254
        %v4179 = vmul.u32 %v4175, 14564
        %v4180 = vmul.u32 %v4175, 58254
        %v4181 = vshll.u32 %v4178, 16
        %v4182 = vshrl.u32 %v4178, 16
        %v4183 = vshll.u32 %v4179, 16
        %v4184 = vshrl.u32 %v4179, 16
        %vm4185 = vc.u32 %v4177, %v4181
        %v4186 = vsel %vm4185, 1, 0
        %v4187 = vadd.s32 %v4177, %v4181
        %v4188 = vadd.s32 %v4180, %v4186
        %vm4189 = vc.u32 %v4187, %v4183
        %v4190 = vsel %vm4189, 1, 0
        %v4191 = vadd.s32 %v4187, %v4183
        %v4192 = vadd.s32 %v4188, %v4190
        %v4193 = vadd.s32 %v4192, %v4182
        %v4194 = vadd.s32 %v4193, %v4184
        %v4195 = vshrl.u32 %v4194, 4
        %v4196 = vmul.u32 %v4195, 18
        %v4197 = vsub.s32 %v4173, %v4196
        %v4198 = vsub.s32 0, %v4197
        %v4199 = vsel %vm4171, %v4198, %v4197
        %vm4200 = vcmp.lt.s32.totalorder %v3819, 0
        %v4201 = vsub.s32 0, %v3819
        %v4202 = vsel %vm4200, %v4201, %v3819
        %v4203 = vand.u32 %v4202, 65535
        %v4204 = vshrl.u32 %v4202, 16
        %v4206 = vmul.u32 %v4203, 14564
        %v4207 = vmul.u32 %v4203, 58254
        %v4208 = vmul.u32 %v4204, 14564
        %v4209 = vmul.u32 %v4204, 58254
        %v4210 = vshll.u32 %v4207, 16
        %v4211 = vshrl.u32 %v4207, 16
        %v4212 = vshll.u32 %v4208, 16
        %v4213 = vshrl.u32 %v4208, 16
        %vm4214 = vc.u32 %v4206, %v4210
        %v4215 = vsel %vm4214, 1, 0
        %v4216 = vadd.s32 %v4206, %v4210
        %v4217 = vadd.s32 %v4209, %v4215
        %vm4218 = vc.u32 %v4216, %v4212
        %v4219 = vsel %vm4218, 1, 0
        %v4220 = vadd.s32 %v4216, %v4212
        %v4221 = vadd.s32 %v4217, %v4219
        %v4222 = vadd.s32 %v4221, %v4211
        %v4223 = vadd.s32 %v4222, %v4213
        %v4224 = vshrl.u32 %v4223, 4
        %v4225 = vmul.u32 %v4224, 18
        %v4226 = vsub.s32 %v4202, %v4225
        %v4227 = vsub.s32 0, %v4226
        %v4228 = vsel %vm4200, %v4227, %v4226
        %vm4229 = vcmp.lt.s32.totalorder %v3820, 0
        %v4230 = vsub.s32 0, %v3820
        %v4231 = vsel %vm4229, %v4230, %v3820
        %v4232 = vand.u32 %v4231, 65535
        %v4233 = vshrl.u32 %v4231, 16
        %v4235 = vmul.u32 %v4232, 14564
        %v4236 = vmul.u32 %v4232, 58254
        %v4237 = vmul.u32 %v4233, 14564
        %v4238 = vmul.u32 %v4233, 58254
        %v4239 = vshll.u32 %v4236, 16
        %v4240 = vshrl.u32 %v4236, 16
        %v4241 = vshll.u32 %v4237, 16
        %v4242 = vshrl.u32 %v4237, 16
        %vm4243 = vc.u32 %v4235, %v4239
        %v4244 = vsel %vm4243, 1, 0
        %v4245 = vadd.s32 %v4235, %v4239
        %v4246 = vadd.s32 %v4238, %v4244
        %vm4247 = vc.u32 %v4245, %v4241
        %v4248 = vsel %vm4247, 1, 0
        %v4249 = vadd.s32 %v4245, %v4241
        %v4250 = vadd.s32 %v4246, %v4248
        %v4251 = vadd.s32 %v4250, %v4240
        %v4252 = vadd.s32 %v4251, %v4242
        %v4253 = vshrl.u32 %v4252, 4
        %v4254 = vmul.u32 %v4253, 18
        %v4255 = vsub.s32 %v4231, %v4254
        %v4256 = vsub.s32 0, %v4255
        %v4257 = vsel %vm4229, %v4256, %v4255
        %vm4258 = vcmp.lt.s32.totalorder %v3821, 0
        %v4259 = vsub.s32 0, %v3821
        %v4260 = vsel %vm4258, %v4259, %v3821
        %v4261 = vand.u32 %v4260, 65535
        %v4262 = vshrl.u32 %v4260, 16
        %v4264 = vmul.u32 %v4261, 14564
        %v4265 = vmul.u32 %v4261, 58254
        %v4266 = vmul.u32 %v4262, 14564
        %v4267 = vmul.u32 %v4262, 58254
        %v4268 = vshll.u32 %v4265, 16
        %v4269 = vshrl.u32 %v4265, 16
        %v4270 = vshll.u32 %v4266, 16
        %v4271 = vshrl.u32 %v4266, 16
        %vm4272 = vc.u32 %v4264, %v4268
        %v4273 = vsel %vm4272, 1, 0
        %v4274 = vadd.s32 %v4264, %v4268
        %v4275 = vadd.s32 %v4267, %v4273
        %vm4276 = vc.u32 %v4274, %v4270
        %v4277 = vsel %vm4276, 1, 0
        %v4278 = vadd.s32 %v4274, %v4270
        %v4279 = vadd.s32 %v4275, %v4277
        %v4280 = vadd.s32 %v4279, %v4269
        %v4281 = vadd.s32 %v4280, %v4271
        %v4282 = vshrl.u32 %v4281, 4
        %v4283 = vmul.u32 %v4282, 18
        %v4284 = vsub.s32 %v4260, %v4283
        %v4285 = vsub.s32 0, %v4284
        %v4286 = vsel %vm4258, %v4285, %v4284
        %vm4287 = vcmp.lt.s32.totalorder %v3822, 0
        %v4288 = vsub.s32 0, %v3822
        %v4289 = vsel %vm4287, %v4288, %v3822
        %v4290 = vand.u32 %v4289, 65535
        %v4291 = vshrl.u32 %v4289, 16
        %v4293 = vmul.u32 %v4290, 14564
        %v4294 = vmul.u32 %v4290, 58254
        %v4295 = vmul.u32 %v4291, 14564
        %v4296 = vmul.u32 %v4291, 58254
        %v4297 = vshll.u32 %v4294, 16
        %v4298 = vshrl.u32 %v4294, 16
        %v4299 = vshll.u32 %v4295, 16
        %v4300 = vshrl.u32 %v4295, 16
        %vm4301 = vc.u32 %v4293, %v4297
        %v4302 = vsel %vm4301, 1, 0
        %v4303 = vadd.s32 %v4293, %v4297
        %v4304 = vadd.s32 %v4296, %v4302
        %vm4305 = vc.u32 %v4303, %v4299
        %v4306 = vsel %vm4305, 1, 0
        %v4307 = vadd.s32 %v4303, %v4299
        %v4308 = vadd.s32 %v4304, %v4306
        %v4309 = vadd.s32 %v4308, %v4298
        %v4310 = vadd.s32 %v4309, %v4300
        %v4311 = vshrl.u32 %v4310, 4
        %v4312 = vmul.u32 %v4311, 18
        %v4313 = vsub.s32 %v4289, %v4312
        %v4314 = vsub.s32 0, %v4313
        %v4315 = vsel %vm4287, %v4314, %v4313
        %vm4316 = vcmp.ne.s32.totalorder %v3851, 0
        %vm4317 = vcmp.ne.s32.totalorder %v3880, 0
        %vm4318 = vcmp.ne.s32.totalorder %v3909, 0
        %vm4319 = vcmp.ne.s32.totalorder %v3938, 0
        %vm4320 = vcmp.ne.s32.totalorder %v3967, 0
        %vm4321 = vcmp.ne.s32.totalorder %v3996, 0
        %vm4322 = vcmp.ne.s32.totalorder %v4025, 0
        %vm4323 = vcmp.ne.s32.totalorder %v4054, 0
        %vm4324 = vcmp.ne.s32.totalorder %v4083, 0
        %vm4325 = vcmp.ne.s32.totalorder %v4112, 0
        %vm4326 = vcmp.ne.s32.totalorder %v4141, 0
        %vm4327 = vcmp.ne.s32.totalorder %v4170, 0
        %vm4328 = vcmp.ne.s32.totalorder %v4199, 0
        %vm4329 = vcmp.ne.s32.totalorder %v4228, 0
        %vm4330 = vcmp.ne.s32.totalorder %v4257, 0
        %vm4331 = vcmp.ne.s32.totalorder %v4286, 0
        %vm4332 = vcmp.ne.s32.totalorder %v4315, 0
        %vm4333 = vcmp.lt.s32.totalorder %v3851, 0
        %vm4334 = vcmp.lt.s32.totalorder %v3880, 0
        %vm4335 = vcmp.lt.s32.totalorder %v3909, 0
        %vm4336 = vcmp.lt.s32.totalorder %v3938, 0
        %vm4337 = vcmp.lt.s32.totalorder %v3967, 0
        %vm4338 = vcmp.lt.s32.totalorder %v3996, 0
        %vm4339 = vcmp.lt.s32.totalorder %v4025, 0
        %vm4340 = vcmp.lt.s32.totalorder %v4054, 0
        %vm4341 = vcmp.lt.s32.totalorder %v4083, 0
        %vm4342 = vcmp.lt.s32.totalorder %v4112, 0
        %vm4343 = vcmp.lt.s32.totalorder %v4141, 0
        %vm4344 = vcmp.lt.s32.totalorder %v4170, 0
        %vm4345 = vcmp.lt.s32.totalorder %v4199, 0
        %vm4346 = vcmp.lt.s32.totalorder %v4228, 0
        %vm4347 = vcmp.lt.s32.totalorder %v4257, 0
        %vm4348 = vcmp.lt.s32.totalorder %v4286, 0
        %vm4349 = vcmp.lt.s32.totalorder %v4315, 0
        %vm4350 = vmand %vm4333, %vm4316
        %vm4351 = vmand %vm4334, %vm4317
        %vm4352 = vmand %vm4335, %vm4318
        %vm4353 = vmand %vm4336, %vm4319
        %vm4354 = vmand %vm4337, %vm4320
        %vm4355 = vmand %vm4338, %vm4321
        %vm4356 = vmand %vm4339, %vm4322
        %vm4357 = vmand %vm4340, %vm4323
        %vm4358 = vmand %vm4341, %vm4324
        %vm4359 = vmand %vm4342, %vm4325
        %vm4360 = vmand %vm4343, %vm4326
        %vm4361 = vmand %vm4344, %vm4327
        %vm4362 = vmand %vm4345, %vm4328
        %vm4363 = vmand %vm4346, %vm4329
        %vm4364 = vmand %vm4347, %vm4330
        %vm4365 = vmand %vm4348, %vm4331
        %vm4366 = vmand %vm4349, %vm4332
        %v4367 = vadd.s32 %v3851, 18
        %v4368 = vadd.s32 %v3880, 18
        %v4369 = vadd.s32 %v3909, 18
        %v4370 = vadd.s32 %v3938, 18
        %v4371 = vadd.s32 %v3967, 18
        %v4372 = vadd.s32 %v3996, 18
        %v4373 = vadd.s32 %v4025, 18
        %v4374 = vadd.s32 %v4054, 18
        %v4375 = vadd.s32 %v4083, 18
        %v4376 = vadd.s32 %v4112, 18
        %v4377 = vadd.s32 %v4141, 18
        %v4378 = vadd.s32 %v4170, 18
        %v4379 = vadd.s32 %v4199, 18
        %v4380 = vadd.s32 %v4228, 18
        %v4381 = vadd.s32 %v4257, 18
        %v4382 = vadd.s32 %v4286, 18
        %v4383 = vadd.s32 %v4315, 18
        %v4384 = vsel %vm4350, %v4367, %v3851
        %v4385 = vsel %vm4351, %v4368, %v3880
        %v4386 = vsel %vm4352, %v4369, %v3909
        %v4387 = vsel %vm4353, %v4370, %v3938
        %v4388 = vsel %vm4354, %v4371, %v3967
        %v4389 = vsel %vm4355, %v4372, %v3996
        %v4390 = vsel %vm4356, %v4373, %v4025
        %v4391 = vsel %vm4357, %v4374, %v4054
        %v4392 = vsel %vm4358, %v4375, %v4083
        %v4393 = vsel %vm4359, %v4376, %v4112
        %v4394 = vsel %vm4360, %v4377, %v4141
        %v4395 = vsel %vm4361, %v4378, %v4170
        %v4396 = vsel %vm4362, %v4379, %v4199
        %v4397 = vsel %vm4363, %v4380, %v4228
        %v4398 = vsel %vm4364, %v4381, %v4257
        %v4399 = vsel %vm4365, %v4382, %v4286
        %v4400 = vsel %vm4366, %v4383, %v4315
        %vm4401 = vcmp.lt.s32.totalorder %v4384, 8
        %vm4402 = vcmp.lt.s32.totalorder %v4385, 8
        %vm4403 = vcmp.lt.s32.totalorder %v4386, 8
        %vm4404 = vcmp.lt.s32.totalorder %v4387, 8
        %vm4405 = vcmp.lt.s32.totalorder %v4388, 8
        %vm4406 = vcmp.lt.s32.totalorder %v4389, 8
        %vm4407 = vcmp.lt.s32.totalorder %v4390, 8
        %vm4408 = vcmp.lt.s32.totalorder %v4391, 8
        %vm4409 = vcmp.lt.s32.totalorder %v4392, 8
        %vm4410 = vcmp.lt.s32.totalorder %v4393, 8
        %vm4411 = vcmp.lt.s32.totalorder %v4394, 8
        %vm4412 = vcmp.lt.s32.totalorder %v4395, 8
        %vm4413 = vcmp.lt.s32.totalorder %v4396, 8
        %vm4414 = vcmp.lt.s32.totalorder %v4397, 8
        %vm4415 = vcmp.lt.s32.totalorder %v4398, 8
        %vm4416 = vcmp.lt.s32.totalorder %v4399, 8
        %vm4417 = vcmp.lt.s32.totalorder %v4400, 8
        %v4418 = vsel %vm4401, 1, 0
        %v4419 = vsel %vm4402, 1, 0
        %v4420 = vsel %vm4403, 1, 0
        %v4421 = vsel %vm4404, 1, 0
        %v4422 = vsel %vm4405, 1, 0
        %v4423 = vsel %vm4406, 1, 0
        %v4424 = vsel %vm4407, 1, 0
        %v4425 = vsel %vm4408, 1, 0
        %v4426 = vsel %vm4409, 1, 0
        %v4427 = vsel %vm4410, 1, 0
        %v4428 = vsel %vm4411, 1, 0
        %v4429 = vsel %vm4412, 1, 0
        %v4430 = vsel %vm4413, 1, 0
        %v4431 = vsel %vm4414, 1, 0
        %v4432 = vsel %vm4415, 1, 0
        %v4433 = vsel %vm4416, 1, 0
        %v4434 = vsel %vm4417, 1, 0
        %vm4435 = vcmp.eq.s32.totalorder %v4418, 1
        %vm4436 = vcmp.eq.s32.totalorder %v4419, 1
        %vm4437 = vcmp.eq.s32.totalorder %v4420, 1
        %vm4438 = vcmp.eq.s32.totalorder %v4421, 1
        %vm4439 = vcmp.eq.s32.totalorder %v4422, 1
        %vm4440 = vcmp.eq.s32.totalorder %v4423, 1
        %vm4441 = vcmp.eq.s32.totalorder %v4424, 1
        %vm4442 = vcmp.eq.s32.totalorder %v4425, 1
        %vm4443 = vcmp.eq.s32.totalorder %v4426, 1
        %vm4444 = vcmp.eq.s32.totalorder %v4427, 1
        %vm4445 = vcmp.eq.s32.totalorder %v4428, 1
        %vm4446 = vcmp.eq.s32.totalorder %v4429, 1
        %vm4447 = vcmp.eq.s32.totalorder %v4430, 1
        %vm4448 = vcmp.eq.s32.totalorder %v4431, 1
        %vm4449 = vcmp.eq.s32.totalorder %v4432, 1
        %vm4450 = vcmp.eq.s32.totalorder %v4433, 1
        %vm4451 = vcmp.eq.s32.totalorder %v4434, 1
        %v4452 = vsel %vm4435, %v3788, 0.0
        %v4453 = vsel %vm4436, %v3789, 0.0
        %v4454 = vsel %vm4437, %v3790, 0.0
        %v4455 = vsel %vm4438, %v3791, 0.0
        %v4456 = vsel %vm4439, %v3792, 0.0
        %v4457 = vsel %vm4440, %v3793, 0.0
        %v4458 = vsel %vm4441, %v3794, 0.0
        %v4459 = vsel %vm4442, %v3795, 0.0
        %v4460 = vsel %vm4443, %v3796, 0.0
        %v4461 = vsel %vm4444, %v3797, 0.0
        %v4462 = vsel %vm4445, %v3798, 0.0
        %v4463 = vsel %vm4446, %v3799, 0.0
        %v4464 = vsel %vm4447, %v3800, 0.0
        %v4465 = vsel %vm4448, %v3801, 0.0
        %v4466 = vsel %vm4449, %v3802, 0.0
        %v4467 = vsel %vm4450, %v3803, 0.0
        %v4468 = vsel %vm4451, %v3804, 0.0
        %vm4469 = vcmask 130048
        %v4470 = vsel %vm4469, %v4452, 0.0
        %v4471 = vsel %vm4469, %v4453, 0.0
        %v4472 = vadd.f32 %v4470, %v4471
        %v4473 = vsel %vm4469, %v4454, 0.0
        %v4474 = vadd.f32 %v4472, %v4473
        %v4475 = vsel %vm4469, %v4455, 0.0
        %v4476 = vadd.f32 %v4474, %v4475
        %v4477 = vsel %vm4469, %v4456, 0.0
        %v4478 = vadd.f32 %v4476, %v4477
        %v4479 = vsel %vm4469, %v4457, 0.0
        %v4480 = vadd.f32 %v4478, %v4479
        %v4481 = vsel %vm4469, %v4458, 0.0
        %v4482 = vadd.f32 %v4480, %v4481
        %v4483 = vsel %vm4469, %v4459, 0.0
        %v4484 = vadd.f32 %v4482, %v4483
        %v4485 = vsel %vm4469, %v4460, 0.0
        %v4486 = vadd.f32 %v4484, %v4485
        %v4487 = vsel %vm4469, %v4461, 0.0
        %v4488 = vadd.f32 %v4486, %v4487
        %v4489 = vsel %vm4469, %v4462, 0.0
        %v4490 = vadd.f32 %v4488, %v4489
        %v4491 = vsel %vm4469, %v4463, 0.0
        %v4492 = vadd.f32 %v4490, %v4491
        %v4493 = vsel %vm4469, %v4464, 0.0
        %v4494 = vadd.f32 %v4492, %v4493
        %v4495 = vsel %vm4469, %v4465, 0.0
        %v4496 = vadd.f32 %v4494, %v4495
        %v4497 = vsel %vm4469, %v4466, 0.0
        %v4498 = vadd.f32 %v4496, %v4497
        %v4499 = vsel %vm4469, %v4467, 0.0
        %v4500 = vadd.f32 %v4498, %v4499
        %vm4501 = vcmask 128000
        %v4502 = vsel %vm4501, %v4468, 0.0
        %v4503 = vadd.f32 %v4500, %v4502
        %v4504 = vrot.slane %v4503, 4
        %v4505 = vadd.f32 %v4503, %v4504
        %v4506 = vrot.slane %v4505, 2
        %v4507 = vadd.f32 %v4505, %v4506
        %v4508 = vrot.slane %v4507, 1
        %v4509 = vadd.f32 %v4507, %v4508
        %v4510 = vmul.f32 %v4509, 0.015625
        %v4511 = vsub.f32 %v3788, %v4510
        %v4512 = vsub.f32 %v3789, %v4510
        %v4513 = vsub.f32 %v3790, %v4510
        %v4514 = vsub.f32 %v3791, %v4510
        %v4515 = vsub.f32 %v3792, %v4510
        %v4516 = vsub.f32 %v3793, %v4510
        %v4517 = vsub.f32 %v3794, %v4510
        %v4518 = vsub.f32 %v3795, %v4510
        %v4519 = vsub.f32 %v3796, %v4510
        %v4520 = vsub.f32 %v3797, %v4510
        %v4521 = vsub.f32 %v3798, %v4510
        %v4522 = vsub.f32 %v3799, %v4510
        %v4523 = vsub.f32 %v3800, %v4510
        %v4524 = vsub.f32 %v3801, %v4510
        %v4525 = vsub.f32 %v3802, %v4510
        %v4526 = vsub.f32 %v3803, %v4510
        %v4527 = vsub.f32 %v3804, %v4510
        %v4528 = vsel %vm4435, %v4511, 0.0
        %v4529 = vsel %vm4436, %v4512, 0.0
        %v4530 = vsel %vm4437, %v4513, 0.0
        %v4531 = vsel %vm4438, %v4514, 0.0
        %v4532 = vsel %vm4439, %v4515, 0.0
        %v4533 = vsel %vm4440, %v4516, 0.0
        %v4534 = vsel %vm4441, %v4517, 0.0
        %v4535 = vsel %vm4442, %v4518, 0.0
        %v4536 = vsel %vm4443, %v4519, 0.0
        %v4537 = vsel %vm4444, %v4520, 0.0
        %v4538 = vsel %vm4445, %v4521, 0.0
        %v4539 = vsel %vm4446, %v4522, 0.0
        %v4540 = vsel %vm4447, %v4523, 0.0
        %v4541 = vsel %vm4448, %v4524, 0.0
        %v4542 = vsel %vm4449, %v4525, 0.0
        %v4543 = vsel %vm4450, %v4526, 0.0
        %v4544 = vsel %vm4451, %v4527, 0.0
        %v4545 = vmul.f32 %v4528, %v4528
        %v4546 = vmul.f32 %v4529, %v4529
        %v4547 = vmul.f32 %v4530, %v4530
        %v4548 = vmul.f32 %v4531, %v4531
        %v4549 = vmul.f32 %v4532, %v4532
        %v4550 = vmul.f32 %v4533, %v4533
        %v4551 = vmul.f32 %v4534, %v4534
        %v4552 = vmul.f32 %v4535, %v4535
        %v4553 = vmul.f32 %v4536, %v4536
        %v4554 = vmul.f32 %v4537, %v4537
        %v4555 = vmul.f32 %v4538, %v4538
        %v4556 = vmul.f32 %v4539, %v4539
        %v4557 = vmul.f32 %v4540, %v4540
        %v4558 = vmul.f32 %v4541, %v4541
        %v4559 = vmul.f32 %v4542, %v4542
        %v4560 = vmul.f32 %v4543, %v4543
        %v4561 = vmul.f32 %v4544, %v4544
        %v4562 = vsel %vm4469, %v4545, 0.0
        %v4563 = vsel %vm4469, %v4546, 0.0
        %v4564 = vadd.f32 %v4562, %v4563
        %v4565 = vsel %vm4469, %v4547, 0.0
        %v4566 = vadd.f32 %v4564, %v4565
        %v4567 = vsel %vm4469, %v4548, 0.0
        %v4568 = vadd.f32 %v4566, %v4567
        %v4569 = vsel %vm4469, %v4549, 0.0
        %v4570 = vadd.f32 %v4568, %v4569
        %v4571 = vsel %vm4469, %v4550, 0.0
        %v4572 = vadd.f32 %v4570, %v4571
        %v4573 = vsel %vm4469, %v4551, 0.0
        %v4574 = vadd.f32 %v4572, %v4573
        %v4575 = vsel %vm4469, %v4552, 0.0
        %v4576 = vadd.f32 %v4574, %v4575
        %v4577 = vsel %vm4469, %v4553, 0.0
        %v4578 = vadd.f32 %v4576, %v4577
        %v4579 = vsel %vm4469, %v4554, 0.0
        %v4580 = vadd.f32 %v4578, %v4579
        %v4581 = vsel %vm4469, %v4555, 0.0
        %v4582 = vadd.f32 %v4580, %v4581
        %v4583 = vsel %vm4469, %v4556, 0.0
        %v4584 = vadd.f32 %v4582, %v4583
        %v4585 = vsel %vm4469, %v4557, 0.0
        %v4586 = vadd.f32 %v4584, %v4585
        %v4587 = vsel %vm4469, %v4558, 0.0
        %v4588 = vadd.f32 %v4586, %v4587
        %v4589 = vsel %vm4469, %v4559, 0.0
        %v4590 = vadd.f32 %v4588, %v4589
        %v4591 = vsel %vm4469, %v4560, 0.0
        %v4592 = vadd.f32 %v4590, %v4591
        %v4593 = vsel %vm4501, %v4561, 0.0
        %v4594 = vadd.f32 %v4592, %v4593
        %v4595 = vrot.slane %v4594, 4
        %v4596 = vadd.f32 %v4594, %v4595
        %v4597 = vrot.slane %v4596, 2
        %v4598 = vadd.f32 %v4596, %v4597
        %v4599 = vrot.slane %v4598, 1
        %v4600 = vadd.f32 %v4598, %v4599
        %v4601 = vmul.f32 %v4600, 0.015625
        %v4602 = vadd.f32 %v4601, 1e-05
        %v4603 = vrsqrt.pop %v4602
        %v4604 = vmul.f32 %v4603, %v4602
        %v4605 = vmul.f32 %v4604, %v4603
        %v4606 = vmul.f32 0.5, %v4605
        %v4607 = vsub.f32 1.5, %v4606
        %v4608 = vmul.f32 %v4603, %v4607
        %vm4609 = vweird.f32 %v4602
        %vm4610 = vweird.f32 %v4603
        %vm4611 = vmor %vm4609, %vm4610
        %v4612 = vsel %vm4611, %v4603, %v4608
        %v4613 = vmul.f32 %v4511, %v4612
        %v4614 = vmul.f32 %v4512, %v4612
        %v4615 = vmul.f32 %v4513, %v4612
        %v4616 = vmul.f32 %v4514, %v4612
        %v4617 = vmul.f32 %v4515, %v4612
        %v4618 = vmul.f32 %v4516, %v4612
        %v4619 = vmul.f32 %v4517, %v4612
        %v4620 = vmul.f32 %v4518, %v4612
        %v4621 = vmul.f32 %v4519, %v4612
        %v4622 = vmul.f32 %v4520, %v4612
        %v4623 = vmul.f32 %v4521, %v4612
        %v4624 = vmul.f32 %v4522, %v4612
        %v4625 = vmul.f32 %v4523, %v4612
        %v4626 = vmul.f32 %v4524, %v4612
        %v4627 = vmul.f32 %v4525, %v4612
        %v4628 = vmul.f32 %v4526, %v4612
        %v4629 = vmul.f32 %v4527, %v4612
        %v4630 = vmax.f32 %v4613, 0.0
        %v4631 = vmax.f32 %v4614, 0.0
        %v4632 = vmax.f32 %v4615, 0.0
        %v4633 = vmax.f32 %v4616, 0.0
        %v4634 = vmax.f32 %v4617, 0.0
        %v4635 = vmax.f32 %v4618, 0.0
        %v4636 = vmax.f32 %v4619, 0.0
        %v4637 = vmax.f32 %v4620, 0.0
        %v4638 = vmax.f32 %v4621, 0.0
        %v4639 = vmax.f32 %v4622, 0.0
        %v4640 = vmax.f32 %v4623, 0.0
        %v4641 = vmax.f32 %v4624, 0.0
        %v4642 = vmax.f32 %v4625, 0.0
        %v4643 = vmax.f32 %v4626, 0.0
        %v4644 = vmax.f32 %v4627, 0.0
        %v4645 = vmax.f32 %v4628, 0.0
        %v4646 = vmax.f32 %v4629, 0.0
        %v4647 = vld [vmem:[%s6] sm:$0xff]
        %v4648 = vld [vmem:[%s6 + $0x8] sm:$0xff]
        %v4649 = vld [vmem:[%s6 + $0x10] sm:$0xff]
        %v4650 = vld [vmem:[%s6 + $0x18] sm:$0xff]
        %v4651 = vld [vmem:[%s6 + $0x20] sm:$0xff]
        %v4652 = vld [vmem:[%s6 + $0x28] sm:$0xff]
        %v4653 = vld [vmem:[%s6 + $0x30] sm:$0x11]
        %v4654 = vpack.c.bf16 %v4631, %v4630
        %v4655 = vpack.c.bf16 %v4633, %v4632
        %v4656 = vpack.c.bf16 %v4635, %v4634
        %v4657 = vpack.c.bf16 %v4637, %v4636
        %v4658 = vpack.c.bf16 %v4639, %v4638
        %v4659 = vpack.c.bf16 %v4641, %v4640
        %v4660 = vpack.c.bf16 %v4643, %v4642
        %v4661 = vpack.c.bf16 %v4645, %v4644
        %v4662 = vpack.c.bf16 %v4646, %v4646
        %v4670 = vunpack.c.l.b16 %v4647
        %v4671 = vunpack.c.h.b16 %v4647
        %v4672 = vunpack.c.l.b16 %v4648
        %v4673 = vunpack.c.h.b16 %v4648
        %v4674 = vunpack.c.l.b16 %v4649
        %v4675 = vunpack.c.h.b16 %v4649
        %v4676 = vunpack.c.l.b16 %v4650
        %v4677 = vunpack.c.h.b16 %v4650
        %v4678 = vunpack.c.l.b16 %v4651
        %v4679 = vunpack.c.h.b16 %v4651
        %v4680 = vunpack.c.l.b16 %v4652
        %v4681 = vunpack.c.h.b16 %v4652
        %v4682 = vunpack.c.l.b16 %v4653
        %v4683 = vunpack.c.h.b16 %v4653
        %v4684 = vpack.c.b16 %v4672, %v4670
        %v4685 = vpack.c.b16 %v4673, %v4671
        %v4686 = vpack.c.b16 %v4676, %v4674
        %v4687 = vpack.c.b16 %v4677, %v4675
        %v4688 = vpack.c.b16 %v4680, %v4678
        %v4689 = vpack.c.b16 %v4681, %v4679
        %v4690 = vpack.c.b16 %v4682, %v4682
        %v4691 = vpack.c.b16 %v4683, %v4683
        %vm4696 = vcmask 48128
        %v4698 = vsel %vm4696, %v4685, 0
        %v4701 = vsel %vm4696, %v4687, 0
        %v4704 = vsel %vm4696, %v4689, 0
        %v4707 = vsel %vm4696, %v4691, 0
        %vm4709 = vcmask 1042432
        %v4711 = vsel %vm4709, %v4662, 0
        %4713 = vmatpush.bf16.msra.mxu0 %v4661
        %4714 = vmatpush.bf16.msra.mxu0 %v4660
        %4715 = vmatpush.bf16.msra.mxu0 %v4659
        %4716 = vmatpush.bf16.msra.mxu0 %v4658
        %4717 = vmatpush.bf16.msra.mxu0 %v4657
        %4718 = vmatpush.bf16.msra.mxu0 %v4656
        %4719 = vmatpush.bf16.msra.mxu0 %v4655
        %4720 = vmatpush.bf16.msra.mxu0 %v4654
        %4721 = vmatmul.bf16.gmra.mxu0 %v4684
        %v4722 = vpop.f32.mrf.mxu0
        %v4723 = vadd.f32 0.0, %v4722
        %v4724 = vpop.f32.mrf.mxu0
        %v4725 = vadd.f32 0.0, %v4724
        %4726 = vmatmul.bf16.gmra.mxu0 %v4686
        %v4727 = vpop.f32.mrf.mxu0
        %v4728 = vadd.f32 0.0, %v4727
        %v4729 = vpop.f32.mrf.mxu0
        %v4730 = vadd.f32 0.0, %v4729
        %4731 = vmatmul.bf16.gmra.mxu0 %v4688
        %v4732 = vpop.f32.mrf.mxu0
        %v4733 = vadd.f32 0.0, %v4732
        %v4734 = vpop.f32.mrf.mxu0
        %v4735 = vadd.f32 0.0, %v4734
        %4736 = vmatmul.bf16.gmra.mxu0 %v4690
        %v4737 = vpop.f32.mrf.mxu0
        %v4738 = vadd.f32 0.0, %v4737
        %v4739 = vpop.f32.mrf.mxu0
        %4740 = vdwg.mxu0
        %4741 = vmatpush.bf16.msra.mxu0 0
        %4742 = vmatpush.bf16.msra.mxu0 0
        %4743 = vmatpush.bf16.msra.mxu0 0
        %4744 = vmatpush.bf16.msra.mxu0 0
        %4745 = vmatpush.bf16.msra.mxu0 0
        %4746 = vmatpush.bf16.msra.mxu0 0
        %4747 = vmatpush.bf16.msra.mxu0 0
        %4748 = vmatpush.bf16.msra.mxu0 %v4711
        %4749 = vmatmul.bf16.gmra.mxu0 %v4698
        %v4750 = vpop.f32.mrf.mxu0
        %v4751 = vadd.f32 %v4723, %v4750
        %v4752 = vpop.f32.mrf.mxu0
        %v4753 = vadd.f32 %v4725, %v4752
        %4754 = vmatmul.bf16.gmra.mxu0 %v4701
        %v4755 = vpop.f32.mrf.mxu0
        %v4756 = vadd.f32 %v4728, %v4755
        %v4757 = vpop.f32.mrf.mxu0
        %v4758 = vadd.f32 %v4730, %v4757
        %4759 = vmatmul.bf16.gmra.mxu0 %v4704
        %v4760 = vpop.f32.mrf.mxu0
        %v4761 = vadd.f32 %v4733, %v4760
        %v4762 = vpop.f32.mrf.mxu0
        %v4763 = vadd.f32 %v4735, %v4762
        %4764 = vmatmul.bf16.gmra.mxu0 %v4707
        %v4765 = vpop.f32.mrf.mxu0
        %v4766 = vadd.f32 %v4738, %v4765
        %v4767 = vpop.f32.mrf.mxu0
        %4768 = vdwg.mxu0
        %s4769 = scalar_lea.vmem %s6, 56
        %v4770 = vld [vmem:[%s4769] sm:$0xff]
        %v4771 = vld [vmem:[%s4769 + $0x8] sm:$0xff]
        %v4772 = vld [vmem:[%s4769 + $0x10] sm:$0xff]
        %v4773 = vld [vmem:[%s4769 + $0x18] sm:$0xff]
        %v4774 = vld [vmem:[%s4769 + $0x20] sm:$0xff]
        %v4775 = vld [vmem:[%s4769 + $0x28] sm:$0xff]
        %v4776 = vld [vmem:[%s4769 + $0x30] sm:$0x11]
        %v4784 = vunpack.c.l.b16 %v4770
        %v4785 = vunpack.c.h.b16 %v4770
        %v4786 = vunpack.c.l.b16 %v4771
        %v4787 = vunpack.c.h.b16 %v4771
        %v4788 = vunpack.c.l.b16 %v4772
        %v4789 = vunpack.c.h.b16 %v4772
        %v4790 = vunpack.c.l.b16 %v4773
        %v4791 = vunpack.c.h.b16 %v4773
        %v4792 = vunpack.c.l.b16 %v4774
        %v4793 = vunpack.c.h.b16 %v4774
        %v4794 = vunpack.c.l.b16 %v4775
        %v4795 = vunpack.c.h.b16 %v4775
        %v4796 = vunpack.c.l.b16 %v4776
        %v4797 = vunpack.c.h.b16 %v4776
        %v4798 = vpack.c.b16 %v4786, %v4784
        %v4799 = vpack.c.b16 %v4787, %v4785
        %v4800 = vpack.c.b16 %v4790, %v4788
        %v4801 = vpack.c.b16 %v4791, %v4789
        %v4802 = vpack.c.b16 %v4794, %v4792
        %v4803 = vpack.c.b16 %v4795, %v4793
        %v4804 = vpack.c.b16 %v4796, %v4796
        %v4805 = vpack.c.b16 %v4797, %v4797
        %v4811 = vsel %vm4696, %v4799, 0
        %v4814 = vsel %vm4696, %v4801, 0
        %v4817 = vsel %vm4696, %v4803, 0
        %v4820 = vsel %vm4696, %v4805, 0
        %4822 = vmatpush.bf16.msra.mxu0 %v4661
        %4823 = vmatpush.bf16.msra.mxu0 %v4660
        %4824 = vmatpush.bf16.msra.mxu0 %v4659
        %4825 = vmatpush.bf16.msra.mxu0 %v4658
        %4826 = vmatpush.bf16.msra.mxu0 %v4657
        %4827 = vmatpush.bf16.msra.mxu0 %v4656
        %4828 = vmatpush.bf16.msra.mxu0 %v4655
        %4829 = vmatpush.bf16.msra.mxu0 %v4654
        %4830 = vmatmul.bf16.gmra.mxu0 %v4798
        %v4831 = vpop.f32.mrf.mxu0
        %v4832 = vadd.f32 0.0, %v4831
        %v4833 = vpop.f32.mrf.mxu0
        %v4834 = vadd.f32 0.0, %v4833
        %4835 = vmatmul.bf16.gmra.mxu0 %v4800
        %v4836 = vpop.f32.mrf.mxu0
        %v4837 = vadd.f32 0.0, %v4836
        %v4838 = vpop.f32.mrf.mxu0
        %v4839 = vadd.f32 0.0, %v4838
        %4840 = vmatmul.bf16.gmra.mxu0 %v4802
        %v4841 = vpop.f32.mrf.mxu0
        %v4842 = vadd.f32 0.0, %v4841
        %v4843 = vpop.f32.mrf.mxu0
        %v4844 = vadd.f32 0.0, %v4843
        %4845 = vmatmul.bf16.gmra.mxu0 %v4804
        %v4846 = vpop.f32.mrf.mxu0
        %v4847 = vadd.f32 0.0, %v4846
        %v4848 = vpop.f32.mrf.mxu0
        %4849 = vdwg.mxu0
        %4850 = vmatpush.bf16.msra.mxu0 0
        %4851 = vmatpush.bf16.msra.mxu0 0
        %4852 = vmatpush.bf16.msra.mxu0 0
        %4853 = vmatpush.bf16.msra.mxu0 0
        %4854 = vmatpush.bf16.msra.mxu0 0
        %4855 = vmatpush.bf16.msra.mxu0 0
        %4856 = vmatpush.bf16.msra.mxu0 0
        %4857 = vmatpush.bf16.msra.mxu0 %v4711
        %4858 = vmatmul.bf16.gmra.mxu0 %v4811
        %v4859 = vpop.f32.mrf.mxu0
        %v4860 = vadd.f32 %v4832, %v4859
        %v4861 = vpop.f32.mrf.mxu0
        %v4862 = vadd.f32 %v4834, %v4861
        %4863 = vmatmul.bf16.gmra.mxu0 %v4814
        %v4864 = vpop.f32.mrf.mxu0
        %v4865 = vadd.f32 %v4837, %v4864
        %v4866 = vpop.f32.mrf.mxu0
        %v4867 = vadd.f32 %v4839, %v4866
        %4868 = vmatmul.bf16.gmra.mxu0 %v4817
        %v4869 = vpop.f32.mrf.mxu0
        %v4870 = vadd.f32 %v4842, %v4869
        %v4871 = vpop.f32.mrf.mxu0
        %v4872 = vadd.f32 %v4844, %v4871
        %4873 = vmatmul.bf16.gmra.mxu0 %v4820
        %v4874 = vpop.f32.mrf.mxu0
        %v4875 = vadd.f32 %v4847, %v4874
        %v4876 = vpop.f32.mrf.mxu0
        %4877 = vdwg.mxu0
        %v4878 = vld [vmem:[%s3] sm:$0xf]
        %v4879 = vld [vmem:[%s3 + $0x4] sm:$0xf]
        %v4880 = vpack.c.bf16 %v4753, %v4751
        %v4881 = vpack.c.bf16 %v4758, %v4756
        %v4882 = vpack.c.bf16 %v4761, %v4761
        %s4883 = scalar_lea.vmem %s3, 8
        %v4884 = vld [vmem:[%s4883] sm:$0xf]
        %v4885 = vld [vmem:[%s4883 + $0x4] sm:$0xf]
        %v4886 = vpack.c.bf16 %v4862, %v4860
        %v4887 = vpack.c.bf16 %v4867, %v4865
        %v4888 = vpack.c.bf16 %v4870, %v4870
        %v4891 = vunpack.c.l.b16 %v4884
        %v4892 = vunpack.c.l.b16 %v4885
        %v4893 = vpack.c.b16 %v4892, %v4891
        %v4896 = vsel %vm4469, %v4886, 0
        %v4899 = vsel %vm4469, %v4887, 0
        %v4902 = vsel %vm4469, %v4888, 0
        %4904 = vmatpush.bf16.msra.mxu0 0
        %4905 = vmatpush.bf16.msra.mxu0 0
        %4906 = vmatpush.bf16.msra.mxu0 0
        %4907 = vmatpush.bf16.msra.mxu0 0
        %4908 = vmatpush.bf16.msra.mxu0 0
        %4909 = vmatpush.bf16.msra.mxu0 0
        %4910 = vmatpush.bf16.msra.mxu0 0
        %4911 = vmatpush.bf16.msra.mxu0 %v4893
        %4912 = vmatmul.bf16.gmra.mxu0 %v4896
        %v4913 = vpop.f32.mrf.mxu0
        %v4914 = vadd.f32 0.0, %v4913
        %v4915 = vpop.f32.mrf.mxu0
        %v4916 = vadd.f32 0.0, %v4915
        %4917 = vmatmul.bf16.gmra.mxu0 %v4899
        %v4918 = vpop.f32.mrf.mxu0
        %v4919 = vadd.f32 0.0, %v4918
        %v4920 = vpop.f32.mrf.mxu0
        %v4921 = vadd.f32 0.0, %v4920
        %4922 = vmatmul.bf16.gmra.mxu0 %v4902
        %v4923 = vpop.f32.mrf.mxu0
        %v4924 = vadd.f32 0.0, %v4923
        %v4925 = vpop.f32.mrf.mxu0
        %4926 = vdwg.mxu0
        %v4929 = vunpack.c.l.b16 %v4878
        %v4930 = vunpack.c.l.b16 %v4879
        %v4931 = vpack.c.b16 %v4930, %v4929
        %v4934 = vsel %vm4469, %v4880, 0
        %v4937 = vsel %vm4469, %v4881, 0
        %v4940 = vsel %vm4469, %v4882, 0
        %4942 = vmatpush.bf16.msra.mxu0 0
        %4943 = vmatpush.bf16.msra.mxu0 0
        %4944 = vmatpush.bf16.msra.mxu0 0
        %4945 = vmatpush.bf16.msra.mxu0 0
        %4946 = vmatpush.bf16.msra.mxu0 0
        %4947 = vmatpush.bf16.msra.mxu0 0
        %4948 = vmatpush.bf16.msra.mxu0 0
        %4949 = vmatpush.bf16.msra.mxu0 %v4931
        %4950 = vmatmul.bf16.gmra.mxu0 %v4934
        %v4951 = vpop.f32.mrf.mxu0
        %v4952 = vadd.f32 %v4914, %v4951
        %v4953 = vpop.f32.mrf.mxu0
        %v4954 = vadd.f32 %v4916, %v4953
        %4955 = vmatmul.bf16.gmra.mxu0 %v4937
        %v4956 = vpop.f32.mrf.mxu0
        %v4957 = vadd.f32 %v4919, %v4956
        %v4958 = vpop.f32.mrf.mxu0
        %v4959 = vadd.f32 %v4921, %v4958
        %4960 = vmatmul.bf16.gmra.mxu0 %v4940
        %v4961 = vpop.f32.mrf.mxu0
        %v4962 = vadd.f32 %v4924, %v4961
        %v4963 = vpop.f32.mrf.mxu0
        %4964 = vdwg.mxu0
        %s4965 = scalar_lea.vmem %s3, 16
        %v4966 = vld [vmem:[%s4965] sm:$0xf]
        %v4967 = vld [vmem:[%s4965 + $0x4] sm:$0xf]
        %v4968 = vshrl.u32 %v4880, 16
        %v4970 = vshll.u32 %v4880, 16
        %v4972 = vrot.slane %v4970, 1
        %v4973 = vor.u32 %v4968, %v4972
        %v4974 = vshll.u32 %v4881, 16
        %v4976 = vrot.slane %v4974, 1
        %v4977 = vsel %vm1759, %v4973, %v4976
        %v4978 = vshrl.u32 %v4881, 16
        %v4980 = vor.u32 %v4978, %v4976
        %v4981 = vshll.u32 %v4882, 16
        %v4983 = vrot.slane %v4981, 1
        %v4984 = vsel %vm1759, %v4980, %v4983
        %v4985 = vshrl.u32 %v4882, 16
        %v4987 = vor.u32 %v4985, %v4983
        %v4990 = vunpack.c.l.b16 %v4966
        %v4991 = vunpack.c.l.b16 %v4967
        %v4992 = vpack.c.b16 %v4991, %v4990
        %v4995 = vsel %vm4469, %v4977, 0
        %v4998 = vsel %vm4469, %v4984, 0
        %v5001 = vsel %vm4469, %v4987, 0
        %5003 = vmatpush.bf16.msra.mxu0 0
        %5004 = vmatpush.bf16.msra.mxu0 0
        %5005 = vmatpush.bf16.msra.mxu0 0
        %5006 = vmatpush.bf16.msra.mxu0 0
        %5007 = vmatpush.bf16.msra.mxu0 0
        %5008 = vmatpush.bf16.msra.mxu0 0
        %5009 = vmatpush.bf16.msra.mxu0 0
        %5010 = vmatpush.bf16.msra.mxu0 %v4992
        %5011 = vmatmul.bf16.gmra.mxu0 %v4995
        %v5012 = vpop.f32.mrf.mxu0
        %v5013 = vadd.f32 0.0, %v5012
        %v5014 = vpop.f32.mrf.mxu0
        %v5015 = vadd.f32 0.0, %v5014
        %5016 = vmatmul.bf16.gmra.mxu0 %v4998
        %v5017 = vpop.f32.mrf.mxu0
        %v5018 = vadd.f32 0.0, %v5017
        %v5019 = vpop.f32.mrf.mxu0
        %v5020 = vadd.f32 0.0, %v5019
        %5021 = vmatmul.bf16.gmra.mxu0 %v5001
        %v5022 = vpop.f32.mrf.mxu0
        %v5023 = vadd.f32 0.0, %v5022
        %v5024 = vpop.f32.mrf.mxu0
        %5025 = vdwg.mxu0
        %v5026 = vadd.f32 %v4952, %v5013
        %v5027 = vadd.f32 %v4954, %v5015
        %v5028 = vadd.f32 %v4957, %v5018
        %v5029 = vadd.f32 %v4959, %v5020
        %v5030 = vadd.f32 %v4962, %v5023
        %s5031 = scalar_lea.vmem %s3, 24
        %v5032 = vld [vmem:[%s5031] sm:$0xf]
        %v5033 = vld [vmem:[%s5031 + $0x4] sm:$0xf]
        %v5034 = vshrl.u32 %v4886, 16
        %v5036 = vshll.u32 %v4886, 16
        %v5038 = vrot.slane %v5036, 1
        %v5039 = vor.u32 %v5034, %v5038
        %v5040 = vshll.u32 %v4887, 16
        %v5042 = vrot.slane %v5040, 1
        %v5043 = vsel %vm1759, %v5039, %v5042
        %v5044 = vshrl.u32 %v4887, 16
        %v5046 = vor.u32 %v5044, %v5042
        %v5047 = vshll.u32 %v4888, 16
        %v5049 = vrot.slane %v5047, 1
        %v5050 = vsel %vm1759, %v5046, %v5049
        %v5051 = vshrl.u32 %v4888, 16
        %v5053 = vor.u32 %v5051, %v5049
        %v5056 = vunpack.c.l.b16 %v5032
        %v5057 = vunpack.c.l.b16 %v5033
        %v5058 = vpack.c.b16 %v5057, %v5056
        %v5061 = vsel %vm4469, %v5043, 0
        %v5064 = vsel %vm4469, %v5050, 0
        %v5067 = vsel %vm4469, %v5053, 0
        %5069 = vmatpush.bf16.msra.mxu0 0
        %5070 = vmatpush.bf16.msra.mxu0 0
        %5071 = vmatpush.bf16.msra.mxu0 0
        %5072 = vmatpush.bf16.msra.mxu0 0
        %5073 = vmatpush.bf16.msra.mxu0 0
        %5074 = vmatpush.bf16.msra.mxu0 0
        %5075 = vmatpush.bf16.msra.mxu0 0
        %5076 = vmatpush.bf16.msra.mxu0 %v5058
        %5077 = vmatmul.bf16.gmra.mxu0 %v5061
        %v5078 = vpop.f32.mrf.mxu0
        %v5079 = vadd.f32 0.0, %v5078
        %v5080 = vpop.f32.mrf.mxu0
        %v5081 = vadd.f32 0.0, %v5080
        %5082 = vmatmul.bf16.gmra.mxu0 %v5064
        %v5083 = vpop.f32.mrf.mxu0
        %v5084 = vadd.f32 0.0, %v5083
        %v5085 = vpop.f32.mrf.mxu0
        %v5086 = vadd.f32 0.0, %v5085
        %5087 = vmatmul.bf16.gmra.mxu0 %v5067
        %v5088 = vpop.f32.mrf.mxu0
        %v5089 = vadd.f32 0.0, %v5088
        %v5090 = vpop.f32.mrf.mxu0
        %5091 = vdwg.mxu0
        %v5092 = vadd.f32 %v5026, %v5079
        %v5093 = vadd.f32 %v5027, %v5081
        %v5094 = vadd.f32 %v5028, %v5084
        %v5095 = vadd.f32 %v5029, %v5086
        %v5096 = vadd.f32 %v5030, %v5089
        %s5097 = scalar_lea.vmem %s3, 32
        %v5098 = vld [vmem:[%s5097] sm:$0xf]
        %v5099 = vld [vmem:[%s5097 + $0x4] sm:$0xf]
        %vm5100 = vsmask.f32 5376
        %v5101 = vrot.slane %v4968, 2
        %v5102 = vrot.slane %v4970, 3
        %v5103 = vor.u32 %v5101, %v5102
        %v5104 = vrot.slane %v4978, 2
        %v5105 = vrot.slane %v4974, 3
        %v5106 = vor.u32 %v5104, %v5105
        %v5107 = vsel %vm5100, %v5103, %v5106
        %v5108 = vrot.slane %v4985, 2
        %v5109 = vrot.slane %v4981, 3
        %v5110 = vor.u32 %v5108, %v5109
        %v5111 = vsel %vm5100, %v5106, %v5110
        %v5114 = vunpack.c.l.b16 %v5098
        %v5115 = vunpack.c.l.b16 %v5099
        %v5116 = vpack.c.b16 %v5115, %v5114
        %v5119 = vsel %vm4469, %v5107, 0
        %v5122 = vsel %vm4469, %v5111, 0
        %v5125 = vsel %vm4469, %v5110, 0
        %5127 = vmatpush.bf16.msra.mxu0 0
        %5128 = vmatpush.bf16.msra.mxu0 0
        %5129 = vmatpush.bf16.msra.mxu0 0
        %5130 = vmatpush.bf16.msra.mxu0 0
        %5131 = vmatpush.bf16.msra.mxu0 0
        %5132 = vmatpush.bf16.msra.mxu0 0
        %5133 = vmatpush.bf16.msra.mxu0 0
        %5134 = vmatpush.bf16.msra.mxu0 %v5116
        %5135 = vmatmul.bf16.gmra.mxu0 %v5119
        %v5136 = vpop.f32.mrf.mxu0
        %v5137 = vadd.f32 0.0, %v5136
        %v5138 = vpop.f32.mrf.mxu0
        %v5139 = vadd.f32 0.0, %v5138
        %5140 = vmatmul.bf16.gmra.mxu0 %v5122
        %v5141 = vpop.f32.mrf.mxu0
        %v5142 = vadd.f32 0.0, %v5141
        %v5143 = vpop.f32.mrf.mxu0
        %v5144 = vadd.f32 0.0, %v5143
        %5145 = vmatmul.bf16.gmra.mxu0 %v5125
        %v5146 = vpop.f32.mrf.mxu0
        %v5147 = vadd.f32 0.0, %v5146
        %v5148 = vpop.f32.mrf.mxu0
        %5149 = vdwg.mxu0
        %v5150 = vadd.f32 %v5092, %v5137
        %v5151 = vadd.f32 %v5093, %v5139
        %v5152 = vadd.f32 %v5094, %v5142
        %v5153 = vadd.f32 %v5095, %v5144
        %v5154 = vadd.f32 %v5096, %v5147
        %s5155 = scalar_lea.vmem %s3, 40
        %v5156 = vld [vmem:[%s5155] sm:$0xf]
        %v5157 = vld [vmem:[%s5155 + $0x4] sm:$0xf]
        %v5158 = vrot.slane %v5034, 2
        %v5159 = vrot.slane %v5036, 3
        %v5160 = vor.u32 %v5158, %v5159
        %v5161 = vrot.slane %v5044, 2
        %v5162 = vrot.slane %v5040, 3
        %v5163 = vor.u32 %v5161, %v5162
        %v5164 = vsel %vm5100, %v5160, %v5163
        %v5165 = vrot.slane %v5051, 2
        %v5166 = vrot.slane %v5047, 3
        %v5167 = vor.u32 %v5165, %v5166
        %v5168 = vsel %vm5100, %v5163, %v5167
        %v5171 = vunpack.c.l.b16 %v5156
        %v5172 = vunpack.c.l.b16 %v5157
        %v5173 = vpack.c.b16 %v5172, %v5171
        %v5176 = vsel %vm4469, %v5164, 0
        %v5179 = vsel %vm4469, %v5168, 0
        %v5182 = vsel %vm4469, %v5167, 0
        %5184 = vmatpush.bf16.msra.mxu0 0
        %5185 = vmatpush.bf16.msra.mxu0 0
        %5186 = vmatpush.bf16.msra.mxu0 0
        %5187 = vmatpush.bf16.msra.mxu0 0
        %5188 = vmatpush.bf16.msra.mxu0 0
        %5189 = vmatpush.bf16.msra.mxu0 0
        %5190 = vmatpush.bf16.msra.mxu0 0
        %5191 = vmatpush.bf16.msra.mxu0 %v5173
        %5192 = vmatmul.bf16.gmra.mxu0 %v5176
        %v5193 = vpop.f32.mrf.mxu0
        %v5194 = vadd.f32 0.0, %v5193
        %v5195 = vpop.f32.mrf.mxu0
        %v5196 = vadd.f32 0.0, %v5195
        %5197 = vmatmul.bf16.gmra.mxu0 %v5179
        %v5198 = vpop.f32.mrf.mxu0
        %v5199 = vadd.f32 0.0, %v5198
        %v5200 = vpop.f32.mrf.mxu0
        %v5201 = vadd.f32 0.0, %v5200
        %5202 = vmatmul.bf16.gmra.mxu0 %v5182
        %v5203 = vpop.f32.mrf.mxu0
        %v5204 = vadd.f32 0.0, %v5203
        %v5205 = vpop.f32.mrf.mxu0
        %5206 = vdwg.mxu0
        %v5207 = vadd.f32 %v5150, %v5194
        %v5208 = vadd.f32 %v5151, %v5196
        %v5209 = vadd.f32 %v5152, %v5199
        %v5210 = vadd.f32 %v5153, %v5201
        %v5211 = vadd.f32 %v5154, %v5204
        %s5212 = scalar_lea.vmem %s3, 48
        %v5213 = vld [vmem:[%s5212] sm:$0xf]
        %v5214 = vld [vmem:[%s5212 + $0x4] sm:$0xf]
        %vm5218 = vcmask 1044480
        %v5219 = vrot.slane %v4880, 3
        %v5220 = vrot.slane %v4881, 3
        %v5221 = vsel %vm5218, %v5219, %v5220
        %v5222 = vrot.slane %v4882, 3
        %v5223 = vsel %vm5218, %v5220, %v5222
        %v5226 = vunpack.c.l.b16 %v5213
        %v5227 = vunpack.c.l.b16 %v5214
        %v5228 = vpack.c.b16 %v5227, %v5226
        %v5231 = vsel %vm4469, %v5221, 0
        %v5234 = vsel %vm4469, %v5223, 0
        %v5237 = vsel %vm4469, %v5222, 0
        %5239 = vmatpush.bf16.msra.mxu0 0
        %5240 = vmatpush.bf16.msra.mxu0 0
        %5241 = vmatpush.bf16.msra.mxu0 0
        %5242 = vmatpush.bf16.msra.mxu0 0
        %5243 = vmatpush.bf16.msra.mxu0 0
        %5244 = vmatpush.bf16.msra.mxu0 0
        %5245 = vmatpush.bf16.msra.mxu0 0
        %5246 = vmatpush.bf16.msra.mxu0 %v5228
        %5247 = vmatmul.bf16.gmra.mxu0 %v5231
        %v5248 = vpop.f32.mrf.mxu0
        %v5249 = vadd.f32 0.0, %v5248
        %v5250 = vpop.f32.mrf.mxu0
        %v5251 = vadd.f32 0.0, %v5250
        %5252 = vmatmul.bf16.gmra.mxu0 %v5234
        %v5253 = vpop.f32.mrf.mxu0
        %v5254 = vadd.f32 0.0, %v5253
        %v5255 = vpop.f32.mrf.mxu0
        %v5256 = vadd.f32 0.0, %v5255
        %5257 = vmatmul.bf16.gmra.mxu0 %v5237
        %v5258 = vpop.f32.mrf.mxu0
        %v5259 = vadd.f32 0.0, %v5258
        %v5260 = vpop.f32.mrf.mxu0
        %5261 = vdwg.mxu0
        %v5262 = vadd.f32 %v5207, %v5249
        %v5263 = vadd.f32 %v5208, %v5251
        %v5264 = vadd.f32 %v5209, %v5254
        %v5265 = vadd.f32 %v5210, %v5256
        %v5266 = vadd.f32 %v5211, %v5259
        %s5267 = scalar_lea.vmem %s3, 56
        %v5268 = vld [vmem:[%s5267] sm:$0xf]
        %v5269 = vld [vmem:[%s5267 + $0x4] sm:$0xf]
        %v5273 = vrot.slane %v4886, 3
        %v5274 = vrot.slane %v4887, 3
        %v5275 = vsel %vm5218, %v5273, %v5274
        %v5276 = vrot.slane %v4888, 3
        %v5277 = vsel %vm5218, %v5274, %v5276
        %v5280 = vunpack.c.l.b16 %v5268
        %v5281 = vunpack.c.l.b16 %v5269
        %v5282 = vpack.c.b16 %v5281, %v5280
        %v5285 = vsel %vm4469, %v5275, 0
        %v5288 = vsel %vm4469, %v5277, 0
        %v5291 = vsel %vm4469, %v5276, 0
        %5293 = vmatpush.bf16.msra.mxu0 0
        %5294 = vmatpush.bf16.msra.mxu0 0
        %5295 = vmatpush.bf16.msra.mxu0 0
        %5296 = vmatpush.bf16.msra.mxu0 0
        %5297 = vmatpush.bf16.msra.mxu0 0
        %5298 = vmatpush.bf16.msra.mxu0 0
        %5299 = vmatpush.bf16.msra.mxu0 0
        %5300 = vmatpush.bf16.msra.mxu0 %v5282
        %5301 = vmatmul.bf16.gmra.mxu0 %v5285
        %v5302 = vpop.f32.mrf.mxu0
        %v5303 = vadd.f32 0.0, %v5302
        %v5304 = vpop.f32.mrf.mxu0
        %v5305 = vadd.f32 0.0, %v5304
        %5306 = vmatmul.bf16.gmra.mxu0 %v5288
        %v5307 = vpop.f32.mrf.mxu0
        %v5308 = vadd.f32 0.0, %v5307
        %v5309 = vpop.f32.mrf.mxu0
        %v5310 = vadd.f32 0.0, %v5309
        %5311 = vmatmul.bf16.gmra.mxu0 %v5291
        %v5312 = vpop.f32.mrf.mxu0
        %v5313 = vadd.f32 0.0, %v5312
        %v5314 = vpop.f32.mrf.mxu0
        %5315 = vdwg.mxu0
        %v5316 = vadd.f32 %v5262, %v5303
        %v5317 = vadd.f32 %v5263, %v5305
        %v5318 = vadd.f32 %v5264, %v5308
        %v5319 = vadd.f32 %v5265, %v5310
        %v5320 = vadd.f32 %v5266, %v5313
        %s5321 = scalar_lea.vmem %s3, 64
        %v5322 = vld [vmem:[%s5321] sm:$0xf]
        %v5323 = vld [vmem:[%s5321 + $0x4] sm:$0xf]
        %v5324 = vpack.c.bf16 %v4756, %v4753
        %v5325 = vpack.c.bf16 %v4761, %v4758
        %v5326 = vpack.c.bf16 %v4763, %v4763
        %v5330 = vrot.slane %v5324, 1
        %v5331 = vrot.slane %v5325, 1
        %v5332 = vsel %vm2461, %v5330, %v5331
        %v5333 = vrot.slane %v5326, 1
        %v5334 = vsel %vm2461, %v5331, %v5333
        %v5337 = vunpack.c.l.b16 %v5322
        %v5338 = vunpack.c.l.b16 %v5323
        %v5339 = vpack.c.b16 %v5338, %v5337
        %v5342 = vsel %vm4469, %v5332, 0
        %v5345 = vsel %vm4469, %v5334, 0
        %v5348 = vsel %vm4469, %v5333, 0
        %5350 = vmatpush.bf16.msra.mxu0 0
        %5351 = vmatpush.bf16.msra.mxu0 0
        %5352 = vmatpush.bf16.msra.mxu0 0
        %5353 = vmatpush.bf16.msra.mxu0 0
        %5354 = vmatpush.bf16.msra.mxu0 0
        %5355 = vmatpush.bf16.msra.mxu0 0
        %5356 = vmatpush.bf16.msra.mxu0 0
        %5357 = vmatpush.bf16.msra.mxu0 %v5339
        %5358 = vmatmul.bf16.gmra.mxu0 %v5342
        %v5359 = vpop.f32.mrf.mxu0
        %v5360 = vadd.f32 0.0, %v5359
        %v5361 = vpop.f32.mrf.mxu0
        %v5362 = vadd.f32 0.0, %v5361
        %5363 = vmatmul.bf16.gmra.mxu0 %v5345
        %v5364 = vpop.f32.mrf.mxu0
        %v5365 = vadd.f32 0.0, %v5364
        %v5366 = vpop.f32.mrf.mxu0
        %v5367 = vadd.f32 0.0, %v5366
        %5368 = vmatmul.bf16.gmra.mxu0 %v5348
        %v5369 = vpop.f32.mrf.mxu0
        %v5370 = vadd.f32 0.0, %v5369
        %v5371 = vpop.f32.mrf.mxu0
        %5372 = vdwg.mxu0
        %v5373 = vadd.f32 %v5316, %v5360
        %v5374 = vadd.f32 %v5317, %v5362
        %v5375 = vadd.f32 %v5318, %v5365
        %v5376 = vadd.f32 %v5319, %v5367
        %v5377 = vadd.f32 %v5320, %v5370
        %s5378 = scalar_lea.vmem %s3, 72
        %v5379 = vld [vmem:[%s5378] sm:$0xf]
        %v5380 = vld [vmem:[%s5378 + $0x4] sm:$0xf]
        %v5381 = vpack.c.bf16 %v4865, %v4862
        %v5382 = vpack.c.bf16 %v4870, %v4867
        %v5383 = vpack.c.bf16 %v4872, %v4872
        %v5387 = vrot.slane %v5381, 1
        %v5388 = vrot.slane %v5382, 1
        %v5389 = vsel %vm2461, %v5387, %v5388
        %v5390 = vrot.slane %v5383, 1
        %v5391 = vsel %vm2461, %v5388, %v5390
        %v5394 = vunpack.c.l.b16 %v5379
        %v5395 = vunpack.c.l.b16 %v5380
        %v5396 = vpack.c.b16 %v5395, %v5394
        %v5399 = vsel %vm4469, %v5389, 0
        %v5402 = vsel %vm4469, %v5391, 0
        %v5405 = vsel %vm4469, %v5390, 0
        %5407 = vmatpush.bf16.msra.mxu0 0
        %5408 = vmatpush.bf16.msra.mxu0 0
        %5409 = vmatpush.bf16.msra.mxu0 0
        %5410 = vmatpush.bf16.msra.mxu0 0
        %5411 = vmatpush.bf16.msra.mxu0 0
        %5412 = vmatpush.bf16.msra.mxu0 0
        %5413 = vmatpush.bf16.msra.mxu0 0
        %5414 = vmatpush.bf16.msra.mxu0 %v5396
        %5415 = vmatmul.bf16.gmra.mxu0 %v5399
        %v5416 = vpop.f32.mrf.mxu0
        %v5417 = vadd.f32 0.0, %v5416
        %v5418 = vpop.f32.mrf.mxu0
        %v5419 = vadd.f32 0.0, %v5418
        %5420 = vmatmul.bf16.gmra.mxu0 %v5402
        %v5421 = vpop.f32.mrf.mxu0
        %v5422 = vadd.f32 0.0, %v5421
        %v5423 = vpop.f32.mrf.mxu0
        %v5424 = vadd.f32 0.0, %v5423
        %5425 = vmatmul.bf16.gmra.mxu0 %v5405
        %v5426 = vpop.f32.mrf.mxu0
        %v5427 = vadd.f32 0.0, %v5426
        %v5428 = vpop.f32.mrf.mxu0
        %5429 = vdwg.mxu0
        %v5430 = vadd.f32 %v5373, %v5417
        %v5431 = vadd.f32 %v5374, %v5419
        %v5432 = vadd.f32 %v5375, %v5422
        %v5433 = vadd.f32 %v5376, %v5424
        %v5434 = vadd.f32 %v5377, %v5427
        %s5435 = scalar_lea.vmem %s3, 80
        %v5436 = vld [vmem:[%s5435] sm:$0xf]
        %v5437 = vld [vmem:[%s5435 + $0x4] sm:$0xf]
        %v5439 = vshrl.u32 %v5324, 16
        %v5441 = vrot.slane %v5439, 1
        %v5442 = vshll.u32 %v5324, 16
        %v5444 = vrot.slane %v5442, 2
        %v5445 = vor.u32 %v5441, %v5444
        %v5447 = vshrl.u32 %v5325, 16
        %v5449 = vrot.slane %v5447, 1
        %v5450 = vshll.u32 %v5325, 16
        %v5452 = vrot.slane %v5450, 2
        %v5453 = vor.u32 %v5449, %v5452
        %v5454 = vsel %vm2970, %v5445, %v5453
        %v5456 = vshrl.u32 %v5326, 16
        %v5458 = vrot.slane %v5456, 1
        %v5459 = vshll.u32 %v5326, 16
        %v5461 = vrot.slane %v5459, 2
        %v5462 = vor.u32 %v5458, %v5461
        %v5463 = vsel %vm2970, %v5453, %v5462
        %v5466 = vunpack.c.l.b16 %v5436
        %v5467 = vunpack.c.l.b16 %v5437
        %v5468 = vpack.c.b16 %v5467, %v5466
        %v5471 = vsel %vm4469, %v5454, 0
        %v5474 = vsel %vm4469, %v5463, 0
        %v5477 = vsel %vm4469, %v5462, 0
        %5479 = vmatpush.bf16.msra.mxu0 0
        %5480 = vmatpush.bf16.msra.mxu0 0
        %5481 = vmatpush.bf16.msra.mxu0 0
        %5482 = vmatpush.bf16.msra.mxu0 0
        %5483 = vmatpush.bf16.msra.mxu0 0
        %5484 = vmatpush.bf16.msra.mxu0 0
        %5485 = vmatpush.bf16.msra.mxu0 0
        %5486 = vmatpush.bf16.msra.mxu0 %v5468
        %5487 = vmatmul.bf16.gmra.mxu0 %v5471
        %v5488 = vpop.f32.mrf.mxu0
        %v5489 = vadd.f32 0.0, %v5488
        %v5490 = vpop.f32.mrf.mxu0
        %v5491 = vadd.f32 0.0, %v5490
        %5492 = vmatmul.bf16.gmra.mxu0 %v5474
        %v5493 = vpop.f32.mrf.mxu0
        %v5494 = vadd.f32 0.0, %v5493
        %v5495 = vpop.f32.mrf.mxu0
        %v5496 = vadd.f32 0.0, %v5495
        %5497 = vmatmul.bf16.gmra.mxu0 %v5477
        %v5498 = vpop.f32.mrf.mxu0
        %v5499 = vadd.f32 0.0, %v5498
        %v5500 = vpop.f32.mrf.mxu0
        %5501 = vdwg.mxu0
        %v5502 = vadd.f32 %v5430, %v5489
        %v5503 = vadd.f32 %v5431, %v5491
        %v5504 = vadd.f32 %v5432, %v5494
        %v5505 = vadd.f32 %v5433, %v5496
        %v5506 = vadd.f32 %v5434, %v5499
        %s5507 = scalar_lea.vmem %s3, 88
        %v5508 = vld [vmem:[%s5507] sm:$0xf]
        %v5509 = vld [vmem:[%s5507 + $0x4] sm:$0xf]
        %v5511 = vshrl.u32 %v5381, 16
        %v5513 = vrot.slane %v5511, 1
        %v5514 = vshll.u32 %v5381, 16
        %v5516 = vrot.slane %v5514, 2
        %v5517 = vor.u32 %v5513, %v5516
        %v5519 = vshrl.u32 %v5382, 16
        %v5521 = vrot.slane %v5519, 1
        %v5522 = vshll.u32 %v5382, 16
        %v5524 = vrot.slane %v5522, 2
        %v5525 = vor.u32 %v5521, %v5524
        %v5526 = vsel %vm2970, %v5517, %v5525
        %v5528 = vshrl.u32 %v5383, 16
        %v5530 = vrot.slane %v5528, 1
        %v5531 = vshll.u32 %v5383, 16
        %v5533 = vrot.slane %v5531, 2
        %v5534 = vor.u32 %v5530, %v5533
        %v5535 = vsel %vm2970, %v5525, %v5534
        %v5538 = vunpack.c.l.b16 %v5508
        %v5539 = vunpack.c.l.b16 %v5509
        %v5540 = vpack.c.b16 %v5539, %v5538
        %v5543 = vsel %vm4469, %v5526, 0
        %v5546 = vsel %vm4469, %v5535, 0
        %v5549 = vsel %vm4469, %v5534, 0
        %5551 = vmatpush.bf16.msra.mxu0 0
        %5552 = vmatpush.bf16.msra.mxu0 0
        %5553 = vmatpush.bf16.msra.mxu0 0
        %5554 = vmatpush.bf16.msra.mxu0 0
        %5555 = vmatpush.bf16.msra.mxu0 0
        %5556 = vmatpush.bf16.msra.mxu0 0
        %5557 = vmatpush.bf16.msra.mxu0 0
        %5558 = vmatpush.bf16.msra.mxu0 %v5540
        %5559 = vmatmul.bf16.gmra.mxu0 %v5543
        %v5560 = vpop.f32.mrf.mxu0
        %v5561 = vadd.f32 0.0, %v5560
        %v5562 = vpop.f32.mrf.mxu0
        %v5563 = vadd.f32 0.0, %v5562
        %5564 = vmatmul.bf16.gmra.mxu0 %v5546
        %v5565 = vpop.f32.mrf.mxu0
        %v5566 = vadd.f32 0.0, %v5565
        %v5567 = vpop.f32.mrf.mxu0
        %v5568 = vadd.f32 0.0, %v5567
        %5569 = vmatmul.bf16.gmra.mxu0 %v5549
        %v5570 = vpop.f32.mrf.mxu0
        %v5571 = vadd.f32 0.0, %v5570
        %v5572 = vpop.f32.mrf.mxu0
        %5573 = vdwg.mxu0
        %v5574 = vadd.f32 %v5502, %v5561
        %v5575 = vadd.f32 %v5503, %v5563
        %v5576 = vadd.f32 %v5504, %v5566
        %v5577 = vadd.f32 %v5505, %v5568
        %v5578 = vadd.f32 %v5506, %v5571
        %s5579 = scalar_lea.vmem %s3, 96
        %v5580 = vld [vmem:[%s5579] sm:$0xf]
        %v5581 = vld [vmem:[%s5579 + $0x4] sm:$0xf]
        %v5582 = vpack.c.bf16 %v4766, %v4763
        %vm5583 = vsmask.f32 4352
        %v5584 = vrot.slane %v5439, 3
        %v5585 = vrot.slane %v5442, 4
        %v5586 = vor.u32 %v5584, %v5585
        %v5587 = vrot.slane %v5447, 3
        %v5588 = vrot.slane %v5450, 4
        %v5589 = vor.u32 %v5587, %v5588
        %v5590 = vsel %vm5583, %v5586, %v5589
        %v5592 = vshrl.u32 %v5582, 16
        %v5594 = vrot.slane %v5592, 3
        %v5595 = vshll.u32 %v5582, 16
        %v5597 = vrot.slane %v5595, 4
        %v5598 = vor.u32 %v5594, %v5597
        %v5599 = vsel %vm5583, %v5589, %v5598
        %v5602 = vunpack.c.l.b16 %v5580
        %v5603 = vunpack.c.l.b16 %v5581
        %v5604 = vpack.c.b16 %v5603, %v5602
        %v5607 = vsel %vm4469, %v5590, 0
        %v5610 = vsel %vm4469, %v5599, 0
        %v5613 = vsel %vm4469, %v5598, 0
        %5615 = vmatpush.bf16.msra.mxu0 0
        %5616 = vmatpush.bf16.msra.mxu0 0
        %5617 = vmatpush.bf16.msra.mxu0 0
        %5618 = vmatpush.bf16.msra.mxu0 0
        %5619 = vmatpush.bf16.msra.mxu0 0
        %5620 = vmatpush.bf16.msra.mxu0 0
        %5621 = vmatpush.bf16.msra.mxu0 0
        %5622 = vmatpush.bf16.msra.mxu0 %v5604
        %5623 = vmatmul.bf16.gmra.mxu0 %v5607
        %v5624 = vpop.f32.mrf.mxu0
        %v5625 = vadd.f32 0.0, %v5624
        %v5626 = vpop.f32.mrf.mxu0
        %v5627 = vadd.f32 0.0, %v5626
        %5628 = vmatmul.bf16.gmra.mxu0 %v5610
        %v5629 = vpop.f32.mrf.mxu0
        %v5630 = vadd.f32 0.0, %v5629
        %v5631 = vpop.f32.mrf.mxu0
        %v5632 = vadd.f32 0.0, %v5631
        %5633 = vmatmul.bf16.gmra.mxu0 %v5613
        %v5634 = vpop.f32.mrf.mxu0
        %v5635 = vadd.f32 0.0, %v5634
        %v5636 = vpop.f32.mrf.mxu0
        %5637 = vdwg.mxu0
        %v5638 = vadd.f32 %v5574, %v5625
        %v5639 = vadd.f32 %v5575, %v5627
        %v5640 = vadd.f32 %v5576, %v5630
        %v5641 = vadd.f32 %v5577, %v5632
        %v5642 = vadd.f32 %v5578, %v5635
        %s5643 = scalar_lea.vmem %s3, 104
        %v5644 = vld [vmem:[%s5643] sm:$0xf]
        %v5645 = vld [vmem:[%s5643 + $0x4] sm:$0xf]
        %v5646 = vpack.c.bf16 %v4875, %v4872
        %v5647 = vrot.slane %v5511, 3
        %v5648 = vrot.slane %v5514, 4
        %v5649 = vor.u32 %v5647, %v5648
        %v5650 = vrot.slane %v5519, 3
        %v5651 = vrot.slane %v5522, 4
        %v5652 = vor.u32 %v5650, %v5651
        %v5653 = vsel %vm5583, %v5649, %v5652
        %v5655 = vshrl.u32 %v5646, 16
        %v5657 = vrot.slane %v5655, 3
        %v5658 = vshll.u32 %v5646, 16
        %v5660 = vrot.slane %v5658, 4
        %v5661 = vor.u32 %v5657, %v5660
        %v5662 = vsel %vm5583, %v5652, %v5661
        %v5665 = vunpack.c.l.b16 %v5644
        %v5666 = vunpack.c.l.b16 %v5645
        %v5667 = vpack.c.b16 %v5666, %v5665
        %v5670 = vsel %vm4469, %v5653, 0
        %v5673 = vsel %vm4469, %v5662, 0
        %v5676 = vsel %vm4469, %v5661, 0
        %5678 = vmatpush.bf16.msra.mxu0 0
        %5679 = vmatpush.bf16.msra.mxu0 0
        %5680 = vmatpush.bf16.msra.mxu0 0
        %5681 = vmatpush.bf16.msra.mxu0 0
        %5682 = vmatpush.bf16.msra.mxu0 0
        %5683 = vmatpush.bf16.msra.mxu0 0
        %5684 = vmatpush.bf16.msra.mxu0 0
        %5685 = vmatpush.bf16.msra.mxu0 %v5667
        %5686 = vmatmul.bf16.gmra.mxu0 %v5670
        %v5687 = vpop.f32.mrf.mxu0
        %v5688 = vadd.f32 0.0, %v5687
        %v5689 = vpop.f32.mrf.mxu0
        %v5690 = vadd.f32 0.0, %v5689
        %5691 = vmatmul.bf16.gmra.mxu0 %v5673
        %v5692 = vpop.f32.mrf.mxu0
        %v5693 = vadd.f32 0.0, %v5692
        %v5694 = vpop.f32.mrf.mxu0
        %v5695 = vadd.f32 0.0, %v5694
        %5696 = vmatmul.bf16.gmra.mxu0 %v5676
        %v5697 = vpop.f32.mrf.mxu0
        %v5698 = vadd.f32 0.0, %v5697
        %v5699 = vpop.f32.mrf.mxu0
        %5700 = vdwg.mxu0
        %v5701 = vadd.f32 %v5638, %v5688
        %v5702 = vadd.f32 %v5639, %v5690
        %v5703 = vadd.f32 %v5640, %v5693
        %v5704 = vadd.f32 %v5641, %v5695
        %v5705 = vadd.f32 %v5642, %v5698
        %s5706 = scalar_lea.vmem %s3, 112
        %v5707 = vld [vmem:[%s5706] sm:$0xf]
        %v5708 = vld [vmem:[%s5706 + $0x4] sm:$0xf]
        %v5709 = vpack.c.bf16 %v4763, %v4761
        %v5710 = vpack.c.bf16 %v4766, %v4766
        %v5713 = vunpack.c.l.b16 %v5707
        %v5714 = vunpack.c.l.b16 %v5708
        %v5715 = vpack.c.b16 %v5714, %v5713
        %v5718 = vsel %vm4469, %v5709, 0
        %v5721 = vsel %vm4469, %v5710, 0
        %5723 = vmatpush.bf16.msra.mxu0 0
        %5724 = vmatpush.bf16.msra.mxu0 0
        %5725 = vmatpush.bf16.msra.mxu0 0
        %5726 = vmatpush.bf16.msra.mxu0 0
        %5727 = vmatpush.bf16.msra.mxu0 0
        %5728 = vmatpush.bf16.msra.mxu0 0
        %5729 = vmatpush.bf16.msra.mxu0 0
        %5730 = vmatpush.bf16.msra.mxu0 %v5715
        %5731 = vmatmul.bf16.gmra.mxu0 %v4937
        %v5732 = vpop.f32.mrf.mxu0
        %v5733 = vadd.f32 0.0, %v5732
        %v5734 = vpop.f32.mrf.mxu0
        %v5735 = vadd.f32 0.0, %v5734
        %5736 = vmatmul.bf16.gmra.mxu0 %v5718
        %v5737 = vpop.f32.mrf.mxu0
        %v5738 = vadd.f32 0.0, %v5737
        %v5739 = vpop.f32.mrf.mxu0
        %v5740 = vadd.f32 0.0, %v5739
        %5741 = vmatmul.bf16.gmra.mxu0 %v5721
        %v5742 = vpop.f32.mrf.mxu0
        %v5743 = vadd.f32 0.0, %v5742
        %v5744 = vpop.f32.mrf.mxu0
        %5745 = vdwg.mxu0
        %v5746 = vadd.f32 %v5701, %v5733
        %v5747 = vadd.f32 %v5702, %v5735
        %v5748 = vadd.f32 %v5703, %v5738
        %v5749 = vadd.f32 %v5704, %v5740
        %v5750 = vadd.f32 %v5705, %v5743
        %s5751 = scalar_lea.vmem %s3, 120
        %v5752 = vld [vmem:[%s5751] sm:$0xf]
        %v5753 = vld [vmem:[%s5751 + $0x4] sm:$0xf]
        %v5754 = vpack.c.bf16 %v4872, %v4870
        %v5755 = vpack.c.bf16 %v4875, %v4875
        %v5758 = vunpack.c.l.b16 %v5752
        %v5759 = vunpack.c.l.b16 %v5753
        %v5760 = vpack.c.b16 %v5759, %v5758
        %v5763 = vsel %vm4469, %v5754, 0
        %v5766 = vsel %vm4469, %v5755, 0
        %5768 = vmatpush.bf16.msra.mxu0 0
        %5769 = vmatpush.bf16.msra.mxu0 0
        %5770 = vmatpush.bf16.msra.mxu0 0
        %5771 = vmatpush.bf16.msra.mxu0 0
        %5772 = vmatpush.bf16.msra.mxu0 0
        %5773 = vmatpush.bf16.msra.mxu0 0
        %5774 = vmatpush.bf16.msra.mxu0 0
        %5775 = vmatpush.bf16.msra.mxu0 %v5760
        %5776 = vmatmul.bf16.gmra.mxu0 %v4899
        %v5777 = vpop.f32.mrf.mxu0
        %v5778 = vadd.f32 0.0, %v5777
        %v5779 = vpop.f32.mrf.mxu0
        %v5780 = vadd.f32 0.0, %v5779
        %5781 = vmatmul.bf16.gmra.mxu0 %v5763
        %v5782 = vpop.f32.mrf.mxu0
        %v5783 = vadd.f32 0.0, %v5782
        %v5784 = vpop.f32.mrf.mxu0
        %v5785 = vadd.f32 0.0, %v5784
        %5786 = vmatmul.bf16.gmra.mxu0 %v5766
        %v5787 = vpop.f32.mrf.mxu0
        %v5788 = vadd.f32 0.0, %v5787
        %v5789 = vpop.f32.mrf.mxu0
        %5790 = vdwg.mxu0
        %v5791 = vadd.f32 %v5746, %v5778
        %v5792 = vadd.f32 %v5747, %v5780
        %v5793 = vadd.f32 %v5748, %v5783
        %v5794 = vadd.f32 %v5749, %v5785
        %v5795 = vadd.f32 %v5750, %v5788
        %vm5796 = vcmp.lt.s32.totalorder %v3806, 0
        %v5797 = vsub.s32 0, %v3806
        %v5798 = vsel %vm5796, %v5797, %v3806
        %v5799 = vand.u32 %v5798, 65535
        %v5800 = vshrl.u32 %v5798, 16
        %v5802 = vmul.u32 %v5799, 52429
        %v5803 = vmul.u32 %v5799, 52428
        %v5804 = vmul.u32 %v5800, 52429
        %v5805 = vmul.u32 %v5800, 52428
        %v5806 = vshll.u32 %v5803, 16
        %v5807 = vshrl.u32 %v5803, 16
        %v5808 = vshll.u32 %v5804, 16
        %v5809 = vshrl.u32 %v5804, 16
        %vm5810 = vc.u32 %v5802, %v5806
        %v5811 = vsel %vm5810, 1, 0
        %v5812 = vadd.s32 %v5802, %v5806
        %v5813 = vadd.s32 %v5805, %v5811
        %vm5814 = vc.u32 %v5812, %v5808
        %v5815 = vsel %vm5814, 1, 0
        %v5816 = vadd.s32 %v5812, %v5808
        %v5817 = vadd.s32 %v5813, %v5815
        %v5818 = vadd.s32 %v5817, %v5807
        %v5819 = vadd.s32 %v5818, %v5809
        %v5820 = vshrl.u32 %v5819, 3
        %v5821 = vmul.u32 %v5820, 10
        %v5822 = vsub.s32 %v5798, %v5821
        %v5823 = vsub.s32 0, %v5822
        %v5824 = vsel %vm5796, %v5823, %v5822
        %vm5825 = vcmp.lt.s32.totalorder %v3807, 0
        %v5826 = vsub.s32 0, %v3807
        %v5827 = vsel %vm5825, %v5826, %v3807
        %v5828 = vand.u32 %v5827, 65535
        %v5829 = vshrl.u32 %v5827, 16
        %v5831 = vmul.u32 %v5828, 52429
        %v5832 = vmul.u32 %v5828, 52428
        %v5833 = vmul.u32 %v5829, 52429
        %v5834 = vmul.u32 %v5829, 52428
        %v5835 = vshll.u32 %v5832, 16
        %v5836 = vshrl.u32 %v5832, 16
        %v5837 = vshll.u32 %v5833, 16
        %v5838 = vshrl.u32 %v5833, 16
        %vm5839 = vc.u32 %v5831, %v5835
        %v5840 = vsel %vm5839, 1, 0
        %v5841 = vadd.s32 %v5831, %v5835
        %v5842 = vadd.s32 %v5834, %v5840
        %vm5843 = vc.u32 %v5841, %v5837
        %v5844 = vsel %vm5843, 1, 0
        %v5845 = vadd.s32 %v5841, %v5837
        %v5846 = vadd.s32 %v5842, %v5844
        %v5847 = vadd.s32 %v5846, %v5836
        %v5848 = vadd.s32 %v5847, %v5838
        %v5849 = vshrl.u32 %v5848, 3
        %v5850 = vmul.u32 %v5849, 10
        %v5851 = vsub.s32 %v5827, %v5850
        %v5852 = vsub.s32 0, %v5851
        %v5853 = vsel %vm5825, %v5852, %v5851
        %vm5854 = vcmp.lt.s32.totalorder %v3808, 0
        %v5855 = vsub.s32 0, %v3808
        %v5856 = vsel %vm5854, %v5855, %v3808
        %v5857 = vand.u32 %v5856, 65535
        %v5858 = vshrl.u32 %v5856, 16
        %v5860 = vmul.u32 %v5857, 52429
        %v5861 = vmul.u32 %v5857, 52428
        %v5862 = vmul.u32 %v5858, 52429
        %v5863 = vmul.u32 %v5858, 52428
        %v5864 = vshll.u32 %v5861, 16
        %v5865 = vshrl.u32 %v5861, 16
        %v5866 = vshll.u32 %v5862, 16
        %v5867 = vshrl.u32 %v5862, 16
        %vm5868 = vc.u32 %v5860, %v5864
        %v5869 = vsel %vm5868, 1, 0
        %v5870 = vadd.s32 %v5860, %v5864
        %v5871 = vadd.s32 %v5863, %v5869
        %vm5872 = vc.u32 %v5870, %v5866
        %v5873 = vsel %vm5872, 1, 0
        %v5874 = vadd.s32 %v5870, %v5866
        %v5875 = vadd.s32 %v5871, %v5873
        %v5876 = vadd.s32 %v5875, %v5865
        %v5877 = vadd.s32 %v5876, %v5867
        %v5878 = vshrl.u32 %v5877, 3
        %v5879 = vmul.u32 %v5878, 10
        %v5880 = vsub.s32 %v5856, %v5879
        %v5881 = vsub.s32 0, %v5880
        %v5882 = vsel %vm5854, %v5881, %v5880
        %vm5883 = vcmp.lt.s32.totalorder %v3809, 0
        %v5884 = vsub.s32 0, %v3809
        %v5885 = vsel %vm5883, %v5884, %v3809
        %v5886 = vand.u32 %v5885, 65535
        %v5887 = vshrl.u32 %v5885, 16
        %v5889 = vmul.u32 %v5886, 52429
        %v5890 = vmul.u32 %v5886, 52428
        %v5891 = vmul.u32 %v5887, 52429
        %v5892 = vmul.u32 %v5887, 52428
        %v5893 = vshll.u32 %v5890, 16
        %v5894 = vshrl.u32 %v5890, 16
        %v5895 = vshll.u32 %v5891, 16
        %v5896 = vshrl.u32 %v5891, 16
        %vm5897 = vc.u32 %v5889, %v5893
        %v5898 = vsel %vm5897, 1, 0
        %v5899 = vadd.s32 %v5889, %v5893
        %v5900 = vadd.s32 %v5892, %v5898
        %vm5901 = vc.u32 %v5899, %v5895
        %v5902 = vsel %vm5901, 1, 0
        %v5903 = vadd.s32 %v5899, %v5895
        %v5904 = vadd.s32 %v5900, %v5902
        %v5905 = vadd.s32 %v5904, %v5894
        %v5906 = vadd.s32 %v5905, %v5896
        %v5907 = vshrl.u32 %v5906, 3
        %v5908 = vmul.u32 %v5907, 10
        %v5909 = vsub.s32 %v5885, %v5908
        %v5910 = vsub.s32 0, %v5909
        %v5911 = vsel %vm5883, %v5910, %v5909
        %vm5912 = vcmp.lt.s32.totalorder %v3810, 0
        %v5913 = vsub.s32 0, %v3810
        %v5914 = vsel %vm5912, %v5913, %v3810
        %v5915 = vand.u32 %v5914, 65535
        %v5916 = vshrl.u32 %v5914, 16
        %v5918 = vmul.u32 %v5915, 52429
        %v5919 = vmul.u32 %v5915, 52428
        %v5920 = vmul.u32 %v5916, 52429
        %v5921 = vmul.u32 %v5916, 52428
        %v5922 = vshll.u32 %v5919, 16
        %v5923 = vshrl.u32 %v5919, 16
        %v5924 = vshll.u32 %v5920, 16
        %v5925 = vshrl.u32 %v5920, 16
        %vm5926 = vc.u32 %v5918, %v5922
        %v5927 = vsel %vm5926, 1, 0
        %v5928 = vadd.s32 %v5918, %v5922
        %v5929 = vadd.s32 %v5921, %v5927
        %vm5930 = vc.u32 %v5928, %v5924
        %v5931 = vsel %vm5930, 1, 0
        %v5932 = vadd.s32 %v5928, %v5924
        %v5933 = vadd.s32 %v5929, %v5931
        %v5934 = vadd.s32 %v5933, %v5923
        %v5935 = vadd.s32 %v5934, %v5925
        %v5936 = vshrl.u32 %v5935, 3
        %v5937 = vmul.u32 %v5936, 10
        %v5938 = vsub.s32 %v5914, %v5937
        %v5939 = vsub.s32 0, %v5938
        %v5940 = vsel %vm5912, %v5939, %v5938
        %vm5941 = vcmp.ne.s32.totalorder %v5824, 0
        %vm5942 = vcmp.ne.s32.totalorder %v5853, 0
        %vm5943 = vcmp.ne.s32.totalorder %v5882, 0
        %vm5944 = vcmp.ne.s32.totalorder %v5911, 0
        %vm5945 = vcmp.ne.s32.totalorder %v5940, 0
        %vm5946 = vcmp.lt.s32.totalorder %v5824, 0
        %vm5947 = vcmp.lt.s32.totalorder %v5853, 0
        %vm5948 = vcmp.lt.s32.totalorder %v5882, 0
        %vm5949 = vcmp.lt.s32.totalorder %v5911, 0
        %vm5950 = vcmp.lt.s32.totalorder %v5940, 0
        %vm5951 = vmand %vm5946, %vm5941
        %vm5952 = vmand %vm5947, %vm5942
        %vm5953 = vmand %vm5948, %vm5943
        %vm5954 = vmand %vm5949, %vm5944
        %vm5955 = vmand %vm5950, %vm5945
        %v5956 = vadd.s32 %v5824, 10
        %v5957 = vadd.s32 %v5853, 10
        %v5958 = vadd.s32 %v5882, 10
        %v5959 = vadd.s32 %v5911, 10
        %v5960 = vadd.s32 %v5940, 10
        %v5961 = vsel %vm5951, %v5956, %v5824
        %v5962 = vsel %vm5952, %v5957, %v5853
        %v5963 = vsel %vm5953, %v5958, %v5882
        %v5964 = vsel %vm5954, %v5959, %v5911
        %v5965 = vsel %vm5955, %v5960, %v5940
        %vm5966 = vcmp.lt.s32.totalorder %v5961, 4
        %vm5967 = vcmp.lt.s32.totalorder %v5962, 4
        %vm5968 = vcmp.lt.s32.totalorder %v5963, 4
        %vm5969 = vcmp.lt.s32.totalorder %v5964, 4
        %vm5970 = vcmp.lt.s32.totalorder %v5965, 4
        %v5971 = vsel %vm5966, 1, 0
        %v5972 = vsel %vm5967, 1, 0
        %v5973 = vsel %vm5968, 1, 0
        %v5974 = vsel %vm5969, 1, 0
        %v5975 = vsel %vm5970, 1, 0
        %vm5976 = vcmp.eq.s32.totalorder %v5971, 1
        %vm5977 = vcmp.eq.s32.totalorder %v5972, 1
        %vm5978 = vcmp.eq.s32.totalorder %v5973, 1
        %vm5979 = vcmp.eq.s32.totalorder %v5974, 1
        %vm5980 = vcmp.eq.s32.totalorder %v5975, 1
        %v5981 = vsel %vm5976, %v5791, 0.0
        %v5982 = vsel %vm5977, %v5792, 0.0
        %v5983 = vsel %vm5978, %v5793, 0.0
        %v5984 = vsel %vm5979, %v5794, 0.0
        %v5985 = vsel %vm5980, %v5795, 0.0
        %vm5986 = vcmask 261120
        %v5987 = vsel %vm5986, %v5981, 0.0
        %v5988 = vsel %vm5986, %v5982, 0.0
        %v5989 = vadd.f32 %v5987, %v5988
        %v5990 = vsel %vm5986, %v5983, 0.0
        %v5991 = vadd.f32 %v5989, %v5990
        %v5992 = vsel %vm5986, %v5984, 0.0
        %v5993 = vadd.f32 %v5991, %v5992
        %vm5994 = vcmask 254976
        %v5995 = vsel %vm5994, %v5985, 0.0
        %v5996 = vadd.f32 %v5993, %v5995
        %v5997 = vrot.slane %v5996, 4
        %v5998 = vadd.f32 %v5996, %v5997
        %v5999 = vrot.slane %v5998, 2
        %v6000 = vadd.f32 %v5998, %v5999
        %v6001 = vrot.slane %v6000, 1
        %v6002 = vadd.f32 %v6000, %v6001
        %v6003 = vmul.f32 %v6002, 0.0625
        %v6004 = vsub.f32 %v5791, %v6003
        %v6005 = vsub.f32 %v5792, %v6003
        %v6006 = vsub.f32 %v5793, %v6003
        %v6007 = vsub.f32 %v5794, %v6003
        %v6008 = vsub.f32 %v5795, %v6003
        %v6009 = vsel %vm5976, %v6004, 0.0
        %v6010 = vsel %vm5977, %v6005, 0.0
        %v6011 = vsel %vm5978, %v6006, 0.0
        %v6012 = vsel %vm5979, %v6007, 0.0
        %v6013 = vsel %vm5980, %v6008, 0.0
        %v6014 = vmul.f32 %v6009, %v6009
        %v6015 = vmul.f32 %v6010, %v6010
        %v6016 = vmul.f32 %v6011, %v6011
        %v6017 = vmul.f32 %v6012, %v6012
        %v6018 = vmul.f32 %v6013, %v6013
        %v6019 = vsel %vm5986, %v6014, 0.0
        %v6020 = vsel %vm5986, %v6015, 0.0
        %v6021 = vadd.f32 %v6019, %v6020
        %v6022 = vsel %vm5986, %v6016, 0.0
        %v6023 = vadd.f32 %v6021, %v6022
        %v6024 = vsel %vm5986, %v6017, 0.0
        %v6025 = vadd.f32 %v6023, %v6024
        %v6026 = vsel %vm5994, %v6018, 0.0
        %v6027 = vadd.f32 %v6025, %v6026
        %v6028 = vrot.slane %v6027, 4
        %v6029 = vadd.f32 %v6027, %v6028
        %v6030 = vrot.slane %v6029, 2
        %v6031 = vadd.f32 %v6029, %v6030
        %v6032 = vrot.slane %v6031, 1
        %v6033 = vadd.f32 %v6031, %v6032
        %v6034 = vmul.f32 %v6033, 0.0625
        %v6035 = vadd.f32 %v6034, 1e-05
        %v6036 = vrsqrt.pop %v6035
        %v6037 = vmul.f32 %v6036, %v6035
        %v6038 = vmul.f32 %v6037, %v6036
        %v6039 = vmul.f32 0.5, %v6038
        %v6040 = vsub.f32 1.5, %v6039
        %v6041 = vmul.f32 %v6036, %v6040
        %vm6042 = vweird.f32 %v6035
        %vm6043 = vweird.f32 %v6036
        %vm6044 = vmor %vm6042, %vm6043
        %v6045 = vsel %vm6044, %v6036, %v6041
        %v6046 = vmul.f32 %v6004, %v6045
        %v6047 = vmul.f32 %v6005, %v6045
        %v6048 = vmul.f32 %v6006, %v6045
        %v6049 = vmul.f32 %v6007, %v6045
        %v6050 = vmul.f32 %v6008, %v6045
        %v6051 = vmax.f32 %v6046, 0.0
        %v6052 = vmax.f32 %v6047, 0.0
        %v6053 = vmax.f32 %v6048, 0.0
        %v6054 = vmax.f32 %v6049, 0.0
        %v6055 = vmax.f32 %v6050, 0.0
        %v6057 = vrot.slane %v6052, 6
        %v6060 = vrot.slane %v6053, 4
        %vm6064 = vcmask 1045504
        %v6065 = vrot.slane %v6054, 2
        %v6066 = vrot.slane %v6055, 2
        %v6067 = vsel %vm6064, %v6065, %v6066
        %v6069 = vsel %vm1617, %v6051, %v6057
        %v6070 = vsel %vm1617, %v6060, %v6067
        %v6072 = vrot.slane %v6069, 1
        %v6074 = vrot.slane %v6069, 7
        %v6076 = vrot.slane %v6069, 5
        %v6078 = vsel %vm579, %v6072, %v6074
        %vm6079 = vcmask 1044480
        %v6080 = vsel %vm6079, %v6078, %v6076
        %v6081 = vrot.slane %v6069, 3
        %v6083 = vsel %vm579, %v6076, %v6081
        %v6084 = vsel %vm6079, %v6083, %v6072
        %v6086 = vrot.slane %v6070, 1
        %v6088 = vrot.slane %v6070, 7
        %v6090 = vrot.slane %v6070, 5
        %v6092 = vsel %vm579, %v6086, %v6088
        %v6093 = vsel %vm6079, %v6092, %v6090
        %v6094 = vrot.slane %v6070, 3
        %v6096 = vsel %vm579, %v6090, %v6094
        %v6097 = vsel %vm6079, %v6096, %v6086
        %v6099 = vrot.slane %v6080, 2
        %v6102 = vrot.slane %v6084, 4
        %v6105 = vrot.slane %v6093, 6
        %v6107 = vrot.slane %v6093, 2
        %v6109 = vsel %vm6064, %v6084, %v6099
        %v6110 = vsel %vm1617, %v6099, %v6102
        %v6111 = vsel %vm580, %v6102, %v6105
        %v6112 = vsel %vm6064, %v6097, %v6107
        %v6113 = vld [vmem:[%s4] sm:$0xf]
        %v6114 = vld [vmem:[%s4 + $0x4] sm:$0xf]
        %v6115 = vld [vmem:[%s4 + $0x8] sm:$0xf]
        %v6116 = vld [vmem:[%s4 + $0xc] sm:$0xf]
        %v6117 = vpack.c.bf16 %v6110, %v6109
        %v6118 = vpack.c.bf16 %v6111, %v6111
        %s6119 = scalar_lea.vmem %s4, 16
        %v6120 = vld [vmem:[%s6119] sm:$0xf]
        %v6121 = vld [vmem:[%s6119 + $0x4] sm:$0xf]
        %v6122 = vld [vmem:[%s6119 + $0x8] sm:$0xf]
        %v6123 = vld [vmem:[%s6119 + $0xc] sm:$0xf]
        %v6125 = vshrl.u32 %v6117, 16
        %v6127 = vshll.u32 %v6117, 16
        %v6129 = vrot.slane %v6127, 1
        %v6130 = vor.u32 %v6125, %v6129
        %v6132 = vshll.u32 %v6118, 16
        %v6134 = vrot.slane %v6132, 1
        %v6135 = vsel %vm1759, %v6130, %v6134
        %v6136 = vshrl.u32 %v6118, 16
        %v6138 = vor.u32 %v6136, %v6134
        %v6143 = vunpack.c.l.b16 %v6120
        %v6144 = vunpack.c.l.b16 %v6121
        %v6145 = vunpack.c.l.b16 %v6122
        %v6146 = vunpack.c.l.b16 %v6123
        %v6147 = vpack.c.b16 %v6144, %v6143
        %v6148 = vpack.c.b16 %v6146, %v6145
        %v6152 = vsel %vm5986, %v6135, 0
        %v6155 = vsel %vm5986, %v6138, 0
        %6157 = vmatpush.bf16.msra.mxu0 0
        %6158 = vmatpush.bf16.msra.mxu0 0
        %6159 = vmatpush.bf16.msra.mxu0 0
        %6160 = vmatpush.bf16.msra.mxu0 0
        %6161 = vmatpush.bf16.msra.mxu0 0
        %6162 = vmatpush.bf16.msra.mxu0 0
        %6163 = vmatpush.bf16.msra.mxu0 %v6148
        %6164 = vmatpush.bf16.msra.mxu0 %v6147
        %6165 = vmatmul.bf16.gmra.mxu0 %v6152
        %v6166 = vpop.f32.mrf.mxu0
        %v6167 = vadd.f32 0.0, %v6166
        %v6168 = vpop.f32.mrf.mxu0
        %v6169 = vadd.f32 0.0, %v6168
        %6170 = vmatmul.bf16.gmra.mxu0 %v6155
        %v6171 = vpop.f32.mrf.mxu0
        %v6172 = vadd.f32 0.0, %v6171
        %v6173 = vpop.f32.mrf.mxu0
        %6174 = vdwg.mxu0
        %v6179 = vunpack.c.l.b16 %v6113
        %v6180 = vunpack.c.l.b16 %v6114
        %v6181 = vunpack.c.l.b16 %v6115
        %v6182 = vunpack.c.l.b16 %v6116
        %v6183 = vpack.c.b16 %v6180, %v6179
        %v6184 = vpack.c.b16 %v6182, %v6181
        %v6187 = vsel %vm5986, %v6117, 0
        %v6189 = vsel %vm5986, %v6118, 0
        %6191 = vmatpush.bf16.msra.mxu0 0
        %6192 = vmatpush.bf16.msra.mxu0 0
        %6193 = vmatpush.bf16.msra.mxu0 0
        %6194 = vmatpush.bf16.msra.mxu0 0
        %6195 = vmatpush.bf16.msra.mxu0 0
        %6196 = vmatpush.bf16.msra.mxu0 0
        %6197 = vmatpush.bf16.msra.mxu0 %v6184
        %6198 = vmatpush.bf16.msra.mxu0 %v6183
        %6199 = vmatmul.bf16.gmra.mxu0 %v6187
        %v6200 = vpop.f32.mrf.mxu0
        %v6201 = vadd.f32 %v6167, %v6200
        %v6202 = vpop.f32.mrf.mxu0
        %v6203 = vadd.f32 %v6169, %v6202
        %6204 = vmatmul.bf16.gmra.mxu0 %v6189
        %v6205 = vpop.f32.mrf.mxu0
        %v6206 = vadd.f32 %v6172, %v6205
        %v6207 = vpop.f32.mrf.mxu0
        %6208 = vdwg.mxu0
        %s6209 = scalar_lea.vmem %s4, 32
        %v6210 = vld [vmem:[%s6209] sm:$0xf]
        %v6211 = vld [vmem:[%s6209 + $0x4] sm:$0xf]
        %v6212 = vld [vmem:[%s6209 + $0x8] sm:$0xf]
        %v6213 = vld [vmem:[%s6209 + $0xc] sm:$0xf]
        %v6216 = vrot.slane %v6117, 1
        %v6217 = vrot.slane %v6118, 1
        %v6218 = vsel %vm2461, %v6216, %v6217
        %v6223 = vunpack.c.l.b16 %v6210
        %v6224 = vunpack.c.l.b16 %v6211
        %v6225 = vunpack.c.l.b16 %v6212
        %v6226 = vunpack.c.l.b16 %v6213
        %v6227 = vpack.c.b16 %v6224, %v6223
        %v6228 = vpack.c.b16 %v6226, %v6225
        %v6232 = vsel %vm5986, %v6218, 0
        %v6235 = vsel %vm5986, %v6217, 0
        %6237 = vmatpush.bf16.msra.mxu0 0
        %6238 = vmatpush.bf16.msra.mxu0 0
        %6239 = vmatpush.bf16.msra.mxu0 0
        %6240 = vmatpush.bf16.msra.mxu0 0
        %6241 = vmatpush.bf16.msra.mxu0 0
        %6242 = vmatpush.bf16.msra.mxu0 0
        %6243 = vmatpush.bf16.msra.mxu0 %v6228
        %6244 = vmatpush.bf16.msra.mxu0 %v6227
        %6245 = vmatmul.bf16.gmra.mxu0 %v6232
        %v6246 = vpop.f32.mrf.mxu0
        %v6247 = vadd.f32 0.0, %v6246
        %v6248 = vpop.f32.mrf.mxu0
        %v6249 = vadd.f32 0.0, %v6248
        %6250 = vmatmul.bf16.gmra.mxu0 %v6235
        %v6251 = vpop.f32.mrf.mxu0
        %v6252 = vadd.f32 0.0, %v6251
        %v6253 = vpop.f32.mrf.mxu0
        %6254 = vdwg.mxu0
        %v6255 = vadd.f32 %v6201, %v6247
        %v6256 = vadd.f32 %v6203, %v6249
        %v6257 = vadd.f32 %v6206, %v6252
        %s6258 = scalar_lea.vmem %s4, 48
        %v6259 = vld [vmem:[%s6258] sm:$0xf]
        %v6260 = vld [vmem:[%s6258 + $0x4] sm:$0xf]
        %v6261 = vld [vmem:[%s6258 + $0x8] sm:$0xf]
        %v6262 = vld [vmem:[%s6258 + $0xc] sm:$0xf]
        %v6263 = vpack.c.bf16 %v6112, %v6111
        %v6265 = vrot.slane %v6117, 3
        %v6266 = vrot.slane %v6263, 3
        %v6267 = vsel %vm5218, %v6265, %v6266
        %v6272 = vunpack.c.l.b16 %v6259
        %v6273 = vunpack.c.l.b16 %v6260
        %v6274 = vunpack.c.l.b16 %v6261
        %v6275 = vunpack.c.l.b16 %v6262
        %v6276 = vpack.c.b16 %v6273, %v6272
        %v6277 = vpack.c.b16 %v6275, %v6274
        %v6281 = vsel %vm5986, %v6267, 0
        %v6284 = vsel %vm5986, %v6266, 0
        %6286 = vmatpush.bf16.msra.mxu0 0
        %6287 = vmatpush.bf16.msra.mxu0 0
        %6288 = vmatpush.bf16.msra.mxu0 0
        %6289 = vmatpush.bf16.msra.mxu0 0
        %6290 = vmatpush.bf16.msra.mxu0 0
        %6291 = vmatpush.bf16.msra.mxu0 0
        %6292 = vmatpush.bf16.msra.mxu0 %v6277
        %6293 = vmatpush.bf16.msra.mxu0 %v6276
        %6294 = vmatmul.bf16.gmra.mxu0 %v6281
        %v6295 = vpop.f32.mrf.mxu0
        %v6296 = vadd.f32 0.0, %v6295
        %v6297 = vpop.f32.mrf.mxu0
        %v6298 = vadd.f32 0.0, %v6297
        %6299 = vmatmul.bf16.gmra.mxu0 %v6284
        %v6300 = vpop.f32.mrf.mxu0
        %v6301 = vadd.f32 0.0, %v6300
        %v6302 = vpop.f32.mrf.mxu0
        %6303 = vdwg.mxu0
        %v6304 = vadd.f32 %v6255, %v6296
        %v6305 = vadd.f32 %v6256, %v6298
        %v6306 = vadd.f32 %v6257, %v6301
        %s6307 = scalar_lea.vmem %s4, 64
        %v6308 = vld [vmem:[%s6307] sm:$0xf]
        %v6309 = vld [vmem:[%s6307 + $0x4] sm:$0xf]
        %v6310 = vld [vmem:[%s6307 + $0x8] sm:$0xf]
        %v6311 = vld [vmem:[%s6307 + $0xc] sm:$0xf]
        %v6312 = vrot.slane %v6125, 3
        %v6313 = vrot.slane %v6127, 4
        %v6314 = vor.u32 %v6312, %v6313
        %v6316 = vshrl.u32 %v6263, 16
        %v6318 = vrot.slane %v6316, 3
        %v6319 = vshll.u32 %v6263, 16
        %v6321 = vrot.slane %v6319, 4
        %v6322 = vor.u32 %v6318, %v6321
        %v6323 = vsel %vm5583, %v6314, %v6322
        %v6328 = vunpack.c.l.b16 %v6308
        %v6329 = vunpack.c.l.b16 %v6309
        %v6330 = vunpack.c.l.b16 %v6310
        %v6331 = vunpack.c.l.b16 %v6311
        %v6332 = vpack.c.b16 %v6329, %v6328
        %v6333 = vpack.c.b16 %v6331, %v6330
        %v6337 = vsel %vm5986, %v6323, 0
        %v6340 = vsel %vm5986, %v6322, 0
        %6342 = vmatpush.bf16.msra.mxu0 0
        %6343 = vmatpush.bf16.msra.mxu0 0
        %6344 = vmatpush.bf16.msra.mxu0 0
        %6345 = vmatpush.bf16.msra.mxu0 0
        %6346 = vmatpush.bf16.msra.mxu0 0
        %6347 = vmatpush.bf16.msra.mxu0 0
        %6348 = vmatpush.bf16.msra.mxu0 %v6333
        %6349 = vmatpush.bf16.msra.mxu0 %v6332
        %6350 = vmatmul.bf16.gmra.mxu0 %v6337
        %v6351 = vpop.f32.mrf.mxu0
        %v6352 = vadd.f32 0.0, %v6351
        %v6353 = vpop.f32.mrf.mxu0
        %v6354 = vadd.f32 0.0, %v6353
        %6355 = vmatmul.bf16.gmra.mxu0 %v6340
        %v6356 = vpop.f32.mrf.mxu0
        %v6357 = vadd.f32 0.0, %v6356
        %v6358 = vpop.f32.mrf.mxu0
        %6359 = vdwg.mxu0
        %v6360 = vadd.f32 %v6304, %v6352
        %v6361 = vadd.f32 %v6305, %v6354
        %v6362 = vadd.f32 %v6306, %v6357
        %s6363 = scalar_lea.vmem %s4, 80
        %v6364 = vld [vmem:[%s6363] sm:$0xf]
        %v6365 = vld [vmem:[%s6363 + $0x4] sm:$0xf]
        %v6366 = vld [vmem:[%s6363 + $0x8] sm:$0xf]
        %v6367 = vld [vmem:[%s6363 + $0xc] sm:$0xf]
        %v6368 = vpack.c.bf16 %v6111, %v6110
        %v6369 = vpack.c.bf16 %v6112, %v6112
        %v6374 = vunpack.c.l.b16 %v6364
        %v6375 = vunpack.c.l.b16 %v6365
        %v6376 = vunpack.c.l.b16 %v6366
        %v6377 = vunpack.c.l.b16 %v6367
        %v6378 = vpack.c.b16 %v6375, %v6374
        %v6379 = vpack.c.b16 %v6377, %v6376
        %v6383 = vsel %vm5986, %v6368, 0
        %v6386 = vsel %vm5986, %v6369, 0
        %6388 = vmatpush.bf16.msra.mxu0 0
        %6389 = vmatpush.bf16.msra.mxu0 0
        %6390 = vmatpush.bf16.msra.mxu0 0
        %6391 = vmatpush.bf16.msra.mxu0 0
        %6392 = vmatpush.bf16.msra.mxu0 0
        %6393 = vmatpush.bf16.msra.mxu0 0
        %6394 = vmatpush.bf16.msra.mxu0 %v6379
        %6395 = vmatpush.bf16.msra.mxu0 %v6378
        %6396 = vmatmul.bf16.gmra.mxu0 %v6383
        %v6397 = vpop.f32.mrf.mxu0
        %v6398 = vadd.f32 0.0, %v6397
        %v6399 = vpop.f32.mrf.mxu0
        %v6400 = vadd.f32 0.0, %v6399
        %6401 = vmatmul.bf16.gmra.mxu0 %v6386
        %v6402 = vpop.f32.mrf.mxu0
        %v6403 = vadd.f32 0.0, %v6402
        %v6404 = vpop.f32.mrf.mxu0
        %6405 = vdwg.mxu0
        %v6406 = vadd.f32 %v6360, %v6398
        %v6407 = vadd.f32 %v6361, %v6400
        %v6408 = vadd.f32 %v6362, %v6403
        %s6409 = scalar_lea.vmem %s4, 96
        %v6410 = vld [vmem:[%s6409] sm:$0xf]
        %v6411 = vld [vmem:[%s6409 + $0x4] sm:$0xf]
        %v6412 = vld [vmem:[%s6409 + $0x8] sm:$0xf]
        %v6413 = vld [vmem:[%s6409 + $0xc] sm:$0xf]
        %v6414 = vpack.c.bf16 %v6107, %v6112
        %v6417 = vrot.slane %v6368, 2
        %v6418 = vrot.slane %v6414, 2
        %v6419 = vsel %vm3566, %v6417, %v6418
        %v6424 = vunpack.c.l.b16 %v6410
        %v6425 = vunpack.c.l.b16 %v6411
        %v6426 = vunpack.c.l.b16 %v6412
        %v6427 = vunpack.c.l.b16 %v6413
        %v6428 = vpack.c.b16 %v6425, %v6424
        %v6429 = vpack.c.b16 %v6427, %v6426
        %v6433 = vsel %vm5986, %v6419, 0
        %v6436 = vsel %vm5986, %v6418, 0
        %6438 = vmatpush.bf16.msra.mxu0 0
        %6439 = vmatpush.bf16.msra.mxu0 0
        %6440 = vmatpush.bf16.msra.mxu0 0
        %6441 = vmatpush.bf16.msra.mxu0 0
        %6442 = vmatpush.bf16.msra.mxu0 0
        %6443 = vmatpush.bf16.msra.mxu0 0
        %6444 = vmatpush.bf16.msra.mxu0 %v6429
        %6445 = vmatpush.bf16.msra.mxu0 %v6428
        %6446 = vmatmul.bf16.gmra.mxu0 %v6433
        %v6447 = vpop.f32.mrf.mxu0
        %v6448 = vadd.f32 0.0, %v6447
        %v6449 = vpop.f32.mrf.mxu0
        %v6450 = vadd.f32 0.0, %v6449
        %6451 = vmatmul.bf16.gmra.mxu0 %v6436
        %v6452 = vpop.f32.mrf.mxu0
        %v6453 = vadd.f32 0.0, %v6452
        %v6454 = vpop.f32.mrf.mxu0
        %6455 = vdwg.mxu0
        %v6456 = vadd.f32 %v6406, %v6448
        %v6457 = vadd.f32 %v6407, %v6450
        %v6458 = vadd.f32 %v6408, %v6453
        %s6459 = scalar_lea.vmem %s4, 112
        %v6460 = vld [vmem:[%s6459] sm:$0xf]
        %v6461 = vld [vmem:[%s6459 + $0x4] sm:$0xf]
        %v6462 = vld [vmem:[%s6459 + $0x8] sm:$0xf]
        %v6463 = vld [vmem:[%s6459 + $0xc] sm:$0xf]
        %v6464 = vshrl.u32 %v6368, 16
        %v6466 = vrot.slane %v6464, 2
        %v6467 = vshll.u32 %v6368, 16
        %v6469 = vrot.slane %v6467, 3
        %v6470 = vor.u32 %v6466, %v6469
        %v6472 = vshrl.u32 %v6414, 16
        %v6474 = vrot.slane %v6472, 2
        %v6475 = vshll.u32 %v6414, 16
        %v6477 = vrot.slane %v6475, 3
        %v6478 = vor.u32 %v6474, %v6477
        %v6479 = vsel %vm5100, %v6470, %v6478
        %v6484 = vunpack.c.l.b16 %v6460
        %v6485 = vunpack.c.l.b16 %v6461
        %v6486 = vunpack.c.l.b16 %v6462
        %v6487 = vunpack.c.l.b16 %v6463
        %v6488 = vpack.c.b16 %v6485, %v6484
        %v6489 = vpack.c.b16 %v6487, %v6486
        %v6493 = vsel %vm5986, %v6479, 0
        %v6496 = vsel %vm5986, %v6478, 0
        %6498 = vmatpush.bf16.msra.mxu0 0
        %6499 = vmatpush.bf16.msra.mxu0 0
        %6500 = vmatpush.bf16.msra.mxu0 0
        %6501 = vmatpush.bf16.msra.mxu0 0
        %6502 = vmatpush.bf16.msra.mxu0 0
        %6503 = vmatpush.bf16.msra.mxu0 0
        %6504 = vmatpush.bf16.msra.mxu0 %v6489
        %6505 = vmatpush.bf16.msra.mxu0 %v6488
        %6506 = vmatmul.bf16.gmra.mxu0 %v6493
        %v6507 = vpop.f32.mrf.mxu0
        %v6508 = vadd.f32 0.0, %v6507
        %v6509 = vpop.f32.mrf.mxu0
        %v6510 = vadd.f32 0.0, %v6509
        %6511 = vmatmul.bf16.gmra.mxu0 %v6496
        %v6512 = vpop.f32.mrf.mxu0
        %v6513 = vadd.f32 0.0, %v6512
        %v6514 = vpop.f32.mrf.mxu0
        %6515 = vdwg.mxu0
        %v6516 = vadd.f32 %v6456, %v6508
        %v6517 = vadd.f32 %v6457, %v6510
        %v6518 = vadd.f32 %v6458, %v6513
        %s6519 = scalar_lea.vmem %s4, 128
        %v6520 = vld [vmem:[%s6519] sm:$0xf]
        %v6521 = vld [vmem:[%s6519 + $0x4] sm:$0xf]
        %v6522 = vld [vmem:[%s6519 + $0x8] sm:$0xf]
        %v6523 = vld [vmem:[%s6519 + $0xc] sm:$0xf]
        %v6524 = vrot.slane %v6368, 3
        %v6525 = vrot.slane %v6414, 3
        %v6526 = vsel %vm5218, %v6524, %v6525
        %v6531 = vunpack.c.l.b16 %v6520
        %v6532 = vunpack.c.l.b16 %v6521
        %v6533 = vunpack.c.l.b16 %v6522
        %v6534 = vunpack.c.l.b16 %v6523
        %v6535 = vpack.c.b16 %v6532, %v6531
        %v6536 = vpack.c.b16 %v6534, %v6533
        %v6540 = vsel %vm5986, %v6526, 0
        %v6543 = vsel %vm5986, %v6525, 0
        %6545 = vmatpush.bf16.msra.mxu0 0
        %6546 = vmatpush.bf16.msra.mxu0 0
        %6547 = vmatpush.bf16.msra.mxu0 0
        %6548 = vmatpush.bf16.msra.mxu0 0
        %6549 = vmatpush.bf16.msra.mxu0 0
        %6550 = vmatpush.bf16.msra.mxu0 0
        %6551 = vmatpush.bf16.msra.mxu0 %v6536
        %6552 = vmatpush.bf16.msra.mxu0 %v6535
        %6553 = vmatmul.bf16.gmra.mxu0 %v6540
        %v6554 = vpop.f32.mrf.mxu0
        %v6555 = vadd.f32 0.0, %v6554
        %v6556 = vpop.f32.mrf.mxu0
        %v6557 = vadd.f32 0.0, %v6556
        %6558 = vmatmul.bf16.gmra.mxu0 %v6543
        %v6559 = vpop.f32.mrf.mxu0
        %v6560 = vadd.f32 0.0, %v6559
        %v6561 = vpop.f32.mrf.mxu0
        %6562 = vdwg.mxu0
        %v6563 = vadd.f32 %v6516, %v6555
        %v6564 = vadd.f32 %v6517, %v6557
        %v6565 = vadd.f32 %v6518, %v6560
        %v6568 = vrot.slane %v6563, 2
        %v6569 = vrot.slane %v6564, 2
        %v6570 = vsel %vm6064, %v6568, %v6569
        %v6572 = vrot.slane %v6564, 4
        %v6575 = vrot.slane %v6565, 6
        %v6577 = vsel %vm1617, %v6563, %v6570
        %v6578 = vsel %vm1617, %v6572, %v6575
        %v6579 = vsel %vm5986, %v6577, 0.0
        %v6580 = vsel %vm5986, %v6578, 0.0
        %v6581 = vadd.f32 %v6579, %v6580
        %v6582 = vrot.slane %v6581, 4
        %v6583 = vadd.f32 %v6581, %v6582
        %v6584 = vrot.slane %v6583, 2
        %v6585 = vadd.f32 %v6583, %v6584
        %v6586 = vrot.slane %v6585, 1
        %v6587 = vadd.f32 %v6585, %v6586
        %v6588 = vmul.f32 %v6587, 0.0625
        %v6589 = vsub.f32 %v6577, %v6588
        %v6590 = vsub.f32 %v6578, %v6588
        %v6591 = vmul.f32 %v6589, %v6589
        %v6592 = vmul.f32 %v6590, %v6590
        %v6593 = vsel %vm5986, %v6591, 0.0
        %v6594 = vsel %vm5986, %v6592, 0.0
        %v6595 = vadd.f32 %v6593, %v6594
        %v6596 = vrot.slane %v6595, 4
        %v6597 = vadd.f32 %v6595, %v6596
        %v6598 = vrot.slane %v6597, 2
        %v6599 = vadd.f32 %v6597, %v6598
        %v6600 = vrot.slane %v6599, 1
        %v6601 = vadd.f32 %v6599, %v6600
        %v6602 = vmul.f32 %v6601, 0.0625
        %v6603 = vadd.f32 %v6602, 1e-05
        %v6604 = vrsqrt.pop %v6603
        %v6605 = vmul.f32 %v6604, %v6603
        %v6606 = vmul.f32 %v6605, %v6604
        %v6607 = vmul.f32 0.5, %v6606
        %v6608 = vsub.f32 1.5, %v6607
        %v6609 = vmul.f32 %v6604, %v6608
        %vm6610 = vweird.f32 %v6603
        %vm6611 = vweird.f32 %v6604
        %vm6612 = vmor %vm6610, %vm6611
        %v6613 = vsel %vm6612, %v6604, %v6609
        %v6614 = vmul.f32 %v6589, %v6613
        %v6615 = vmul.f32 %v6590, %v6613
        %v6616 = vmax.f32 %v6614, 0.0
        %v6617 = vmax.f32 %v6615, 0.0
        %v6619 = vrot.slane %v6616, 1
        %v6621 = vrot.slane %v6616, 7
        %v6623 = vrot.slane %v6616, 5
        %v6625 = vsel %vm579, %v6619, %v6621
        %v6626 = vsel %vm6079, %v6625, %v6623
        %v6627 = vrot.slane %v6616, 3
        %v6629 = vsel %vm579, %v6623, %v6627
        %v6630 = vsel %vm6079, %v6629, %v6619
        %v6632 = vrot.slane %v6617, 1
        %v6634 = vrot.slane %v6617, 7
        %v6636 = vrot.slane %v6617, 5
        %v6638 = vsel %vm579, %v6632, %v6634
        %v6639 = vsel %vm6079, %v6638, %v6636
        %v6640 = vrot.slane %v6617, 3
        %v6642 = vsel %vm579, %v6636, %v6640
        %v6643 = vsel %vm6079, %v6642, %v6632
        %v6645 = vrot.slane %v6626, 2
        %v6648 = vrot.slane %v6630, 4
        %v6651 = vrot.slane %v6639, 6
        %v6653 = vrot.slane %v6639, 2
        %v6655 = vsel %vm6064, %v6630, %v6645
        %v6656 = vsel %vm1617, %v6645, %v6648
        %v6657 = vsel %vm580, %v6648, %v6651
        %v6658 = vsel %vm6064, %v6643, %v6653
        %s6659 = scalar_lea.vmem %s4, 144
        %v6660 = vld [vmem:[%s6659] sm:$0xf]
        %v6661 = vld [vmem:[%s6659 + $0x4] sm:$0xf]
        %v6662 = vld [vmem:[%s6659 + $0x8] sm:$0xf]
        %v6663 = vld [vmem:[%s6659 + $0xc] sm:$0xf]
        %v6664 = vpack.c.bf16 %v6656, %v6655
        %v6665 = vpack.c.bf16 %v6657, %v6657
        %s6666 = scalar_lea.vmem %s4, 160
        %v6667 = vld [vmem:[%s6666] sm:$0xf]
        %v6668 = vld [vmem:[%s6666 + $0x4] sm:$0xf]
        %v6669 = vld [vmem:[%s6666 + $0x8] sm:$0xf]
        %v6670 = vld [vmem:[%s6666 + $0xc] sm:$0xf]
        %v6672 = vshrl.u32 %v6664, 16
        %v6674 = vshll.u32 %v6664, 16
        %v6676 = vrot.slane %v6674, 1
        %v6677 = vor.u32 %v6672, %v6676
        %v6679 = vshll.u32 %v6665, 16
        %v6681 = vrot.slane %v6679, 1
        %v6682 = vsel %vm1759, %v6677, %v6681
        %v6683 = vshrl.u32 %v6665, 16
        %v6685 = vor.u32 %v6683, %v6681
        %v6690 = vunpack.c.l.b16 %v6667
        %v6691 = vunpack.c.l.b16 %v6668
        %v6692 = vunpack.c.l.b16 %v6669
        %v6693 = vunpack.c.l.b16 %v6670
        %v6694 = vpack.c.b16 %v6691, %v6690
        %v6695 = vpack.c.b16 %v6693, %v6692
        %v6699 = vsel %vm5986, %v6682, 0
        %v6702 = vsel %vm5986, %v6685, 0
        %6704 = vmatpush.bf16.msra.mxu0 0
        %6705 = vmatpush.bf16.msra.mxu0 0
        %6706 = vmatpush.bf16.msra.mxu0 0
        %6707 = vmatpush.bf16.msra.mxu0 0
        %6708 = vmatpush.bf16.msra.mxu0 0
        %6709 = vmatpush.bf16.msra.mxu0 0
        %6710 = vmatpush.bf16.msra.mxu0 %v6695
        %6711 = vmatpush.bf16.msra.mxu0 %v6694
        %6712 = vmatmul.bf16.gmra.mxu0 %v6699
        %v6713 = vpop.f32.mrf.mxu0
        %v6714 = vadd.f32 0.0, %v6713
        %v6715 = vpop.f32.mrf.mxu0
        %v6716 = vadd.f32 0.0, %v6715
        %6717 = vmatmul.bf16.gmra.mxu0 %v6702
        %v6718 = vpop.f32.mrf.mxu0
        %v6719 = vadd.f32 0.0, %v6718
        %v6720 = vpop.f32.mrf.mxu0
        %6721 = vdwg.mxu0
        %v6726 = vunpack.c.l.b16 %v6660
        %v6727 = vunpack.c.l.b16 %v6661
        %v6728 = vunpack.c.l.b16 %v6662
        %v6729 = vunpack.c.l.b16 %v6663
        %v6730 = vpack.c.b16 %v6727, %v6726
        %v6731 = vpack.c.b16 %v6729, %v6728
        %v6734 = vsel %vm5986, %v6664, 0
        %v6736 = vsel %vm5986, %v6665, 0
        %6738 = vmatpush.bf16.msra.mxu0 0
        %6739 = vmatpush.bf16.msra.mxu0 0
        %6740 = vmatpush.bf16.msra.mxu0 0
        %6741 = vmatpush.bf16.msra.mxu0 0
        %6742 = vmatpush.bf16.msra.mxu0 0
        %6743 = vmatpush.bf16.msra.mxu0 0
        %6744 = vmatpush.bf16.msra.mxu0 %v6731
        %6745 = vmatpush.bf16.msra.mxu0 %v6730
        %6746 = vmatmul.bf16.gmra.mxu0 %v6734
        %v6747 = vpop.f32.mrf.mxu0
        %v6748 = vadd.f32 %v6714, %v6747
        %v6749 = vpop.f32.mrf.mxu0
        %v6750 = vadd.f32 %v6716, %v6749
        %6751 = vmatmul.bf16.gmra.mxu0 %v6736
        %v6752 = vpop.f32.mrf.mxu0
        %v6753 = vadd.f32 %v6719, %v6752
        %v6754 = vpop.f32.mrf.mxu0
        %6755 = vdwg.mxu0
        %s6756 = scalar_lea.vmem %s4, 176
        %v6757 = vld [vmem:[%s6756] sm:$0xf]
        %v6758 = vld [vmem:[%s6756 + $0x4] sm:$0xf]
        %v6759 = vld [vmem:[%s6756 + $0x8] sm:$0xf]
        %v6760 = vld [vmem:[%s6756 + $0xc] sm:$0xf]
        %v6763 = vrot.slane %v6664, 1
        %v6764 = vrot.slane %v6665, 1
        %v6765 = vsel %vm2461, %v6763, %v6764
        %v6770 = vunpack.c.l.b16 %v6757
        %v6771 = vunpack.c.l.b16 %v6758
        %v6772 = vunpack.c.l.b16 %v6759
        %v6773 = vunpack.c.l.b16 %v6760
        %v6774 = vpack.c.b16 %v6771, %v6770
        %v6775 = vpack.c.b16 %v6773, %v6772
        %v6779 = vsel %vm5986, %v6765, 0
        %v6782 = vsel %vm5986, %v6764, 0
        %6784 = vmatpush.bf16.msra.mxu0 0
        %6785 = vmatpush.bf16.msra.mxu0 0
        %6786 = vmatpush.bf16.msra.mxu0 0
        %6787 = vmatpush.bf16.msra.mxu0 0
        %6788 = vmatpush.bf16.msra.mxu0 0
        %6789 = vmatpush.bf16.msra.mxu0 0
        %6790 = vmatpush.bf16.msra.mxu0 %v6775
        %6791 = vmatpush.bf16.msra.mxu0 %v6774
        %6792 = vmatmul.bf16.gmra.mxu0 %v6779
        %v6793 = vpop.f32.mrf.mxu0
        %v6794 = vadd.f32 0.0, %v6793
        %v6795 = vpop.f32.mrf.mxu0
        %v6796 = vadd.f32 0.0, %v6795
        %6797 = vmatmul.bf16.gmra.mxu0 %v6782
        %v6798 = vpop.f32.mrf.mxu0
        %v6799 = vadd.f32 0.0, %v6798
        %v6800 = vpop.f32.mrf.mxu0
        %6801 = vdwg.mxu0
        %v6802 = vadd.f32 %v6748, %v6794
        %v6803 = vadd.f32 %v6750, %v6796
        %v6804 = vadd.f32 %v6753, %v6799
        %s6805 = scalar_lea.vmem %s4, 192
        %v6806 = vld [vmem:[%s6805] sm:$0xf]
        %v6807 = vld [vmem:[%s6805 + $0x4] sm:$0xf]
        %v6808 = vld [vmem:[%s6805 + $0x8] sm:$0xf]
        %v6809 = vld [vmem:[%s6805 + $0xc] sm:$0xf]
        %v6810 = vpack.c.bf16 %v6658, %v6657
        %v6812 = vrot.slane %v6664, 3
        %v6813 = vrot.slane %v6810, 3
        %v6814 = vsel %vm5218, %v6812, %v6813
        %v6819 = vunpack.c.l.b16 %v6806
        %v6820 = vunpack.c.l.b16 %v6807
        %v6821 = vunpack.c.l.b16 %v6808
        %v6822 = vunpack.c.l.b16 %v6809
        %v6823 = vpack.c.b16 %v6820, %v6819
        %v6824 = vpack.c.b16 %v6822, %v6821
        %v6828 = vsel %vm5986, %v6814, 0
        %v6831 = vsel %vm5986, %v6813, 0
        %6833 = vmatpush.bf16.msra.mxu0 0
        %6834 = vmatpush.bf16.msra.mxu0 0
        %6835 = vmatpush.bf16.msra.mxu0 0
        %6836 = vmatpush.bf16.msra.mxu0 0
        %6837 = vmatpush.bf16.msra.mxu0 0
        %6838 = vmatpush.bf16.msra.mxu0 0
        %6839 = vmatpush.bf16.msra.mxu0 %v6824
        %6840 = vmatpush.bf16.msra.mxu0 %v6823
        %6841 = vmatmul.bf16.gmra.mxu0 %v6828
        %v6842 = vpop.f32.mrf.mxu0
        %v6843 = vadd.f32 0.0, %v6842
        %v6844 = vpop.f32.mrf.mxu0
        %v6845 = vadd.f32 0.0, %v6844
        %6846 = vmatmul.bf16.gmra.mxu0 %v6831
        %v6847 = vpop.f32.mrf.mxu0
        %v6848 = vadd.f32 0.0, %v6847
        %v6849 = vpop.f32.mrf.mxu0
        %6850 = vdwg.mxu0
        %v6851 = vadd.f32 %v6802, %v6843
        %v6852 = vadd.f32 %v6803, %v6845
        %v6853 = vadd.f32 %v6804, %v6848
        %s6854 = scalar_lea.vmem %s4, 208
        %v6855 = vld [vmem:[%s6854] sm:$0xf]
        %v6856 = vld [vmem:[%s6854 + $0x4] sm:$0xf]
        %v6857 = vld [vmem:[%s6854 + $0x8] sm:$0xf]
        %v6858 = vld [vmem:[%s6854 + $0xc] sm:$0xf]
        %v6859 = vrot.slane %v6672, 3
        %v6860 = vrot.slane %v6674, 4
        %v6861 = vor.u32 %v6859, %v6860
        %v6863 = vshrl.u32 %v6810, 16
        %v6865 = vrot.slane %v6863, 3
        %v6866 = vshll.u32 %v6810, 16
        %v6868 = vrot.slane %v6866, 4
        %v6869 = vor.u32 %v6865, %v6868
        %v6870 = vsel %vm5583, %v6861, %v6869
        %v6875 = vunpack.c.l.b16 %v6855
        %v6876 = vunpack.c.l.b16 %v6856
        %v6877 = vunpack.c.l.b16 %v6857
        %v6878 = vunpack.c.l.b16 %v6858
        %v6879 = vpack.c.b16 %v6876, %v6875
        %v6880 = vpack.c.b16 %v6878, %v6877
        %v6884 = vsel %vm5986, %v6870, 0
        %v6887 = vsel %vm5986, %v6869, 0
        %6889 = vmatpush.bf16.msra.mxu0 0
        %6890 = vmatpush.bf16.msra.mxu0 0
        %6891 = vmatpush.bf16.msra.mxu0 0
        %6892 = vmatpush.bf16.msra.mxu0 0
        %6893 = vmatpush.bf16.msra.mxu0 0
        %6894 = vmatpush.bf16.msra.mxu0 0
        %6895 = vmatpush.bf16.msra.mxu0 %v6880
        %6896 = vmatpush.bf16.msra.mxu0 %v6879
        %6897 = vmatmul.bf16.gmra.mxu0 %v6884
        %v6898 = vpop.f32.mrf.mxu0
        %v6899 = vadd.f32 0.0, %v6898
        %v6900 = vpop.f32.mrf.mxu0
        %v6901 = vadd.f32 0.0, %v6900
        %6902 = vmatmul.bf16.gmra.mxu0 %v6887
        %v6903 = vpop.f32.mrf.mxu0
        %v6904 = vadd.f32 0.0, %v6903
        %v6905 = vpop.f32.mrf.mxu0
        %6906 = vdwg.mxu0
        %v6907 = vadd.f32 %v6851, %v6899
        %v6908 = vadd.f32 %v6852, %v6901
        %v6909 = vadd.f32 %v6853, %v6904
        %s6910 = scalar_lea.vmem %s4, 224
        %v6911 = vld [vmem:[%s6910] sm:$0xf]
        %v6912 = vld [vmem:[%s6910 + $0x4] sm:$0xf]
        %v6913 = vld [vmem:[%s6910 + $0x8] sm:$0xf]
        %v6914 = vld [vmem:[%s6910 + $0xc] sm:$0xf]
        %v6915 = vpack.c.bf16 %v6657, %v6656
        %v6916 = vpack.c.bf16 %v6658, %v6658
        %v6921 = vunpack.c.l.b16 %v6911
        %v6922 = vunpack.c.l.b16 %v6912
        %v6923 = vunpack.c.l.b16 %v6913
        %v6924 = vunpack.c.l.b16 %v6914
        %v6925 = vpack.c.b16 %v6922, %v6921
        %v6926 = vpack.c.b16 %v6924, %v6923
        %v6930 = vsel %vm5986, %v6915, 0
        %v6933 = vsel %vm5986, %v6916, 0
        %6935 = vmatpush.bf16.msra.mxu0 0
        %6936 = vmatpush.bf16.msra.mxu0 0
        %6937 = vmatpush.bf16.msra.mxu0 0
        %6938 = vmatpush.bf16.msra.mxu0 0
        %6939 = vmatpush.bf16.msra.mxu0 0
        %6940 = vmatpush.bf16.msra.mxu0 0
        %6941 = vmatpush.bf16.msra.mxu0 %v6926
        %6942 = vmatpush.bf16.msra.mxu0 %v6925
        %6943 = vmatmul.bf16.gmra.mxu0 %v6930
        %v6944 = vpop.f32.mrf.mxu0
        %v6945 = vadd.f32 0.0, %v6944
        %v6946 = vpop.f32.mrf.mxu0
        %v6947 = vadd.f32 0.0, %v6946
        %6948 = vmatmul.bf16.gmra.mxu0 %v6933
        %v6949 = vpop.f32.mrf.mxu0
        %v6950 = vadd.f32 0.0, %v6949
        %v6951 = vpop.f32.mrf.mxu0
        %6952 = vdwg.mxu0
        %v6953 = vadd.f32 %v6907, %v6945
        %v6954 = vadd.f32 %v6908, %v6947
        %v6955 = vadd.f32 %v6909, %v6950
        %s6956 = scalar_lea.vmem %s4, 240
        %v6957 = vld [vmem:[%s6956] sm:$0xf]
        %v6958 = vld [vmem:[%s6956 + $0x4] sm:$0xf]
        %v6959 = vld [vmem:[%s6956 + $0x8] sm:$0xf]
        %v6960 = vld [vmem:[%s6956 + $0xc] sm:$0xf]
        %v6961 = vpack.c.bf16 %v6653, %v6658
        %v6964 = vrot.slane %v6915, 2
        %v6965 = vrot.slane %v6961, 2
        %v6966 = vsel %vm3566, %v6964, %v6965
        %v6971 = vunpack.c.l.b16 %v6957
        %v6972 = vunpack.c.l.b16 %v6958
        %v6973 = vunpack.c.l.b16 %v6959
        %v6974 = vunpack.c.l.b16 %v6960
        %v6975 = vpack.c.b16 %v6972, %v6971
        %v6976 = vpack.c.b16 %v6974, %v6973
        %v6980 = vsel %vm5986, %v6966, 0
        %v6983 = vsel %vm5986, %v6965, 0
        %6985 = vmatpush.bf16.msra.mxu0 0
        %6986 = vmatpush.bf16.msra.mxu0 0
        %6987 = vmatpush.bf16.msra.mxu0 0
        %6988 = vmatpush.bf16.msra.mxu0 0
        %6989 = vmatpush.bf16.msra.mxu0 0
        %6990 = vmatpush.bf16.msra.mxu0 0
        %6991 = vmatpush.bf16.msra.mxu0 %v6976
        %6992 = vmatpush.bf16.msra.mxu0 %v6975
        %6993 = vmatmul.bf16.gmra.mxu0 %v6980
        %v6994 = vpop.f32.mrf.mxu0
        %v6995 = vadd.f32 0.0, %v6994
        %v6996 = vpop.f32.mrf.mxu0
        %v6997 = vadd.f32 0.0, %v6996
        %6998 = vmatmul.bf16.gmra.mxu0 %v6983
        %v6999 = vpop.f32.mrf.mxu0
        %v7000 = vadd.f32 0.0, %v6999
        %v7001 = vpop.f32.mrf.mxu0
        %7002 = vdwg.mxu0
        %v7003 = vadd.f32 %v6953, %v6995
        %v7004 = vadd.f32 %v6954, %v6997
        %v7005 = vadd.f32 %v6955, %v7000
        %s7006 = scalar_lea.vmem %s4, 256
        %v7007 = vld [vmem:[%s7006] sm:$0xf]
        %v7008 = vld [vmem:[%s7006 + $0x4] sm:$0xf]
        %v7009 = vld [vmem:[%s7006 + $0x8] sm:$0xf]
        %v7010 = vld [vmem:[%s7006 + $0xc] sm:$0xf]
        %v7011 = vshrl.u32 %v6915, 16
        %v7013 = vrot.slane %v7011, 2
        %v7014 = vshll.u32 %v6915, 16
        %v7016 = vrot.slane %v7014, 3
        %v7017 = vor.u32 %v7013, %v7016
        %v7019 = vshrl.u32 %v6961, 16
        %v7021 = vrot.slane %v7019, 2
        %v7022 = vshll.u32 %v6961, 16
        %v7024 = vrot.slane %v7022, 3
        %v7025 = vor.u32 %v7021, %v7024
        %v7026 = vsel %vm5100, %v7017, %v7025
        %v7031 = vunpack.c.l.b16 %v7007
        %v7032 = vunpack.c.l.b16 %v7008
        %v7033 = vunpack.c.l.b16 %v7009
        %v7034 = vunpack.c.l.b16 %v7010
        %v7035 = vpack.c.b16 %v7032, %v7031
        %v7036 = vpack.c.b16 %v7034, %v7033
        %v7040 = vsel %vm5986, %v7026, 0
        %v7043 = vsel %vm5986, %v7025, 0
        %7045 = vmatpush.bf16.msra.mxu0 0
        %7046 = vmatpush.bf16.msra.mxu0 0
        %7047 = vmatpush.bf16.msra.mxu0 0
        %7048 = vmatpush.bf16.msra.mxu0 0
        %7049 = vmatpush.bf16.msra.mxu0 0
        %7050 = vmatpush.bf16.msra.mxu0 0
        %7051 = vmatpush.bf16.msra.mxu0 %v7036
        %7052 = vmatpush.bf16.msra.mxu0 %v7035
        %7053 = vmatmul.bf16.gmra.mxu0 %v7040
        %v7054 = vpop.f32.mrf.mxu0
        %v7055 = vadd.f32 0.0, %v7054
        %v7056 = vpop.f32.mrf.mxu0
        %v7057 = vadd.f32 0.0, %v7056
        %7058 = vmatmul.bf16.gmra.mxu0 %v7043
        %v7059 = vpop.f32.mrf.mxu0
        %v7060 = vadd.f32 0.0, %v7059
        %v7061 = vpop.f32.mrf.mxu0
        %7062 = vdwg.mxu0
        %v7063 = vadd.f32 %v7003, %v7055
        %v7064 = vadd.f32 %v7004, %v7057
        %v7065 = vadd.f32 %v7005, %v7060
        %s7066 = scalar_lea.vmem %s4, 272
        %v7067 = vld [vmem:[%s7066] sm:$0xf]
        %v7068 = vld [vmem:[%s7066 + $0x4] sm:$0xf]
        %v7069 = vld [vmem:[%s7066 + $0x8] sm:$0xf]
        %v7070 = vld [vmem:[%s7066 + $0xc] sm:$0xf]
        %v7071 = vrot.slane %v6915, 3
        %v7072 = vrot.slane %v6961, 3
        %v7073 = vsel %vm5218, %v7071, %v7072
        %v7078 = vunpack.c.l.b16 %v7067
        %v7079 = vunpack.c.l.b16 %v7068
        %v7080 = vunpack.c.l.b16 %v7069
        %v7081 = vunpack.c.l.b16 %v7070
        %v7082 = vpack.c.b16 %v7079, %v7078
        %v7083 = vpack.c.b16 %v7081, %v7080
        %v7087 = vsel %vm5986, %v7073, 0
        %v7090 = vsel %vm5986, %v7072, 0
        %7092 = vmatpush.bf16.msra.mxu0 0
        %7093 = vmatpush.bf16.msra.mxu0 0
        %7094 = vmatpush.bf16.msra.mxu0 0
        %7095 = vmatpush.bf16.msra.mxu0 0
        %7096 = vmatpush.bf16.msra.mxu0 0
        %7097 = vmatpush.bf16.msra.mxu0 0
        %7098 = vmatpush.bf16.msra.mxu0 %v7083
        %7099 = vmatpush.bf16.msra.mxu0 %v7082
        %7100 = vmatmul.bf16.gmra.mxu0 %v7087
        %v7101 = vpop.f32.mrf.mxu0
        %v7102 = vadd.f32 0.0, %v7101
        %v7103 = vpop.f32.mrf.mxu0
        %v7104 = vadd.f32 0.0, %v7103
        %7105 = vmatmul.bf16.gmra.mxu0 %v7090
        %v7106 = vpop.f32.mrf.mxu0
        %v7107 = vadd.f32 0.0, %v7106
        %v7108 = vpop.f32.mrf.mxu0
        %7109 = vdwg.mxu0
        %v7110 = vadd.f32 %v7063, %v7102
        %v7111 = vadd.f32 %v7064, %v7104
        %v7112 = vadd.f32 %v7065, %v7107
        %v7115 = vrot.slane %v7110, 2
        %v7116 = vrot.slane %v7111, 2
        %v7117 = vsel %vm6064, %v7115, %v7116
        %v7119 = vrot.slane %v7111, 4
        %v7122 = vrot.slane %v7112, 6
        %v7124 = vsel %vm1617, %v7110, %v7117
        %v7125 = vsel %vm1617, %v7119, %v7122
        %v7126 = vsel %vm5986, %v7124, 0.0
        %v7127 = vsel %vm5986, %v7125, 0.0
        %v7128 = vadd.f32 %v7126, %v7127
        %v7129 = vrot.slane %v7128, 4
        %v7130 = vadd.f32 %v7128, %v7129
        %v7131 = vrot.slane %v7130, 2
        %v7132 = vadd.f32 %v7130, %v7131
        %v7133 = vrot.slane %v7132, 1
        %v7134 = vadd.f32 %v7132, %v7133
        %v7135 = vmul.f32 %v7134, 0.0625
        %v7136 = vsub.f32 %v7124, %v7135
        %v7137 = vsub.f32 %v7125, %v7135
        %v7138 = vmul.f32 %v7136, %v7136
        %v7139 = vmul.f32 %v7137, %v7137
        %v7140 = vsel %vm5986, %v7138, 0.0
        %v7141 = vsel %vm5986, %v7139, 0.0
        %v7142 = vadd.f32 %v7140, %v7141
        %v7143 = vrot.slane %v7142, 4
        %v7144 = vadd.f32 %v7142, %v7143
        %v7145 = vrot.slane %v7144, 2
        %v7146 = vadd.f32 %v7144, %v7145
        %v7147 = vrot.slane %v7146, 1
        %v7148 = vadd.f32 %v7146, %v7147
        %v7149 = vmul.f32 %v7148, 0.0625
        %v7150 = vadd.f32 %v7149, 1e-05
        %v7151 = vrsqrt.pop %v7150
        %v7152 = vmul.f32 %v7151, %v7150
        %v7153 = vmul.f32 %v7152, %v7151
        %v7154 = vmul.f32 0.5, %v7153
        %v7155 = vsub.f32 1.5, %v7154
        %v7156 = vmul.f32 %v7151, %v7155
        %vm7157 = vweird.f32 %v7150
        %vm7158 = vweird.f32 %v7151
        %vm7159 = vmor %vm7157, %vm7158
        %v7160 = vsel %vm7159, %v7151, %v7156
        %v7161 = vmul.f32 %v7136, %v7160
        %v7162 = vmul.f32 %v7137, %v7160
        %v7163 = vadd.f32 %v6069, %v7161
        %v7164 = vadd.f32 %v6070, %v7162
        %v7166 = vrot.slane %v7163, 1
        %v7168 = vrot.slane %v7163, 7
        %v7170 = vrot.slane %v7163, 5
        %v7172 = vsel %vm579, %v7166, %v7168
        %v7173 = vsel %vm6079, %v7172, %v7170
        %v7174 = vrot.slane %v7163, 3
        %v7176 = vsel %vm579, %v7170, %v7174
        %v7177 = vsel %vm6079, %v7176, %v7166
        %v7179 = vrot.slane %v7164, 1
        %v7181 = vrot.slane %v7164, 7
        %v7183 = vrot.slane %v7164, 5
        %v7185 = vsel %vm579, %v7179, %v7181
        %v7186 = vsel %vm6079, %v7185, %v7183
        %v7187 = vrot.slane %v7164, 3
        %v7189 = vsel %vm579, %v7183, %v7187
        %v7190 = vsel %vm6079, %v7189, %v7179
        %v7192 = vrot.slane %v7173, 2
        %v7195 = vrot.slane %v7177, 4
        %v7198 = vrot.slane %v7186, 6
        %v7200 = vrot.slane %v7186, 2
        %v7202 = vsel %vm6064, %v7177, %v7192
        %v7203 = vsel %vm1617, %v7192, %v7195
        %v7204 = vsel %vm580, %v7195, %v7198
        %v7205 = vsel %vm6064, %v7190, %v7200
        %s7206 = scalar_lea.vmem %s4, 288
        %v7207 = vld [vmem:[%s7206] sm:$0xf]
        %v7208 = vld [vmem:[%s7206 + $0x4] sm:$0xf]
        %v7209 = vld [vmem:[%s7206 + $0x8] sm:$0xf]
        %v7210 = vld [vmem:[%s7206 + $0xc] sm:$0xf]
        %v7211 = vpack.c.bf16 %v7203, %v7202
        %v7212 = vpack.c.bf16 %v7204, %v7204
        %s7213 = scalar_lea.vmem %s4, 304
        %v7214 = vld [vmem:[%s7213] sm:$0xf]
        %v7215 = vld [vmem:[%s7213 + $0x4] sm:$0xf]
        %v7216 = vld [vmem:[%s7213 + $0x8] sm:$0xf]
        %v7217 = vld [vmem:[%s7213 + $0xc] sm:$0xf]
        %v7219 = vshrl.u32 %v7211, 16
        %v7221 = vshll.u32 %v7211, 16
        %v7223 = vrot.slane %v7221, 1
        %v7224 = vor.u32 %v7219, %v7223
        %v7226 = vshll.u32 %v7212, 16
        %v7228 = vrot.slane %v7226, 1
        %v7229 = vsel %vm1759, %v7224, %v7228
        %v7230 = vshrl.u32 %v7212, 16
        %v7232 = vor.u32 %v7230, %v7228
        %v7237 = vunpack.c.l.b16 %v7214
        %v7238 = vunpack.c.l.b16 %v7215
        %v7239 = vunpack.c.l.b16 %v7216
        %v7240 = vunpack.c.l.b16 %v7217
        %v7241 = vpack.c.b16 %v7238, %v7237
        %v7242 = vpack.c.b16 %v7240, %v7239
        %v7246 = vsel %vm5986, %v7229, 0
        %v7249 = vsel %vm5986, %v7232, 0
        %7251 = vmatpush.bf16.msra.mxu0 0
        %7252 = vmatpush.bf16.msra.mxu0 0
        %7253 = vmatpush.bf16.msra.mxu0 0
        %7254 = vmatpush.bf16.msra.mxu0 0
        %7255 = vmatpush.bf16.msra.mxu0 0
        %7256 = vmatpush.bf16.msra.mxu0 0
        %7257 = vmatpush.bf16.msra.mxu0 %v7242
        %7258 = vmatpush.bf16.msra.mxu0 %v7241
        %7259 = vmatmul.bf16.gmra.mxu0 %v7246
        %v7260 = vpop.f32.mrf.mxu0
        %v7261 = vadd.f32 0.0, %v7260
        %v7262 = vpop.f32.mrf.mxu0
        %v7263 = vadd.f32 0.0, %v7262
        %7264 = vmatmul.bf16.gmra.mxu0 %v7249
        %v7265 = vpop.f32.mrf.mxu0
        %v7266 = vadd.f32 0.0, %v7265
        %v7267 = vpop.f32.mrf.mxu0
        %7268 = vdwg.mxu0
        %v7273 = vunpack.c.l.b16 %v7207
        %v7274 = vunpack.c.l.b16 %v7208
        %v7275 = vunpack.c.l.b16 %v7209
        %v7276 = vunpack.c.l.b16 %v7210
        %v7277 = vpack.c.b16 %v7274, %v7273
        %v7278 = vpack.c.b16 %v7276, %v7275
        %v7281 = vsel %vm5986, %v7211, 0
        %v7283 = vsel %vm5986, %v7212, 0
        %7285 = vmatpush.bf16.msra.mxu0 0
        %7286 = vmatpush.bf16.msra.mxu0 0
        %7287 = vmatpush.bf16.msra.mxu0 0
        %7288 = vmatpush.bf16.msra.mxu0 0
        %7289 = vmatpush.bf16.msra.mxu0 0
        %7290 = vmatpush.bf16.msra.mxu0 0
        %7291 = vmatpush.bf16.msra.mxu0 %v7278
        %7292 = vmatpush.bf16.msra.mxu0 %v7277
        %7293 = vmatmul.bf16.gmra.mxu0 %v7281
        %v7294 = vpop.f32.mrf.mxu0
        %v7295 = vadd.f32 %v7261, %v7294
        %v7296 = vpop.f32.mrf.mxu0
        %v7297 = vadd.f32 %v7263, %v7296
        %7298 = vmatmul.bf16.gmra.mxu0 %v7283
        %v7299 = vpop.f32.mrf.mxu0
        %v7300 = vadd.f32 %v7266, %v7299
        %v7301 = vpop.f32.mrf.mxu0
        %7302 = vdwg.mxu0
        %s7303 = scalar_lea.vmem %s4, 320
        %v7304 = vld [vmem:[%s7303] sm:$0xf]
        %v7305 = vld [vmem:[%s7303 + $0x4] sm:$0xf]
        %v7306 = vld [vmem:[%s7303 + $0x8] sm:$0xf]
        %v7307 = vld [vmem:[%s7303 + $0xc] sm:$0xf]
        %v7310 = vrot.slane %v7211, 1
        %v7311 = vrot.slane %v7212, 1
        %v7312 = vsel %vm2461, %v7310, %v7311
        %v7317 = vunpack.c.l.b16 %v7304
        %v7318 = vunpack.c.l.b16 %v7305
        %v7319 = vunpack.c.l.b16 %v7306
        %v7320 = vunpack.c.l.b16 %v7307
        %v7321 = vpack.c.b16 %v7318, %v7317
        %v7322 = vpack.c.b16 %v7320, %v7319
        %v7326 = vsel %vm5986, %v7312, 0
        %v7329 = vsel %vm5986, %v7311, 0
        %7331 = vmatpush.bf16.msra.mxu0 0
        %7332 = vmatpush.bf16.msra.mxu0 0
        %7333 = vmatpush.bf16.msra.mxu0 0
        %7334 = vmatpush.bf16.msra.mxu0 0
        %7335 = vmatpush.bf16.msra.mxu0 0
        %7336 = vmatpush.bf16.msra.mxu0 0
        %7337 = vmatpush.bf16.msra.mxu0 %v7322
        %7338 = vmatpush.bf16.msra.mxu0 %v7321
        %7339 = vmatmul.bf16.gmra.mxu0 %v7326
        %v7340 = vpop.f32.mrf.mxu0
        %v7341 = vadd.f32 0.0, %v7340
        %v7342 = vpop.f32.mrf.mxu0
        %v7343 = vadd.f32 0.0, %v7342
        %7344 = vmatmul.bf16.gmra.mxu0 %v7329
        %v7345 = vpop.f32.mrf.mxu0
        %v7346 = vadd.f32 0.0, %v7345
        %v7347 = vpop.f32.mrf.mxu0
        %7348 = vdwg.mxu0
        %v7349 = vadd.f32 %v7295, %v7341
        %v7350 = vadd.f32 %v7297, %v7343
        %v7351 = vadd.f32 %v7300, %v7346
        %s7352 = scalar_lea.vmem %s4, 336
        %v7353 = vld [vmem:[%s7352] sm:$0xf]
        %v7354 = vld [vmem:[%s7352 + $0x4] sm:$0xf]
        %v7355 = vld [vmem:[%s7352 + $0x8] sm:$0xf]
        %v7356 = vld [vmem:[%s7352 + $0xc] sm:$0xf]
        %v7357 = vpack.c.bf16 %v7205, %v7204
        %v7359 = vrot.slane %v7211, 3
        %v7360 = vrot.slane %v7357, 3
        %v7361 = vsel %vm5218, %v7359, %v7360
        %v7366 = vunpack.c.l.b16 %v7353
        %v7367 = vunpack.c.l.b16 %v7354
        %v7368 = vunpack.c.l.b16 %v7355
        %v7369 = vunpack.c.l.b16 %v7356
        %v7370 = vpack.c.b16 %v7367, %v7366
        %v7371 = vpack.c.b16 %v7369, %v7368
        %v7375 = vsel %vm5986, %v7361, 0
        %v7378 = vsel %vm5986, %v7360, 0
        %7380 = vmatpush.bf16.msra.mxu0 0
        %7381 = vmatpush.bf16.msra.mxu0 0
        %7382 = vmatpush.bf16.msra.mxu0 0
        %7383 = vmatpush.bf16.msra.mxu0 0
        %7384 = vmatpush.bf16.msra.mxu0 0
        %7385 = vmatpush.bf16.msra.mxu0 0
        %7386 = vmatpush.bf16.msra.mxu0 %v7371
        %7387 = vmatpush.bf16.msra.mxu0 %v7370
        %7388 = vmatmul.bf16.gmra.mxu0 %v7375
        %v7389 = vpop.f32.mrf.mxu0
        %v7390 = vadd.f32 0.0, %v7389
        %v7391 = vpop.f32.mrf.mxu0
        %v7392 = vadd.f32 0.0, %v7391
        %7393 = vmatmul.bf16.gmra.mxu0 %v7378
        %v7394 = vpop.f32.mrf.mxu0
        %v7395 = vadd.f32 0.0, %v7394
        %v7396 = vpop.f32.mrf.mxu0
        %7397 = vdwg.mxu0
        %v7398 = vadd.f32 %v7349, %v7390
        %v7399 = vadd.f32 %v7350, %v7392
        %v7400 = vadd.f32 %v7351, %v7395
        %s7401 = scalar_lea.vmem %s4, 352
        %v7402 = vld [vmem:[%s7401] sm:$0xf]
        %v7403 = vld [vmem:[%s7401 + $0x4] sm:$0xf]
        %v7404 = vld [vmem:[%s7401 + $0x8] sm:$0xf]
        %v7405 = vld [vmem:[%s7401 + $0xc] sm:$0xf]
        %v7406 = vrot.slane %v7219, 3
        %v7407 = vrot.slane %v7221, 4
        %v7408 = vor.u32 %v7406, %v7407
        %v7410 = vshrl.u32 %v7357, 16
        %v7412 = vrot.slane %v7410, 3
        %v7413 = vshll.u32 %v7357, 16
        %v7415 = vrot.slane %v7413, 4
        %v7416 = vor.u32 %v7412, %v7415
        %v7417 = vsel %vm5583, %v7408, %v7416
        %v7422 = vunpack.c.l.b16 %v7402
        %v7423 = vunpack.c.l.b16 %v7403
        %v7424 = vunpack.c.l.b16 %v7404
        %v7425 = vunpack.c.l.b16 %v7405
        %v7426 = vpack.c.b16 %v7423, %v7422
        %v7427 = vpack.c.b16 %v7425, %v7424
        %v7431 = vsel %vm5986, %v7417, 0
        %v7434 = vsel %vm5986, %v7416, 0
        %7436 = vmatpush.bf16.msra.mxu0 0
        %7437 = vmatpush.bf16.msra.mxu0 0
        %7438 = vmatpush.bf16.msra.mxu0 0
        %7439 = vmatpush.bf16.msra.mxu0 0
        %7440 = vmatpush.bf16.msra.mxu0 0
        %7441 = vmatpush.bf16.msra.mxu0 0
        %7442 = vmatpush.bf16.msra.mxu0 %v7427
        %7443 = vmatpush.bf16.msra.mxu0 %v7426
        %7444 = vmatmul.bf16.gmra.mxu0 %v7431
        %v7445 = vpop.f32.mrf.mxu0
        %v7446 = vadd.f32 0.0, %v7445
        %v7447 = vpop.f32.mrf.mxu0
        %v7448 = vadd.f32 0.0, %v7447
        %7449 = vmatmul.bf16.gmra.mxu0 %v7434
        %v7450 = vpop.f32.mrf.mxu0
        %v7451 = vadd.f32 0.0, %v7450
        %v7452 = vpop.f32.mrf.mxu0
        %7453 = vdwg.mxu0
        %v7454 = vadd.f32 %v7398, %v7446
        %v7455 = vadd.f32 %v7399, %v7448
        %v7456 = vadd.f32 %v7400, %v7451
        %s7457 = scalar_lea.vmem %s4, 368
        %v7458 = vld [vmem:[%s7457] sm:$0xf]
        %v7459 = vld [vmem:[%s7457 + $0x4] sm:$0xf]
        %v7460 = vld [vmem:[%s7457 + $0x8] sm:$0xf]
        %v7461 = vld [vmem:[%s7457 + $0xc] sm:$0xf]
        %v7462 = vpack.c.bf16 %v7204, %v7203
        %v7463 = vpack.c.bf16 %v7205, %v7205
        %v7468 = vunpack.c.l.b16 %v7458
        %v7469 = vunpack.c.l.b16 %v7459
        %v7470 = vunpack.c.l.b16 %v7460
        %v7471 = vunpack.c.l.b16 %v7461
        %v7472 = vpack.c.b16 %v7469, %v7468
        %v7473 = vpack.c.b16 %v7471, %v7470
        %v7477 = vsel %vm5986, %v7462, 0
        %v7480 = vsel %vm5986, %v7463, 0
        %7482 = vmatpush.bf16.msra.mxu0 0
        %7483 = vmatpush.bf16.msra.mxu0 0
        %7484 = vmatpush.bf16.msra.mxu0 0
        %7485 = vmatpush.bf16.msra.mxu0 0
        %7486 = vmatpush.bf16.msra.mxu0 0
        %7487 = vmatpush.bf16.msra.mxu0 0
        %7488 = vmatpush.bf16.msra.mxu0 %v7473
        %7489 = vmatpush.bf16.msra.mxu0 %v7472
        %7490 = vmatmul.bf16.gmra.mxu0 %v7477
        %v7491 = vpop.f32.mrf.mxu0
        %v7492 = vadd.f32 0.0, %v7491
        %v7493 = vpop.f32.mrf.mxu0
        %v7494 = vadd.f32 0.0, %v7493
        %7495 = vmatmul.bf16.gmra.mxu0 %v7480
        %v7496 = vpop.f32.mrf.mxu0
        %v7497 = vadd.f32 0.0, %v7496
        %v7498 = vpop.f32.mrf.mxu0
        %7499 = vdwg.mxu0
        %v7500 = vadd.f32 %v7454, %v7492
        %v7501 = vadd.f32 %v7455, %v7494
        %v7502 = vadd.f32 %v7456, %v7497
        %s7503 = scalar_lea.vmem %s4, 384
        %v7504 = vld [vmem:[%s7503] sm:$0xf]
        %v7505 = vld [vmem:[%s7503 + $0x4] sm:$0xf]
        %v7506 = vld [vmem:[%s7503 + $0x8] sm:$0xf]
        %v7507 = vld [vmem:[%s7503 + $0xc] sm:$0xf]
        %v7508 = vpack.c.bf16 %v7200, %v7205
        %v7511 = vrot.slane %v7462, 2
        %v7512 = vrot.slane %v7508, 2
        %v7513 = vsel %vm3566, %v7511, %v7512
        %v7518 = vunpack.c.l.b16 %v7504
        %v7519 = vunpack.c.l.b16 %v7505
        %v7520 = vunpack.c.l.b16 %v7506
        %v7521 = vunpack.c.l.b16 %v7507
        %v7522 = vpack.c.b16 %v7519, %v7518
        %v7523 = vpack.c.b16 %v7521, %v7520
        %v7527 = vsel %vm5986, %v7513, 0
        %v7530 = vsel %vm5986, %v7512, 0
        %7532 = vmatpush.bf16.msra.mxu0 0
        %7533 = vmatpush.bf16.msra.mxu0 0
        %7534 = vmatpush.bf16.msra.mxu0 0
        %7535 = vmatpush.bf16.msra.mxu0 0
        %7536 = vmatpush.bf16.msra.mxu0 0
        %7537 = vmatpush.bf16.msra.mxu0 0
        %7538 = vmatpush.bf16.msra.mxu0 %v7523
        %7539 = vmatpush.bf16.msra.mxu0 %v7522
        %7540 = vmatmul.bf16.gmra.mxu0 %v7527
        %v7541 = vpop.f32.mrf.mxu0
        %v7542 = vadd.f32 0.0, %v7541
        %v7543 = vpop.f32.mrf.mxu0
        %v7544 = vadd.f32 0.0, %v7543
        %7545 = vmatmul.bf16.gmra.mxu0 %v7530
        %v7546 = vpop.f32.mrf.mxu0
        %v7547 = vadd.f32 0.0, %v7546
        %v7548 = vpop.f32.mrf.mxu0
        %7549 = vdwg.mxu0
        %v7550 = vadd.f32 %v7500, %v7542
        %v7551 = vadd.f32 %v7501, %v7544
        %v7552 = vadd.f32 %v7502, %v7547
        %s7553 = scalar_lea.vmem %s4, 400
        %v7554 = vld [vmem:[%s7553] sm:$0xf]
        %v7555 = vld [vmem:[%s7553 + $0x4] sm:$0xf]
        %v7556 = vld [vmem:[%s7553 + $0x8] sm:$0xf]
        %v7557 = vld [vmem:[%s7553 + $0xc] sm:$0xf]
        %v7558 = vshrl.u32 %v7462, 16
        %v7560 = vrot.slane %v7558, 2
        %v7561 = vshll.u32 %v7462, 16
        %v7563 = vrot.slane %v7561, 3
        %v7564 = vor.u32 %v7560, %v7563
        %v7566 = vshrl.u32 %v7508, 16
        %v7568 = vrot.slane %v7566, 2
        %v7569 = vshll.u32 %v7508, 16
        %v7571 = vrot.slane %v7569, 3
        %v7572 = vor.u32 %v7568, %v7571
        %v7573 = vsel %vm5100, %v7564, %v7572
        %v7578 = vunpack.c.l.b16 %v7554
        %v7579 = vunpack.c.l.b16 %v7555
        %v7580 = vunpack.c.l.b16 %v7556
        %v7581 = vunpack.c.l.b16 %v7557
        %v7582 = vpack.c.b16 %v7579, %v7578
        %v7583 = vpack.c.b16 %v7581, %v7580
        %v7587 = vsel %vm5986, %v7573, 0
        %v7590 = vsel %vm5986, %v7572, 0
        %7592 = vmatpush.bf16.msra.mxu0 0
        %7593 = vmatpush.bf16.msra.mxu0 0
        %7594 = vmatpush.bf16.msra.mxu0 0
        %7595 = vmatpush.bf16.msra.mxu0 0
        %7596 = vmatpush.bf16.msra.mxu0 0
        %7597 = vmatpush.bf16.msra.mxu0 0
        %7598 = vmatpush.bf16.msra.mxu0 %v7583
        %7599 = vmatpush.bf16.msra.mxu0 %v7582
        %7600 = vmatmul.bf16.gmra.mxu0 %v7587
        %v7601 = vpop.f32.mrf.mxu0
        %v7602 = vadd.f32 0.0, %v7601
        %v7603 = vpop.f32.mrf.mxu0
        %v7604 = vadd.f32 0.0, %v7603
        %7605 = vmatmul.bf16.gmra.mxu0 %v7590
        %v7606 = vpop.f32.mrf.mxu0
        %v7607 = vadd.f32 0.0, %v7606
        %v7608 = vpop.f32.mrf.mxu0
        %7609 = vdwg.mxu0
        %v7610 = vadd.f32 %v7550, %v7602
        %v7611 = vadd.f32 %v7551, %v7604
        %v7612 = vadd.f32 %v7552, %v7607
        %s7613 = scalar_lea.vmem %s4, 416
        %v7614 = vld [vmem:[%s7613] sm:$0xf]
        %v7615 = vld [vmem:[%s7613 + $0x4] sm:$0xf]
        %v7616 = vld [vmem:[%s7613 + $0x8] sm:$0xf]
        %v7617 = vld [vmem:[%s7613 + $0xc] sm:$0xf]
        %v7618 = vrot.slane %v7462, 3
        %v7619 = vrot.slane %v7508, 3
        %v7620 = vsel %vm5218, %v7618, %v7619
        %v7625 = vunpack.c.l.b16 %v7614
        %v7626 = vunpack.c.l.b16 %v7615
        %v7627 = vunpack.c.l.b16 %v7616
        %v7628 = vunpack.c.l.b16 %v7617
        %v7629 = vpack.c.b16 %v7626, %v7625
        %v7630 = vpack.c.b16 %v7628, %v7627
        %v7634 = vsel %vm5986, %v7620, 0
        %v7637 = vsel %vm5986, %v7619, 0
        %7639 = vmatpush.bf16.msra.mxu0 0
        %7640 = vmatpush.bf16.msra.mxu0 0
        %7641 = vmatpush.bf16.msra.mxu0 0
        %7642 = vmatpush.bf16.msra.mxu0 0
        %7643 = vmatpush.bf16.msra.mxu0 0
        %7644 = vmatpush.bf16.msra.mxu0 0
        %7645 = vmatpush.bf16.msra.mxu0 %v7630
        %7646 = vmatpush.bf16.msra.mxu0 %v7629
        %7647 = vmatmul.bf16.gmra.mxu0 %v7634
        %v7648 = vpop.f32.mrf.mxu0
        %v7649 = vadd.f32 0.0, %v7648
        %v7650 = vpop.f32.mrf.mxu0
        %v7651 = vadd.f32 0.0, %v7650
        %7652 = vmatmul.bf16.gmra.mxu0 %v7637
        %v7653 = vpop.f32.mrf.mxu0
        %v7654 = vadd.f32 0.0, %v7653
        %v7655 = vpop.f32.mrf.mxu0
        %7656 = vdwg.mxu0
        %v7657 = vadd.f32 %v7610, %v7649
        %v7658 = vadd.f32 %v7611, %v7651
        %v7659 = vadd.f32 %v7612, %v7654
        %v7662 = vrot.slane %v7657, 2
        %v7663 = vrot.slane %v7658, 2
        %v7664 = vsel %vm6064, %v7662, %v7663
        %v7666 = vrot.slane %v7658, 4
        %v7669 = vrot.slane %v7659, 6
        %v7671 = vsel %vm1617, %v7657, %v7664
        %v7672 = vsel %vm1617, %v7666, %v7669
        %v7673 = vsel %vm5986, %v7671, 0.0
        %v7674 = vsel %vm5986, %v7672, 0.0
        %v7675 = vadd.f32 %v7673, %v7674
        %v7676 = vrot.slane %v7675, 4
        %v7677 = vadd.f32 %v7675, %v7676
        %v7678 = vrot.slane %v7677, 2
        %v7679 = vadd.f32 %v7677, %v7678
        %v7680 = vrot.slane %v7679, 1
        %v7681 = vadd.f32 %v7679, %v7680
        %v7682 = vmul.f32 %v7681, 0.0625
        %v7683 = vsub.f32 %v7671, %v7682
        %v7684 = vsub.f32 %v7672, %v7682
        %v7685 = vmul.f32 %v7683, %v7683
        %v7686 = vmul.f32 %v7684, %v7684
        %v7687 = vsel %vm5986, %v7685, 0.0
        %v7688 = vsel %vm5986, %v7686, 0.0
        %v7689 = vadd.f32 %v7687, %v7688
        %v7690 = vrot.slane %v7689, 4
        %v7691 = vadd.f32 %v7689, %v7690
        %v7692 = vrot.slane %v7691, 2
        %v7693 = vadd.f32 %v7691, %v7692
        %v7694 = vrot.slane %v7693, 1
        %v7695 = vadd.f32 %v7693, %v7694
        %v7696 = vmul.f32 %v7695, 0.0625
        %v7697 = vadd.f32 %v7696, 1e-05
        %v7698 = vrsqrt.pop %v7697
        %v7699 = vmul.f32 %v7698, %v7697
        %v7700 = vmul.f32 %v7699, %v7698
        %v7701 = vmul.f32 0.5, %v7700
        %v7702 = vsub.f32 1.5, %v7701
        %v7703 = vmul.f32 %v7698, %v7702
        %vm7704 = vweird.f32 %v7697
        %vm7705 = vweird.f32 %v7698
        %vm7706 = vmor %vm7704, %vm7705
        %v7707 = vsel %vm7706, %v7698, %v7703
        %v7708 = vmul.f32 %v7683, %v7707
        %v7709 = vmul.f32 %v7684, %v7707
        %v7710 = vmax.f32 %v7708, 0.0
        %v7711 = vmax.f32 %v7709, 0.0
        %v7713 = vrot.slane %v7710, 1
        %v7715 = vrot.slane %v7710, 7
        %v7717 = vrot.slane %v7710, 5
        %v7719 = vsel %vm579, %v7713, %v7715
        %v7720 = vsel %vm6079, %v7719, %v7717
        %v7721 = vrot.slane %v7710, 3
        %v7723 = vsel %vm579, %v7717, %v7721
        %v7724 = vsel %vm6079, %v7723, %v7713
        %v7726 = vrot.slane %v7711, 1
        %v7728 = vrot.slane %v7711, 7
        %v7730 = vrot.slane %v7711, 5
        %v7732 = vsel %vm579, %v7726, %v7728
        %v7733 = vsel %vm6079, %v7732, %v7730
        %v7734 = vrot.slane %v7711, 3
        %v7736 = vsel %vm579, %v7730, %v7734
        %v7737 = vsel %vm6079, %v7736, %v7726
        %v7739 = vrot.slane %v7720, 2
        %v7742 = vrot.slane %v7724, 4
        %v7745 = vrot.slane %v7733, 6
        %v7747 = vrot.slane %v7733, 2
        %v7749 = vsel %vm6064, %v7724, %v7739
        %v7750 = vsel %vm1617, %v7739, %v7742
        %v7751 = vsel %vm580, %v7742, %v7745
        %v7752 = vsel %vm6064, %v7737, %v7747
        %s7753 = scalar_lea.vmem %s4, 432
        %v7754 = vld [vmem:[%s7753] sm:$0xf]
        %v7755 = vld [vmem:[%s7753 + $0x4] sm:$0xf]
        %v7756 = vld [vmem:[%s7753 + $0x8] sm:$0xf]
        %v7757 = vld [vmem:[%s7753 + $0xc] sm:$0xf]
        %v7758 = vpack.c.bf16 %v7750, %v7749
        %v7759 = vpack.c.bf16 %v7751, %v7751
        %s7760 = scalar_lea.vmem %s4, 448
        %v7761 = vld [vmem:[%s7760] sm:$0xf]
        %v7762 = vld [vmem:[%s7760 + $0x4] sm:$0xf]
        %v7763 = vld [vmem:[%s7760 + $0x8] sm:$0xf]
        %v7764 = vld [vmem:[%s7760 + $0xc] sm:$0xf]
        %v7766 = vshrl.u32 %v7758, 16
        %v7768 = vshll.u32 %v7758, 16
        %v7770 = vrot.slane %v7768, 1
        %v7771 = vor.u32 %v7766, %v7770
        %v7773 = vshll.u32 %v7759, 16
        %v7775 = vrot.slane %v7773, 1
        %v7776 = vsel %vm1759, %v7771, %v7775
        %v7777 = vshrl.u32 %v7759, 16
        %v7779 = vor.u32 %v7777, %v7775
        %v7784 = vunpack.c.l.b16 %v7761
        %v7785 = vunpack.c.l.b16 %v7762
        %v7786 = vunpack.c.l.b16 %v7763
        %v7787 = vunpack.c.l.b16 %v7764
        %v7788 = vpack.c.b16 %v7785, %v7784
        %v7789 = vpack.c.b16 %v7787, %v7786
        %v7793 = vsel %vm5986, %v7776, 0
        %v7796 = vsel %vm5986, %v7779, 0
        %7798 = vmatpush.bf16.msra.mxu0 0
        %7799 = vmatpush.bf16.msra.mxu0 0
        %7800 = vmatpush.bf16.msra.mxu0 0
        %7801 = vmatpush.bf16.msra.mxu0 0
        %7802 = vmatpush.bf16.msra.mxu0 0
        %7803 = vmatpush.bf16.msra.mxu0 0
        %7804 = vmatpush.bf16.msra.mxu0 %v7789
        %7805 = vmatpush.bf16.msra.mxu0 %v7788
        %7806 = vmatmul.bf16.gmra.mxu0 %v7793
        %v7807 = vpop.f32.mrf.mxu0
        %v7808 = vadd.f32 0.0, %v7807
        %v7809 = vpop.f32.mrf.mxu0
        %v7810 = vadd.f32 0.0, %v7809
        %7811 = vmatmul.bf16.gmra.mxu0 %v7796
        %v7812 = vpop.f32.mrf.mxu0
        %v7813 = vadd.f32 0.0, %v7812
        %v7814 = vpop.f32.mrf.mxu0
        %7815 = vdwg.mxu0
        %v7820 = vunpack.c.l.b16 %v7754
        %v7821 = vunpack.c.l.b16 %v7755
        %v7822 = vunpack.c.l.b16 %v7756
        %v7823 = vunpack.c.l.b16 %v7757
        %v7824 = vpack.c.b16 %v7821, %v7820
        %v7825 = vpack.c.b16 %v7823, %v7822
        %v7828 = vsel %vm5986, %v7758, 0
        %v7830 = vsel %vm5986, %v7759, 0
        %7832 = vmatpush.bf16.msra.mxu0 0
        %7833 = vmatpush.bf16.msra.mxu0 0
        %7834 = vmatpush.bf16.msra.mxu0 0
        %7835 = vmatpush.bf16.msra.mxu0 0
        %7836 = vmatpush.bf16.msra.mxu0 0
        %7837 = vmatpush.bf16.msra.mxu0 0
        %7838 = vmatpush.bf16.msra.mxu0 %v7825
        %7839 = vmatpush.bf16.msra.mxu0 %v7824
        %7840 = vmatmul.bf16.gmra.mxu0 %v7828
        %v7841 = vpop.f32.mrf.mxu0
        %v7842 = vadd.f32 %v7808, %v7841
        %v7843 = vpop.f32.mrf.mxu0
        %v7844 = vadd.f32 %v7810, %v7843
        %7845 = vmatmul.bf16.gmra.mxu0 %v7830
        %v7846 = vpop.f32.mrf.mxu0
        %v7847 = vadd.f32 %v7813, %v7846
        %v7848 = vpop.f32.mrf.mxu0
        %7849 = vdwg.mxu0
        %s7850 = scalar_lea.vmem %s4, 464
        %v7851 = vld [vmem:[%s7850] sm:$0xf]
        %v7852 = vld [vmem:[%s7850 + $0x4] sm:$0xf]
        %v7853 = vld [vmem:[%s7850 + $0x8] sm:$0xf]
        %v7854 = vld [vmem:[%s7850 + $0xc] sm:$0xf]
        %v7857 = vrot.slane %v7758, 1
        %v7858 = vrot.slane %v7759, 1
        %v7859 = vsel %vm2461, %v7857, %v7858
        %v7864 = vunpack.c.l.b16 %v7851
        %v7865 = vunpack.c.l.b16 %v7852
        %v7866 = vunpack.c.l.b16 %v7853
        %v7867 = vunpack.c.l.b16 %v7854
        %v7868 = vpack.c.b16 %v7865, %v7864
        %v7869 = vpack.c.b16 %v7867, %v7866
        %v7873 = vsel %vm5986, %v7859, 0
        %v7876 = vsel %vm5986, %v7858, 0
        %7878 = vmatpush.bf16.msra.mxu0 0
        %7879 = vmatpush.bf16.msra.mxu0 0
        %7880 = vmatpush.bf16.msra.mxu0 0
        %7881 = vmatpush.bf16.msra.mxu0 0
        %7882 = vmatpush.bf16.msra.mxu0 0
        %7883 = vmatpush.bf16.msra.mxu0 0
        %7884 = vmatpush.bf16.msra.mxu0 %v7869
        %7885 = vmatpush.bf16.msra.mxu0 %v7868
        %7886 = vmatmul.bf16.gmra.mxu0 %v7873
        %v7887 = vpop.f32.mrf.mxu0
        %v7888 = vadd.f32 0.0, %v7887
        %v7889 = vpop.f32.mrf.mxu0
        %v7890 = vadd.f32 0.0, %v7889
        %7891 = vmatmul.bf16.gmra.mxu0 %v7876
        %v7892 = vpop.f32.mrf.mxu0
        %v7893 = vadd.f32 0.0, %v7892
        %v7894 = vpop.f32.mrf.mxu0
        %7895 = vdwg.mxu0
        %v7896 = vadd.f32 %v7842, %v7888
        %v7897 = vadd.f32 %v7844, %v7890
        %v7898 = vadd.f32 %v7847, %v7893
        %s7899 = scalar_lea.vmem %s4, 480
        %v7900 = vld [vmem:[%s7899] sm:$0xf]
        %v7901 = vld [vmem:[%s7899 + $0x4] sm:$0xf]
        %v7902 = vld [vmem:[%s7899 + $0x8] sm:$0xf]
        %v7903 = vld [vmem:[%s7899 + $0xc] sm:$0xf]
        %v7904 = vpack.c.bf16 %v7752, %v7751
        %v7906 = vrot.slane %v7758, 3
        %v7907 = vrot.slane %v7904, 3
        %v7908 = vsel %vm5218, %v7906, %v7907
        %v7913 = vunpack.c.l.b16 %v7900
        %v7914 = vunpack.c.l.b16 %v7901
        %v7915 = vunpack.c.l.b16 %v7902
        %v7916 = vunpack.c.l.b16 %v7903
        %v7917 = vpack.c.b16 %v7914, %v7913
        %v7918 = vpack.c.b16 %v7916, %v7915
        %v7922 = vsel %vm5986, %v7908, 0
        %v7925 = vsel %vm5986, %v7907, 0
        %7927 = vmatpush.bf16.msra.mxu0 0
        %7928 = vmatpush.bf16.msra.mxu0 0
        %7929 = vmatpush.bf16.msra.mxu0 0
        %7930 = vmatpush.bf16.msra.mxu0 0
        %7931 = vmatpush.bf16.msra.mxu0 0
        %7932 = vmatpush.bf16.msra.mxu0 0
        %7933 = vmatpush.bf16.msra.mxu0 %v7918
        %7934 = vmatpush.bf16.msra.mxu0 %v7917
        %7935 = vmatmul.bf16.gmra.mxu0 %v7922
        %v7936 = vpop.f32.mrf.mxu0
        %v7937 = vadd.f32 0.0, %v7936
        %v7938 = vpop.f32.mrf.mxu0
        %v7939 = vadd.f32 0.0, %v7938
        %7940 = vmatmul.bf16.gmra.mxu0 %v7925
        %v7941 = vpop.f32.mrf.mxu0
        %v7942 = vadd.f32 0.0, %v7941
        %v7943 = vpop.f32.mrf.mxu0
        %7944 = vdwg.mxu0
        %v7945 = vadd.f32 %v7896, %v7937
        %v7946 = vadd.f32 %v7897, %v7939
        %v7947 = vadd.f32 %v7898, %v7942
        %s7948 = scalar_lea.vmem %s4, 496
        %v7949 = vld [vmem:[%s7948] sm:$0xf]
        %v7950 = vld [vmem:[%s7948 + $0x4] sm:$0xf]
        %v7951 = vld [vmem:[%s7948 + $0x8] sm:$0xf]
        %v7952 = vld [vmem:[%s7948 + $0xc] sm:$0xf]
        %v7953 = vrot.slane %v7766, 3
        %v7954 = vrot.slane %v7768, 4
        %v7955 = vor.u32 %v7953, %v7954
        %v7957 = vshrl.u32 %v7904, 16
        %v7959 = vrot.slane %v7957, 3
        %v7960 = vshll.u32 %v7904, 16
        %v7962 = vrot.slane %v7960, 4
        %v7963 = vor.u32 %v7959, %v7962
        %v7964 = vsel %vm5583, %v7955, %v7963
        %v7969 = vunpack.c.l.b16 %v7949
        %v7970 = vunpack.c.l.b16 %v7950
        %v7971 = vunpack.c.l.b16 %v7951
        %v7972 = vunpack.c.l.b16 %v7952
        %v7973 = vpack.c.b16 %v7970, %v7969
        %v7974 = vpack.c.b16 %v7972, %v7971
        %v7978 = vsel %vm5986, %v7964, 0
        %v7981 = vsel %vm5986, %v7963, 0
        %7983 = vmatpush.bf16.msra.mxu0 0
        %7984 = vmatpush.bf16.msra.mxu0 0
        %7985 = vmatpush.bf16.msra.mxu0 0
        %7986 = vmatpush.bf16.msra.mxu0 0
        %7987 = vmatpush.bf16.msra.mxu0 0
        %7988 = vmatpush.bf16.msra.mxu0 0
        %7989 = vmatpush.bf16.msra.mxu0 %v7974
        %7990 = vmatpush.bf16.msra.mxu0 %v7973
        %7991 = vmatmul.bf16.gmra.mxu0 %v7978
        %v7992 = vpop.f32.mrf.mxu0
        %v7993 = vadd.f32 0.0, %v7992
        %v7994 = vpop.f32.mrf.mxu0
        %v7995 = vadd.f32 0.0, %v7994
        %7996 = vmatmul.bf16.gmra.mxu0 %v7981
        %v7997 = vpop.f32.mrf.mxu0
        %v7998 = vadd.f32 0.0, %v7997
        %v7999 = vpop.f32.mrf.mxu0
        %8000 = vdwg.mxu0
        %v8001 = vadd.f32 %v7945, %v7993
        %v8002 = vadd.f32 %v7946, %v7995
        %v8003 = vadd.f32 %v7947, %v7998
        %s8004 = scalar_lea.vmem %s4, 512
        %v8005 = vld [vmem:[%s8004] sm:$0xf]
        %v8006 = vld [vmem:[%s8004 + $0x4] sm:$0xf]
        %v8007 = vld [vmem:[%s8004 + $0x8] sm:$0xf]
        %v8008 = vld [vmem:[%s8004 + $0xc] sm:$0xf]
        %v8009 = vpack.c.bf16 %v7751, %v7750
        %v8010 = vpack.c.bf16 %v7752, %v7752
        %v8015 = vunpack.c.l.b16 %v8005
        %v8016 = vunpack.c.l.b16 %v8006
        %v8017 = vunpack.c.l.b16 %v8007
        %v8018 = vunpack.c.l.b16 %v8008
        %v8019 = vpack.c.b16 %v8016, %v8015
        %v8020 = vpack.c.b16 %v8018, %v8017
        %v8024 = vsel %vm5986, %v8009, 0
        %v8027 = vsel %vm5986, %v8010, 0
        %8029 = vmatpush.bf16.msra.mxu0 0
        %8030 = vmatpush.bf16.msra.mxu0 0
        %8031 = vmatpush.bf16.msra.mxu0 0
        %8032 = vmatpush.bf16.msra.mxu0 0
        %8033 = vmatpush.bf16.msra.mxu0 0
        %8034 = vmatpush.bf16.msra.mxu0 0
        %8035 = vmatpush.bf16.msra.mxu0 %v8020
        %8036 = vmatpush.bf16.msra.mxu0 %v8019
        %8037 = vmatmul.bf16.gmra.mxu0 %v8024
        %v8038 = vpop.f32.mrf.mxu0
        %v8039 = vadd.f32 0.0, %v8038
        %v8040 = vpop.f32.mrf.mxu0
        %v8041 = vadd.f32 0.0, %v8040
        %8042 = vmatmul.bf16.gmra.mxu0 %v8027
        %v8043 = vpop.f32.mrf.mxu0
        %v8044 = vadd.f32 0.0, %v8043
        %v8045 = vpop.f32.mrf.mxu0
        %8046 = vdwg.mxu0
        %v8047 = vadd.f32 %v8001, %v8039
        %v8048 = vadd.f32 %v8002, %v8041
        %v8049 = vadd.f32 %v8003, %v8044
        %s8050 = scalar_lea.vmem %s4, 528
        %v8051 = vld [vmem:[%s8050] sm:$0xf]
        %v8052 = vld [vmem:[%s8050 + $0x4] sm:$0xf]
        %v8053 = vld [vmem:[%s8050 + $0x8] sm:$0xf]
        %v8054 = vld [vmem:[%s8050 + $0xc] sm:$0xf]
        %v8055 = vpack.c.bf16 %v7747, %v7752
        %v8058 = vrot.slane %v8009, 2
        %v8059 = vrot.slane %v8055, 2
        %v8060 = vsel %vm3566, %v8058, %v8059
        %v8065 = vunpack.c.l.b16 %v8051
        %v8066 = vunpack.c.l.b16 %v8052
        %v8067 = vunpack.c.l.b16 %v8053
        %v8068 = vunpack.c.l.b16 %v8054
        %v8069 = vpack.c.b16 %v8066, %v8065
        %v8070 = vpack.c.b16 %v8068, %v8067
        %v8074 = vsel %vm5986, %v8060, 0
        %v8077 = vsel %vm5986, %v8059, 0
        %8079 = vmatpush.bf16.msra.mxu0 0
        %8080 = vmatpush.bf16.msra.mxu0 0
        %8081 = vmatpush.bf16.msra.mxu0 0
        %8082 = vmatpush.bf16.msra.mxu0 0
        %8083 = vmatpush.bf16.msra.mxu0 0
        %8084 = vmatpush.bf16.msra.mxu0 0
        %8085 = vmatpush.bf16.msra.mxu0 %v8070
        %8086 = vmatpush.bf16.msra.mxu0 %v8069
        %8087 = vmatmul.bf16.gmra.mxu0 %v8074
        %v8088 = vpop.f32.mrf.mxu0
        %v8089 = vadd.f32 0.0, %v8088
        %v8090 = vpop.f32.mrf.mxu0
        %v8091 = vadd.f32 0.0, %v8090
        %8092 = vmatmul.bf16.gmra.mxu0 %v8077
        %v8093 = vpop.f32.mrf.mxu0
        %v8094 = vadd.f32 0.0, %v8093
        %v8095 = vpop.f32.mrf.mxu0
        %8096 = vdwg.mxu0
        %v8097 = vadd.f32 %v8047, %v8089
        %v8098 = vadd.f32 %v8048, %v8091
        %v8099 = vadd.f32 %v8049, %v8094
        %s8100 = scalar_lea.vmem %s4, 544
        %v8101 = vld [vmem:[%s8100] sm:$0xf]
        %v8102 = vld [vmem:[%s8100 + $0x4] sm:$0xf]
        %v8103 = vld [vmem:[%s8100 + $0x8] sm:$0xf]
        %v8104 = vld [vmem:[%s8100 + $0xc] sm:$0xf]
        %v8105 = vshrl.u32 %v8009, 16
        %v8107 = vrot.slane %v8105, 2
        %v8108 = vshll.u32 %v8009, 16
        %v8110 = vrot.slane %v8108, 3
        %v8111 = vor.u32 %v8107, %v8110
        %v8113 = vshrl.u32 %v8055, 16
        %v8115 = vrot.slane %v8113, 2
        %v8116 = vshll.u32 %v8055, 16
        %v8118 = vrot.slane %v8116, 3
        %v8119 = vor.u32 %v8115, %v8118
        %v8120 = vsel %vm5100, %v8111, %v8119
        %v8125 = vunpack.c.l.b16 %v8101
        %v8126 = vunpack.c.l.b16 %v8102
        %v8127 = vunpack.c.l.b16 %v8103
        %v8128 = vunpack.c.l.b16 %v8104
        %v8129 = vpack.c.b16 %v8126, %v8125
        %v8130 = vpack.c.b16 %v8128, %v8127
        %v8134 = vsel %vm5986, %v8120, 0
        %v8137 = vsel %vm5986, %v8119, 0
        %8139 = vmatpush.bf16.msra.mxu0 0
        %8140 = vmatpush.bf16.msra.mxu0 0
        %8141 = vmatpush.bf16.msra.mxu0 0
        %8142 = vmatpush.bf16.msra.mxu0 0
        %8143 = vmatpush.bf16.msra.mxu0 0
        %8144 = vmatpush.bf16.msra.mxu0 0
        %8145 = vmatpush.bf16.msra.mxu0 %v8130
        %8146 = vmatpush.bf16.msra.mxu0 %v8129
        %8147 = vmatmul.bf16.gmra.mxu0 %v8134
        %v8148 = vpop.f32.mrf.mxu0
        %v8149 = vadd.f32 0.0, %v8148
        %v8150 = vpop.f32.mrf.mxu0
        %v8151 = vadd.f32 0.0, %v8150
        %8152 = vmatmul.bf16.gmra.mxu0 %v8137
        %v8153 = vpop.f32.mrf.mxu0
        %v8154 = vadd.f32 0.0, %v8153
        %v8155 = vpop.f32.mrf.mxu0
        %8156 = vdwg.mxu0
        %v8157 = vadd.f32 %v8097, %v8149
        %v8158 = vadd.f32 %v8098, %v8151
        %v8159 = vadd.f32 %v8099, %v8154
        %s8160 = scalar_lea.vmem %s4, 560
        %v8161 = vld [vmem:[%s8160] sm:$0xf]
        %v8162 = vld [vmem:[%s8160 + $0x4] sm:$0xf]
        %v8163 = vld [vmem:[%s8160 + $0x8] sm:$0xf]
        %v8164 = vld [vmem:[%s8160 + $0xc] sm:$0xf]
        %v8165 = vrot.slane %v8009, 3
        %v8166 = vrot.slane %v8055, 3
        %v8167 = vsel %vm5218, %v8165, %v8166
        %v8172 = vunpack.c.l.b16 %v8161
        %v8173 = vunpack.c.l.b16 %v8162
        %v8174 = vunpack.c.l.b16 %v8163
        %v8175 = vunpack.c.l.b16 %v8164
        %v8176 = vpack.c.b16 %v8173, %v8172
        %v8177 = vpack.c.b16 %v8175, %v8174
        %v8181 = vsel %vm5986, %v8167, 0
        %v8184 = vsel %vm5986, %v8166, 0
        %8186 = vmatpush.bf16.msra.mxu0 0
        %8187 = vmatpush.bf16.msra.mxu0 0
        %8188 = vmatpush.bf16.msra.mxu0 0
        %8189 = vmatpush.bf16.msra.mxu0 0
        %8190 = vmatpush.bf16.msra.mxu0 0
        %8191 = vmatpush.bf16.msra.mxu0 0
        %8192 = vmatpush.bf16.msra.mxu0 %v8177
        %8193 = vmatpush.bf16.msra.mxu0 %v8176
        %8194 = vmatmul.bf16.gmra.mxu0 %v8181
        %v8195 = vpop.f32.mrf.mxu0
        %v8196 = vadd.f32 0.0, %v8195
        %v8197 = vpop.f32.mrf.mxu0
        %v8198 = vadd.f32 0.0, %v8197
        %8199 = vmatmul.bf16.gmra.mxu0 %v8184
        %v8200 = vpop.f32.mrf.mxu0
        %v8201 = vadd.f32 0.0, %v8200
        %v8202 = vpop.f32.mrf.mxu0
        %8203 = vdwg.mxu0
        %v8204 = vadd.f32 %v8157, %v8196
        %v8205 = vadd.f32 %v8158, %v8198
        %v8206 = vadd.f32 %v8159, %v8201
        %v8209 = vrot.slane %v8204, 2
        %v8210 = vrot.slane %v8205, 2
        %v8211 = vsel %vm6064, %v8209, %v8210
        %v8213 = vrot.slane %v8205, 4
        %v8216 = vrot.slane %v8206, 6
        %v8218 = vsel %vm1617, %v8204, %v8211
        %v8219 = vsel %vm1617, %v8213, %v8216
        %v8220 = vsel %vm5986, %v8218, 0.0
        %v8221 = vsel %vm5986, %v8219, 0.0
        %v8222 = vadd.f32 %v8220, %v8221
        %v8223 = vrot.slane %v8222, 4
        %v8224 = vadd.f32 %v8222, %v8223
        %v8225 = vrot.slane %v8224, 2
        %v8226 = vadd.f32 %v8224, %v8225
        %v8227 = vrot.slane %v8226, 1
        %v8228 = vadd.f32 %v8226, %v8227
        %v8229 = vmul.f32 %v8228, 0.0625
        %v8230 = vsub.f32 %v8218, %v8229
        %v8231 = vsub.f32 %v8219, %v8229
        %v8232 = vmul.f32 %v8230, %v8230
        %v8233 = vmul.f32 %v8231, %v8231
        %v8234 = vsel %vm5986, %v8232, 0.0
        %v8235 = vsel %vm5986, %v8233, 0.0
        %v8236 = vadd.f32 %v8234, %v8235
        %v8237 = vrot.slane %v8236, 4
        %v8238 = vadd.f32 %v8236, %v8237
        %v8239 = vrot.slane %v8238, 2
        %v8240 = vadd.f32 %v8238, %v8239
        %v8241 = vrot.slane %v8240, 1
        %v8242 = vadd.f32 %v8240, %v8241
        %v8243 = vmul.f32 %v8242, 0.0625
        %v8244 = vadd.f32 %v8243, 1e-05
        %v8245 = vrsqrt.pop %v8244
        %v8246 = vmul.f32 %v8245, %v8244
        %v8247 = vmul.f32 %v8246, %v8245
        %v8248 = vmul.f32 0.5, %v8247
        %v8249 = vsub.f32 1.5, %v8248
        %v8250 = vmul.f32 %v8245, %v8249
        %vm8251 = vweird.f32 %v8244
        %vm8252 = vweird.f32 %v8245
        %vm8253 = vmor %vm8251, %vm8252
        %v8254 = vsel %vm8253, %v8245, %v8250
        %v8255 = vmul.f32 %v8230, %v8254
        %v8256 = vmul.f32 %v8231, %v8254
        %v8257 = vadd.f32 %v7163, %v8255
        %v8258 = vadd.f32 %v7164, %v8256
        %v8260 = vrot.slane %v8257, 1
        %v8262 = vrot.slane %v8257, 7
        %v8264 = vrot.slane %v8257, 5
        %v8266 = vsel %vm579, %v8260, %v8262
        %v8267 = vsel %vm6079, %v8266, %v8264
        %v8268 = vrot.slane %v8257, 3
        %v8270 = vsel %vm579, %v8264, %v8268
        %v8271 = vsel %vm6079, %v8270, %v8260
        %v8273 = vrot.slane %v8258, 1
        %v8275 = vrot.slane %v8258, 7
        %v8277 = vrot.slane %v8258, 5
        %v8279 = vsel %vm579, %v8273, %v8275
        %v8280 = vsel %vm6079, %v8279, %v8277
        %v8281 = vrot.slane %v8258, 3
        %v8283 = vsel %vm579, %v8277, %v8281
        %v8284 = vsel %vm6079, %v8283, %v8273
        %v8286 = vrot.slane %v8267, 2
        %v8289 = vrot.slane %v8271, 4
        %v8292 = vrot.slane %v8280, 6
        %v8294 = vrot.slane %v8280, 2
        %v8296 = vsel %vm6064, %v8271, %v8286
        %v8297 = vsel %vm1617, %v8286, %v8289
        %v8298 = vsel %vm580, %v8289, %v8292
        %v8299 = vsel %vm6064, %v8284, %v8294
        %s8300 = scalar_lea.vmem %s4, 576
        %v8301 = vld [vmem:[%s8300] sm:$0xf]
        %v8302 = vld [vmem:[%s8300 + $0x4] sm:$0xf]
        %v8303 = vld [vmem:[%s8300 + $0x8] sm:$0xf]
        %v8304 = vld [vmem:[%s8300 + $0xc] sm:$0xf]
        %v8305 = vpack.c.bf16 %v8297, %v8296
        %v8306 = vpack.c.bf16 %v8298, %v8298
        %s8307 = scalar_lea.vmem %s4, 592
        %v8308 = vld [vmem:[%s8307] sm:$0xf]
        %v8309 = vld [vmem:[%s8307 + $0x4] sm:$0xf]
        %v8310 = vld [vmem:[%s8307 + $0x8] sm:$0xf]
        %v8311 = vld [vmem:[%s8307 + $0xc] sm:$0xf]
        %v8313 = vshrl.u32 %v8305, 16
        %v8315 = vshll.u32 %v8305, 16
        %v8317 = vrot.slane %v8315, 1
        %v8318 = vor.u32 %v8313, %v8317
        %v8320 = vshll.u32 %v8306, 16
        %v8322 = vrot.slane %v8320, 1
        %v8323 = vsel %vm1759, %v8318, %v8322
        %v8324 = vshrl.u32 %v8306, 16
        %v8326 = vor.u32 %v8324, %v8322
        %v8331 = vunpack.c.l.b16 %v8308
        %v8332 = vunpack.c.l.b16 %v8309
        %v8333 = vunpack.c.l.b16 %v8310
        %v8334 = vunpack.c.l.b16 %v8311
        %v8335 = vpack.c.b16 %v8332, %v8331
        %v8336 = vpack.c.b16 %v8334, %v8333
        %v8340 = vsel %vm5986, %v8323, 0
        %v8343 = vsel %vm5986, %v8326, 0
        %8345 = vmatpush.bf16.msra.mxu0 0
        %8346 = vmatpush.bf16.msra.mxu0 0
        %8347 = vmatpush.bf16.msra.mxu0 0
        %8348 = vmatpush.bf16.msra.mxu0 0
        %8349 = vmatpush.bf16.msra.mxu0 0
        %8350 = vmatpush.bf16.msra.mxu0 0
        %8351 = vmatpush.bf16.msra.mxu0 %v8336
        %8352 = vmatpush.bf16.msra.mxu0 %v8335
        %8353 = vmatmul.bf16.gmra.mxu0 %v8340
        %v8354 = vpop.f32.mrf.mxu0
        %v8355 = vadd.f32 0.0, %v8354
        %v8356 = vpop.f32.mrf.mxu0
        %v8357 = vadd.f32 0.0, %v8356
        %8358 = vmatmul.bf16.gmra.mxu0 %v8343
        %v8359 = vpop.f32.mrf.mxu0
        %v8360 = vadd.f32 0.0, %v8359
        %v8361 = vpop.f32.mrf.mxu0
        %8362 = vdwg.mxu0
        %v8367 = vunpack.c.l.b16 %v8301
        %v8368 = vunpack.c.l.b16 %v8302
        %v8369 = vunpack.c.l.b16 %v8303
        %v8370 = vunpack.c.l.b16 %v8304
        %v8371 = vpack.c.b16 %v8368, %v8367
        %v8372 = vpack.c.b16 %v8370, %v8369
        %v8375 = vsel %vm5986, %v8305, 0
        %v8377 = vsel %vm5986, %v8306, 0
        %8379 = vmatpush.bf16.msra.mxu0 0
        %8380 = vmatpush.bf16.msra.mxu0 0
        %8381 = vmatpush.bf16.msra.mxu0 0
        %8382 = vmatpush.bf16.msra.mxu0 0
        %8383 = vmatpush.bf16.msra.mxu0 0
        %8384 = vmatpush.bf16.msra.mxu0 0
        %8385 = vmatpush.bf16.msra.mxu0 %v8372
        %8386 = vmatpush.bf16.msra.mxu0 %v8371
        %8387 = vmatmul.bf16.gmra.mxu0 %v8375
        %v8388 = vpop.f32.mrf.mxu0
        %v8389 = vadd.f32 %v8355, %v8388
        %v8390 = vpop.f32.mrf.mxu0
        %v8391 = vadd.f32 %v8357, %v8390
        %8392 = vmatmul.bf16.gmra.mxu0 %v8377
        %v8393 = vpop.f32.mrf.mxu0
        %v8394 = vadd.f32 %v8360, %v8393
        %v8395 = vpop.f32.mrf.mxu0
        %8396 = vdwg.mxu0
        %s8397 = scalar_lea.vmem %s4, 608
        %v8398 = vld [vmem:[%s8397] sm:$0xf]
        %v8399 = vld [vmem:[%s8397 + $0x4] sm:$0xf]
        %v8400 = vld [vmem:[%s8397 + $0x8] sm:$0xf]
        %v8401 = vld [vmem:[%s8397 + $0xc] sm:$0xf]
        %v8404 = vrot.slane %v8305, 1
        %v8405 = vrot.slane %v8306, 1
        %v8406 = vsel %vm2461, %v8404, %v8405
        %v8411 = vunpack.c.l.b16 %v8398
        %v8412 = vunpack.c.l.b16 %v8399
        %v8413 = vunpack.c.l.b16 %v8400
        %v8414 = vunpack.c.l.b16 %v8401
        %v8415 = vpack.c.b16 %v8412, %v8411
        %v8416 = vpack.c.b16 %v8414, %v8413
        %v8420 = vsel %vm5986, %v8406, 0
        %v8423 = vsel %vm5986, %v8405, 0
        %8425 = vmatpush.bf16.msra.mxu0 0
        %8426 = vmatpush.bf16.msra.mxu0 0
        %8427 = vmatpush.bf16.msra.mxu0 0
        %8428 = vmatpush.bf16.msra.mxu0 0
        %8429 = vmatpush.bf16.msra.mxu0 0
        %8430 = vmatpush.bf16.msra.mxu0 0
        %8431 = vmatpush.bf16.msra.mxu0 %v8416
        %8432 = vmatpush.bf16.msra.mxu0 %v8415
        %8433 = vmatmul.bf16.gmra.mxu0 %v8420
        %v8434 = vpop.f32.mrf.mxu0
        %v8435 = vadd.f32 0.0, %v8434
        %v8436 = vpop.f32.mrf.mxu0
        %v8437 = vadd.f32 0.0, %v8436
        %8438 = vmatmul.bf16.gmra.mxu0 %v8423
        %v8439 = vpop.f32.mrf.mxu0
        %v8440 = vadd.f32 0.0, %v8439
        %v8441 = vpop.f32.mrf.mxu0
        %8442 = vdwg.mxu0
        %v8443 = vadd.f32 %v8389, %v8435
        %v8444 = vadd.f32 %v8391, %v8437
        %v8445 = vadd.f32 %v8394, %v8440
        %s8446 = scalar_lea.vmem %s4, 624
        %v8447 = vld [vmem:[%s8446] sm:$0xf]
        %v8448 = vld [vmem:[%s8446 + $0x4] sm:$0xf]
        %v8449 = vld [vmem:[%s8446 + $0x8] sm:$0xf]
        %v8450 = vld [vmem:[%s8446 + $0xc] sm:$0xf]
        %v8451 = vpack.c.bf16 %v8299, %v8298
        %v8453 = vrot.slane %v8305, 3
        %v8454 = vrot.slane %v8451, 3
        %v8455 = vsel %vm5218, %v8453, %v8454
        %v8460 = vunpack.c.l.b16 %v8447
        %v8461 = vunpack.c.l.b16 %v8448
        %v8462 = vunpack.c.l.b16 %v8449
        %v8463 = vunpack.c.l.b16 %v8450
        %v8464 = vpack.c.b16 %v8461, %v8460
        %v8465 = vpack.c.b16 %v8463, %v8462
        %v8469 = vsel %vm5986, %v8455, 0
        %v8472 = vsel %vm5986, %v8454, 0
        %8474 = vmatpush.bf16.msra.mxu0 0
        %8475 = vmatpush.bf16.msra.mxu0 0
        %8476 = vmatpush.bf16.msra.mxu0 0
        %8477 = vmatpush.bf16.msra.mxu0 0
        %8478 = vmatpush.bf16.msra.mxu0 0
        %8479 = vmatpush.bf16.msra.mxu0 0
        %8480 = vmatpush.bf16.msra.mxu0 %v8465
        %8481 = vmatpush.bf16.msra.mxu0 %v8464
        %8482 = vmatmul.bf16.gmra.mxu0 %v8469
        %v8483 = vpop.f32.mrf.mxu0
        %v8484 = vadd.f32 0.0, %v8483
        %v8485 = vpop.f32.mrf.mxu0
        %v8486 = vadd.f32 0.0, %v8485
        %8487 = vmatmul.bf16.gmra.mxu0 %v8472
        %v8488 = vpop.f32.mrf.mxu0
        %v8489 = vadd.f32 0.0, %v8488
        %v8490 = vpop.f32.mrf.mxu0
        %8491 = vdwg.mxu0
        %v8492 = vadd.f32 %v8443, %v8484
        %v8493 = vadd.f32 %v8444, %v8486
        %v8494 = vadd.f32 %v8445, %v8489
        %s8495 = scalar_lea.vmem %s4, 640
        %v8496 = vld [vmem:[%s8495] sm:$0xf]
        %v8497 = vld [vmem:[%s8495 + $0x4] sm:$0xf]
        %v8498 = vld [vmem:[%s8495 + $0x8] sm:$0xf]
        %v8499 = vld [vmem:[%s8495 + $0xc] sm:$0xf]
        %v8500 = vrot.slane %v8313, 3
        %v8501 = vrot.slane %v8315, 4
        %v8502 = vor.u32 %v8500, %v8501
        %v8504 = vshrl.u32 %v8451, 16
        %v8506 = vrot.slane %v8504, 3
        %v8507 = vshll.u32 %v8451, 16
        %v8509 = vrot.slane %v8507, 4
        %v8510 = vor.u32 %v8506, %v8509
        %v8511 = vsel %vm5583, %v8502, %v8510
        %v8516 = vunpack.c.l.b16 %v8496
        %v8517 = vunpack.c.l.b16 %v8497
        %v8518 = vunpack.c.l.b16 %v8498
        %v8519 = vunpack.c.l.b16 %v8499
        %v8520 = vpack.c.b16 %v8517, %v8516
        %v8521 = vpack.c.b16 %v8519, %v8518
        %v8525 = vsel %vm5986, %v8511, 0
        %v8528 = vsel %vm5986, %v8510, 0
        %8530 = vmatpush.bf16.msra.mxu0 0
        %8531 = vmatpush.bf16.msra.mxu0 0
        %8532 = vmatpush.bf16.msra.mxu0 0
        %8533 = vmatpush.bf16.msra.mxu0 0
        %8534 = vmatpush.bf16.msra.mxu0 0
        %8535 = vmatpush.bf16.msra.mxu0 0
        %8536 = vmatpush.bf16.msra.mxu0 %v8521
        %8537 = vmatpush.bf16.msra.mxu0 %v8520
        %8538 = vmatmul.bf16.gmra.mxu0 %v8525
        %v8539 = vpop.f32.mrf.mxu0
        %v8540 = vadd.f32 0.0, %v8539
        %v8541 = vpop.f32.mrf.mxu0
        %v8542 = vadd.f32 0.0, %v8541
        %8543 = vmatmul.bf16.gmra.mxu0 %v8528
        %v8544 = vpop.f32.mrf.mxu0
        %v8545 = vadd.f32 0.0, %v8544
        %v8546 = vpop.f32.mrf.mxu0
        %8547 = vdwg.mxu0
        %v8548 = vadd.f32 %v8492, %v8540
        %v8549 = vadd.f32 %v8493, %v8542
        %v8550 = vadd.f32 %v8494, %v8545
        %s8551 = scalar_lea.vmem %s4, 656
        %v8552 = vld [vmem:[%s8551] sm:$0xf]
        %v8553 = vld [vmem:[%s8551 + $0x4] sm:$0xf]
        %v8554 = vld [vmem:[%s8551 + $0x8] sm:$0xf]
        %v8555 = vld [vmem:[%s8551 + $0xc] sm:$0xf]
        %v8556 = vpack.c.bf16 %v8298, %v8297
        %v8557 = vpack.c.bf16 %v8299, %v8299
        %v8562 = vunpack.c.l.b16 %v8552
        %v8563 = vunpack.c.l.b16 %v8553
        %v8564 = vunpack.c.l.b16 %v8554
        %v8565 = vunpack.c.l.b16 %v8555
        %v8566 = vpack.c.b16 %v8563, %v8562
        %v8567 = vpack.c.b16 %v8565, %v8564
        %v8571 = vsel %vm5986, %v8556, 0
        %v8574 = vsel %vm5986, %v8557, 0
        %8576 = vmatpush.bf16.msra.mxu0 0
        %8577 = vmatpush.bf16.msra.mxu0 0
        %8578 = vmatpush.bf16.msra.mxu0 0
        %8579 = vmatpush.bf16.msra.mxu0 0
        %8580 = vmatpush.bf16.msra.mxu0 0
        %8581 = vmatpush.bf16.msra.mxu0 0
        %8582 = vmatpush.bf16.msra.mxu0 %v8567
        %8583 = vmatpush.bf16.msra.mxu0 %v8566
        %8584 = vmatmul.bf16.gmra.mxu0 %v8571
        %v8585 = vpop.f32.mrf.mxu0
        %v8586 = vadd.f32 0.0, %v8585
        %v8587 = vpop.f32.mrf.mxu0
        %v8588 = vadd.f32 0.0, %v8587
        %8589 = vmatmul.bf16.gmra.mxu0 %v8574
        %v8590 = vpop.f32.mrf.mxu0
        %v8591 = vadd.f32 0.0, %v8590
        %v8592 = vpop.f32.mrf.mxu0
        %8593 = vdwg.mxu0
        %v8594 = vadd.f32 %v8548, %v8586
        %v8595 = vadd.f32 %v8549, %v8588
        %v8596 = vadd.f32 %v8550, %v8591
        %s8597 = scalar_lea.vmem %s4, 672
        %v8598 = vld [vmem:[%s8597] sm:$0xf]
        %v8599 = vld [vmem:[%s8597 + $0x4] sm:$0xf]
        %v8600 = vld [vmem:[%s8597 + $0x8] sm:$0xf]
        %v8601 = vld [vmem:[%s8597 + $0xc] sm:$0xf]
        %v8602 = vpack.c.bf16 %v8294, %v8299
        %v8605 = vrot.slane %v8556, 2
        %v8606 = vrot.slane %v8602, 2
        %v8607 = vsel %vm3566, %v8605, %v8606
        %v8612 = vunpack.c.l.b16 %v8598
        %v8613 = vunpack.c.l.b16 %v8599
        %v8614 = vunpack.c.l.b16 %v8600
        %v8615 = vunpack.c.l.b16 %v8601
        %v8616 = vpack.c.b16 %v8613, %v8612
        %v8617 = vpack.c.b16 %v8615, %v8614
        %v8621 = vsel %vm5986, %v8607, 0
        %v8624 = vsel %vm5986, %v8606, 0
        %8626 = vmatpush.bf16.msra.mxu0 0
        %8627 = vmatpush.bf16.msra.mxu0 0
        %8628 = vmatpush.bf16.msra.mxu0 0
        %8629 = vmatpush.bf16.msra.mxu0 0
        %8630 = vmatpush.bf16.msra.mxu0 0
        %8631 = vmatpush.bf16.msra.mxu0 0
        %8632 = vmatpush.bf16.msra.mxu0 %v8617
        %8633 = vmatpush.bf16.msra.mxu0 %v8616
        %8634 = vmatmul.bf16.gmra.mxu0 %v8621
        %v8635 = vpop.f32.mrf.mxu0
        %v8636 = vadd.f32 0.0, %v8635
        %v8637 = vpop.f32.mrf.mxu0
        %v8638 = vadd.f32 0.0, %v8637
        %8639 = vmatmul.bf16.gmra.mxu0 %v8624
        %v8640 = vpop.f32.mrf.mxu0
        %v8641 = vadd.f32 0.0, %v8640
        %v8642 = vpop.f32.mrf.mxu0
        %8643 = vdwg.mxu0
        %v8644 = vadd.f32 %v8594, %v8636
        %v8645 = vadd.f32 %v8595, %v8638
        %v8646 = vadd.f32 %v8596, %v8641
        %s8647 = scalar_lea.vmem %s4, 688
        %v8648 = vld [vmem:[%s8647] sm:$0xf]
        %v8649 = vld [vmem:[%s8647 + $0x4] sm:$0xf]
        %v8650 = vld [vmem:[%s8647 + $0x8] sm:$0xf]
        %v8651 = vld [vmem:[%s8647 + $0xc] sm:$0xf]
        %v8652 = vshrl.u32 %v8556, 16
        %v8654 = vrot.slane %v8652, 2
        %v8655 = vshll.u32 %v8556, 16
        %v8657 = vrot.slane %v8655, 3
        %v8658 = vor.u32 %v8654, %v8657
        %v8660 = vshrl.u32 %v8602, 16
        %v8662 = vrot.slane %v8660, 2
        %v8663 = vshll.u32 %v8602, 16
        %v8665 = vrot.slane %v8663, 3
        %v8666 = vor.u32 %v8662, %v8665
        %v8667 = vsel %vm5100, %v8658, %v8666
        %v8672 = vunpack.c.l.b16 %v8648
        %v8673 = vunpack.c.l.b16 %v8649
        %v8674 = vunpack.c.l.b16 %v8650
        %v8675 = vunpack.c.l.b16 %v8651
        %v8676 = vpack.c.b16 %v8673, %v8672
        %v8677 = vpack.c.b16 %v8675, %v8674
        %v8681 = vsel %vm5986, %v8667, 0
        %v8684 = vsel %vm5986, %v8666, 0
        %8686 = vmatpush.bf16.msra.mxu0 0
        %8687 = vmatpush.bf16.msra.mxu0 0
        %8688 = vmatpush.bf16.msra.mxu0 0
        %8689 = vmatpush.bf16.msra.mxu0 0
        %8690 = vmatpush.bf16.msra.mxu0 0
        %8691 = vmatpush.bf16.msra.mxu0 0
        %8692 = vmatpush.bf16.msra.mxu0 %v8677
        %8693 = vmatpush.bf16.msra.mxu0 %v8676
        %8694 = vmatmul.bf16.gmra.mxu0 %v8681
        %v8695 = vpop.f32.mrf.mxu0
        %v8696 = vadd.f32 0.0, %v8695
        %v8697 = vpop.f32.mrf.mxu0
        %v8698 = vadd.f32 0.0, %v8697
        %8699 = vmatmul.bf16.gmra.mxu0 %v8684
        %v8700 = vpop.f32.mrf.mxu0
        %v8701 = vadd.f32 0.0, %v8700
        %v8702 = vpop.f32.mrf.mxu0
        %8703 = vdwg.mxu0
        %v8704 = vadd.f32 %v8644, %v8696
        %v8705 = vadd.f32 %v8645, %v8698
        %v8706 = vadd.f32 %v8646, %v8701
        %s8707 = scalar_lea.vmem %s4, 704
        %v8708 = vld [vmem:[%s8707] sm:$0xf]
        %v8709 = vld [vmem:[%s8707 + $0x4] sm:$0xf]
        %v8710 = vld [vmem:[%s8707 + $0x8] sm:$0xf]
        %v8711 = vld [vmem:[%s8707 + $0xc] sm:$0xf]
        %v8712 = vrot.slane %v8556, 3
        %v8713 = vrot.slane %v8602, 3
        %v8714 = vsel %vm5218, %v8712, %v8713
        %v8719 = vunpack.c.l.b16 %v8708
        %v8720 = vunpack.c.l.b16 %v8709
        %v8721 = vunpack.c.l.b16 %v8710
        %v8722 = vunpack.c.l.b16 %v8711
        %v8723 = vpack.c.b16 %v8720, %v8719
        %v8724 = vpack.c.b16 %v8722, %v8721
        %v8728 = vsel %vm5986, %v8714, 0
        %v8731 = vsel %vm5986, %v8713, 0
        %8733 = vmatpush.bf16.msra.mxu0 0
        %8734 = vmatpush.bf16.msra.mxu0 0
        %8735 = vmatpush.bf16.msra.mxu0 0
        %8736 = vmatpush.bf16.msra.mxu0 0
        %8737 = vmatpush.bf16.msra.mxu0 0
        %8738 = vmatpush.bf16.msra.mxu0 0
        %8739 = vmatpush.bf16.msra.mxu0 %v8724
        %8740 = vmatpush.bf16.msra.mxu0 %v8723
        %8741 = vmatmul.bf16.gmra.mxu0 %v8728
        %v8742 = vpop.f32.mrf.mxu0
        %v8743 = vadd.f32 0.0, %v8742
        %v8744 = vpop.f32.mrf.mxu0
        %v8745 = vadd.f32 0.0, %v8744
        %8746 = vmatmul.bf16.gmra.mxu0 %v8731
        %v8747 = vpop.f32.mrf.mxu0
        %v8748 = vadd.f32 0.0, %v8747
        %v8749 = vpop.f32.mrf.mxu0
        %8750 = vdwg.mxu0
        %v8751 = vadd.f32 %v8704, %v8743
        %v8752 = vadd.f32 %v8705, %v8745
        %v8753 = vadd.f32 %v8706, %v8748
        %v8756 = vrot.slane %v8751, 2
        %v8757 = vrot.slane %v8752, 2
        %v8758 = vsel %vm6064, %v8756, %v8757
        %v8760 = vrot.slane %v8752, 4
        %v8763 = vrot.slane %v8753, 6
        %v8765 = vsel %vm1617, %v8751, %v8758
        %v8766 = vsel %vm1617, %v8760, %v8763
        %v8767 = vsel %vm5986, %v8765, 0.0
        %v8768 = vsel %vm5986, %v8766, 0.0
        %v8769 = vadd.f32 %v8767, %v8768
        %v8770 = vrot.slane %v8769, 4
        %v8771 = vadd.f32 %v8769, %v8770
        %v8772 = vrot.slane %v8771, 2
        %v8773 = vadd.f32 %v8771, %v8772
        %v8774 = vrot.slane %v8773, 1
        %v8775 = vadd.f32 %v8773, %v8774
        %v8776 = vmul.f32 %v8775, 0.0625
        %v8777 = vsub.f32 %v8765, %v8776
        %v8778 = vsub.f32 %v8766, %v8776
        %v8779 = vmul.f32 %v8777, %v8777
        %v8780 = vmul.f32 %v8778, %v8778
        %v8781 = vsel %vm5986, %v8779, 0.0
        %v8782 = vsel %vm5986, %v8780, 0.0
        %v8783 = vadd.f32 %v8781, %v8782
        %v8784 = vrot.slane %v8783, 4
        %v8785 = vadd.f32 %v8783, %v8784
        %v8786 = vrot.slane %v8785, 2
        %v8787 = vadd.f32 %v8785, %v8786
        %v8788 = vrot.slane %v8787, 1
        %v8789 = vadd.f32 %v8787, %v8788
        %v8790 = vmul.f32 %v8789, 0.0625
        %v8791 = vadd.f32 %v8790, 1e-05
        %v8792 = vrsqrt.pop %v8791
        %v8793 = vmul.f32 %v8792, %v8791
        %v8794 = vmul.f32 %v8793, %v8792
        %v8795 = vmul.f32 0.5, %v8794
        %v8796 = vsub.f32 1.5, %v8795
        %v8797 = vmul.f32 %v8792, %v8796
        %vm8798 = vweird.f32 %v8791
        %vm8799 = vweird.f32 %v8792
        %vm8800 = vmor %vm8798, %vm8799
        %v8801 = vsel %vm8800, %v8792, %v8797
        %v8802 = vmul.f32 %v8777, %v8801
        %v8803 = vmul.f32 %v8778, %v8801
        %v8804 = vmax.f32 %v8802, 0.0
        %v8805 = vmax.f32 %v8803, 0.0
        %v8807 = vrot.slane %v8804, 1
        %v8809 = vrot.slane %v8804, 7
        %v8811 = vrot.slane %v8804, 5
        %v8813 = vsel %vm579, %v8807, %v8809
        %v8814 = vsel %vm6079, %v8813, %v8811
        %v8815 = vrot.slane %v8804, 3
        %v8817 = vsel %vm579, %v8811, %v8815
        %v8818 = vsel %vm6079, %v8817, %v8807
        %v8820 = vrot.slane %v8805, 1
        %v8822 = vrot.slane %v8805, 7
        %v8824 = vrot.slane %v8805, 5
        %v8826 = vsel %vm579, %v8820, %v8822
        %v8827 = vsel %vm6079, %v8826, %v8824
        %v8828 = vrot.slane %v8805, 3
        %v8830 = vsel %vm579, %v8824, %v8828
        %v8831 = vsel %vm6079, %v8830, %v8820
        %v8833 = vrot.slane %v8814, 2
        %v8836 = vrot.slane %v8818, 4
        %v8839 = vrot.slane %v8827, 6
        %v8841 = vrot.slane %v8827, 2
        %v8843 = vsel %vm6064, %v8818, %v8833
        %v8844 = vsel %vm1617, %v8833, %v8836
        %v8845 = vsel %vm580, %v8836, %v8839
        %v8846 = vsel %vm6064, %v8831, %v8841
        %s8847 = scalar_lea.vmem %s4, 720
        %v8848 = vld [vmem:[%s8847] sm:$0xf]
        %v8849 = vld [vmem:[%s8847 + $0x4] sm:$0xf]
        %v8850 = vld [vmem:[%s8847 + $0x8] sm:$0xf]
        %v8851 = vld [vmem:[%s8847 + $0xc] sm:$0xf]
        %v8852 = vpack.c.bf16 %v8844, %v8843
        %v8853 = vpack.c.bf16 %v8845, %v8845
        %s8854 = scalar_lea.vmem %s4, 736
        %v8855 = vld [vmem:[%s8854] sm:$0xf]
        %v8856 = vld [vmem:[%s8854 + $0x4] sm:$0xf]
        %v8857 = vld [vmem:[%s8854 + $0x8] sm:$0xf]
        %v8858 = vld [vmem:[%s8854 + $0xc] sm:$0xf]
        %v8860 = vshrl.u32 %v8852, 16
        %v8862 = vshll.u32 %v8852, 16
        %v8864 = vrot.slane %v8862, 1
        %v8865 = vor.u32 %v8860, %v8864
        %v8867 = vshll.u32 %v8853, 16
        %v8869 = vrot.slane %v8867, 1
        %v8870 = vsel %vm1759, %v8865, %v8869
        %v8871 = vshrl.u32 %v8853, 16
        %v8873 = vor.u32 %v8871, %v8869
        %v8878 = vunpack.c.l.b16 %v8855
        %v8879 = vunpack.c.l.b16 %v8856
        %v8880 = vunpack.c.l.b16 %v8857
        %v8881 = vunpack.c.l.b16 %v8858
        %v8882 = vpack.c.b16 %v8879, %v8878
        %v8883 = vpack.c.b16 %v8881, %v8880
        %v8887 = vsel %vm5986, %v8870, 0
        %v8890 = vsel %vm5986, %v8873, 0
        %8892 = vmatpush.bf16.msra.mxu0 0
        %8893 = vmatpush.bf16.msra.mxu0 0
        %8894 = vmatpush.bf16.msra.mxu0 0
        %8895 = vmatpush.bf16.msra.mxu0 0
        %8896 = vmatpush.bf16.msra.mxu0 0
        %8897 = vmatpush.bf16.msra.mxu0 0
        %8898 = vmatpush.bf16.msra.mxu0 %v8883
        %8899 = vmatpush.bf16.msra.mxu0 %v8882
        %8900 = vmatmul.bf16.gmra.mxu0 %v8887
        %v8901 = vpop.f32.mrf.mxu0
        %v8902 = vadd.f32 0.0, %v8901
        %v8903 = vpop.f32.mrf.mxu0
        %v8904 = vadd.f32 0.0, %v8903
        %8905 = vmatmul.bf16.gmra.mxu0 %v8890
        %v8906 = vpop.f32.mrf.mxu0
        %v8907 = vadd.f32 0.0, %v8906
        %v8908 = vpop.f32.mrf.mxu0
        %8909 = vdwg.mxu0
        %v8914 = vunpack.c.l.b16 %v8848
        %v8915 = vunpack.c.l.b16 %v8849
        %v8916 = vunpack.c.l.b16 %v8850
        %v8917 = vunpack.c.l.b16 %v8851
        %v8918 = vpack.c.b16 %v8915, %v8914
        %v8919 = vpack.c.b16 %v8917, %v8916
        %v8922 = vsel %vm5986, %v8852, 0
        %v8924 = vsel %vm5986, %v8853, 0
        %8926 = vmatpush.bf16.msra.mxu0 0
        %8927 = vmatpush.bf16.msra.mxu0 0
        %8928 = vmatpush.bf16.msra.mxu0 0
        %8929 = vmatpush.bf16.msra.mxu0 0
        %8930 = vmatpush.bf16.msra.mxu0 0
        %8931 = vmatpush.bf16.msra.mxu0 0
        %8932 = vmatpush.bf16.msra.mxu0 %v8919
        %8933 = vmatpush.bf16.msra.mxu0 %v8918
        %8934 = vmatmul.bf16.gmra.mxu0 %v8922
        %v8935 = vpop.f32.mrf.mxu0
        %v8936 = vadd.f32 %v8902, %v8935
        %v8937 = vpop.f32.mrf.mxu0
        %v8938 = vadd.f32 %v8904, %v8937
        %8939 = vmatmul.bf16.gmra.mxu0 %v8924
        %v8940 = vpop.f32.mrf.mxu0
        %v8941 = vadd.f32 %v8907, %v8940
        %v8942 = vpop.f32.mrf.mxu0
        %8943 = vdwg.mxu0
        %s8944 = scalar_lea.vmem %s4, 752
        %v8945 = vld [vmem:[%s8944] sm:$0xf]
        %v8946 = vld [vmem:[%s8944 + $0x4] sm:$0xf]
        %v8947 = vld [vmem:[%s8944 + $0x8] sm:$0xf]
        %v8948 = vld [vmem:[%s8944 + $0xc] sm:$0xf]
        %v8951 = vrot.slane %v8852, 1
        %v8952 = vrot.slane %v8853, 1
        %v8953 = vsel %vm2461, %v8951, %v8952
        %v8958 = vunpack.c.l.b16 %v8945
        %v8959 = vunpack.c.l.b16 %v8946
        %v8960 = vunpack.c.l.b16 %v8947
        %v8961 = vunpack.c.l.b16 %v8948
        %v8962 = vpack.c.b16 %v8959, %v8958
        %v8963 = vpack.c.b16 %v8961, %v8960
        %v8967 = vsel %vm5986, %v8953, 0
        %v8970 = vsel %vm5986, %v8952, 0
        %8972 = vmatpush.bf16.msra.mxu0 0
        %8973 = vmatpush.bf16.msra.mxu0 0
        %8974 = vmatpush.bf16.msra.mxu0 0
        %8975 = vmatpush.bf16.msra.mxu0 0
        %8976 = vmatpush.bf16.msra.mxu0 0
        %8977 = vmatpush.bf16.msra.mxu0 0
        %8978 = vmatpush.bf16.msra.mxu0 %v8963
        %8979 = vmatpush.bf16.msra.mxu0 %v8962
        %8980 = vmatmul.bf16.gmra.mxu0 %v8967
        %v8981 = vpop.f32.mrf.mxu0
        %v8982 = vadd.f32 0.0, %v8981
        %v8983 = vpop.f32.mrf.mxu0
        %v8984 = vadd.f32 0.0, %v8983
        %8985 = vmatmul.bf16.gmra.mxu0 %v8970
        %v8986 = vpop.f32.mrf.mxu0
        %v8987 = vadd.f32 0.0, %v8986
        %v8988 = vpop.f32.mrf.mxu0
        %8989 = vdwg.mxu0
        %v8990 = vadd.f32 %v8936, %v8982
        %v8991 = vadd.f32 %v8938, %v8984
        %v8992 = vadd.f32 %v8941, %v8987
        %s8993 = scalar_lea.vmem %s4, 768
        %v8994 = vld [vmem:[%s8993] sm:$0xf]
        %v8995 = vld [vmem:[%s8993 + $0x4] sm:$0xf]
        %v8996 = vld [vmem:[%s8993 + $0x8] sm:$0xf]
        %v8997 = vld [vmem:[%s8993 + $0xc] sm:$0xf]
        %v8998 = vpack.c.bf16 %v8846, %v8845
        %v9000 = vrot.slane %v8852, 3
        %v9001 = vrot.slane %v8998, 3
        %v9002 = vsel %vm5218, %v9000, %v9001
        %v9007 = vunpack.c.l.b16 %v8994
        %v9008 = vunpack.c.l.b16 %v8995
        %v9009 = vunpack.c.l.b16 %v8996
        %v9010 = vunpack.c.l.b16 %v8997
        %v9011 = vpack.c.b16 %v9008, %v9007
        %v9012 = vpack.c.b16 %v9010, %v9009
        %v9016 = vsel %vm5986, %v9002, 0
        %v9019 = vsel %vm5986, %v9001, 0
        %9021 = vmatpush.bf16.msra.mxu0 0
        %9022 = vmatpush.bf16.msra.mxu0 0
        %9023 = vmatpush.bf16.msra.mxu0 0
        %9024 = vmatpush.bf16.msra.mxu0 0
        %9025 = vmatpush.bf16.msra.mxu0 0
        %9026 = vmatpush.bf16.msra.mxu0 0
        %9027 = vmatpush.bf16.msra.mxu0 %v9012
        %9028 = vmatpush.bf16.msra.mxu0 %v9011
        %9029 = vmatmul.bf16.gmra.mxu0 %v9016
        %v9030 = vpop.f32.mrf.mxu0
        %v9031 = vadd.f32 0.0, %v9030
        %v9032 = vpop.f32.mrf.mxu0
        %v9033 = vadd.f32 0.0, %v9032
        %9034 = vmatmul.bf16.gmra.mxu0 %v9019
        %v9035 = vpop.f32.mrf.mxu0
        %v9036 = vadd.f32 0.0, %v9035
        %v9037 = vpop.f32.mrf.mxu0
        %9038 = vdwg.mxu0
        %v9039 = vadd.f32 %v8990, %v9031
        %v9040 = vadd.f32 %v8991, %v9033
        %v9041 = vadd.f32 %v8992, %v9036
        %s9042 = scalar_lea.vmem %s4, 784
        %v9043 = vld [vmem:[%s9042] sm:$0xf]
        %v9044 = vld [vmem:[%s9042 + $0x4] sm:$0xf]
        %v9045 = vld [vmem:[%s9042 + $0x8] sm:$0xf]
        %v9046 = vld [vmem:[%s9042 + $0xc] sm:$0xf]
        %v9047 = vrot.slane %v8860, 3
        %v9048 = vrot.slane %v8862, 4
        %v9049 = vor.u32 %v9047, %v9048
        %v9051 = vshrl.u32 %v8998, 16
        %v9053 = vrot.slane %v9051, 3
        %v9054 = vshll.u32 %v8998, 16
        %v9056 = vrot.slane %v9054, 4
        %v9057 = vor.u32 %v9053, %v9056
        %v9058 = vsel %vm5583, %v9049, %v9057
        %v9063 = vunpack.c.l.b16 %v9043
        %v9064 = vunpack.c.l.b16 %v9044
        %v9065 = vunpack.c.l.b16 %v9045
        %v9066 = vunpack.c.l.b16 %v9046
        %v9067 = vpack.c.b16 %v9064, %v9063
        %v9068 = vpack.c.b16 %v9066, %v9065
        %v9072 = vsel %vm5986, %v9058, 0
        %v9075 = vsel %vm5986, %v9057, 0
        %9077 = vmatpush.bf16.msra.mxu0 0
        %9078 = vmatpush.bf16.msra.mxu0 0
        %9079 = vmatpush.bf16.msra.mxu0 0
        %9080 = vmatpush.bf16.msra.mxu0 0
        %9081 = vmatpush.bf16.msra.mxu0 0
        %9082 = vmatpush.bf16.msra.mxu0 0
        %9083 = vmatpush.bf16.msra.mxu0 %v9068
        %9084 = vmatpush.bf16.msra.mxu0 %v9067
        %9085 = vmatmul.bf16.gmra.mxu0 %v9072
        %v9086 = vpop.f32.mrf.mxu0
        %v9087 = vadd.f32 0.0, %v9086
        %v9088 = vpop.f32.mrf.mxu0
        %v9089 = vadd.f32 0.0, %v9088
        %9090 = vmatmul.bf16.gmra.mxu0 %v9075
        %v9091 = vpop.f32.mrf.mxu0
        %v9092 = vadd.f32 0.0, %v9091
        %v9093 = vpop.f32.mrf.mxu0
        %9094 = vdwg.mxu0
        %v9095 = vadd.f32 %v9039, %v9087
        %v9096 = vadd.f32 %v9040, %v9089
        %v9097 = vadd.f32 %v9041, %v9092
        %s9098 = scalar_lea.vmem %s4, 800
        %v9099 = vld [vmem:[%s9098] sm:$0xf]
        %v9100 = vld [vmem:[%s9098 + $0x4] sm:$0xf]
        %v9101 = vld [vmem:[%s9098 + $0x8] sm:$0xf]
        %v9102 = vld [vmem:[%s9098 + $0xc] sm:$0xf]
        %v9103 = vpack.c.bf16 %v8845, %v8844
        %v9104 = vpack.c.bf16 %v8846, %v8846
        %v9109 = vunpack.c.l.b16 %v9099
        %v9110 = vunpack.c.l.b16 %v9100
        %v9111 = vunpack.c.l.b16 %v9101
        %v9112 = vunpack.c.l.b16 %v9102
        %v9113 = vpack.c.b16 %v9110, %v9109
        %v9114 = vpack.c.b16 %v9112, %v9111
        %v9118 = vsel %vm5986, %v9103, 0
        %v9121 = vsel %vm5986, %v9104, 0
        %9123 = vmatpush.bf16.msra.mxu0 0
        %9124 = vmatpush.bf16.msra.mxu0 0
        %9125 = vmatpush.bf16.msra.mxu0 0
        %9126 = vmatpush.bf16.msra.mxu0 0
        %9127 = vmatpush.bf16.msra.mxu0 0
        %9128 = vmatpush.bf16.msra.mxu0 0
        %9129 = vmatpush.bf16.msra.mxu0 %v9114
        %9130 = vmatpush.bf16.msra.mxu0 %v9113
        %9131 = vmatmul.bf16.gmra.mxu0 %v9118
        %v9132 = vpop.f32.mrf.mxu0
        %v9133 = vadd.f32 0.0, %v9132
        %v9134 = vpop.f32.mrf.mxu0
        %v9135 = vadd.f32 0.0, %v9134
        %9136 = vmatmul.bf16.gmra.mxu0 %v9121
        %v9137 = vpop.f32.mrf.mxu0
        %v9138 = vadd.f32 0.0, %v9137
        %v9139 = vpop.f32.mrf.mxu0
        %9140 = vdwg.mxu0
        %v9141 = vadd.f32 %v9095, %v9133
        %v9142 = vadd.f32 %v9096, %v9135
        %v9143 = vadd.f32 %v9097, %v9138
        %s9144 = scalar_lea.vmem %s4, 816
        %v9145 = vld [vmem:[%s9144] sm:$0xf]
        %v9146 = vld [vmem:[%s9144 + $0x4] sm:$0xf]
        %v9147 = vld [vmem:[%s9144 + $0x8] sm:$0xf]
        %v9148 = vld [vmem:[%s9144 + $0xc] sm:$0xf]
        %v9149 = vpack.c.bf16 %v8841, %v8846
        %v9152 = vrot.slane %v9103, 2
        %v9153 = vrot.slane %v9149, 2
        %v9154 = vsel %vm3566, %v9152, %v9153
        %v9159 = vunpack.c.l.b16 %v9145
        %v9160 = vunpack.c.l.b16 %v9146
        %v9161 = vunpack.c.l.b16 %v9147
        %v9162 = vunpack.c.l.b16 %v9148
        %v9163 = vpack.c.b16 %v9160, %v9159
        %v9164 = vpack.c.b16 %v9162, %v9161
        %v9168 = vsel %vm5986, %v9154, 0
        %v9171 = vsel %vm5986, %v9153, 0
        %9173 = vmatpush.bf16.msra.mxu0 0
        %9174 = vmatpush.bf16.msra.mxu0 0
        %9175 = vmatpush.bf16.msra.mxu0 0
        %9176 = vmatpush.bf16.msra.mxu0 0
        %9177 = vmatpush.bf16.msra.mxu0 0
        %9178 = vmatpush.bf16.msra.mxu0 0
        %9179 = vmatpush.bf16.msra.mxu0 %v9164
        %9180 = vmatpush.bf16.msra.mxu0 %v9163
        %9181 = vmatmul.bf16.gmra.mxu0 %v9168
        %v9182 = vpop.f32.mrf.mxu0
        %v9183 = vadd.f32 0.0, %v9182
        %v9184 = vpop.f32.mrf.mxu0
        %v9185 = vadd.f32 0.0, %v9184
        %9186 = vmatmul.bf16.gmra.mxu0 %v9171
        %v9187 = vpop.f32.mrf.mxu0
        %v9188 = vadd.f32 0.0, %v9187
        %v9189 = vpop.f32.mrf.mxu0
        %9190 = vdwg.mxu0
        %v9191 = vadd.f32 %v9141, %v9183
        %v9192 = vadd.f32 %v9142, %v9185
        %v9193 = vadd.f32 %v9143, %v9188
        %s9194 = scalar_lea.vmem %s4, 832
        %v9195 = vld [vmem:[%s9194] sm:$0xf]
        %v9196 = vld [vmem:[%s9194 + $0x4] sm:$0xf]
        %v9197 = vld [vmem:[%s9194 + $0x8] sm:$0xf]
        %v9198 = vld [vmem:[%s9194 + $0xc] sm:$0xf]
        %v9199 = vshrl.u32 %v9103, 16
        %v9201 = vrot.slane %v9199, 2
        %v9202 = vshll.u32 %v9103, 16
        %v9204 = vrot.slane %v9202, 3
        %v9205 = vor.u32 %v9201, %v9204
        %v9207 = vshrl.u32 %v9149, 16
        %v9209 = vrot.slane %v9207, 2
        %v9210 = vshll.u32 %v9149, 16
        %v9212 = vrot.slane %v9210, 3
        %v9213 = vor.u32 %v9209, %v9212
        %v9214 = vsel %vm5100, %v9205, %v9213
        %v9219 = vunpack.c.l.b16 %v9195
        %v9220 = vunpack.c.l.b16 %v9196
        %v9221 = vunpack.c.l.b16 %v9197
        %v9222 = vunpack.c.l.b16 %v9198
        %v9223 = vpack.c.b16 %v9220, %v9219
        %v9224 = vpack.c.b16 %v9222, %v9221
        %v9228 = vsel %vm5986, %v9214, 0
        %v9231 = vsel %vm5986, %v9213, 0
        %9233 = vmatpush.bf16.msra.mxu0 0
        %9234 = vmatpush.bf16.msra.mxu0 0
        %9235 = vmatpush.bf16.msra.mxu0 0
        %9236 = vmatpush.bf16.msra.mxu0 0
        %9237 = vmatpush.bf16.msra.mxu0 0
        %9238 = vmatpush.bf16.msra.mxu0 0
        %9239 = vmatpush.bf16.msra.mxu0 %v9224
        %9240 = vmatpush.bf16.msra.mxu0 %v9223
        %9241 = vmatmul.bf16.gmra.mxu0 %v9228
        %v9242 = vpop.f32.mrf.mxu0
        %v9243 = vadd.f32 0.0, %v9242
        %v9244 = vpop.f32.mrf.mxu0
        %v9245 = vadd.f32 0.0, %v9244
        %9246 = vmatmul.bf16.gmra.mxu0 %v9231
        %v9247 = vpop.f32.mrf.mxu0
        %v9248 = vadd.f32 0.0, %v9247
        %v9249 = vpop.f32.mrf.mxu0
        %9250 = vdwg.mxu0
        %v9251 = vadd.f32 %v9191, %v9243
        %v9252 = vadd.f32 %v9192, %v9245
        %v9253 = vadd.f32 %v9193, %v9248
        %s9254 = scalar_lea.vmem %s4, 848
        %v9255 = vld [vmem:[%s9254] sm:$0xf]
        %v9256 = vld [vmem:[%s9254 + $0x4] sm:$0xf]
        %v9257 = vld [vmem:[%s9254 + $0x8] sm:$0xf]
        %v9258 = vld [vmem:[%s9254 + $0xc] sm:$0xf]
        %v9259 = vrot.slane %v9103, 3
        %v9260 = vrot.slane %v9149, 3
        %v9261 = vsel %vm5218, %v9259, %v9260
        %v9266 = vunpack.c.l.b16 %v9255
        %v9267 = vunpack.c.l.b16 %v9256
        %v9268 = vunpack.c.l.b16 %v9257
        %v9269 = vunpack.c.l.b16 %v9258
        %v9270 = vpack.c.b16 %v9267, %v9266
        %v9271 = vpack.c.b16 %v9269, %v9268
        %v9275 = vsel %vm5986, %v9261, 0
        %v9278 = vsel %vm5986, %v9260, 0
        %9280 = vmatpush.bf16.msra.mxu0 0
        %9281 = vmatpush.bf16.msra.mxu0 0
        %9282 = vmatpush.bf16.msra.mxu0 0
        %9283 = vmatpush.bf16.msra.mxu0 0
        %9284 = vmatpush.bf16.msra.mxu0 0
        %9285 = vmatpush.bf16.msra.mxu0 0
        %9286 = vmatpush.bf16.msra.mxu0 %v9271
        %9287 = vmatpush.bf16.msra.mxu0 %v9270
        %9288 = vmatmul.bf16.gmra.mxu0 %v9275
        %v9289 = vpop.f32.mrf.mxu0
        %v9290 = vadd.f32 0.0, %v9289
        %v9291 = vpop.f32.mrf.mxu0
        %v9292 = vadd.f32 0.0, %v9291
        %9293 = vmatmul.bf16.gmra.mxu0 %v9278
        %v9294 = vpop.f32.mrf.mxu0
        %v9295 = vadd.f32 0.0, %v9294
        %v9296 = vpop.f32.mrf.mxu0
        %9297 = vdwg.mxu0
        %v9298 = vadd.f32 %v9251, %v9290
        %v9299 = vadd.f32 %v9252, %v9292
        %v9300 = vadd.f32 %v9253, %v9295
        %v9303 = vrot.slane %v9298, 2
        %v9304 = vrot.slane %v9299, 2
        %v9305 = vsel %vm6064, %v9303, %v9304
        %v9307 = vrot.slane %v9299, 4
        %v9310 = vrot.slane %v9300, 6
        %v9312 = vsel %vm1617, %v9298, %v9305
        %v9313 = vsel %vm1617, %v9307, %v9310
        %v9314 = vsel %vm5986, %v9312, 0.0
        %v9315 = vsel %vm5986, %v9313, 0.0
        %v9316 = vadd.f32 %v9314, %v9315
        %v9317 = vrot.slane %v9316, 4
        %v9318 = vadd.f32 %v9316, %v9317
        %v9319 = vrot.slane %v9318, 2
        %v9320 = vadd.f32 %v9318, %v9319
        %v9321 = vrot.slane %v9320, 1
        %v9322 = vadd.f32 %v9320, %v9321
        %v9323 = vmul.f32 %v9322, 0.0625
        %v9324 = vsub.f32 %v9312, %v9323
        %v9325 = vsub.f32 %v9313, %v9323
        %v9326 = vmul.f32 %v9324, %v9324
        %v9327 = vmul.f32 %v9325, %v9325
        %v9328 = vsel %vm5986, %v9326, 0.0
        %v9329 = vsel %vm5986, %v9327, 0.0
        %v9330 = vadd.f32 %v9328, %v9329
        %v9331 = vrot.slane %v9330, 4
        %v9332 = vadd.f32 %v9330, %v9331
        %v9333 = vrot.slane %v9332, 2
        %v9334 = vadd.f32 %v9332, %v9333
        %v9335 = vrot.slane %v9334, 1
        %v9336 = vadd.f32 %v9334, %v9335
        %v9337 = vmul.f32 %v9336, 0.0625
        %v9338 = vadd.f32 %v9337, 1e-05
        %v9339 = vrsqrt.pop %v9338
        %v9340 = vmul.f32 %v9339, %v9338
        %v9341 = vmul.f32 %v9340, %v9339
        %v9342 = vmul.f32 0.5, %v9341
        %v9343 = vsub.f32 1.5, %v9342
        %v9344 = vmul.f32 %v9339, %v9343
        %vm9345 = vweird.f32 %v9338
        %vm9346 = vweird.f32 %v9339
        %vm9347 = vmor %vm9345, %vm9346
        %v9348 = vsel %vm9347, %v9339, %v9344
        %v9349 = vmul.f32 %v9324, %v9348
        %v9350 = vmul.f32 %v9325, %v9348
        %v9351 = vadd.f32 %v8257, %v9349
        %v9352 = vadd.f32 %v8258, %v9350
        %9353 = vst.msk [vmem:[%s271] sm:$0xff] %vm5986, %v9351
        %9354 = vst.msk [vmem:[%s271 + $0x8] sm:$0xff] %vm5986, %v9352
        %s9355 = sand.u32 %s181, 1
        %s9356 = scalar_lea.sflag [#allocation3], %s9355
        %s9357 = sand.u32 %s181, 1
        %s9358 = smul.addr %s9357, 16
        %s9359 = scalar_lea.vmem [#allocation2], %s9358
        // Predicated region
        $region49: #{_lambda_.1} parent=47 // pred_check
          %p9360 = pneg %p191
        $region50: #{_lambda_.1} parent=47 // pred_check_branch
          %9362 = sbr.rel (%p9360) target = $region52
        $region51: #{_lambda_.1} parent=47 // pred_region
          %9364 = vsyncadd %s9356, 0
          %s9365 = smul.addr %s21, 2
          %s9366 = smul.addr %s9365, 8
          %s9367 = scalar_lea.hbm %s7, %s9366
          %s9368 = sshll.u32 %s9359, 4
          %s9369 = int_to_ptr.vmem [resolvable:$true] %s9368
          %s9370 = sshll.u32 %s9367, 4
          %s9371 = int_to_ptr.hbm [resolvable:$true] %s9370
          %9376 = dma.vmem_to_hbm [thread:$0]  %s9369, 256, %s9371, %s9356, 128, 128, 8
        $region52: #{_lambda_.1} parent=47 // pred_fallthru
          _
      $region48: #{_lambda_.1} parent=5 // pred_fallthru
        _
      %p9377 = scmp.le.s32.totalorder 2, %s16
      // Predicated region
      $region53: #{_lambda_.1} parent=5 // pred_check
        %p9378 = pneg %p9377
      $region54: #{_lambda_.1} parent=5 // pred_check_branch
        %9380 = sbr.rel (%p9378) target = $region56
      $region55: #{_lambda_.1} parent=5 // pred_region
        %s9381 = ssub.s32 %s16, 2
        // Predicated region
        $region57: #{_lambda_.1} parent=55 // pred_check
          %p9382 = pneg %p197
        $region58: #{_lambda_.1} parent=55 // pred_check_branch
          %9384 = sbr.rel (%p9382) target = $region60
        $region59: #{_lambda_.1} parent=55 // pred_region
          %s9385 = sand.u32 %s182, 1
          %s9386 = scalar_lea.sflag [#allocation3], %s9385
          %s9387 = sand.u32 %s182, 1
          %s9388 = smul.addr %s9387, 16
          %s9389 = scalar_lea.vmem [#allocation2], %s9388
          %9391 = dma.done %s9386, 256
        $region60: #{_lambda_.1} parent=55 // pred_fallthru
          _
      $region56: #{_lambda_.1} parent=5 // pred_fallthru
        _
    $region6: #{_lambda_.1} parent=1 // loop_footer
      %s20 = sadd.s32 1, %s16
    $region7: #{_lambda_.1} parent=1 // loop_footer_branch
      %15 = sbr.rel target = $region3
    $region8: #{_lambda_.1} parent=1 // loop_exit
      _
    %9392 = vsyncpa [#allocation3], 1
    %s9393 = scalar_lea.sflag [#allocation3], 1
    %9394 = vsyncpa %s9393, 1

</llo_original>
